<compile_context>
chip_gen: v7x
topology: tpu7x:2x2x1
jax: 0.10.0
libtpu: 0.0.40
codegen_flags: <defaults>
</compile_context>

<pallas_src>
import functools
import math

import jax
import jax.numpy as jnp
from jax import lax
from jax.experimental import pallas as pl
from jax.experimental.pallas import tpu as pltpu


def _resize_conv2d_kernel(x_ref, w_ref, b_ref, o_ref, *, s, K, Th, Tr, Wo):
    # x_ref: (1, H+2, W+2, Cin)  zero-padded ORIGINAL-resolution image, one batch elem
    # w_ref: (Cout, K*K*Cin)     im2col weights, tap order (kh, kw, cin)
    # b_ref: (Cout, 1)
    # o_ref: (1, Cout, Th*Wo)    lane-dense output tile (flat index = h_local*Wo + w)
    i = pl.program_id(1)
    Cin = x_ref.shape[-1]

    # Rows of the padded original image feeding this output-row tile:
    # Tr = Th // s original rows plus a 1-row halo on each side (pad = 1, K = 3).
    row0 = pl.multiple_of(i * Tr, Tr)
    xt = x_ref[0, pl.ds(row0, Tr + 2), :, :]                          # (Tr+2, W+2, Cin)

    # Fused nearest-upsample + zero-pad + halo via repeat-and-crop (exactly one copy of
    # each zero-pad / halo row & column survives the crop, matching zero-padding of the
    # upsampled image).  Columns first (fewer rows to shuffle), then rows.
    xc = jnp.repeat(xt, s, axis=1)[:, s - 1: s - 1 + Wo + 2, :]       # (Tr+2, Wo+2, Cin)
    xu = jnp.repeat(xc, s, axis=0)[s - 1: s - 1 + Th + 2]             # (Th+2, Wo+2, Cin)

    # im2col: (Th*Wo, K*K*Cin) patch matrix from K*K statically shifted views.
    taps = []
    for kh in range(K):
        for kw in range(K):
            taps.append(xu[kh:kh + Th, kw:kw + Wo, :])                # (Th, Wo, Cin)
    patches = jnp.concatenate(taps, axis=-1)                          # (Th, Wo, K*K*Cin)
    patches = patches.reshape(Th * Wo, K * K * Cin)

    # Single MXU matmul, native input dtype, f32 accumulation -> (Cout, Th*Wo).
    acc = lax.dot_general(w_ref[...], patches,
                          dimension_numbers=(((1,), (1,)), ((), ())),
                          preferred_element_type=jnp.float32)
    acc = acc + b_ref[...]                                            # (Cout, 1) broadcast
    o_ref[0] = acc.astype(o_ref.dtype)


def _tile_vmem_bytes(Th, H, W, s, Cin, Cout, K, itemsize):
    """Rough per-grid-step VMEM working set for an output-row tile of height Th."""
    Tr = Th // s
    Wo = W * s
    b = (Tr + 2) * (W + 2) * Cin * itemsize            # original-res row slice
    b += (Tr + 2) * (Wo + 2) * Cin * itemsize          # column-upsampled
    b += (Th + 2) * (Wo + 2) * Cin * itemsize          # fully upsampled + halo
    b += Th * Wo * K * K * Cin * itemsize              # im2col patch matrix
    b += Th * Wo * Cout * 4                            # f32 accumulator
    b += 2 * Th * Wo * Cout * itemsize                 # double-buffered output block
    b += 2 * (H + 2) * (W + 2) * Cin * itemsize        # double-buffered input block
    b += 2 * Cout * (K * K * Cin + 1) * itemsize       # weights + bias
    return b


def _pick_tile_rows(H, W, s, Cin, Cout, K, itemsize, budget_bytes=20 << 20):
    """Largest output-row tile Th (multiple of s, divisor of Ho) whose working set fits
    the VMEM budget and whose output block is lane-dense ((Th*Wo) % 128 == 0, or the
    full-height block)."""
    Ho, Wo = H * s, W * s
    cands = []
    for Tr in range(1, H + 1):
        if H % Tr:
            continue
        Th = Tr * s
        if (Th * Wo) % 128 != 0 and Th != Ho:
            continue
        cands.append(Th)
    cands.sort()
    best = cands[0]                      # smallest valid tile as a fallback
    for Th in cands:
        if _tile_vmem_bytes(Th, H, W, s, Cin, Cout, K, itemsize) <= budget_bytes:
            best = Th                    # keep growing while under budget
    return best


def resize_conv2d_forward(x_nchw, weight_oihw, bias, scale_factor, tile_h_out=None):
    """ResizeConv2d.forward: F.interpolate(mode='nearest', scale_factor) then
    Conv2d(kernel_size=3, stride=1, padding=1). Inputs/weights in PyTorch NCHW/OIHW."""
    N, Cin, H, W = x_nchw.shape
    Cout, Cin_w, K, K2 = weight_oihw.shape
    assert Cin_w == Cin and K == K2, "weight shape mismatch"
    if K != 3:
        # TODO(synk): module hardcodes padding=1, which is only consistent with kernel_size=3.
        raise NotImplementedError("only kernel_size=3 (padding=1) is supported")
    s = int(scale_factor)
    if s != scale_factor or s < 1:
        # TODO(synk): fractional nearest scale factors (F.interpolate allows them).
        raise NotImplementedError("only positive integer scale_factor is supported")

    Ho, Wo = H * s, W * s            # k=3, stride=1, padding=1 -> same size as upsampled
    itemsize = jnp.dtype(x_nchw.dtype).itemsize
    Th = (_pick_tile_rows(H, W, s, Cin, Cout, K, itemsize)
          if tile_h_out is None else tile_h_out)
    assert Th % s == 0 and Ho % Th == 0
    Tr = Th // s
    n_tiles = Ho // Th

    # Glue at ORIGINAL resolution only: NCHW -> NHWC (C on lanes) and a 1-px zero
    # border (the conv padding).
    x_nhwc = jnp.transpose(x_nchw, (0, 2, 3, 1))
    x_po = jnp.pad(x_nhwc, ((0, 0), (1, 1), (1, 1), (0, 0)))          # (N, H+2, W+2, Cin)

    # im2col weights: (Cout, K*K*Cin) with tap order (kh, kw, cin); bias as (Cout, 1).
    w_t = jnp.transpose(weight_oihw, (0, 2, 3, 1)).reshape(Cout, K * K * Cin)
    b_col = bias.reshape(Cout, 1)

    kernel = functools.partial(_resize_conv2d_kernel, s=s, K=K, Th=Th, Tr=Tr, Wo=Wo)
    out_flat = pl.pallas_call(
        kernel,
        out_shape=jax.ShapeDtypeStruct((N, Cout, Ho * Wo), x_nchw.dtype),
        grid=(N, n_tiles),
        in_specs=[
            # Whole (small, original-res) padded image per batch element.  Block index
            # is constant in i, so it is DMA'd once per batch and re-sliced in VMEM for
            # every row tile.
            pl.BlockSpec((1, H + 2, W + 2, Cin), lambda b, i: (b, 0, 0, 0)),
            pl.BlockSpec((Cout, K * K * Cin), lambda b, i: (0, 0)),
            pl.BlockSpec((Cout, 1), lambda b, i: (0, 0)),
        ],
        # Lane-dense output tile: last dim Th*Wo is a multiple of 128 (or full extent).
        out_specs=pl.BlockSpec((1, Cout, Th * Wo), lambda b, i: (b, 0, i)),
        compiler_params=pltpu.CompilerParams(
            dimension_semantics=("parallel", "parallel"),   # both TCs on v7x, megacore on v5e/v6e
            vmem_limit_bytes=48 * 1024 * 1024,              # under v7x 64 MiB physical; ample elsewhere
        ),
    )(x_po, w_t, b_col)

    # Free reshape: output was produced directly in NCHW (flattened HW) layout.
    return out_flat.reshape(N, Cout, Ho, Wo)


if __name__ == "__main__":
    # Small config consistent with ResizeConv2d(in, out, kernel_size=3, scale_factor=2).
    N, Cin, H, W = 2, 4, 16, 16
    Cout, K, scale_factor = 8, 3, 2

    key = jax.random.PRNGKey(0)
    kx, kw, kb = jax.random.split(key, 3)

    x = jax.random.normal(kx, (N, Cin, H, W), dtype=jnp.float32)

    # Deterministic Conv2d-style init (kaiming-uniform-like), shapes from nn.Conv2d.
    fan_in = Cin * K * K
    bound = 1.0 / math.sqrt(fan_in)
    weight = jax.random.uniform(kw, (Cout, Cin, K, K), jnp.float32, -bound, bound)
    bias = jax.random.uniform(kb, (Cout,), jnp.float32, -bound, bound)

    out = resize_conv2d_forward(x, weight, bias, scale_factor)
    out = jax.block_until_ready(out)

    # Pure-JAX reference (nearest upsample + conv) for a sanity check.
    x_up = jnp.repeat(jnp.repeat(x, scale_factor, axis=2), scale_factor, axis=3)
    ref = lax.conv_general_dilated(
        x_up, weight, window_strides=(1, 1), padding=((1, 1), (1, 1)),
        dimension_numbers=("NCHW", "OIHW", "NCHW"),
    ) + bias[None, :, None, None]

    assert out.shape == (N, Cout, H * scale_factor, W * scale_factor), out.shape
    assert float(jnp.max(jnp.abs(out - ref))) < 2e-3, "mismatch vs reference conv"

    print("KERNEL_OK")
</pallas_src>

<mosaic_0001>
module attributes {stable_mosaic.version = 11 : i64} {
  func.func @_resize_conv2d_kernel(%arg0: i32, %arg1: i32, %arg2: memref<1x18x18x4xf32, #tpu.memory_space<vmem>>, %arg3: memref<8x36xf32, #tpu.memory_space<vmem>>, %arg4: memref<8x1xf32, #tpu.memory_space<vmem>>, %arg5: memref<1x8x1024xf32, #tpu.memory_space<vmem>>) attributes {dimension_semantics = [#tpu.dimension_semantics<parallel>, #tpu.dimension_semantics<parallel>], iteration_bounds = array<i64: 2, 1>, scalar_prefetch = 0 : i64, scratch_operands = 0 : i64, tpu.core_type = #tpu.core_type<tc>, window_params = [{transform_indices = @transform_0, window_bounds = array<i64: 1, 18, 18, 4>}, {pipeline_mode = #tpu.pipeline_mode<synchronous>, transform_indices = @transform_1, window_bounds = array<i64: 8, 36>}, {pipeline_mode = #tpu.pipeline_mode<synchronous>, transform_indices = @transform_2, window_bounds = array<i64: 8, 1>}, {transform_indices = @transform_3, window_bounds = array<i64: 1, 8, 1024>}]} {
    %c16_i32 = arith.constant 16 : i32
    %0 = arith.muli %arg1, %c16_i32 : i32
    %1 = tpu.assume_multiple %0, 16 : i32
    %c0 = arith.constant 0 : index
    %2 = arith.index_cast %1 : i32 to index
    %c0_0 = arith.constant 0 : index
    %c0_1 = arith.constant 0 : index
    %3 = vector.load %arg2[%c0, %2, %c0_0, %c0_1] : memref<1x18x18x4xf32, #tpu.memory_space<vmem>>, vector<1x18x18x4xf32>
    %4 = vector.shape_cast %3 : vector<1x18x18x4xf32> to vector<18x18x4xf32>
    %5 = vector.shape_cast %4 : vector<18x18x4xf32> to vector<18x18x1x4xf32>
    %6 = vector.broadcast %5 : vector<18x18x1x4xf32> to vector<18x18x2x4xf32>
    %7 = vector.shape_cast %6 : vector<18x18x2x4xf32> to vector<18x36x4xf32>
    %8 = vector.extract_strided_slice %7 {offsets = [0, 1, 0], sizes = [18, 34, 4], strides = [1, 1, 1]} : vector<18x36x4xf32> to vector<18x34x4xf32>
    %9 = vector.shape_cast %8 : vector<18x34x4xf32> to vector<18x1x34x4xf32>
    %10 = vector.broadcast %9 : vector<18x1x34x4xf32> to vector<18x2x34x4xf32>
    %11 = vector.shape_cast %10 : vector<18x2x34x4xf32> to vector<36x34x4xf32>
    %12 = vector.extract_strided_slice %11 {offsets = [1, 0, 0], sizes = [34, 34, 4], strides = [1, 1, 1]} : vector<36x34x4xf32> to vector<34x34x4xf32>
    %13 = vector.extract_strided_slice %12 {offsets = [0, 0, 0], sizes = [32, 32, 4], strides = [1, 1, 1]} : vector<34x34x4xf32> to vector<32x32x4xf32>
    %14 = vector.extract_strided_slice %12 {offsets = [0, 1, 0], sizes = [32, 32, 4], strides = [1, 1, 1]} : vector<34x34x4xf32> to vector<32x32x4xf32>
    %15 = vector.extract_strided_slice %12 {offsets = [0, 2, 0], sizes = [32, 32, 4], strides = [1, 1, 1]} : vector<34x34x4xf32> to vector<32x32x4xf32>
    %16 = vector.extract_strided_slice %12 {offsets = [1, 0, 0], sizes = [32, 32, 4], strides = [1, 1, 1]} : vector<34x34x4xf32> to vector<32x32x4xf32>
    %17 = vector.extract_strided_slice %12 {offsets = [1, 1, 0], sizes = [32, 32, 4], strides = [1, 1, 1]} : vector<34x34x4xf32> to vector<32x32x4xf32>
    %18 = vector.extract_strided_slice %12 {offsets = [1, 2, 0], sizes = [32, 32, 4], strides = [1, 1, 1]} : vector<34x34x4xf32> to vector<32x32x4xf32>
    %19 = vector.extract_strided_slice %12 {offsets = [2, 0, 0], sizes = [32, 32, 4], strides = [1, 1, 1]} : vector<34x34x4xf32> to vector<32x32x4xf32>
    %20 = vector.extract_strided_slice %12 {offsets = [2, 1, 0], sizes = [32, 32, 4], strides = [1, 1, 1]} : vector<34x34x4xf32> to vector<32x32x4xf32>
    %21 = vector.extract_strided_slice %12 {offsets = [2, 2, 0], sizes = [32, 32, 4], strides = [1, 1, 1]} : vector<34x34x4xf32> to vector<32x32x4xf32>
    %22 = tpu.concatenate %13, %14, %15, %16, %17, %18, %19, %20, %21 in 2 : vector<32x32x4xf32>, vector<32x32x4xf32>, vector<32x32x4xf32>, vector<32x32x4xf32>, vector<32x32x4xf32>, vector<32x32x4xf32>, vector<32x32x4xf32>, vector<32x32x4xf32>, vector<32x32x4xf32> -> vector<32x32x36xf32>
    %23 = vector.shape_cast %22 : vector<32x32x36xf32> to vector<1024x36xf32>
    %c0_2 = arith.constant 0 : index
    %c0_3 = arith.constant 0 : index
    %24 = vector.load %arg3[%c0_2, %c0_3] : memref<8x36xf32, #tpu.memory_space<vmem>>, vector<8x36xf32>
    %cst = arith.constant dense<0.000000e+00> : vector<8x1024xf32>
    %25 = tpu.matmul %24, %23, %cst {dimension_numbers = #tpu.dot_dimension_numbers<[1], [1], [0], [0], [0, 0, 1, 0], [], []>} : vector<8x36xf32>, vector<1024x36xf32>, vector<8x1024xf32> -> vector<8x1024xf32>
    %c0_4 = arith.constant 0 : index
    %c0_5 = arith.constant 0 : index
    %26 = vector.load %arg4[%c0_4, %c0_5] : memref<8x1xf32, #tpu.memory_space<vmem>>, vector<8x1xf32>
    %27 = vector.broadcast %26 : vector<8x1xf32> to vector<8x1024xf32>
    %28 = arith.addf %25, %27 : vector<8x1024xf32>
    %c0_6 = arith.constant 0 : index
    %c0_7 = arith.constant 0 : index
    %c0_8 = arith.constant 0 : index
    %29 = vector.load %arg5[%c0_6, %c0_7, %c0_8] : memref<1x8x1024xf32, #tpu.memory_space<vmem>>, vector<1x8x1024xf32>
    %30 = vector.shape_cast %29 : vector<1x8x1024xf32> to vector<8x1024xf32>
    %31 = vector.shape_cast %28 : vector<8x1024xf32> to vector<1x8x1024xf32>
    tpu.vector_store %arg5[%c0_6, %c0_7, %c0_8], %31 {strides = array<i32>} : memref<1x8x1024xf32, #tpu.memory_space<vmem>>, vector<1x8x1024xf32>,
    return
  }
  func.func @transform_0(%arg0: i32, %arg1: i32) -> (i32, i32, i32, i32) {
    %c0_i32 = arith.constant 0 : i32
    %c0_i32_0 = arith.constant 0 : i32
    %c0_i32_1 = arith.constant 0 : i32
    %c0_i32_2 = arith.constant 0 : i32
    return %arg0, %c0_i32, %c0_i32_0, %c0_i32_1 : i32, i32, i32, i32
  }
  func.func @transform_1(%arg0: i32, %arg1: i32) -> (i32, i32) {
    %c0_i32 = arith.constant 0 : i32
    %c0_i32_0 = arith.constant 0 : i32
    %c0_i32_1 = arith.constant 0 : i32
    return %c0_i32, %c0_i32_0 : i32, i32
  }
  func.func @transform_2(%arg0: i32, %arg1: i32) -> (i32, i32) {
    %c0_i32 = arith.constant 0 : i32
    %c0_i32_0 = arith.constant 0 : i32
    %c0_i32_1 = arith.constant 0 : i32
    return %c0_i32, %c0_i32_0 : i32, i32
  }
  func.func @transform_3(%arg0: i32, %arg1: i32) -> (i32, i32, i32) {
    %c0_i32 = arith.constant 0 : i32
    %c0_i32_0 = arith.constant 0 : i32
    return %arg0, %c0_i32, %arg1 : i32, i32, i32
  }
}

</mosaic_0001>

<llo_original>
// kernel: tpu_custom_call.1
$region0: #{tpu_custom_call.1}
  #allocation0 [shape = 'u32[]', space=smem, size = 0x4, offset = 0x4, fixed_abs, tag = 'smem constant byte address 0x4 - core index']
  #allocation1 [shape = 'u32[144,128]{1,0:T(1,128)}', space=vmem, size = 0x12000, scoped, tag = 'internal scratch']
  %s0 = inlined_call_operand.vmem [shape: f32[2,18,18,4], index: 0, kind: input, shape index: {}]
  %s1 = inlined_call_operand.vmem [shape: f32[8,36], index: 1, kind: input, shape index: {}]
  %s2 = inlined_call_operand.vmem [shape: f32[8,1], index: 2, kind: input, shape index: {}]
  %s3 = inlined_call_operand.hbm [shape: f32[2,8,1024], index: 3, kind: output, shape index: {}]
  %s4 = sld [smem:[#allocation0]]
  $region45: #{tpu_custom_call.1} parent=0
    _
  %s6 = ssub.s32 1, %s4
  %s7 = scalar_select 0, %s6, %s4
  $region1: #{tpu_custom_call.1} parent=0
    #allocation2 [shape = 'u8[65536]{0}', space=vmem, size = 0x10000, scoped, tag = 'output window, operand 0']
    #allocation3 [shape = 's32[2]{0}', space=sflag, size = 0x8, scoped, tag = 'scoped memory for tpu_custom_call.1']
    %8 = vsyncpa [#allocation3], 0
    %s9 = scalar_lea.sflag [#allocation3], 1
    %10 = vsyncpa %s9, 0
    loop: start=0, step=1, limit=4
    $region2: #{tpu_custom_call.1} parent=1 // loop_pre_header
      _
    $region3: #{tpu_custom_call.1} parent=1 // loop_header
      %s12 = sphi 0, %s16
      %p13 = scmp.ge.s32.totalorder %s12, 4
      %s19 = sphi 0, %s31
      %s20 = sphi 0, %s27
      %s21 = sphi 0, %s19
      %s22 = sphi 0, %s20
      %s23 = sphi 0, %s21
      %s24 = sphi 0, %s22
      %s34 = sphi 0, %s36
      %s37 = sphi 0, %s34
      %s38 = sphi 0, %s37
      %s54 = sphi 0, %s38
      %s58 = sphi 0, %s58
      %s60 = sphi 0, %s58
      %s61 = sphi 0, %s60
      %s75 = sphi 0, %s61
      %s79 = sphi 0, %s79
      %s81 = sphi 0, %s79
      %s82 = sphi 0, %s81
      %s96 = sphi 0, %s82
      %s104 = sphi 0, %s106
      %s107 = sphi 0, %s104
      %s108 = sphi 0, %s107
      %s124 = sphi 0, %s108
    $region4: #{tpu_custom_call.1} parent=1 // loop_header_branch
      %15 = sbr.rel (%p13) target = $region8
    $region5: #{tpu_custom_call.1} parent=1 // loop_body
      %s17 = ssub.s32 %s12, 1
      %s18 = ssub.s32 %s12, 2
      %s25 = sadd.s32 1, %s20
      %p26 = scmp.ge.s32.totalorder %s25, 1
      %s27 = scalar_select %p26, 0, %s25
      %s28 = sadd.s32 1, %s19
      %s29 = scalar_select %p26, %s28, %s19
      %p30 = scmp.ge.s32.totalorder %s29, 2
      %s31 = scalar_select %p30, 0, %s29
      %s32 = ssub.s32 %s19, %s31
      %p33 = scmp.eq.s32.totalorder %s32, 0
      %s35 = sadd.s32 %s34, 1
      %s36 = scalar_select %p33, %s34, %s35
      %p39 = pneg %p33
      %p40 = scmp.eq.s32.totalorder %s12, 1
      %p41 = por %p39, %p40
      %p42 = scmp.ne.s32.totalorder %s34, %s37
      %p43 = scmp.eq.s32.totalorder %s12, 0
      %p44 = por %p42, %p43
      %p45 = scmp.ne.s32.totalorder %s34, %s37
      %p46 = scmp.eq.s32.totalorder %s17, 1
      %p47 = por %p45, %p46
      %p48 = scmp.ne.s32.totalorder %s37, %s38
      %p49 = scmp.eq.s32.totalorder %s17, 0
      %p50 = por %p48, %p49
      %p51 = scmp.ne.s32.totalorder %s37, %s38
      %p52 = scmp.eq.s32.totalorder %s18, 1
      %p53 = por %p51, %p52
      %p55 = scmp.ne.s32.totalorder %s38, %s54
      %p56 = scmp.eq.s32.totalorder %s18, 0
      %p57 = por %p55, %p56
      %s59 = sadd.s32 %s58, 1
      %p62 = scmp.eq.s32.totalorder %s12, 1
      %p63 = scmp.ne.s32.totalorder %s58, %s60
      %p64 = scmp.eq.s32.totalorder %s12, 0
      %p65 = por %p63, %p64
      %p66 = scmp.ne.s32.totalorder %s58, %s60
      %p67 = scmp.eq.s32.totalorder %s17, 1
      %p68 = por %p66, %p67
      %p69 = scmp.ne.s32.totalorder %s60, %s61
      %p70 = scmp.eq.s32.totalorder %s17, 0
      %p71 = por %p69, %p70
      %p72 = scmp.ne.s32.totalorder %s60, %s61
      %p73 = scmp.eq.s32.totalorder %s18, 1
      %p74 = por %p72, %p73
      %p76 = scmp.ne.s32.totalorder %s61, %s75
      %p77 = scmp.eq.s32.totalorder %s18, 0
      %p78 = por %p76, %p77
      %s80 = sadd.s32 %s79, 1
      %p83 = scmp.eq.s32.totalorder %s12, 1
      %p84 = scmp.ne.s32.totalorder %s79, %s81
      %p85 = scmp.eq.s32.totalorder %s12, 0
      %p86 = por %p84, %p85
      %p87 = scmp.ne.s32.totalorder %s79, %s81
      %p88 = scmp.eq.s32.totalorder %s17, 1
      %p89 = por %p87, %p88
      %p90 = scmp.ne.s32.totalorder %s81, %s82
      %p91 = scmp.eq.s32.totalorder %s17, 0
      %p92 = por %p90, %p91
      %p93 = scmp.ne.s32.totalorder %s81, %s82
      %p94 = scmp.eq.s32.totalorder %s18, 1
      %p95 = por %p93, %p94
      %p97 = scmp.ne.s32.totalorder %s82, %s96
      %p98 = scmp.eq.s32.totalorder %s18, 0
      %p99 = por %p97, %p98
      %s100 = ssub.s32 %s19, %s31
      %s101 = ssub.s32 %s20, %s27
      %s102 = sor.u32 %s100, %s101
      %p103 = scmp.eq.s32.totalorder %s102, 0
      %s105 = sadd.s32 %s104, 1
      %s106 = scalar_select %p103, %s104, %s105
      %p109 = pneg %p103
      %p110 = scmp.eq.s32.totalorder %s12, 1
      %p111 = por %p109, %p110
      %p112 = scmp.ne.s32.totalorder %s104, %s107
      %p113 = scmp.eq.s32.totalorder %s12, 0
      %p114 = por %p112, %p113
      %p115 = scmp.ne.s32.totalorder %s104, %s107
      %p116 = scmp.eq.s32.totalorder %s17, 1
      %p117 = por %p115, %p116
      %p118 = scmp.ne.s32.totalorder %s107, %s108
      %p119 = scmp.eq.s32.totalorder %s17, 0
      %p120 = por %p118, %p119
      %p121 = scmp.ne.s32.totalorder %s107, %s108
      %p122 = scmp.eq.s32.totalorder %s18, 1
      %p123 = por %p121, %p122
      %p125 = scmp.ne.s32.totalorder %s108, %s124
      %p126 = scmp.eq.s32.totalorder %s18, 0
      %p127 = por %p125, %p126
      %p128 = scmp.le.s32.totalorder 1, %s12
      %p129 = scmp.lt.s32.totalorder %s12, 3
      %p130 = pnand %p128, %p129
      %p131 = pneg %p130
      // Predicated region
      $region9: #{tpu_custom_call.1} parent=5 // pred_check
        _
      $region10: #{tpu_custom_call.1} parent=5 // pred_check_branch
        %133 = sbr.rel (%p130) target = $region12
      $region11: #{tpu_custom_call.1} parent=5 // pred_region
        %s134 = ssub.s32 %s12, 1
        // Predicated region
        $region13: #{tpu_custom_call.1} parent=11 // pred_check
          %p135 = pneg %p71
        $region14: #{tpu_custom_call.1} parent=11 // pred_check_branch
          %137 = sbr.rel (%p135) target = $region16
        $region15: #{tpu_custom_call.1} parent=11 // pred_region
          _
        $region16: #{tpu_custom_call.1} parent=11 // pred_fallthru
          _
        // Predicated region
        $region17: #{tpu_custom_call.1} parent=11 // pred_check
          %p138 = pneg %p92
        $region18: #{tpu_custom_call.1} parent=11 // pred_check_branch
          %140 = sbr.rel (%p138) target = $region20
        $region19: #{tpu_custom_call.1} parent=11 // pred_region
          _
        $region20: #{tpu_custom_call.1} parent=11 // pred_fallthru
          _
      $region12: #{tpu_custom_call.1} parent=5 // pred_fallthru
        _
      %p141 = scmp.lt.s32.totalorder %s12, 2
      // Predicated region
      $region21: #{tpu_custom_call.1} parent=5 // pred_check
        %p142 = pneg %p141
      $region22: #{tpu_custom_call.1} parent=5 // pred_check_branch
        %144 = sbr.rel (%p142) target = $region24
      $region23: #{tpu_custom_call.1} parent=5 // pred_region
        // Predicated region
        $region25: #{tpu_custom_call.1} parent=23 // pred_check
          %p145 = pneg %p44
        $region26: #{tpu_custom_call.1} parent=23 // pred_check_branch
          %147 = sbr.rel (%p145) target = $region28
        $region27: #{tpu_custom_call.1} parent=23 // pred_region
          %p148 = scmp.lt.s32.totalorder %s19, 1
          %s149 = scalar_select %p148, %s19, 1
          %s150 = smul.addr %s149, 54
          %s151 = smul.addr %s150, 8
          %s152 = scalar_lea.vmem %s0, %s151
        $region28: #{tpu_custom_call.1} parent=23 // pred_fallthru
          _
      $region24: #{tpu_custom_call.1} parent=5 // pred_fallthru
        _
      %p153 = scmp.le.s32.totalorder 1, %s12
      %p154 = scmp.lt.s32.totalorder %s12, 3
      %p155 = pnand %p153, %p154
      %p156 = pneg %p155
      // Predicated region
      $region29: #{tpu_custom_call.1} parent=5 // pred_check
        _
      $region30: #{tpu_custom_call.1} parent=5 // pred_check_branch
        %158 = sbr.rel (%p155) target = $region32
      $region31: #{tpu_custom_call.1} parent=5 // pred_region
        %s159 = ssub.s32 %s12, 1
        %p160 = scmp.lt.s32.totalorder %s21, 1
        %s161 = scalar_select %p160, %s21, 1
        %s162 = smul.addr %s161, 54
        %s163 = smul.addr %s162, 8
        %s164 = scalar_lea.vmem %s0, %s163
        %p165 = pneg %p50
        %p166 = pneg %p47
        %p167 = pneg %p71
        %p168 = pneg %p68
        %p169 = pneg %p92
        %p170 = pneg %p89
        %p171 = pneg %p120
        %p172 = pneg %p117
        %s173 = sand.u32 %s107, 1
        %s174 = scalar_lea.sflag [#allocation3], %s173
        %s175 = sand.u32 %s107, 1
        %s176 = smul.addr %s175, 64
        %s177 = scalar_lea.vmem [#allocation2], %s176
        %p178 = scmp.lt.s32.totalorder %s21, 1
        %s179 = scalar_select %p178, %s21, 1
        %s180 = smul.addr %s179, 54
        %s181 = smul.addr %s180, 8
        %s182 = scalar_lea.vmem %s0, %s181
        %s183 = smul.u32 8, %s22
        %s184 = smul.u32 %s22, 16
        %s185 = smul.u32 %s184, 24
        %s186 = scalar_lea.vmem %s182, %s185
        %v187 = vld [vmem:[%s186] sm:$0xff]
        %v188 = vld [vmem:[%s186 + $0x8] sm:$0xff]
        %v189 = vld [vmem:[%s186 + $0x10] sm:$0x3]
        %v190 = vld [vmem:[%s186 + $0x18] sm:$0xff]
        %v191 = vld [vmem:[%s186 + $0x20] sm:$0xff]
        %v192 = vld [vmem:[%s186 + $0x28] sm:$0x3]
        %v193 = vld [vmem:[%s186 + $0x30] sm:$0xff]
        %v194 = vld [vmem:[%s186 + $0x38] sm:$0xff]
        %v195 = vld [vmem:[%s186 + $0x40] sm:$0x3]
        %v196 = vld [vmem:[%s186 + $0x48] sm:$0xff]
        %v197 = vld [vmem:[%s186 + $0x50] sm:$0xff]
        %v198 = vld [vmem:[%s186 + $0x58] sm:$0x3]
        %v199 = vld [vmem:[%s186 + $0x60] sm:$0xff]
        %v200 = vld [vmem:[%s186 + $0x68] sm:$0xff]
        %v201 = vld [vmem:[%s186 + $0x70] sm:$0x3]
        %v202 = vld [vmem:[%s186 + $0x78] sm:$0xff]
        %v203 = vld [vmem:[%s186 + $0x80] sm:$0xff]
        %v204 = vld [vmem:[%s186 + $0x88] sm:$0x3]
        %v205 = vld [vmem:[%s186 + $0x90] sm:$0xff]
        %v206 = vld [vmem:[%s186 + $0x98] sm:$0xff]
        %v207 = vld [vmem:[%s186 + $0xa0] sm:$0x3]
        %v208 = vld [vmem:[%s186 + $0xa8] sm:$0xff]
        %v209 = vld [vmem:[%s186 + $0xb0] sm:$0xff]
        %v210 = vld [vmem:[%s186 + $0xb8] sm:$0x3]
        %v211 = vld [vmem:[%s186 + $0xc0] sm:$0xff]
        %v212 = vld [vmem:[%s186 + $0xc8] sm:$0xff]
        %v213 = vld [vmem:[%s186 + $0xd0] sm:$0x3]
        %v214 = vld [vmem:[%s186 + $0xd8] sm:$0xff]
        %v215 = vld [vmem:[%s186 + $0xe0] sm:$0xff]
        %v216 = vld [vmem:[%s186 + $0xe8] sm:$0x3]
        %v217 = vld [vmem:[%s186 + $0xf0] sm:$0xff]
        %v218 = vld [vmem:[%s186 + $0xf8] sm:$0xff]
        %v219 = vld [vmem:[%s186 + $0x100] sm:$0x3]
        %v220 = vld [vmem:[%s186 + $0x108] sm:$0xff]
        %v221 = vld [vmem:[%s186 + $0x110] sm:$0xff]
        %v222 = vld [vmem:[%s186 + $0x118] sm:$0x3]
        %v223 = vld [vmem:[%s186 + $0x120] sm:$0xff]
        %v224 = vld [vmem:[%s186 + $0x128] sm:$0xff]
        %v225 = vld [vmem:[%s186 + $0x130] sm:$0x3]
        %v226 = vld [vmem:[%s186 + $0x138] sm:$0xff]
        %v227 = vld [vmem:[%s186 + $0x140] sm:$0xff]
        %v228 = vld [vmem:[%s186 + $0x148] sm:$0x3]
        %v229 = vld [vmem:[%s186 + $0x150] sm:$0xff]
        %v230 = vld [vmem:[%s186 + $0x158] sm:$0xff]
        %v231 = vld [vmem:[%s186 + $0x160] sm:$0x3]
        %v232 = vld [vmem:[%s186 + $0x168] sm:$0xff]
        %v233 = vld [vmem:[%s186 + $0x170] sm:$0xff]
        %v234 = vld [vmem:[%s186 + $0x178] sm:$0x3]
        %v235 = vld [vmem:[%s186 + $0x180] sm:$0xff]
        %v236 = vld [vmem:[%s186 + $0x188] sm:$0xff]
        %v237 = vld [vmem:[%s186 + $0x190] sm:$0x3]
        %v238 = vld [vmem:[%s186 + $0x198] sm:$0xff]
        %v239 = vld [vmem:[%s186 + $0x1a0] sm:$0xff]
        %v240 = vld [vmem:[%s186 + $0x1a8] sm:$0x3]
        %v295 = vcombine.high %v187, %v187
        %v297 = vunpack.c.l.s4 1966171168
        %v298 = vunpack.c.0.s8 %v297
        %v299 = vlaneseq
        %v300 = vshrl.u32 %v299, 7
        %v301 = vsub.s32 %v298, %v300
        %v302 = vrot.slane %v187, %v301
        %v304 = vunpack.c.l.s4 1966171168
        %v305 = vunpack.c.0.s8 %v304
        %v306 = vlaneseq
        %v307 = vshrl.u32 %v306, 7
        %v308 = vsub.s32 %v305, %v307
        %v309 = vrot.slane %v295, %v308
        %v310 = vcombine.high %v302, %v302
        %v311 = vcombine.high %v309, %v309
        %v313 = vunpack.c.l.s4 1966171168
        %v314 = vunpack.c.0.s8 %v313
        %v315 = vlaneseq
        %v316 = vshrl.u32 %v315, 7
        %v317 = vsub.s32 %v314, %v316
        %v318 = vrot.slane %v302, %v317
        %v320 = vunpack.c.l.s4 1966171168
        %v321 = vunpack.c.0.s8 %v320
        %v322 = vlaneseq
        %v323 = vshrl.u32 %v322, 7
        %v324 = vsub.s32 %v321, %v323
        %v325 = vrot.slane %v309, %v324
        %v327 = vunpack.c.l.s4 1966171168
        %v328 = vunpack.c.0.s8 %v327
        %v329 = vlaneseq
        %v330 = vshrl.u32 %v329, 7
        %v331 = vsub.s32 %v328, %v330
        %v332 = vrot.slane %v310, %v331
        %v334 = vunpack.c.l.s4 1966171168
        %v335 = vunpack.c.0.s8 %v334
        %v336 = vlaneseq
        %v337 = vshrl.u32 %v336, 7
        %v338 = vsub.s32 %v335, %v337
        %v339 = vrot.slane %v311, %v338
        %v340 = vcombine.high %v318, %v318
        %v341 = vcombine.high %v325, %v325
        %v342 = vcombine.high %v332, %v332
        %v343 = vcombine.high %v339, %v339
        %v344 = vcombine.high %v188, %v188
        %v346 = vunpack.c.l.s4 1966171168
        %v347 = vunpack.c.0.s8 %v346
        %v348 = vlaneseq
        %v349 = vshrl.u32 %v348, 7
        %v350 = vsub.s32 %v347, %v349
        %v351 = vrot.slane %v188, %v350
        %v353 = vunpack.c.l.s4 1966171168
        %v354 = vunpack.c.0.s8 %v353
        %v355 = vlaneseq
        %v356 = vshrl.u32 %v355, 7
        %v357 = vsub.s32 %v354, %v356
        %v358 = vrot.slane %v344, %v357
        %v359 = vcombine.high %v351, %v351
        %v360 = vcombine.high %v358, %v358
        %v362 = vunpack.c.l.s4 1966171168
        %v363 = vunpack.c.0.s8 %v362
        %v364 = vlaneseq
        %v365 = vshrl.u32 %v364, 7
        %v366 = vsub.s32 %v363, %v365
        %v367 = vrot.slane %v351, %v366
        %v369 = vunpack.c.l.s4 1966171168
        %v370 = vunpack.c.0.s8 %v369
        %v371 = vlaneseq
        %v372 = vshrl.u32 %v371, 7
        %v373 = vsub.s32 %v370, %v372
        %v374 = vrot.slane %v358, %v373
        %v376 = vunpack.c.l.s4 1966171168
        %v377 = vunpack.c.0.s8 %v376
        %v378 = vlaneseq
        %v379 = vshrl.u32 %v378, 7
        %v380 = vsub.s32 %v377, %v379
        %v381 = vrot.slane %v359, %v380
        %v383 = vunpack.c.l.s4 1966171168
        %v384 = vunpack.c.0.s8 %v383
        %v385 = vlaneseq
        %v386 = vshrl.u32 %v385, 7
        %v387 = vsub.s32 %v384, %v386
        %v388 = vrot.slane %v360, %v387
        %v389 = vcombine.high %v367, %v367
        %v390 = vcombine.high %v374, %v374
        %v391 = vcombine.high %v381, %v381
        %v392 = vcombine.high %v388, %v388
        %v394 = vunpack.c.l.s4 1966171168
        %v395 = vunpack.c.0.s8 %v394
        %v396 = vlaneseq
        %v397 = vshrl.u32 %v396, 7
        %v398 = vsub.s32 %v395, %v397
        %v399 = vrot.slane %v189, %v398
        %v400 = vcombine.high %v399, %v399
        %v402 = vunpack.c.l.s4 1966171168
        %v403 = vunpack.c.0.s8 %v402
        %v404 = vlaneseq
        %v405 = vshrl.u32 %v404, 7
        %v406 = vsub.s32 %v403, %v405
        %v407 = vrot.slane %v399, %v406
        %v409 = vunpack.c.l.s4 1966171168
        %v410 = vunpack.c.0.s8 %v409
        %v411 = vlaneseq
        %v412 = vshrl.u32 %v411, 7
        %v413 = vsub.s32 %v410, %v412
        %v414 = vrot.slane %v400, %v413
        %v415 = vcombine.high %v190, %v190
        %v417 = vunpack.c.l.s4 1966171168
        %v418 = vunpack.c.0.s8 %v417
        %v419 = vlaneseq
        %v420 = vshrl.u32 %v419, 7
        %v421 = vsub.s32 %v418, %v420
        %v422 = vrot.slane %v190, %v421
        %v424 = vunpack.c.l.s4 1966171168
        %v425 = vunpack.c.0.s8 %v424
        %v426 = vlaneseq
        %v427 = vshrl.u32 %v426, 7
        %v428 = vsub.s32 %v425, %v427
        %v429 = vrot.slane %v415, %v428
        %v430 = vcombine.high %v422, %v422
        %v431 = vcombine.high %v429, %v429
        %v433 = vunpack.c.l.s4 1966171168
        %v434 = vunpack.c.0.s8 %v433
        %v435 = vlaneseq
        %v436 = vshrl.u32 %v435, 7
        %v437 = vsub.s32 %v434, %v436
        %v438 = vrot.slane %v422, %v437
        %v440 = vunpack.c.l.s4 1966171168
        %v441 = vunpack.c.0.s8 %v440
        %v442 = vlaneseq
        %v443 = vshrl.u32 %v442, 7
        %v444 = vsub.s32 %v441, %v443
        %v445 = vrot.slane %v429, %v444
        %v447 = vunpack.c.l.s4 1966171168
        %v448 = vunpack.c.0.s8 %v447
        %v449 = vlaneseq
        %v450 = vshrl.u32 %v449, 7
        %v451 = vsub.s32 %v448, %v450
        %v452 = vrot.slane %v430, %v451
        %v454 = vunpack.c.l.s4 1966171168
        %v455 = vunpack.c.0.s8 %v454
        %v456 = vlaneseq
        %v457 = vshrl.u32 %v456, 7
        %v458 = vsub.s32 %v455, %v457
        %v459 = vrot.slane %v431, %v458
        %v460 = vcombine.high %v438, %v438
        %v461 = vcombine.high %v445, %v445
        %v462 = vcombine.high %v452, %v452
        %v463 = vcombine.high %v459, %v459
        %v464 = vcombine.high %v191, %v191
        %v466 = vunpack.c.l.s4 1966171168
        %v467 = vunpack.c.0.s8 %v466
        %v468 = vlaneseq
        %v469 = vshrl.u32 %v468, 7
        %v470 = vsub.s32 %v467, %v469
        %v471 = vrot.slane %v191, %v470
        %v473 = vunpack.c.l.s4 1966171168
        %v474 = vunpack.c.0.s8 %v473
        %v475 = vlaneseq
        %v476 = vshrl.u32 %v475, 7
        %v477 = vsub.s32 %v474, %v476
        %v478 = vrot.slane %v464, %v477
        %v479 = vcombine.high %v471, %v471
        %v480 = vcombine.high %v478, %v478
        %v482 = vunpack.c.l.s4 1966171168
        %v483 = vunpack.c.0.s8 %v482
        %v484 = vlaneseq
        %v485 = vshrl.u32 %v484, 7
        %v486 = vsub.s32 %v483, %v485
        %v487 = vrot.slane %v471, %v486
        %v489 = vunpack.c.l.s4 1966171168
        %v490 = vunpack.c.0.s8 %v489
        %v491 = vlaneseq
        %v492 = vshrl.u32 %v491, 7
        %v493 = vsub.s32 %v490, %v492
        %v494 = vrot.slane %v478, %v493
        %v496 = vunpack.c.l.s4 1966171168
        %v497 = vunpack.c.0.s8 %v496
        %v498 = vlaneseq
        %v499 = vshrl.u32 %v498, 7
        %v500 = vsub.s32 %v497, %v499
        %v501 = vrot.slane %v479, %v500
        %v503 = vunpack.c.l.s4 1966171168
        %v504 = vunpack.c.0.s8 %v503
        %v505 = vlaneseq
        %v506 = vshrl.u32 %v505, 7
        %v507 = vsub.s32 %v504, %v506
        %v508 = vrot.slane %v480, %v507
        %v509 = vcombine.high %v487, %v487
        %v510 = vcombine.high %v494, %v494
        %v511 = vcombine.high %v501, %v501
        %v512 = vcombine.high %v508, %v508
        %v514 = vunpack.c.l.s4 1966171168
        %v515 = vunpack.c.0.s8 %v514
        %v516 = vlaneseq
        %v517 = vshrl.u32 %v516, 7
        %v518 = vsub.s32 %v515, %v517
        %v519 = vrot.slane %v192, %v518
        %v520 = vcombine.high %v519, %v519
        %v522 = vunpack.c.l.s4 1966171168
        %v523 = vunpack.c.0.s8 %v522
        %v524 = vlaneseq
        %v525 = vshrl.u32 %v524, 7
        %v526 = vsub.s32 %v523, %v525
        %v527 = vrot.slane %v519, %v526
        %v529 = vunpack.c.l.s4 1966171168
        %v530 = vunpack.c.0.s8 %v529
        %v531 = vlaneseq
        %v532 = vshrl.u32 %v531, 7
        %v533 = vsub.s32 %v530, %v532
        %v534 = vrot.slane %v520, %v533
        %v535 = vcombine.high %v193, %v193
        %v537 = vunpack.c.l.s4 1966171168
        %v538 = vunpack.c.0.s8 %v537
        %v539 = vlaneseq
        %v540 = vshrl.u32 %v539, 7
        %v541 = vsub.s32 %v538, %v540
        %v542 = vrot.slane %v193, %v541
        %v544 = vunpack.c.l.s4 1966171168
        %v545 = vunpack.c.0.s8 %v544
        %v546 = vlaneseq
        %v547 = vshrl.u32 %v546, 7
        %v548 = vsub.s32 %v545, %v547
        %v549 = vrot.slane %v535, %v548
        %v550 = vcombine.high %v542, %v542
        %v551 = vcombine.high %v549, %v549
        %v553 = vunpack.c.l.s4 1966171168
        %v554 = vunpack.c.0.s8 %v553
        %v555 = vlaneseq
        %v556 = vshrl.u32 %v555, 7
        %v557 = vsub.s32 %v554, %v556
        %v558 = vrot.slane %v542, %v557
        %v560 = vunpack.c.l.s4 1966171168
        %v561 = vunpack.c.0.s8 %v560
        %v562 = vlaneseq
        %v563 = vshrl.u32 %v562, 7
        %v564 = vsub.s32 %v561, %v563
        %v565 = vrot.slane %v549, %v564
        %v567 = vunpack.c.l.s4 1966171168
        %v568 = vunpack.c.0.s8 %v567
        %v569 = vlaneseq
        %v570 = vshrl.u32 %v569, 7
        %v571 = vsub.s32 %v568, %v570
        %v572 = vrot.slane %v550, %v571
        %v574 = vunpack.c.l.s4 1966171168
        %v575 = vunpack.c.0.s8 %v574
        %v576 = vlaneseq
        %v577 = vshrl.u32 %v576, 7
        %v578 = vsub.s32 %v575, %v577
        %v579 = vrot.slane %v551, %v578
        %v580 = vcombine.high %v558, %v558
        %v581 = vcombine.high %v565, %v565
        %v582 = vcombine.high %v572, %v572
        %v583 = vcombine.high %v579, %v579
        %v584 = vcombine.high %v194, %v194
        %v586 = vunpack.c.l.s4 1966171168
        %v587 = vunpack.c.0.s8 %v586
        %v588 = vlaneseq
        %v589 = vshrl.u32 %v588, 7
        %v590 = vsub.s32 %v587, %v589
        %v591 = vrot.slane %v194, %v590
        %v593 = vunpack.c.l.s4 1966171168
        %v594 = vunpack.c.0.s8 %v593
        %v595 = vlaneseq
        %v596 = vshrl.u32 %v595, 7
        %v597 = vsub.s32 %v594, %v596
        %v598 = vrot.slane %v584, %v597
        %v599 = vcombine.high %v591, %v591
        %v600 = vcombine.high %v598, %v598
        %v602 = vunpack.c.l.s4 1966171168
        %v603 = vunpack.c.0.s8 %v602
        %v604 = vlaneseq
        %v605 = vshrl.u32 %v604, 7
        %v606 = vsub.s32 %v603, %v605
        %v607 = vrot.slane %v591, %v606
        %v609 = vunpack.c.l.s4 1966171168
        %v610 = vunpack.c.0.s8 %v609
        %v611 = vlaneseq
        %v612 = vshrl.u32 %v611, 7
        %v613 = vsub.s32 %v610, %v612
        %v614 = vrot.slane %v598, %v613
        %v616 = vunpack.c.l.s4 1966171168
        %v617 = vunpack.c.0.s8 %v616
        %v618 = vlaneseq
        %v619 = vshrl.u32 %v618, 7
        %v620 = vsub.s32 %v617, %v619
        %v621 = vrot.slane %v599, %v620
        %v623 = vunpack.c.l.s4 1966171168
        %v624 = vunpack.c.0.s8 %v623
        %v625 = vlaneseq
        %v626 = vshrl.u32 %v625, 7
        %v627 = vsub.s32 %v624, %v626
        %v628 = vrot.slane %v600, %v627
        %v629 = vcombine.high %v607, %v607
        %v630 = vcombine.high %v614, %v614
        %v631 = vcombine.high %v621, %v621
        %v632 = vcombine.high %v628, %v628
        %v634 = vunpack.c.l.s4 1966171168
        %v635 = vunpack.c.0.s8 %v634
        %v636 = vlaneseq
        %v637 = vshrl.u32 %v636, 7
        %v638 = vsub.s32 %v635, %v637
        %v639 = vrot.slane %v195, %v638
        %v640 = vcombine.high %v639, %v639
        %v642 = vunpack.c.l.s4 1966171168
        %v643 = vunpack.c.0.s8 %v642
        %v644 = vlaneseq
        %v645 = vshrl.u32 %v644, 7
        %v646 = vsub.s32 %v643, %v645
        %v647 = vrot.slane %v639, %v646
        %v649 = vunpack.c.l.s4 1966171168
        %v650 = vunpack.c.0.s8 %v649
        %v651 = vlaneseq
        %v652 = vshrl.u32 %v651, 7
        %v653 = vsub.s32 %v650, %v652
        %v654 = vrot.slane %v640, %v653
        %v655 = vcombine.high %v196, %v196
        %v657 = vunpack.c.l.s4 1966171168
        %v658 = vunpack.c.0.s8 %v657
        %v659 = vlaneseq
        %v660 = vshrl.u32 %v659, 7
        %v661 = vsub.s32 %v658, %v660
        %v662 = vrot.slane %v196, %v661
        %v664 = vunpack.c.l.s4 1966171168
        %v665 = vunpack.c.0.s8 %v664
        %v666 = vlaneseq
        %v667 = vshrl.u32 %v666, 7
        %v668 = vsub.s32 %v665, %v667
        %v669 = vrot.slane %v655, %v668
        %v670 = vcombine.high %v662, %v662
        %v671 = vcombine.high %v669, %v669
        %v673 = vunpack.c.l.s4 1966171168
        %v674 = vunpack.c.0.s8 %v673
        %v675 = vlaneseq
        %v676 = vshrl.u32 %v675, 7
        %v677 = vsub.s32 %v674, %v676
        %v678 = vrot.slane %v662, %v677
        %v680 = vunpack.c.l.s4 1966171168
        %v681 = vunpack.c.0.s8 %v680
        %v682 = vlaneseq
        %v683 = vshrl.u32 %v682, 7
        %v684 = vsub.s32 %v681, %v683
        %v685 = vrot.slane %v669, %v684
        %v687 = vunpack.c.l.s4 1966171168
        %v688 = vunpack.c.0.s8 %v687
        %v689 = vlaneseq
        %v690 = vshrl.u32 %v689, 7
        %v691 = vsub.s32 %v688, %v690
        %v692 = vrot.slane %v670, %v691
        %v694 = vunpack.c.l.s4 1966171168
        %v695 = vunpack.c.0.s8 %v694
        %v696 = vlaneseq
        %v697 = vshrl.u32 %v696, 7
        %v698 = vsub.s32 %v695, %v697
        %v699 = vrot.slane %v671, %v698
        %v700 = vcombine.high %v678, %v678
        %v701 = vcombine.high %v685, %v685
        %v702 = vcombine.high %v692, %v692
        %v703 = vcombine.high %v699, %v699
        %v704 = vcombine.high %v197, %v197
        %v706 = vunpack.c.l.s4 1966171168
        %v707 = vunpack.c.0.s8 %v706
        %v708 = vlaneseq
        %v709 = vshrl.u32 %v708, 7
        %v710 = vsub.s32 %v707, %v709
        %v711 = vrot.slane %v197, %v710
        %v713 = vunpack.c.l.s4 1966171168
        %v714 = vunpack.c.0.s8 %v713
        %v715 = vlaneseq
        %v716 = vshrl.u32 %v715, 7
        %v717 = vsub.s32 %v714, %v716
        %v718 = vrot.slane %v704, %v717
        %v719 = vcombine.high %v711, %v711
        %v720 = vcombine.high %v718, %v718
        %v722 = vunpack.c.l.s4 1966171168
        %v723 = vunpack.c.0.s8 %v722
        %v724 = vlaneseq
        %v725 = vshrl.u32 %v724, 7
        %v726 = vsub.s32 %v723, %v725
        %v727 = vrot.slane %v711, %v726
        %v729 = vunpack.c.l.s4 1966171168
        %v730 = vunpack.c.0.s8 %v729
        %v731 = vlaneseq
        %v732 = vshrl.u32 %v731, 7
        %v733 = vsub.s32 %v730, %v732
        %v734 = vrot.slane %v718, %v733
        %v736 = vunpack.c.l.s4 1966171168
        %v737 = vunpack.c.0.s8 %v736
        %v738 = vlaneseq
        %v739 = vshrl.u32 %v738, 7
        %v740 = vsub.s32 %v737, %v739
        %v741 = vrot.slane %v719, %v740
        %v743 = vunpack.c.l.s4 1966171168
        %v744 = vunpack.c.0.s8 %v743
        %v745 = vlaneseq
        %v746 = vshrl.u32 %v745, 7
        %v747 = vsub.s32 %v744, %v746
        %v748 = vrot.slane %v720, %v747
        %v749 = vcombine.high %v727, %v727
        %v750 = vcombine.high %v734, %v734
        %v751 = vcombine.high %v741, %v741
        %v752 = vcombine.high %v748, %v748
        %v754 = vunpack.c.l.s4 1966171168
        %v755 = vunpack.c.0.s8 %v754
        %v756 = vlaneseq
        %v757 = vshrl.u32 %v756, 7
        %v758 = vsub.s32 %v755, %v757
        %v759 = vrot.slane %v198, %v758
        %v760 = vcombine.high %v759, %v759
        %v762 = vunpack.c.l.s4 1966171168
        %v763 = vunpack.c.0.s8 %v762
        %v764 = vlaneseq
        %v765 = vshrl.u32 %v764, 7
        %v766 = vsub.s32 %v763, %v765
        %v767 = vrot.slane %v759, %v766
        %v769 = vunpack.c.l.s4 1966171168
        %v770 = vunpack.c.0.s8 %v769
        %v771 = vlaneseq
        %v772 = vshrl.u32 %v771, 7
        %v773 = vsub.s32 %v770, %v772
        %v774 = vrot.slane %v760, %v773
        %v775 = vcombine.high %v199, %v199
        %v777 = vunpack.c.l.s4 1966171168
        %v778 = vunpack.c.0.s8 %v777
        %v779 = vlaneseq
        %v780 = vshrl.u32 %v779, 7
        %v781 = vsub.s32 %v778, %v780
        %v782 = vrot.slane %v199, %v781
        %v784 = vunpack.c.l.s4 1966171168
        %v785 = vunpack.c.0.s8 %v784
        %v786 = vlaneseq
        %v787 = vshrl.u32 %v786, 7
        %v788 = vsub.s32 %v785, %v787
        %v789 = vrot.slane %v775, %v788
        %v790 = vcombine.high %v782, %v782
        %v791 = vcombine.high %v789, %v789
        %v793 = vunpack.c.l.s4 1966171168
        %v794 = vunpack.c.0.s8 %v793
        %v795 = vlaneseq
        %v796 = vshrl.u32 %v795, 7
        %v797 = vsub.s32 %v794, %v796
        %v798 = vrot.slane %v782, %v797
        %v800 = vunpack.c.l.s4 1966171168
        %v801 = vunpack.c.0.s8 %v800
        %v802 = vlaneseq
        %v803 = vshrl.u32 %v802, 7
        %v804 = vsub.s32 %v801, %v803
        %v805 = vrot.slane %v789, %v804
        %v807 = vunpack.c.l.s4 1966171168
        %v808 = vunpack.c.0.s8 %v807
        %v809 = vlaneseq
        %v810 = vshrl.u32 %v809, 7
        %v811 = vsub.s32 %v808, %v810
        %v812 = vrot.slane %v790, %v811
        %v814 = vunpack.c.l.s4 1966171168
        %v815 = vunpack.c.0.s8 %v814
        %v816 = vlaneseq
        %v817 = vshrl.u32 %v816, 7
        %v818 = vsub.s32 %v815, %v817
        %v819 = vrot.slane %v791, %v818
        %v820 = vcombine.high %v798, %v798
        %v821 = vcombine.high %v805, %v805
        %v822 = vcombine.high %v812, %v812
        %v823 = vcombine.high %v819, %v819
        %v824 = vcombine.high %v200, %v200
        %v826 = vunpack.c.l.s4 1966171168
        %v827 = vunpack.c.0.s8 %v826
        %v828 = vlaneseq
        %v829 = vshrl.u32 %v828, 7
        %v830 = vsub.s32 %v827, %v829
        %v831 = vrot.slane %v200, %v830
        %v833 = vunpack.c.l.s4 1966171168
        %v834 = vunpack.c.0.s8 %v833
        %v835 = vlaneseq
        %v836 = vshrl.u32 %v835, 7
        %v837 = vsub.s32 %v834, %v836
        %v838 = vrot.slane %v824, %v837
        %v839 = vcombine.high %v831, %v831
        %v840 = vcombine.high %v838, %v838
        %v842 = vunpack.c.l.s4 1966171168
        %v843 = vunpack.c.0.s8 %v842
        %v844 = vlaneseq
        %v845 = vshrl.u32 %v844, 7
        %v846 = vsub.s32 %v843, %v845
        %v847 = vrot.slane %v831, %v846
        %v849 = vunpack.c.l.s4 1966171168
        %v850 = vunpack.c.0.s8 %v849
        %v851 = vlaneseq
        %v852 = vshrl.u32 %v851, 7
        %v853 = vsub.s32 %v850, %v852
        %v854 = vrot.slane %v838, %v853
        %v856 = vunpack.c.l.s4 1966171168
        %v857 = vunpack.c.0.s8 %v856
        %v858 = vlaneseq
        %v859 = vshrl.u32 %v858, 7
        %v860 = vsub.s32 %v857, %v859
        %v861 = vrot.slane %v839, %v860
        %v863 = vunpack.c.l.s4 1966171168
        %v864 = vunpack.c.0.s8 %v863
        %v865 = vlaneseq
        %v866 = vshrl.u32 %v865, 7
        %v867 = vsub.s32 %v864, %v866
        %v868 = vrot.slane %v840, %v867
        %v869 = vcombine.high %v847, %v847
        %v870 = vcombine.high %v854, %v854
        %v871 = vcombine.high %v861, %v861
        %v872 = vcombine.high %v868, %v868
        %v874 = vunpack.c.l.s4 1966171168
        %v875 = vunpack.c.0.s8 %v874
        %v876 = vlaneseq
        %v877 = vshrl.u32 %v876, 7
        %v878 = vsub.s32 %v875, %v877
        %v879 = vrot.slane %v201, %v878
        %v880 = vcombine.high %v879, %v879
        %v882 = vunpack.c.l.s4 1966171168
        %v883 = vunpack.c.0.s8 %v882
        %v884 = vlaneseq
        %v885 = vshrl.u32 %v884, 7
        %v886 = vsub.s32 %v883, %v885
        %v887 = vrot.slane %v879, %v886
        %v889 = vunpack.c.l.s4 1966171168
        %v890 = vunpack.c.0.s8 %v889
        %v891 = vlaneseq
        %v892 = vshrl.u32 %v891, 7
        %v893 = vsub.s32 %v890, %v892
        %v894 = vrot.slane %v880, %v893
        %v895 = vcombine.high %v202, %v202
        %v897 = vunpack.c.l.s4 1966171168
        %v898 = vunpack.c.0.s8 %v897
        %v899 = vlaneseq
        %v900 = vshrl.u32 %v899, 7
        %v901 = vsub.s32 %v898, %v900
        %v902 = vrot.slane %v202, %v901
        %v904 = vunpack.c.l.s4 1966171168
        %v905 = vunpack.c.0.s8 %v904
        %v906 = vlaneseq
        %v907 = vshrl.u32 %v906, 7
        %v908 = vsub.s32 %v905, %v907
        %v909 = vrot.slane %v895, %v908
        %v910 = vcombine.high %v902, %v902
        %v911 = vcombine.high %v909, %v909
        %v913 = vunpack.c.l.s4 1966171168
        %v914 = vunpack.c.0.s8 %v913
        %v915 = vlaneseq
        %v916 = vshrl.u32 %v915, 7
        %v917 = vsub.s32 %v914, %v916
        %v918 = vrot.slane %v902, %v917
        %v920 = vunpack.c.l.s4 1966171168
        %v921 = vunpack.c.0.s8 %v920
        %v922 = vlaneseq
        %v923 = vshrl.u32 %v922, 7
        %v924 = vsub.s32 %v921, %v923
        %v925 = vrot.slane %v909, %v924
        %v927 = vunpack.c.l.s4 1966171168
        %v928 = vunpack.c.0.s8 %v927
        %v929 = vlaneseq
        %v930 = vshrl.u32 %v929, 7
        %v931 = vsub.s32 %v928, %v930
        %v932 = vrot.slane %v910, %v931
        %v934 = vunpack.c.l.s4 1966171168
        %v935 = vunpack.c.0.s8 %v934
        %v936 = vlaneseq
        %v937 = vshrl.u32 %v936, 7
        %v938 = vsub.s32 %v935, %v937
        %v939 = vrot.slane %v911, %v938
        %v940 = vcombine.high %v918, %v918
        %v941 = vcombine.high %v925, %v925
        %v942 = vcombine.high %v932, %v932
        %v943 = vcombine.high %v939, %v939
        %v944 = vcombine.high %v203, %v203
        %v946 = vunpack.c.l.s4 1966171168
        %v947 = vunpack.c.0.s8 %v946
        %v948 = vlaneseq
        %v949 = vshrl.u32 %v948, 7
        %v950 = vsub.s32 %v947, %v949
        %v951 = vrot.slane %v203, %v950
        %v953 = vunpack.c.l.s4 1966171168
        %v954 = vunpack.c.0.s8 %v953
        %v955 = vlaneseq
        %v956 = vshrl.u32 %v955, 7
        %v957 = vsub.s32 %v954, %v956
        %v958 = vrot.slane %v944, %v957
        %v959 = vcombine.high %v951, %v951
        %v960 = vcombine.high %v958, %v958
        %v962 = vunpack.c.l.s4 1966171168
        %v963 = vunpack.c.0.s8 %v962
        %v964 = vlaneseq
        %v965 = vshrl.u32 %v964, 7
        %v966 = vsub.s32 %v963, %v965
        %v967 = vrot.slane %v951, %v966
        %v969 = vunpack.c.l.s4 1966171168
        %v970 = vunpack.c.0.s8 %v969
        %v971 = vlaneseq
        %v972 = vshrl.u32 %v971, 7
        %v973 = vsub.s32 %v970, %v972
        %v974 = vrot.slane %v958, %v973
        %v976 = vunpack.c.l.s4 1966171168
        %v977 = vunpack.c.0.s8 %v976
        %v978 = vlaneseq
        %v979 = vshrl.u32 %v978, 7
        %v980 = vsub.s32 %v977, %v979
        %v981 = vrot.slane %v959, %v980
        %v983 = vunpack.c.l.s4 1966171168
        %v984 = vunpack.c.0.s8 %v983
        %v985 = vlaneseq
        %v986 = vshrl.u32 %v985, 7
        %v987 = vsub.s32 %v984, %v986
        %v988 = vrot.slane %v960, %v987
        %v989 = vcombine.high %v967, %v967
        %v990 = vcombine.high %v974, %v974
        %v991 = vcombine.high %v981, %v981
        %v992 = vcombine.high %v988, %v988
        %v994 = vunpack.c.l.s4 1966171168
        %v995 = vunpack.c.0.s8 %v994
        %v996 = vlaneseq
        %v997 = vshrl.u32 %v996, 7
        %v998 = vsub.s32 %v995, %v997
        %v999 = vrot.slane %v204, %v998
        %v1000 = vcombine.high %v999, %v999
        %v1002 = vunpack.c.l.s4 1966171168
        %v1003 = vunpack.c.0.s8 %v1002
        %v1004 = vlaneseq
        %v1005 = vshrl.u32 %v1004, 7
        %v1006 = vsub.s32 %v1003, %v1005
        %v1007 = vrot.slane %v999, %v1006
        %v1009 = vunpack.c.l.s4 1966171168
        %v1010 = vunpack.c.0.s8 %v1009
        %v1011 = vlaneseq
        %v1012 = vshrl.u32 %v1011, 7
        %v1013 = vsub.s32 %v1010, %v1012
        %v1014 = vrot.slane %v1000, %v1013
        %v1015 = vcombine.high %v205, %v205
        %v1017 = vunpack.c.l.s4 1966171168
        %v1018 = vunpack.c.0.s8 %v1017
        %v1019 = vlaneseq
        %v1020 = vshrl.u32 %v1019, 7
        %v1021 = vsub.s32 %v1018, %v1020
        %v1022 = vrot.slane %v205, %v1021
        %v1024 = vunpack.c.l.s4 1966171168
        %v1025 = vunpack.c.0.s8 %v1024
        %v1026 = vlaneseq
        %v1027 = vshrl.u32 %v1026, 7
        %v1028 = vsub.s32 %v1025, %v1027
        %v1029 = vrot.slane %v1015, %v1028
        %v1030 = vcombine.high %v1022, %v1022
        %v1031 = vcombine.high %v1029, %v1029
        %v1033 = vunpack.c.l.s4 1966171168
        %v1034 = vunpack.c.0.s8 %v1033
        %v1035 = vlaneseq
        %v1036 = vshrl.u32 %v1035, 7
        %v1037 = vsub.s32 %v1034, %v1036
        %v1038 = vrot.slane %v1022, %v1037
        %v1040 = vunpack.c.l.s4 1966171168
        %v1041 = vunpack.c.0.s8 %v1040
        %v1042 = vlaneseq
        %v1043 = vshrl.u32 %v1042, 7
        %v1044 = vsub.s32 %v1041, %v1043
        %v1045 = vrot.slane %v1029, %v1044
        %v1047 = vunpack.c.l.s4 1966171168
        %v1048 = vunpack.c.0.s8 %v1047
        %v1049 = vlaneseq
        %v1050 = vshrl.u32 %v1049, 7
        %v1051 = vsub.s32 %v1048, %v1050
        %v1052 = vrot.slane %v1030, %v1051
        %v1054 = vunpack.c.l.s4 1966171168
        %v1055 = vunpack.c.0.s8 %v1054
        %v1056 = vlaneseq
        %v1057 = vshrl.u32 %v1056, 7
        %v1058 = vsub.s32 %v1055, %v1057
        %v1059 = vrot.slane %v1031, %v1058
        %v1060 = vcombine.high %v1038, %v1038
        %v1061 = vcombine.high %v1045, %v1045
        %v1062 = vcombine.high %v1052, %v1052
        %v1063 = vcombine.high %v1059, %v1059
        %v1064 = vcombine.high %v206, %v206
        %v1066 = vunpack.c.l.s4 1966171168
        %v1067 = vunpack.c.0.s8 %v1066
        %v1068 = vlaneseq
        %v1069 = vshrl.u32 %v1068, 7
        %v1070 = vsub.s32 %v1067, %v1069
        %v1071 = vrot.slane %v206, %v1070
        %v1073 = vunpack.c.l.s4 1966171168
        %v1074 = vunpack.c.0.s8 %v1073
        %v1075 = vlaneseq
        %v1076 = vshrl.u32 %v1075, 7
        %v1077 = vsub.s32 %v1074, %v1076
        %v1078 = vrot.slane %v1064, %v1077
        %v1079 = vcombine.high %v1071, %v1071
        %v1080 = vcombine.high %v1078, %v1078
        %v1082 = vunpack.c.l.s4 1966171168
        %v1083 = vunpack.c.0.s8 %v1082
        %v1084 = vlaneseq
        %v1085 = vshrl.u32 %v1084, 7
        %v1086 = vsub.s32 %v1083, %v1085
        %v1087 = vrot.slane %v1071, %v1086
        %v1089 = vunpack.c.l.s4 1966171168
        %v1090 = vunpack.c.0.s8 %v1089
        %v1091 = vlaneseq
        %v1092 = vshrl.u32 %v1091, 7
        %v1093 = vsub.s32 %v1090, %v1092
        %v1094 = vrot.slane %v1078, %v1093
        %v1096 = vunpack.c.l.s4 1966171168
        %v1097 = vunpack.c.0.s8 %v1096
        %v1098 = vlaneseq
        %v1099 = vshrl.u32 %v1098, 7
        %v1100 = vsub.s32 %v1097, %v1099
        %v1101 = vrot.slane %v1079, %v1100
        %v1103 = vunpack.c.l.s4 1966171168
        %v1104 = vunpack.c.0.s8 %v1103
        %v1105 = vlaneseq
        %v1106 = vshrl.u32 %v1105, 7
        %v1107 = vsub.s32 %v1104, %v1106
        %v1108 = vrot.slane %v1080, %v1107
        %v1109 = vcombine.high %v1087, %v1087
        %v1110 = vcombine.high %v1094, %v1094
        %v1111 = vcombine.high %v1101, %v1101
        %v1112 = vcombine.high %v1108, %v1108
        %v1114 = vunpack.c.l.s4 1966171168
        %v1115 = vunpack.c.0.s8 %v1114
        %v1116 = vlaneseq
        %v1117 = vshrl.u32 %v1116, 7
        %v1118 = vsub.s32 %v1115, %v1117
        %v1119 = vrot.slane %v207, %v1118
        %v1120 = vcombine.high %v1119, %v1119
        %v1122 = vunpack.c.l.s4 1966171168
        %v1123 = vunpack.c.0.s8 %v1122
        %v1124 = vlaneseq
        %v1125 = vshrl.u32 %v1124, 7
        %v1126 = vsub.s32 %v1123, %v1125
        %v1127 = vrot.slane %v1119, %v1126
        %v1129 = vunpack.c.l.s4 1966171168
        %v1130 = vunpack.c.0.s8 %v1129
        %v1131 = vlaneseq
        %v1132 = vshrl.u32 %v1131, 7
        %v1133 = vsub.s32 %v1130, %v1132
        %v1134 = vrot.slane %v1120, %v1133
        %v1135 = vcombine.high %v208, %v208
        %v1137 = vunpack.c.l.s4 1966171168
        %v1138 = vunpack.c.0.s8 %v1137
        %v1139 = vlaneseq
        %v1140 = vshrl.u32 %v1139, 7
        %v1141 = vsub.s32 %v1138, %v1140
        %v1142 = vrot.slane %v208, %v1141
        %v1144 = vunpack.c.l.s4 1966171168
        %v1145 = vunpack.c.0.s8 %v1144
        %v1146 = vlaneseq
        %v1147 = vshrl.u32 %v1146, 7
        %v1148 = vsub.s32 %v1145, %v1147
        %v1149 = vrot.slane %v1135, %v1148
        %v1150 = vcombine.high %v1142, %v1142
        %v1151 = vcombine.high %v1149, %v1149
        %v1153 = vunpack.c.l.s4 1966171168
        %v1154 = vunpack.c.0.s8 %v1153
        %v1155 = vlaneseq
        %v1156 = vshrl.u32 %v1155, 7
        %v1157 = vsub.s32 %v1154, %v1156
        %v1158 = vrot.slane %v1142, %v1157
        %v1160 = vunpack.c.l.s4 1966171168
        %v1161 = vunpack.c.0.s8 %v1160
        %v1162 = vlaneseq
        %v1163 = vshrl.u32 %v1162, 7
        %v1164 = vsub.s32 %v1161, %v1163
        %v1165 = vrot.slane %v1149, %v1164
        %v1167 = vunpack.c.l.s4 1966171168
        %v1168 = vunpack.c.0.s8 %v1167
        %v1169 = vlaneseq
        %v1170 = vshrl.u32 %v1169, 7
        %v1171 = vsub.s32 %v1168, %v1170
        %v1172 = vrot.slane %v1150, %v1171
        %v1174 = vunpack.c.l.s4 1966171168
        %v1175 = vunpack.c.0.s8 %v1174
        %v1176 = vlaneseq
        %v1177 = vshrl.u32 %v1176, 7
        %v1178 = vsub.s32 %v1175, %v1177
        %v1179 = vrot.slane %v1151, %v1178
        %v1180 = vcombine.high %v1158, %v1158
        %v1181 = vcombine.high %v1165, %v1165
        %v1182 = vcombine.high %v1172, %v1172
        %v1183 = vcombine.high %v1179, %v1179
        %v1184 = vcombine.high %v209, %v209
        %v1186 = vunpack.c.l.s4 1966171168
        %v1187 = vunpack.c.0.s8 %v1186
        %v1188 = vlaneseq
        %v1189 = vshrl.u32 %v1188, 7
        %v1190 = vsub.s32 %v1187, %v1189
        %v1191 = vrot.slane %v209, %v1190
        %v1193 = vunpack.c.l.s4 1966171168
        %v1194 = vunpack.c.0.s8 %v1193
        %v1195 = vlaneseq
        %v1196 = vshrl.u32 %v1195, 7
        %v1197 = vsub.s32 %v1194, %v1196
        %v1198 = vrot.slane %v1184, %v1197
        %v1199 = vcombine.high %v1191, %v1191
        %v1200 = vcombine.high %v1198, %v1198
        %v1202 = vunpack.c.l.s4 1966171168
        %v1203 = vunpack.c.0.s8 %v1202
        %v1204 = vlaneseq
        %v1205 = vshrl.u32 %v1204, 7
        %v1206 = vsub.s32 %v1203, %v1205
        %v1207 = vrot.slane %v1191, %v1206
        %v1209 = vunpack.c.l.s4 1966171168
        %v1210 = vunpack.c.0.s8 %v1209
        %v1211 = vlaneseq
        %v1212 = vshrl.u32 %v1211, 7
        %v1213 = vsub.s32 %v1210, %v1212
        %v1214 = vrot.slane %v1198, %v1213
        %v1216 = vunpack.c.l.s4 1966171168
        %v1217 = vunpack.c.0.s8 %v1216
        %v1218 = vlaneseq
        %v1219 = vshrl.u32 %v1218, 7
        %v1220 = vsub.s32 %v1217, %v1219
        %v1221 = vrot.slane %v1199, %v1220
        %v1223 = vunpack.c.l.s4 1966171168
        %v1224 = vunpack.c.0.s8 %v1223
        %v1225 = vlaneseq
        %v1226 = vshrl.u32 %v1225, 7
        %v1227 = vsub.s32 %v1224, %v1226
        %v1228 = vrot.slane %v1200, %v1227
        %v1229 = vcombine.high %v1207, %v1207
        %v1230 = vcombine.high %v1214, %v1214
        %v1231 = vcombine.high %v1221, %v1221
        %v1232 = vcombine.high %v1228, %v1228
        %v1234 = vunpack.c.l.s4 1966171168
        %v1235 = vunpack.c.0.s8 %v1234
        %v1236 = vlaneseq
        %v1237 = vshrl.u32 %v1236, 7
        %v1238 = vsub.s32 %v1235, %v1237
        %v1239 = vrot.slane %v210, %v1238
        %v1240 = vcombine.high %v1239, %v1239
        %v1242 = vunpack.c.l.s4 1966171168
        %v1243 = vunpack.c.0.s8 %v1242
        %v1244 = vlaneseq
        %v1245 = vshrl.u32 %v1244, 7
        %v1246 = vsub.s32 %v1243, %v1245
        %v1247 = vrot.slane %v1239, %v1246
        %v1249 = vunpack.c.l.s4 1966171168
        %v1250 = vunpack.c.0.s8 %v1249
        %v1251 = vlaneseq
        %v1252 = vshrl.u32 %v1251, 7
        %v1253 = vsub.s32 %v1250, %v1252
        %v1254 = vrot.slane %v1240, %v1253
        %v1255 = vcombine.high %v211, %v211
        %v1257 = vunpack.c.l.s4 1966171168
        %v1258 = vunpack.c.0.s8 %v1257
        %v1259 = vlaneseq
        %v1260 = vshrl.u32 %v1259, 7
        %v1261 = vsub.s32 %v1258, %v1260
        %v1262 = vrot.slane %v211, %v1261
        %v1264 = vunpack.c.l.s4 1966171168
        %v1265 = vunpack.c.0.s8 %v1264
        %v1266 = vlaneseq
        %v1267 = vshrl.u32 %v1266, 7
        %v1268 = vsub.s32 %v1265, %v1267
        %v1269 = vrot.slane %v1255, %v1268
        %v1270 = vcombine.high %v1262, %v1262
        %v1271 = vcombine.high %v1269, %v1269
        %v1273 = vunpack.c.l.s4 1966171168
        %v1274 = vunpack.c.0.s8 %v1273
        %v1275 = vlaneseq
        %v1276 = vshrl.u32 %v1275, 7
        %v1277 = vsub.s32 %v1274, %v1276
        %v1278 = vrot.slane %v1262, %v1277
        %v1280 = vunpack.c.l.s4 1966171168
        %v1281 = vunpack.c.0.s8 %v1280
        %v1282 = vlaneseq
        %v1283 = vshrl.u32 %v1282, 7
        %v1284 = vsub.s32 %v1281, %v1283
        %v1285 = vrot.slane %v1269, %v1284
        %v1287 = vunpack.c.l.s4 1966171168
        %v1288 = vunpack.c.0.s8 %v1287
        %v1289 = vlaneseq
        %v1290 = vshrl.u32 %v1289, 7
        %v1291 = vsub.s32 %v1288, %v1290
        %v1292 = vrot.slane %v1270, %v1291
        %v1294 = vunpack.c.l.s4 1966171168
        %v1295 = vunpack.c.0.s8 %v1294
        %v1296 = vlaneseq
        %v1297 = vshrl.u32 %v1296, 7
        %v1298 = vsub.s32 %v1295, %v1297
        %v1299 = vrot.slane %v1271, %v1298
        %v1300 = vcombine.high %v1278, %v1278
        %v1301 = vcombine.high %v1285, %v1285
        %v1302 = vcombine.high %v1292, %v1292
        %v1303 = vcombine.high %v1299, %v1299
        %v1304 = vcombine.high %v212, %v212
        %v1306 = vunpack.c.l.s4 1966171168
        %v1307 = vunpack.c.0.s8 %v1306
        %v1308 = vlaneseq
        %v1309 = vshrl.u32 %v1308, 7
        %v1310 = vsub.s32 %v1307, %v1309
        %v1311 = vrot.slane %v212, %v1310
        %v1313 = vunpack.c.l.s4 1966171168
        %v1314 = vunpack.c.0.s8 %v1313
        %v1315 = vlaneseq
        %v1316 = vshrl.u32 %v1315, 7
        %v1317 = vsub.s32 %v1314, %v1316
        %v1318 = vrot.slane %v1304, %v1317
        %v1319 = vcombine.high %v1311, %v1311
        %v1320 = vcombine.high %v1318, %v1318
        %v1322 = vunpack.c.l.s4 1966171168
        %v1323 = vunpack.c.0.s8 %v1322
        %v1324 = vlaneseq
        %v1325 = vshrl.u32 %v1324, 7
        %v1326 = vsub.s32 %v1323, %v1325
        %v1327 = vrot.slane %v1311, %v1326
        %v1329 = vunpack.c.l.s4 1966171168
        %v1330 = vunpack.c.0.s8 %v1329
        %v1331 = vlaneseq
        %v1332 = vshrl.u32 %v1331, 7
        %v1333 = vsub.s32 %v1330, %v1332
        %v1334 = vrot.slane %v1318, %v1333
        %v1336 = vunpack.c.l.s4 1966171168
        %v1337 = vunpack.c.0.s8 %v1336
        %v1338 = vlaneseq
        %v1339 = vshrl.u32 %v1338, 7
        %v1340 = vsub.s32 %v1337, %v1339
        %v1341 = vrot.slane %v1319, %v1340
        %v1343 = vunpack.c.l.s4 1966171168
        %v1344 = vunpack.c.0.s8 %v1343
        %v1345 = vlaneseq
        %v1346 = vshrl.u32 %v1345, 7
        %v1347 = vsub.s32 %v1344, %v1346
        %v1348 = vrot.slane %v1320, %v1347
        %v1349 = vcombine.high %v1327, %v1327
        %v1350 = vcombine.high %v1334, %v1334
        %v1351 = vcombine.high %v1341, %v1341
        %v1352 = vcombine.high %v1348, %v1348
        %v1354 = vunpack.c.l.s4 1966171168
        %v1355 = vunpack.c.0.s8 %v1354
        %v1356 = vlaneseq
        %v1357 = vshrl.u32 %v1356, 7
        %v1358 = vsub.s32 %v1355, %v1357
        %v1359 = vrot.slane %v213, %v1358
        %v1360 = vcombine.high %v1359, %v1359
        %v1362 = vunpack.c.l.s4 1966171168
        %v1363 = vunpack.c.0.s8 %v1362
        %v1364 = vlaneseq
        %v1365 = vshrl.u32 %v1364, 7
        %v1366 = vsub.s32 %v1363, %v1365
        %v1367 = vrot.slane %v1359, %v1366
        %v1369 = vunpack.c.l.s4 1966171168
        %v1370 = vunpack.c.0.s8 %v1369
        %v1371 = vlaneseq
        %v1372 = vshrl.u32 %v1371, 7
        %v1373 = vsub.s32 %v1370, %v1372
        %v1374 = vrot.slane %v1360, %v1373
        %v1375 = vcombine.high %v214, %v214
        %v1377 = vunpack.c.l.s4 1966171168
        %v1378 = vunpack.c.0.s8 %v1377
        %v1379 = vlaneseq
        %v1380 = vshrl.u32 %v1379, 7
        %v1381 = vsub.s32 %v1378, %v1380
        %v1382 = vrot.slane %v214, %v1381
        %v1384 = vunpack.c.l.s4 1966171168
        %v1385 = vunpack.c.0.s8 %v1384
        %v1386 = vlaneseq
        %v1387 = vshrl.u32 %v1386, 7
        %v1388 = vsub.s32 %v1385, %v1387
        %v1389 = vrot.slane %v1375, %v1388
        %v1390 = vcombine.high %v1382, %v1382
        %v1391 = vcombine.high %v1389, %v1389
        %v1393 = vunpack.c.l.s4 1966171168
        %v1394 = vunpack.c.0.s8 %v1393
        %v1395 = vlaneseq
        %v1396 = vshrl.u32 %v1395, 7
        %v1397 = vsub.s32 %v1394, %v1396
        %v1398 = vrot.slane %v1382, %v1397
        %v1400 = vunpack.c.l.s4 1966171168
        %v1401 = vunpack.c.0.s8 %v1400
        %v1402 = vlaneseq
        %v1403 = vshrl.u32 %v1402, 7
        %v1404 = vsub.s32 %v1401, %v1403
        %v1405 = vrot.slane %v1389, %v1404
        %v1407 = vunpack.c.l.s4 1966171168
        %v1408 = vunpack.c.0.s8 %v1407
        %v1409 = vlaneseq
        %v1410 = vshrl.u32 %v1409, 7
        %v1411 = vsub.s32 %v1408, %v1410
        %v1412 = vrot.slane %v1390, %v1411
        %v1414 = vunpack.c.l.s4 1966171168
        %v1415 = vunpack.c.0.s8 %v1414
        %v1416 = vlaneseq
        %v1417 = vshrl.u32 %v1416, 7
        %v1418 = vsub.s32 %v1415, %v1417
        %v1419 = vrot.slane %v1391, %v1418
        %v1420 = vcombine.high %v1398, %v1398
        %v1421 = vcombine.high %v1405, %v1405
        %v1422 = vcombine.high %v1412, %v1412
        %v1423 = vcombine.high %v1419, %v1419
        %v1424 = vcombine.high %v215, %v215
        %v1426 = vunpack.c.l.s4 1966171168
        %v1427 = vunpack.c.0.s8 %v1426
        %v1428 = vlaneseq
        %v1429 = vshrl.u32 %v1428, 7
        %v1430 = vsub.s32 %v1427, %v1429
        %v1431 = vrot.slane %v215, %v1430
        %v1433 = vunpack.c.l.s4 1966171168
        %v1434 = vunpack.c.0.s8 %v1433
        %v1435 = vlaneseq
        %v1436 = vshrl.u32 %v1435, 7
        %v1437 = vsub.s32 %v1434, %v1436
        %v1438 = vrot.slane %v1424, %v1437
        %v1439 = vcombine.high %v1431, %v1431
        %v1440 = vcombine.high %v1438, %v1438
        %v1442 = vunpack.c.l.s4 1966171168
        %v1443 = vunpack.c.0.s8 %v1442
        %v1444 = vlaneseq
        %v1445 = vshrl.u32 %v1444, 7
        %v1446 = vsub.s32 %v1443, %v1445
        %v1447 = vrot.slane %v1431, %v1446
        %v1449 = vunpack.c.l.s4 1966171168
        %v1450 = vunpack.c.0.s8 %v1449
        %v1451 = vlaneseq
        %v1452 = vshrl.u32 %v1451, 7
        %v1453 = vsub.s32 %v1450, %v1452
        %v1454 = vrot.slane %v1438, %v1453
        %v1456 = vunpack.c.l.s4 1966171168
        %v1457 = vunpack.c.0.s8 %v1456
        %v1458 = vlaneseq
        %v1459 = vshrl.u32 %v1458, 7
        %v1460 = vsub.s32 %v1457, %v1459
        %v1461 = vrot.slane %v1439, %v1460
        %v1463 = vunpack.c.l.s4 1966171168
        %v1464 = vunpack.c.0.s8 %v1463
        %v1465 = vlaneseq
        %v1466 = vshrl.u32 %v1465, 7
        %v1467 = vsub.s32 %v1464, %v1466
        %v1468 = vrot.slane %v1440, %v1467
        %v1469 = vcombine.high %v1447, %v1447
        %v1470 = vcombine.high %v1454, %v1454
        %v1471 = vcombine.high %v1461, %v1461
        %v1472 = vcombine.high %v1468, %v1468
        %v1474 = vunpack.c.l.s4 1966171168
        %v1475 = vunpack.c.0.s8 %v1474
        %v1476 = vlaneseq
        %v1477 = vshrl.u32 %v1476, 7
        %v1478 = vsub.s32 %v1475, %v1477
        %v1479 = vrot.slane %v216, %v1478
        %v1480 = vcombine.high %v1479, %v1479
        %v1482 = vunpack.c.l.s4 1966171168
        %v1483 = vunpack.c.0.s8 %v1482
        %v1484 = vlaneseq
        %v1485 = vshrl.u32 %v1484, 7
        %v1486 = vsub.s32 %v1483, %v1485
        %v1487 = vrot.slane %v1479, %v1486
        %v1489 = vunpack.c.l.s4 1966171168
        %v1490 = vunpack.c.0.s8 %v1489
        %v1491 = vlaneseq
        %v1492 = vshrl.u32 %v1491, 7
        %v1493 = vsub.s32 %v1490, %v1492
        %v1494 = vrot.slane %v1480, %v1493
        %v1495 = vcombine.high %v217, %v217
        %v1497 = vunpack.c.l.s4 1966171168
        %v1498 = vunpack.c.0.s8 %v1497
        %v1499 = vlaneseq
        %v1500 = vshrl.u32 %v1499, 7
        %v1501 = vsub.s32 %v1498, %v1500
        %v1502 = vrot.slane %v217, %v1501
        %v1504 = vunpack.c.l.s4 1966171168
        %v1505 = vunpack.c.0.s8 %v1504
        %v1506 = vlaneseq
        %v1507 = vshrl.u32 %v1506, 7
        %v1508 = vsub.s32 %v1505, %v1507
        %v1509 = vrot.slane %v1495, %v1508
        %v1510 = vcombine.high %v1502, %v1502
        %v1511 = vcombine.high %v1509, %v1509
        %v1513 = vunpack.c.l.s4 1966171168
        %v1514 = vunpack.c.0.s8 %v1513
        %v1515 = vlaneseq
        %v1516 = vshrl.u32 %v1515, 7
        %v1517 = vsub.s32 %v1514, %v1516
        %v1518 = vrot.slane %v1502, %v1517
        %v1520 = vunpack.c.l.s4 1966171168
        %v1521 = vunpack.c.0.s8 %v1520
        %v1522 = vlaneseq
        %v1523 = vshrl.u32 %v1522, 7
        %v1524 = vsub.s32 %v1521, %v1523
        %v1525 = vrot.slane %v1509, %v1524
        %v1527 = vunpack.c.l.s4 1966171168
        %v1528 = vunpack.c.0.s8 %v1527
        %v1529 = vlaneseq
        %v1530 = vshrl.u32 %v1529, 7
        %v1531 = vsub.s32 %v1528, %v1530
        %v1532 = vrot.slane %v1510, %v1531
        %v1534 = vunpack.c.l.s4 1966171168
        %v1535 = vunpack.c.0.s8 %v1534
        %v1536 = vlaneseq
        %v1537 = vshrl.u32 %v1536, 7
        %v1538 = vsub.s32 %v1535, %v1537
        %v1539 = vrot.slane %v1511, %v1538
        %v1540 = vcombine.high %v1518, %v1518
        %v1541 = vcombine.high %v1525, %v1525
        %v1542 = vcombine.high %v1532, %v1532
        %v1543 = vcombine.high %v1539, %v1539
        %v1544 = vcombine.high %v218, %v218
        %v1546 = vunpack.c.l.s4 1966171168
        %v1547 = vunpack.c.0.s8 %v1546
        %v1548 = vlaneseq
        %v1549 = vshrl.u32 %v1548, 7
        %v1550 = vsub.s32 %v1547, %v1549
        %v1551 = vrot.slane %v218, %v1550
        %v1553 = vunpack.c.l.s4 1966171168
        %v1554 = vunpack.c.0.s8 %v1553
        %v1555 = vlaneseq
        %v1556 = vshrl.u32 %v1555, 7
        %v1557 = vsub.s32 %v1554, %v1556
        %v1558 = vrot.slane %v1544, %v1557
        %v1559 = vcombine.high %v1551, %v1551
        %v1560 = vcombine.high %v1558, %v1558
        %v1562 = vunpack.c.l.s4 1966171168
        %v1563 = vunpack.c.0.s8 %v1562
        %v1564 = vlaneseq
        %v1565 = vshrl.u32 %v1564, 7
        %v1566 = vsub.s32 %v1563, %v1565
        %v1567 = vrot.slane %v1551, %v1566
        %v1569 = vunpack.c.l.s4 1966171168
        %v1570 = vunpack.c.0.s8 %v1569
        %v1571 = vlaneseq
        %v1572 = vshrl.u32 %v1571, 7
        %v1573 = vsub.s32 %v1570, %v1572
        %v1574 = vrot.slane %v1558, %v1573
        %v1576 = vunpack.c.l.s4 1966171168
        %v1577 = vunpack.c.0.s8 %v1576
        %v1578 = vlaneseq
        %v1579 = vshrl.u32 %v1578, 7
        %v1580 = vsub.s32 %v1577, %v1579
        %v1581 = vrot.slane %v1559, %v1580
        %v1583 = vunpack.c.l.s4 1966171168
        %v1584 = vunpack.c.0.s8 %v1583
        %v1585 = vlaneseq
        %v1586 = vshrl.u32 %v1585, 7
        %v1587 = vsub.s32 %v1584, %v1586
        %v1588 = vrot.slane %v1560, %v1587
        %v1589 = vcombine.high %v1567, %v1567
        %v1590 = vcombine.high %v1574, %v1574
        %v1591 = vcombine.high %v1581, %v1581
        %v1592 = vcombine.high %v1588, %v1588
        %v1594 = vunpack.c.l.s4 1966171168
        %v1595 = vunpack.c.0.s8 %v1594
        %v1596 = vlaneseq
        %v1597 = vshrl.u32 %v1596, 7
        %v1598 = vsub.s32 %v1595, %v1597
        %v1599 = vrot.slane %v219, %v1598
        %v1600 = vcombine.high %v1599, %v1599
        %v1602 = vunpack.c.l.s4 1966171168
        %v1603 = vunpack.c.0.s8 %v1602
        %v1604 = vlaneseq
        %v1605 = vshrl.u32 %v1604, 7
        %v1606 = vsub.s32 %v1603, %v1605
        %v1607 = vrot.slane %v1599, %v1606
        %v1609 = vunpack.c.l.s4 1966171168
        %v1610 = vunpack.c.0.s8 %v1609
        %v1611 = vlaneseq
        %v1612 = vshrl.u32 %v1611, 7
        %v1613 = vsub.s32 %v1610, %v1612
        %v1614 = vrot.slane %v1600, %v1613
        %v1615 = vcombine.high %v220, %v220
        %v1617 = vunpack.c.l.s4 1966171168
        %v1618 = vunpack.c.0.s8 %v1617
        %v1619 = vlaneseq
        %v1620 = vshrl.u32 %v1619, 7
        %v1621 = vsub.s32 %v1618, %v1620
        %v1622 = vrot.slane %v220, %v1621
        %v1624 = vunpack.c.l.s4 1966171168
        %v1625 = vunpack.c.0.s8 %v1624
        %v1626 = vlaneseq
        %v1627 = vshrl.u32 %v1626, 7
        %v1628 = vsub.s32 %v1625, %v1627
        %v1629 = vrot.slane %v1615, %v1628
        %v1630 = vcombine.high %v1622, %v1622
        %v1631 = vcombine.high %v1629, %v1629
        %v1633 = vunpack.c.l.s4 1966171168
        %v1634 = vunpack.c.0.s8 %v1633
        %v1635 = vlaneseq
        %v1636 = vshrl.u32 %v1635, 7
        %v1637 = vsub.s32 %v1634, %v1636
        %v1638 = vrot.slane %v1622, %v1637
        %v1640 = vunpack.c.l.s4 1966171168
        %v1641 = vunpack.c.0.s8 %v1640
        %v1642 = vlaneseq
        %v1643 = vshrl.u32 %v1642, 7
        %v1644 = vsub.s32 %v1641, %v1643
        %v1645 = vrot.slane %v1629, %v1644
        %v1647 = vunpack.c.l.s4 1966171168
        %v1648 = vunpack.c.0.s8 %v1647
        %v1649 = vlaneseq
        %v1650 = vshrl.u32 %v1649, 7
        %v1651 = vsub.s32 %v1648, %v1650
        %v1652 = vrot.slane %v1630, %v1651
        %v1654 = vunpack.c.l.s4 1966171168
        %v1655 = vunpack.c.0.s8 %v1654
        %v1656 = vlaneseq
        %v1657 = vshrl.u32 %v1656, 7
        %v1658 = vsub.s32 %v1655, %v1657
        %v1659 = vrot.slane %v1631, %v1658
        %v1660 = vcombine.high %v1638, %v1638
        %v1661 = vcombine.high %v1645, %v1645
        %v1662 = vcombine.high %v1652, %v1652
        %v1663 = vcombine.high %v1659, %v1659
        %v1664 = vcombine.high %v221, %v221
        %v1666 = vunpack.c.l.s4 1966171168
        %v1667 = vunpack.c.0.s8 %v1666
        %v1668 = vlaneseq
        %v1669 = vshrl.u32 %v1668, 7
        %v1670 = vsub.s32 %v1667, %v1669
        %v1671 = vrot.slane %v221, %v1670
        %v1673 = vunpack.c.l.s4 1966171168
        %v1674 = vunpack.c.0.s8 %v1673
        %v1675 = vlaneseq
        %v1676 = vshrl.u32 %v1675, 7
        %v1677 = vsub.s32 %v1674, %v1676
        %v1678 = vrot.slane %v1664, %v1677
        %v1679 = vcombine.high %v1671, %v1671
        %v1680 = vcombine.high %v1678, %v1678
        %v1682 = vunpack.c.l.s4 1966171168
        %v1683 = vunpack.c.0.s8 %v1682
        %v1684 = vlaneseq
        %v1685 = vshrl.u32 %v1684, 7
        %v1686 = vsub.s32 %v1683, %v1685
        %v1687 = vrot.slane %v1671, %v1686
        %v1689 = vunpack.c.l.s4 1966171168
        %v1690 = vunpack.c.0.s8 %v1689
        %v1691 = vlaneseq
        %v1692 = vshrl.u32 %v1691, 7
        %v1693 = vsub.s32 %v1690, %v1692
        %v1694 = vrot.slane %v1678, %v1693
        %v1696 = vunpack.c.l.s4 1966171168
        %v1697 = vunpack.c.0.s8 %v1696
        %v1698 = vlaneseq
        %v1699 = vshrl.u32 %v1698, 7
        %v1700 = vsub.s32 %v1697, %v1699
        %v1701 = vrot.slane %v1679, %v1700
        %v1703 = vunpack.c.l.s4 1966171168
        %v1704 = vunpack.c.0.s8 %v1703
        %v1705 = vlaneseq
        %v1706 = vshrl.u32 %v1705, 7
        %v1707 = vsub.s32 %v1704, %v1706
        %v1708 = vrot.slane %v1680, %v1707
        %v1709 = vcombine.high %v1687, %v1687
        %v1710 = vcombine.high %v1694, %v1694
        %v1711 = vcombine.high %v1701, %v1701
        %v1712 = vcombine.high %v1708, %v1708
        %v1714 = vunpack.c.l.s4 1966171168
        %v1715 = vunpack.c.0.s8 %v1714
        %v1716 = vlaneseq
        %v1717 = vshrl.u32 %v1716, 7
        %v1718 = vsub.s32 %v1715, %v1717
        %v1719 = vrot.slane %v222, %v1718
        %v1720 = vcombine.high %v1719, %v1719
        %v1722 = vunpack.c.l.s4 1966171168
        %v1723 = vunpack.c.0.s8 %v1722
        %v1724 = vlaneseq
        %v1725 = vshrl.u32 %v1724, 7
        %v1726 = vsub.s32 %v1723, %v1725
        %v1727 = vrot.slane %v1719, %v1726
        %v1729 = vunpack.c.l.s4 1966171168
        %v1730 = vunpack.c.0.s8 %v1729
        %v1731 = vlaneseq
        %v1732 = vshrl.u32 %v1731, 7
        %v1733 = vsub.s32 %v1730, %v1732
        %v1734 = vrot.slane %v1720, %v1733
        %v1735 = vcombine.high %v223, %v223
        %v1737 = vunpack.c.l.s4 1966171168
        %v1738 = vunpack.c.0.s8 %v1737
        %v1739 = vlaneseq
        %v1740 = vshrl.u32 %v1739, 7
        %v1741 = vsub.s32 %v1738, %v1740
        %v1742 = vrot.slane %v223, %v1741
        %v1744 = vunpack.c.l.s4 1966171168
        %v1745 = vunpack.c.0.s8 %v1744
        %v1746 = vlaneseq
        %v1747 = vshrl.u32 %v1746, 7
        %v1748 = vsub.s32 %v1745, %v1747
        %v1749 = vrot.slane %v1735, %v1748
        %v1750 = vcombine.high %v1742, %v1742
        %v1751 = vcombine.high %v1749, %v1749
        %v1753 = vunpack.c.l.s4 1966171168
        %v1754 = vunpack.c.0.s8 %v1753
        %v1755 = vlaneseq
        %v1756 = vshrl.u32 %v1755, 7
        %v1757 = vsub.s32 %v1754, %v1756
        %v1758 = vrot.slane %v1742, %v1757
        %v1760 = vunpack.c.l.s4 1966171168
        %v1761 = vunpack.c.0.s8 %v1760
        %v1762 = vlaneseq
        %v1763 = vshrl.u32 %v1762, 7
        %v1764 = vsub.s32 %v1761, %v1763
        %v1765 = vrot.slane %v1749, %v1764
        %v1767 = vunpack.c.l.s4 1966171168
        %v1768 = vunpack.c.0.s8 %v1767
        %v1769 = vlaneseq
        %v1770 = vshrl.u32 %v1769, 7
        %v1771 = vsub.s32 %v1768, %v1770
        %v1772 = vrot.slane %v1750, %v1771
        %v1774 = vunpack.c.l.s4 1966171168
        %v1775 = vunpack.c.0.s8 %v1774
        %v1776 = vlaneseq
        %v1777 = vshrl.u32 %v1776, 7
        %v1778 = vsub.s32 %v1775, %v1777
        %v1779 = vrot.slane %v1751, %v1778
        %v1780 = vcombine.high %v1758, %v1758
        %v1781 = vcombine.high %v1765, %v1765
        %v1782 = vcombine.high %v1772, %v1772
        %v1783 = vcombine.high %v1779, %v1779
        %v1784 = vcombine.high %v224, %v224
        %v1786 = vunpack.c.l.s4 1966171168
        %v1787 = vunpack.c.0.s8 %v1786
        %v1788 = vlaneseq
        %v1789 = vshrl.u32 %v1788, 7
        %v1790 = vsub.s32 %v1787, %v1789
        %v1791 = vrot.slane %v224, %v1790
        %v1793 = vunpack.c.l.s4 1966171168
        %v1794 = vunpack.c.0.s8 %v1793
        %v1795 = vlaneseq
        %v1796 = vshrl.u32 %v1795, 7
        %v1797 = vsub.s32 %v1794, %v1796
        %v1798 = vrot.slane %v1784, %v1797
        %v1799 = vcombine.high %v1791, %v1791
        %v1800 = vcombine.high %v1798, %v1798
        %v1802 = vunpack.c.l.s4 1966171168
        %v1803 = vunpack.c.0.s8 %v1802
        %v1804 = vlaneseq
        %v1805 = vshrl.u32 %v1804, 7
        %v1806 = vsub.s32 %v1803, %v1805
        %v1807 = vrot.slane %v1791, %v1806
        %v1809 = vunpack.c.l.s4 1966171168
        %v1810 = vunpack.c.0.s8 %v1809
        %v1811 = vlaneseq
        %v1812 = vshrl.u32 %v1811, 7
        %v1813 = vsub.s32 %v1810, %v1812
        %v1814 = vrot.slane %v1798, %v1813
        %v1816 = vunpack.c.l.s4 1966171168
        %v1817 = vunpack.c.0.s8 %v1816
        %v1818 = vlaneseq
        %v1819 = vshrl.u32 %v1818, 7
        %v1820 = vsub.s32 %v1817, %v1819
        %v1821 = vrot.slane %v1799, %v1820
        %v1823 = vunpack.c.l.s4 1966171168
        %v1824 = vunpack.c.0.s8 %v1823
        %v1825 = vlaneseq
        %v1826 = vshrl.u32 %v1825, 7
        %v1827 = vsub.s32 %v1824, %v1826
        %v1828 = vrot.slane %v1800, %v1827
        %v1829 = vcombine.high %v1807, %v1807
        %v1830 = vcombine.high %v1814, %v1814
        %v1831 = vcombine.high %v1821, %v1821
        %v1832 = vcombine.high %v1828, %v1828
        %v1834 = vunpack.c.l.s4 1966171168
        %v1835 = vunpack.c.0.s8 %v1834
        %v1836 = vlaneseq
        %v1837 = vshrl.u32 %v1836, 7
        %v1838 = vsub.s32 %v1835, %v1837
        %v1839 = vrot.slane %v225, %v1838
        %v1840 = vcombine.high %v1839, %v1839
        %v1842 = vunpack.c.l.s4 1966171168
        %v1843 = vunpack.c.0.s8 %v1842
        %v1844 = vlaneseq
        %v1845 = vshrl.u32 %v1844, 7
        %v1846 = vsub.s32 %v1843, %v1845
        %v1847 = vrot.slane %v1839, %v1846
        %v1849 = vunpack.c.l.s4 1966171168
        %v1850 = vunpack.c.0.s8 %v1849
        %v1851 = vlaneseq
        %v1852 = vshrl.u32 %v1851, 7
        %v1853 = vsub.s32 %v1850, %v1852
        %v1854 = vrot.slane %v1840, %v1853
        %v1855 = vcombine.high %v226, %v226
        %v1857 = vunpack.c.l.s4 1966171168
        %v1858 = vunpack.c.0.s8 %v1857
        %v1859 = vlaneseq
        %v1860 = vshrl.u32 %v1859, 7
        %v1861 = vsub.s32 %v1858, %v1860
        %v1862 = vrot.slane %v226, %v1861
        %v1864 = vunpack.c.l.s4 1966171168
        %v1865 = vunpack.c.0.s8 %v1864
        %v1866 = vlaneseq
        %v1867 = vshrl.u32 %v1866, 7
        %v1868 = vsub.s32 %v1865, %v1867
        %v1869 = vrot.slane %v1855, %v1868
        %v1870 = vcombine.high %v1862, %v1862
        %v1871 = vcombine.high %v1869, %v1869
        %v1873 = vunpack.c.l.s4 1966171168
        %v1874 = vunpack.c.0.s8 %v1873
        %v1875 = vlaneseq
        %v1876 = vshrl.u32 %v1875, 7
        %v1877 = vsub.s32 %v1874, %v1876
        %v1878 = vrot.slane %v1862, %v1877
        %v1880 = vunpack.c.l.s4 1966171168
        %v1881 = vunpack.c.0.s8 %v1880
        %v1882 = vlaneseq
        %v1883 = vshrl.u32 %v1882, 7
        %v1884 = vsub.s32 %v1881, %v1883
        %v1885 = vrot.slane %v1869, %v1884
        %v1887 = vunpack.c.l.s4 1966171168
        %v1888 = vunpack.c.0.s8 %v1887
        %v1889 = vlaneseq
        %v1890 = vshrl.u32 %v1889, 7
        %v1891 = vsub.s32 %v1888, %v1890
        %v1892 = vrot.slane %v1870, %v1891
        %v1894 = vunpack.c.l.s4 1966171168
        %v1895 = vunpack.c.0.s8 %v1894
        %v1896 = vlaneseq
        %v1897 = vshrl.u32 %v1896, 7
        %v1898 = vsub.s32 %v1895, %v1897
        %v1899 = vrot.slane %v1871, %v1898
        %v1900 = vcombine.high %v1878, %v1878
        %v1901 = vcombine.high %v1885, %v1885
        %v1902 = vcombine.high %v1892, %v1892
        %v1903 = vcombine.high %v1899, %v1899
        %v1904 = vcombine.high %v227, %v227
        %v1906 = vunpack.c.l.s4 1966171168
        %v1907 = vunpack.c.0.s8 %v1906
        %v1908 = vlaneseq
        %v1909 = vshrl.u32 %v1908, 7
        %v1910 = vsub.s32 %v1907, %v1909
        %v1911 = vrot.slane %v227, %v1910
        %v1913 = vunpack.c.l.s4 1966171168
        %v1914 = vunpack.c.0.s8 %v1913
        %v1915 = vlaneseq
        %v1916 = vshrl.u32 %v1915, 7
        %v1917 = vsub.s32 %v1914, %v1916
        %v1918 = vrot.slane %v1904, %v1917
        %v1919 = vcombine.high %v1911, %v1911
        %v1920 = vcombine.high %v1918, %v1918
        %v1922 = vunpack.c.l.s4 1966171168
        %v1923 = vunpack.c.0.s8 %v1922
        %v1924 = vlaneseq
        %v1925 = vshrl.u32 %v1924, 7
        %v1926 = vsub.s32 %v1923, %v1925
        %v1927 = vrot.slane %v1911, %v1926
        %v1929 = vunpack.c.l.s4 1966171168
        %v1930 = vunpack.c.0.s8 %v1929
        %v1931 = vlaneseq
        %v1932 = vshrl.u32 %v1931, 7
        %v1933 = vsub.s32 %v1930, %v1932
        %v1934 = vrot.slane %v1918, %v1933
        %v1936 = vunpack.c.l.s4 1966171168
        %v1937 = vunpack.c.0.s8 %v1936
        %v1938 = vlaneseq
        %v1939 = vshrl.u32 %v1938, 7
        %v1940 = vsub.s32 %v1937, %v1939
        %v1941 = vrot.slane %v1919, %v1940
        %v1943 = vunpack.c.l.s4 1966171168
        %v1944 = vunpack.c.0.s8 %v1943
        %v1945 = vlaneseq
        %v1946 = vshrl.u32 %v1945, 7
        %v1947 = vsub.s32 %v1944, %v1946
        %v1948 = vrot.slane %v1920, %v1947
        %v1949 = vcombine.high %v1927, %v1927
        %v1950 = vcombine.high %v1934, %v1934
        %v1951 = vcombine.high %v1941, %v1941
        %v1952 = vcombine.high %v1948, %v1948
        %v1954 = vunpack.c.l.s4 1966171168
        %v1955 = vunpack.c.0.s8 %v1954
        %v1956 = vlaneseq
        %v1957 = vshrl.u32 %v1956, 7
        %v1958 = vsub.s32 %v1955, %v1957
        %v1959 = vrot.slane %v228, %v1958
        %v1960 = vcombine.high %v1959, %v1959
        %v1962 = vunpack.c.l.s4 1966171168
        %v1963 = vunpack.c.0.s8 %v1962
        %v1964 = vlaneseq
        %v1965 = vshrl.u32 %v1964, 7
        %v1966 = vsub.s32 %v1963, %v1965
        %v1967 = vrot.slane %v1959, %v1966
        %v1969 = vunpack.c.l.s4 1966171168
        %v1970 = vunpack.c.0.s8 %v1969
        %v1971 = vlaneseq
        %v1972 = vshrl.u32 %v1971, 7
        %v1973 = vsub.s32 %v1970, %v1972
        %v1974 = vrot.slane %v1960, %v1973
        %v1975 = vcombine.high %v229, %v229
        %v1977 = vunpack.c.l.s4 1966171168
        %v1978 = vunpack.c.0.s8 %v1977
        %v1979 = vlaneseq
        %v1980 = vshrl.u32 %v1979, 7
        %v1981 = vsub.s32 %v1978, %v1980
        %v1982 = vrot.slane %v229, %v1981
        %v1984 = vunpack.c.l.s4 1966171168
        %v1985 = vunpack.c.0.s8 %v1984
        %v1986 = vlaneseq
        %v1987 = vshrl.u32 %v1986, 7
        %v1988 = vsub.s32 %v1985, %v1987
        %v1989 = vrot.slane %v1975, %v1988
        %v1990 = vcombine.high %v1982, %v1982
        %v1991 = vcombine.high %v1989, %v1989
        %v1993 = vunpack.c.l.s4 1966171168
        %v1994 = vunpack.c.0.s8 %v1993
        %v1995 = vlaneseq
        %v1996 = vshrl.u32 %v1995, 7
        %v1997 = vsub.s32 %v1994, %v1996
        %v1998 = vrot.slane %v1982, %v1997
        %v2000 = vunpack.c.l.s4 1966171168
        %v2001 = vunpack.c.0.s8 %v2000
        %v2002 = vlaneseq
        %v2003 = vshrl.u32 %v2002, 7
        %v2004 = vsub.s32 %v2001, %v2003
        %v2005 = vrot.slane %v1989, %v2004
        %v2007 = vunpack.c.l.s4 1966171168
        %v2008 = vunpack.c.0.s8 %v2007
        %v2009 = vlaneseq
        %v2010 = vshrl.u32 %v2009, 7
        %v2011 = vsub.s32 %v2008, %v2010
        %v2012 = vrot.slane %v1990, %v2011
        %v2014 = vunpack.c.l.s4 1966171168
        %v2015 = vunpack.c.0.s8 %v2014
        %v2016 = vlaneseq
        %v2017 = vshrl.u32 %v2016, 7
        %v2018 = vsub.s32 %v2015, %v2017
        %v2019 = vrot.slane %v1991, %v2018
        %v2020 = vcombine.high %v1998, %v1998
        %v2021 = vcombine.high %v2005, %v2005
        %v2022 = vcombine.high %v2012, %v2012
        %v2023 = vcombine.high %v2019, %v2019
        %v2024 = vcombine.high %v230, %v230
        %v2026 = vunpack.c.l.s4 1966171168
        %v2027 = vunpack.c.0.s8 %v2026
        %v2028 = vlaneseq
        %v2029 = vshrl.u32 %v2028, 7
        %v2030 = vsub.s32 %v2027, %v2029
        %v2031 = vrot.slane %v230, %v2030
        %v2033 = vunpack.c.l.s4 1966171168
        %v2034 = vunpack.c.0.s8 %v2033
        %v2035 = vlaneseq
        %v2036 = vshrl.u32 %v2035, 7
        %v2037 = vsub.s32 %v2034, %v2036
        %v2038 = vrot.slane %v2024, %v2037
        %v2039 = vcombine.high %v2031, %v2031
        %v2040 = vcombine.high %v2038, %v2038
        %v2042 = vunpack.c.l.s4 1966171168
        %v2043 = vunpack.c.0.s8 %v2042
        %v2044 = vlaneseq
        %v2045 = vshrl.u32 %v2044, 7
        %v2046 = vsub.s32 %v2043, %v2045
        %v2047 = vrot.slane %v2031, %v2046
        %v2049 = vunpack.c.l.s4 1966171168
        %v2050 = vunpack.c.0.s8 %v2049
        %v2051 = vlaneseq
        %v2052 = vshrl.u32 %v2051, 7
        %v2053 = vsub.s32 %v2050, %v2052
        %v2054 = vrot.slane %v2038, %v2053
        %v2056 = vunpack.c.l.s4 1966171168
        %v2057 = vunpack.c.0.s8 %v2056
        %v2058 = vlaneseq
        %v2059 = vshrl.u32 %v2058, 7
        %v2060 = vsub.s32 %v2057, %v2059
        %v2061 = vrot.slane %v2039, %v2060
        %v2063 = vunpack.c.l.s4 1966171168
        %v2064 = vunpack.c.0.s8 %v2063
        %v2065 = vlaneseq
        %v2066 = vshrl.u32 %v2065, 7
        %v2067 = vsub.s32 %v2064, %v2066
        %v2068 = vrot.slane %v2040, %v2067
        %v2069 = vcombine.high %v2047, %v2047
        %v2070 = vcombine.high %v2054, %v2054
        %v2071 = vcombine.high %v2061, %v2061
        %v2072 = vcombine.high %v2068, %v2068
        %v2074 = vunpack.c.l.s4 1966171168
        %v2075 = vunpack.c.0.s8 %v2074
        %v2076 = vlaneseq
        %v2077 = vshrl.u32 %v2076, 7
        %v2078 = vsub.s32 %v2075, %v2077
        %v2079 = vrot.slane %v231, %v2078
        %v2080 = vcombine.high %v2079, %v2079
        %v2082 = vunpack.c.l.s4 1966171168
        %v2083 = vunpack.c.0.s8 %v2082
        %v2084 = vlaneseq
        %v2085 = vshrl.u32 %v2084, 7
        %v2086 = vsub.s32 %v2083, %v2085
        %v2087 = vrot.slane %v2079, %v2086
        %v2089 = vunpack.c.l.s4 1966171168
        %v2090 = vunpack.c.0.s8 %v2089
        %v2091 = vlaneseq
        %v2092 = vshrl.u32 %v2091, 7
        %v2093 = vsub.s32 %v2090, %v2092
        %v2094 = vrot.slane %v2080, %v2093
        %v2095 = vcombine.high %v232, %v232
        %v2097 = vunpack.c.l.s4 1966171168
        %v2098 = vunpack.c.0.s8 %v2097
        %v2099 = vlaneseq
        %v2100 = vshrl.u32 %v2099, 7
        %v2101 = vsub.s32 %v2098, %v2100
        %v2102 = vrot.slane %v232, %v2101
        %v2104 = vunpack.c.l.s4 1966171168
        %v2105 = vunpack.c.0.s8 %v2104
        %v2106 = vlaneseq
        %v2107 = vshrl.u32 %v2106, 7
        %v2108 = vsub.s32 %v2105, %v2107
        %v2109 = vrot.slane %v2095, %v2108
        %v2110 = vcombine.high %v2102, %v2102
        %v2111 = vcombine.high %v2109, %v2109
        %v2113 = vunpack.c.l.s4 1966171168
        %v2114 = vunpack.c.0.s8 %v2113
        %v2115 = vlaneseq
        %v2116 = vshrl.u32 %v2115, 7
        %v2117 = vsub.s32 %v2114, %v2116
        %v2118 = vrot.slane %v2102, %v2117
        %v2120 = vunpack.c.l.s4 1966171168
        %v2121 = vunpack.c.0.s8 %v2120
        %v2122 = vlaneseq
        %v2123 = vshrl.u32 %v2122, 7
        %v2124 = vsub.s32 %v2121, %v2123
        %v2125 = vrot.slane %v2109, %v2124
        %v2127 = vunpack.c.l.s4 1966171168
        %v2128 = vunpack.c.0.s8 %v2127
        %v2129 = vlaneseq
        %v2130 = vshrl.u32 %v2129, 7
        %v2131 = vsub.s32 %v2128, %v2130
        %v2132 = vrot.slane %v2110, %v2131
        %v2134 = vunpack.c.l.s4 1966171168
        %v2135 = vunpack.c.0.s8 %v2134
        %v2136 = vlaneseq
        %v2137 = vshrl.u32 %v2136, 7
        %v2138 = vsub.s32 %v2135, %v2137
        %v2139 = vrot.slane %v2111, %v2138
        %v2140 = vcombine.high %v2118, %v2118
        %v2141 = vcombine.high %v2125, %v2125
        %v2142 = vcombine.high %v2132, %v2132
        %v2143 = vcombine.high %v2139, %v2139
        %v2144 = vcombine.high %v233, %v233
        %v2146 = vunpack.c.l.s4 1966171168
        %v2147 = vunpack.c.0.s8 %v2146
        %v2148 = vlaneseq
        %v2149 = vshrl.u32 %v2148, 7
        %v2150 = vsub.s32 %v2147, %v2149
        %v2151 = vrot.slane %v233, %v2150
        %v2153 = vunpack.c.l.s4 1966171168
        %v2154 = vunpack.c.0.s8 %v2153
        %v2155 = vlaneseq
        %v2156 = vshrl.u32 %v2155, 7
        %v2157 = vsub.s32 %v2154, %v2156
        %v2158 = vrot.slane %v2144, %v2157
        %v2159 = vcombine.high %v2151, %v2151
        %v2160 = vcombine.high %v2158, %v2158
        %v2162 = vunpack.c.l.s4 1966171168
        %v2163 = vunpack.c.0.s8 %v2162
        %v2164 = vlaneseq
        %v2165 = vshrl.u32 %v2164, 7
        %v2166 = vsub.s32 %v2163, %v2165
        %v2167 = vrot.slane %v2151, %v2166
        %v2169 = vunpack.c.l.s4 1966171168
        %v2170 = vunpack.c.0.s8 %v2169
        %v2171 = vlaneseq
        %v2172 = vshrl.u32 %v2171, 7
        %v2173 = vsub.s32 %v2170, %v2172
        %v2174 = vrot.slane %v2158, %v2173
        %v2176 = vunpack.c.l.s4 1966171168
        %v2177 = vunpack.c.0.s8 %v2176
        %v2178 = vlaneseq
        %v2179 = vshrl.u32 %v2178, 7
        %v2180 = vsub.s32 %v2177, %v2179
        %v2181 = vrot.slane %v2159, %v2180
        %v2183 = vunpack.c.l.s4 1966171168
        %v2184 = vunpack.c.0.s8 %v2183
        %v2185 = vlaneseq
        %v2186 = vshrl.u32 %v2185, 7
        %v2187 = vsub.s32 %v2184, %v2186
        %v2188 = vrot.slane %v2160, %v2187
        %v2189 = vcombine.high %v2167, %v2167
        %v2190 = vcombine.high %v2174, %v2174
        %v2191 = vcombine.high %v2181, %v2181
        %v2192 = vcombine.high %v2188, %v2188
        %v2194 = vunpack.c.l.s4 1966171168
        %v2195 = vunpack.c.0.s8 %v2194
        %v2196 = vlaneseq
        %v2197 = vshrl.u32 %v2196, 7
        %v2198 = vsub.s32 %v2195, %v2197
        %v2199 = vrot.slane %v234, %v2198
        %v2200 = vcombine.high %v2199, %v2199
        %v2202 = vunpack.c.l.s4 1966171168
        %v2203 = vunpack.c.0.s8 %v2202
        %v2204 = vlaneseq
        %v2205 = vshrl.u32 %v2204, 7
        %v2206 = vsub.s32 %v2203, %v2205
        %v2207 = vrot.slane %v2199, %v2206
        %v2209 = vunpack.c.l.s4 1966171168
        %v2210 = vunpack.c.0.s8 %v2209
        %v2211 = vlaneseq
        %v2212 = vshrl.u32 %v2211, 7
        %v2213 = vsub.s32 %v2210, %v2212
        %v2214 = vrot.slane %v2200, %v2213
        %v2215 = vcombine.high %v235, %v235
        %v2217 = vunpack.c.l.s4 1966171168
        %v2218 = vunpack.c.0.s8 %v2217
        %v2219 = vlaneseq
        %v2220 = vshrl.u32 %v2219, 7
        %v2221 = vsub.s32 %v2218, %v2220
        %v2222 = vrot.slane %v235, %v2221
        %v2224 = vunpack.c.l.s4 1966171168
        %v2225 = vunpack.c.0.s8 %v2224
        %v2226 = vlaneseq
        %v2227 = vshrl.u32 %v2226, 7
        %v2228 = vsub.s32 %v2225, %v2227
        %v2229 = vrot.slane %v2215, %v2228
        %v2230 = vcombine.high %v2222, %v2222
        %v2231 = vcombine.high %v2229, %v2229
        %v2233 = vunpack.c.l.s4 1966171168
        %v2234 = vunpack.c.0.s8 %v2233
        %v2235 = vlaneseq
        %v2236 = vshrl.u32 %v2235, 7
        %v2237 = vsub.s32 %v2234, %v2236
        %v2238 = vrot.slane %v2222, %v2237
        %v2240 = vunpack.c.l.s4 1966171168
        %v2241 = vunpack.c.0.s8 %v2240
        %v2242 = vlaneseq
        %v2243 = vshrl.u32 %v2242, 7
        %v2244 = vsub.s32 %v2241, %v2243
        %v2245 = vrot.slane %v2229, %v2244
        %v2247 = vunpack.c.l.s4 1966171168
        %v2248 = vunpack.c.0.s8 %v2247
        %v2249 = vlaneseq
        %v2250 = vshrl.u32 %v2249, 7
        %v2251 = vsub.s32 %v2248, %v2250
        %v2252 = vrot.slane %v2230, %v2251
        %v2254 = vunpack.c.l.s4 1966171168
        %v2255 = vunpack.c.0.s8 %v2254
        %v2256 = vlaneseq
        %v2257 = vshrl.u32 %v2256, 7
        %v2258 = vsub.s32 %v2255, %v2257
        %v2259 = vrot.slane %v2231, %v2258
        %v2260 = vcombine.high %v2238, %v2238
        %v2261 = vcombine.high %v2245, %v2245
        %v2262 = vcombine.high %v2252, %v2252
        %v2263 = vcombine.high %v2259, %v2259
        %v2264 = vcombine.high %v236, %v236
        %v2266 = vunpack.c.l.s4 1966171168
        %v2267 = vunpack.c.0.s8 %v2266
        %v2268 = vlaneseq
        %v2269 = vshrl.u32 %v2268, 7
        %v2270 = vsub.s32 %v2267, %v2269
        %v2271 = vrot.slane %v236, %v2270
        %v2273 = vunpack.c.l.s4 1966171168
        %v2274 = vunpack.c.0.s8 %v2273
        %v2275 = vlaneseq
        %v2276 = vshrl.u32 %v2275, 7
        %v2277 = vsub.s32 %v2274, %v2276
        %v2278 = vrot.slane %v2264, %v2277
        %v2279 = vcombine.high %v2271, %v2271
        %v2280 = vcombine.high %v2278, %v2278
        %v2282 = vunpack.c.l.s4 1966171168
        %v2283 = vunpack.c.0.s8 %v2282
        %v2284 = vlaneseq
        %v2285 = vshrl.u32 %v2284, 7
        %v2286 = vsub.s32 %v2283, %v2285
        %v2287 = vrot.slane %v2271, %v2286
        %v2289 = vunpack.c.l.s4 1966171168
        %v2290 = vunpack.c.0.s8 %v2289
        %v2291 = vlaneseq
        %v2292 = vshrl.u32 %v2291, 7
        %v2293 = vsub.s32 %v2290, %v2292
        %v2294 = vrot.slane %v2278, %v2293
        %v2296 = vunpack.c.l.s4 1966171168
        %v2297 = vunpack.c.0.s8 %v2296
        %v2298 = vlaneseq
        %v2299 = vshrl.u32 %v2298, 7
        %v2300 = vsub.s32 %v2297, %v2299
        %v2301 = vrot.slane %v2279, %v2300
        %v2303 = vunpack.c.l.s4 1966171168
        %v2304 = vunpack.c.0.s8 %v2303
        %v2305 = vlaneseq
        %v2306 = vshrl.u32 %v2305, 7
        %v2307 = vsub.s32 %v2304, %v2306
        %v2308 = vrot.slane %v2280, %v2307
        %v2309 = vcombine.high %v2287, %v2287
        %v2310 = vcombine.high %v2294, %v2294
        %v2311 = vcombine.high %v2301, %v2301
        %v2312 = vcombine.high %v2308, %v2308
        %v2314 = vunpack.c.l.s4 1966171168
        %v2315 = vunpack.c.0.s8 %v2314
        %v2316 = vlaneseq
        %v2317 = vshrl.u32 %v2316, 7
        %v2318 = vsub.s32 %v2315, %v2317
        %v2319 = vrot.slane %v237, %v2318
        %v2320 = vcombine.high %v2319, %v2319
        %v2322 = vunpack.c.l.s4 1966171168
        %v2323 = vunpack.c.0.s8 %v2322
        %v2324 = vlaneseq
        %v2325 = vshrl.u32 %v2324, 7
        %v2326 = vsub.s32 %v2323, %v2325
        %v2327 = vrot.slane %v2319, %v2326
        %v2329 = vunpack.c.l.s4 1966171168
        %v2330 = vunpack.c.0.s8 %v2329
        %v2331 = vlaneseq
        %v2332 = vshrl.u32 %v2331, 7
        %v2333 = vsub.s32 %v2330, %v2332
        %v2334 = vrot.slane %v2320, %v2333
        %v2335 = vcombine.high %v238, %v238
        %v2337 = vunpack.c.l.s4 1966171168
        %v2338 = vunpack.c.0.s8 %v2337
        %v2339 = vlaneseq
        %v2340 = vshrl.u32 %v2339, 7
        %v2341 = vsub.s32 %v2338, %v2340
        %v2342 = vrot.slane %v238, %v2341
        %v2344 = vunpack.c.l.s4 1966171168
        %v2345 = vunpack.c.0.s8 %v2344
        %v2346 = vlaneseq
        %v2347 = vshrl.u32 %v2346, 7
        %v2348 = vsub.s32 %v2345, %v2347
        %v2349 = vrot.slane %v2335, %v2348
        %v2350 = vcombine.high %v2342, %v2342
        %v2351 = vcombine.high %v2349, %v2349
        %v2353 = vunpack.c.l.s4 1966171168
        %v2354 = vunpack.c.0.s8 %v2353
        %v2355 = vlaneseq
        %v2356 = vshrl.u32 %v2355, 7
        %v2357 = vsub.s32 %v2354, %v2356
        %v2358 = vrot.slane %v2342, %v2357
        %v2360 = vunpack.c.l.s4 1966171168
        %v2361 = vunpack.c.0.s8 %v2360
        %v2362 = vlaneseq
        %v2363 = vshrl.u32 %v2362, 7
        %v2364 = vsub.s32 %v2361, %v2363
        %v2365 = vrot.slane %v2349, %v2364
        %v2367 = vunpack.c.l.s4 1966171168
        %v2368 = vunpack.c.0.s8 %v2367
        %v2369 = vlaneseq
        %v2370 = vshrl.u32 %v2369, 7
        %v2371 = vsub.s32 %v2368, %v2370
        %v2372 = vrot.slane %v2350, %v2371
        %v2374 = vunpack.c.l.s4 1966171168
        %v2375 = vunpack.c.0.s8 %v2374
        %v2376 = vlaneseq
        %v2377 = vshrl.u32 %v2376, 7
        %v2378 = vsub.s32 %v2375, %v2377
        %v2379 = vrot.slane %v2351, %v2378
        %v2380 = vcombine.high %v2358, %v2358
        %v2381 = vcombine.high %v2365, %v2365
        %v2382 = vcombine.high %v2372, %v2372
        %v2383 = vcombine.high %v2379, %v2379
        %v2384 = vcombine.high %v239, %v239
        %v2386 = vunpack.c.l.s4 1966171168
        %v2387 = vunpack.c.0.s8 %v2386
        %v2388 = vlaneseq
        %v2389 = vshrl.u32 %v2388, 7
        %v2390 = vsub.s32 %v2387, %v2389
        %v2391 = vrot.slane %v239, %v2390
        %v2393 = vunpack.c.l.s4 1966171168
        %v2394 = vunpack.c.0.s8 %v2393
        %v2395 = vlaneseq
        %v2396 = vshrl.u32 %v2395, 7
        %v2397 = vsub.s32 %v2394, %v2396
        %v2398 = vrot.slane %v2384, %v2397
        %v2399 = vcombine.high %v2391, %v2391
        %v2400 = vcombine.high %v2398, %v2398
        %v2402 = vunpack.c.l.s4 1966171168
        %v2403 = vunpack.c.0.s8 %v2402
        %v2404 = vlaneseq
        %v2405 = vshrl.u32 %v2404, 7
        %v2406 = vsub.s32 %v2403, %v2405
        %v2407 = vrot.slane %v2391, %v2406
        %v2409 = vunpack.c.l.s4 1966171168
        %v2410 = vunpack.c.0.s8 %v2409
        %v2411 = vlaneseq
        %v2412 = vshrl.u32 %v2411, 7
        %v2413 = vsub.s32 %v2410, %v2412
        %v2414 = vrot.slane %v2398, %v2413
        %v2416 = vunpack.c.l.s4 1966171168
        %v2417 = vunpack.c.0.s8 %v2416
        %v2418 = vlaneseq
        %v2419 = vshrl.u32 %v2418, 7
        %v2420 = vsub.s32 %v2417, %v2419
        %v2421 = vrot.slane %v2399, %v2420
        %v2423 = vunpack.c.l.s4 1966171168
        %v2424 = vunpack.c.0.s8 %v2423
        %v2425 = vlaneseq
        %v2426 = vshrl.u32 %v2425, 7
        %v2427 = vsub.s32 %v2424, %v2426
        %v2428 = vrot.slane %v2400, %v2427
        %v2429 = vcombine.high %v2407, %v2407
        %v2430 = vcombine.high %v2414, %v2414
        %v2431 = vcombine.high %v2421, %v2421
        %v2432 = vcombine.high %v2428, %v2428
        %v2434 = vunpack.c.l.s4 1966171168
        %v2435 = vunpack.c.0.s8 %v2434
        %v2436 = vlaneseq
        %v2437 = vshrl.u32 %v2436, 7
        %v2438 = vsub.s32 %v2435, %v2437
        %v2439 = vrot.slane %v240, %v2438
        %v2440 = vcombine.high %v2439, %v2439
        %v2442 = vunpack.c.l.s4 1966171168
        %v2443 = vunpack.c.0.s8 %v2442
        %v2444 = vlaneseq
        %v2445 = vshrl.u32 %v2444, 7
        %v2446 = vsub.s32 %v2443, %v2445
        %v2447 = vrot.slane %v2439, %v2446
        %v2449 = vunpack.c.l.s4 1966171168
        %v2450 = vunpack.c.0.s8 %v2449
        %v2451 = vlaneseq
        %v2452 = vshrl.u32 %v2451, 7
        %v2453 = vsub.s32 %v2450, %v2452
        %v2454 = vrot.slane %v2440, %v2453
        %v2455 = vlaneseq
        %v2456 = vshrl.u32 %v2455, 7
        %v2457 = vsub.s32 0, %v2456
        %v2458 = vrot.slane %v318, %v2457
        %v2459 = vlaneseq
        %v2460 = vshrl.u32 %v2459, 7
        %v2461 = vsub.s32 0, %v2460
        %v2462 = vrot.slane %v332, %v2461
        %v2463 = vlaneseq
        %v2464 = vshrl.u32 %v2463, 7
        %v2465 = vsub.s32 0, %v2464
        %v2466 = vrot.slane %v340, %v2465
        %v2467 = vlaneseq
        %v2468 = vshrl.u32 %v2467, 7
        %v2469 = vsub.s32 0, %v2468
        %v2470 = vrot.slane %v342, %v2469
        %v2471 = vlaneseq
        %v2472 = vshrl.u32 %v2471, 7
        %v2473 = vsub.s32 0, %v2472
        %v2474 = vrot.slane %v325, %v2473
        %v2475 = vlaneseq
        %v2476 = vshrl.u32 %v2475, 7
        %v2477 = vsub.s32 0, %v2476
        %v2478 = vrot.slane %v339, %v2477
        %v2479 = vlaneseq
        %v2480 = vshrl.u32 %v2479, 7
        %v2481 = vsub.s32 0, %v2480
        %v2482 = vrot.slane %v341, %v2481
        %v2483 = vlaneseq
        %v2484 = vshrl.u32 %v2483, 7
        %v2485 = vsub.s32 0, %v2484
        %v2486 = vrot.slane %v343, %v2485
        %v2487 = vlaneseq
        %v2488 = vshrl.u32 %v2487, 7
        %v2489 = vsub.s32 0, %v2488
        %v2490 = vrot.slane %v367, %v2489
        %v2491 = vlaneseq
        %v2492 = vshrl.u32 %v2491, 7
        %v2493 = vsub.s32 0, %v2492
        %v2494 = vrot.slane %v381, %v2493
        %v2495 = vlaneseq
        %v2496 = vshrl.u32 %v2495, 7
        %v2497 = vsub.s32 0, %v2496
        %v2498 = vrot.slane %v389, %v2497
        %v2499 = vlaneseq
        %v2500 = vshrl.u32 %v2499, 7
        %v2501 = vsub.s32 0, %v2500
        %v2502 = vrot.slane %v391, %v2501
        %v2503 = vlaneseq
        %v2504 = vshrl.u32 %v2503, 7
        %v2505 = vsub.s32 0, %v2504
        %v2506 = vrot.slane %v374, %v2505
        %v2507 = vlaneseq
        %v2508 = vshrl.u32 %v2507, 7
        %v2509 = vsub.s32 0, %v2508
        %v2510 = vrot.slane %v388, %v2509
        %v2511 = vlaneseq
        %v2512 = vshrl.u32 %v2511, 7
        %v2513 = vsub.s32 0, %v2512
        %v2514 = vrot.slane %v390, %v2513
        %v2515 = vlaneseq
        %v2516 = vshrl.u32 %v2515, 7
        %v2517 = vsub.s32 0, %v2516
        %v2518 = vrot.slane %v392, %v2517
        %v2519 = vlaneseq
        %v2520 = vshrl.u32 %v2519, 7
        %v2521 = vsub.s32 0, %v2520
        %v2522 = vrot.slane %v407, %v2521
        %v2523 = vlaneseq
        %v2524 = vshrl.u32 %v2523, 7
        %v2525 = vsub.s32 0, %v2524
        %v2526 = vrot.slane %v414, %v2525
        %v2527 = vlaneseq
        %v2528 = vshrl.u32 %v2527, 7
        %v2529 = vsub.s32 0, %v2528
        %v2530 = vrot.slane %v438, %v2529
        %v2531 = vlaneseq
        %v2532 = vshrl.u32 %v2531, 7
        %v2533 = vsub.s32 0, %v2532
        %v2534 = vrot.slane %v452, %v2533
        %v2535 = vlaneseq
        %v2536 = vshrl.u32 %v2535, 7
        %v2537 = vsub.s32 0, %v2536
        %v2538 = vrot.slane %v460, %v2537
        %v2539 = vlaneseq
        %v2540 = vshrl.u32 %v2539, 7
        %v2541 = vsub.s32 0, %v2540
        %v2542 = vrot.slane %v462, %v2541
        %v2543 = vlaneseq
        %v2544 = vshrl.u32 %v2543, 7
        %v2545 = vsub.s32 0, %v2544
        %v2546 = vrot.slane %v445, %v2545
        %v2547 = vlaneseq
        %v2548 = vshrl.u32 %v2547, 7
        %v2549 = vsub.s32 0, %v2548
        %v2550 = vrot.slane %v459, %v2549
        %v2551 = vlaneseq
        %v2552 = vshrl.u32 %v2551, 7
        %v2553 = vsub.s32 0, %v2552
        %v2554 = vrot.slane %v461, %v2553
        %v2555 = vlaneseq
        %v2556 = vshrl.u32 %v2555, 7
        %v2557 = vsub.s32 0, %v2556
        %v2558 = vrot.slane %v463, %v2557
        %v2559 = vlaneseq
        %v2560 = vshrl.u32 %v2559, 7
        %v2561 = vsub.s32 0, %v2560
        %v2562 = vrot.slane %v487, %v2561
        %v2563 = vlaneseq
        %v2564 = vshrl.u32 %v2563, 7
        %v2565 = vsub.s32 0, %v2564
        %v2566 = vrot.slane %v501, %v2565
        %v2567 = vlaneseq
        %v2568 = vshrl.u32 %v2567, 7
        %v2569 = vsub.s32 0, %v2568
        %v2570 = vrot.slane %v509, %v2569
        %v2571 = vlaneseq
        %v2572 = vshrl.u32 %v2571, 7
        %v2573 = vsub.s32 0, %v2572
        %v2574 = vrot.slane %v511, %v2573
        %v2575 = vlaneseq
        %v2576 = vshrl.u32 %v2575, 7
        %v2577 = vsub.s32 0, %v2576
        %v2578 = vrot.slane %v494, %v2577
        %v2579 = vlaneseq
        %v2580 = vshrl.u32 %v2579, 7
        %v2581 = vsub.s32 0, %v2580
        %v2582 = vrot.slane %v508, %v2581
        %v2583 = vlaneseq
        %v2584 = vshrl.u32 %v2583, 7
        %v2585 = vsub.s32 0, %v2584
        %v2586 = vrot.slane %v510, %v2585
        %v2587 = vlaneseq
        %v2588 = vshrl.u32 %v2587, 7
        %v2589 = vsub.s32 0, %v2588
        %v2590 = vrot.slane %v512, %v2589
        %v2591 = vlaneseq
        %v2592 = vshrl.u32 %v2591, 7
        %v2593 = vsub.s32 0, %v2592
        %v2594 = vrot.slane %v527, %v2593
        %v2595 = vlaneseq
        %v2596 = vshrl.u32 %v2595, 7
        %v2597 = vsub.s32 0, %v2596
        %v2598 = vrot.slane %v534, %v2597
        %v2599 = vlaneseq
        %v2600 = vshrl.u32 %v2599, 7
        %v2601 = vsub.s32 0, %v2600
        %v2602 = vrot.slane %v558, %v2601
        %v2603 = vlaneseq
        %v2604 = vshrl.u32 %v2603, 7
        %v2605 = vsub.s32 0, %v2604
        %v2606 = vrot.slane %v572, %v2605
        %v2607 = vlaneseq
        %v2608 = vshrl.u32 %v2607, 7
        %v2609 = vsub.s32 0, %v2608
        %v2610 = vrot.slane %v580, %v2609
        %v2611 = vlaneseq
        %v2612 = vshrl.u32 %v2611, 7
        %v2613 = vsub.s32 0, %v2612
        %v2614 = vrot.slane %v582, %v2613
        %v2615 = vlaneseq
        %v2616 = vshrl.u32 %v2615, 7
        %v2617 = vsub.s32 0, %v2616
        %v2618 = vrot.slane %v565, %v2617
        %v2619 = vlaneseq
        %v2620 = vshrl.u32 %v2619, 7
        %v2621 = vsub.s32 0, %v2620
        %v2622 = vrot.slane %v579, %v2621
        %v2623 = vlaneseq
        %v2624 = vshrl.u32 %v2623, 7
        %v2625 = vsub.s32 0, %v2624
        %v2626 = vrot.slane %v581, %v2625
        %v2627 = vlaneseq
        %v2628 = vshrl.u32 %v2627, 7
        %v2629 = vsub.s32 0, %v2628
        %v2630 = vrot.slane %v583, %v2629
        %v2631 = vlaneseq
        %v2632 = vshrl.u32 %v2631, 7
        %v2633 = vsub.s32 0, %v2632
        %v2634 = vrot.slane %v607, %v2633
        %v2635 = vlaneseq
        %v2636 = vshrl.u32 %v2635, 7
        %v2637 = vsub.s32 0, %v2636
        %v2638 = vrot.slane %v621, %v2637
        %v2639 = vlaneseq
        %v2640 = vshrl.u32 %v2639, 7
        %v2641 = vsub.s32 0, %v2640
        %v2642 = vrot.slane %v629, %v2641
        %v2643 = vlaneseq
        %v2644 = vshrl.u32 %v2643, 7
        %v2645 = vsub.s32 0, %v2644
        %v2646 = vrot.slane %v631, %v2645
        %v2647 = vlaneseq
        %v2648 = vshrl.u32 %v2647, 7
        %v2649 = vsub.s32 0, %v2648
        %v2650 = vrot.slane %v614, %v2649
        %v2651 = vlaneseq
        %v2652 = vshrl.u32 %v2651, 7
        %v2653 = vsub.s32 0, %v2652
        %v2654 = vrot.slane %v628, %v2653
        %v2655 = vlaneseq
        %v2656 = vshrl.u32 %v2655, 7
        %v2657 = vsub.s32 0, %v2656
        %v2658 = vrot.slane %v630, %v2657
        %v2659 = vlaneseq
        %v2660 = vshrl.u32 %v2659, 7
        %v2661 = vsub.s32 0, %v2660
        %v2662 = vrot.slane %v632, %v2661
        %v2663 = vlaneseq
        %v2664 = vshrl.u32 %v2663, 7
        %v2665 = vsub.s32 0, %v2664
        %v2666 = vrot.slane %v647, %v2665
        %v2667 = vlaneseq
        %v2668 = vshrl.u32 %v2667, 7
        %v2669 = vsub.s32 0, %v2668
        %v2670 = vrot.slane %v654, %v2669
        %v2671 = vlaneseq
        %v2672 = vshrl.u32 %v2671, 7
        %v2673 = vsub.s32 0, %v2672
        %v2674 = vrot.slane %v678, %v2673
        %v2675 = vlaneseq
        %v2676 = vshrl.u32 %v2675, 7
        %v2677 = vsub.s32 0, %v2676
        %v2678 = vrot.slane %v692, %v2677
        %v2679 = vlaneseq
        %v2680 = vshrl.u32 %v2679, 7
        %v2681 = vsub.s32 0, %v2680
        %v2682 = vrot.slane %v700, %v2681
        %v2683 = vlaneseq
        %v2684 = vshrl.u32 %v2683, 7
        %v2685 = vsub.s32 0, %v2684
        %v2686 = vrot.slane %v702, %v2685
        %v2687 = vlaneseq
        %v2688 = vshrl.u32 %v2687, 7
        %v2689 = vsub.s32 0, %v2688
        %v2690 = vrot.slane %v685, %v2689
        %v2691 = vlaneseq
        %v2692 = vshrl.u32 %v2691, 7
        %v2693 = vsub.s32 0, %v2692
        %v2694 = vrot.slane %v699, %v2693
        %v2695 = vlaneseq
        %v2696 = vshrl.u32 %v2695, 7
        %v2697 = vsub.s32 0, %v2696
        %v2698 = vrot.slane %v701, %v2697
        %v2699 = vlaneseq
        %v2700 = vshrl.u32 %v2699, 7
        %v2701 = vsub.s32 0, %v2700
        %v2702 = vrot.slane %v703, %v2701
        %v2703 = vlaneseq
        %v2704 = vshrl.u32 %v2703, 7
        %v2705 = vsub.s32 0, %v2704
        %v2706 = vrot.slane %v727, %v2705
        %v2707 = vlaneseq
        %v2708 = vshrl.u32 %v2707, 7
        %v2709 = vsub.s32 0, %v2708
        %v2710 = vrot.slane %v741, %v2709
        %v2711 = vlaneseq
        %v2712 = vshrl.u32 %v2711, 7
        %v2713 = vsub.s32 0, %v2712
        %v2714 = vrot.slane %v749, %v2713
        %v2715 = vlaneseq
        %v2716 = vshrl.u32 %v2715, 7
        %v2717 = vsub.s32 0, %v2716
        %v2718 = vrot.slane %v751, %v2717
        %v2719 = vlaneseq
        %v2720 = vshrl.u32 %v2719, 7
        %v2721 = vsub.s32 0, %v2720
        %v2722 = vrot.slane %v734, %v2721
        %v2723 = vlaneseq
        %v2724 = vshrl.u32 %v2723, 7
        %v2725 = vsub.s32 0, %v2724
        %v2726 = vrot.slane %v748, %v2725
        %v2727 = vlaneseq
        %v2728 = vshrl.u32 %v2727, 7
        %v2729 = vsub.s32 0, %v2728
        %v2730 = vrot.slane %v750, %v2729
        %v2731 = vlaneseq
        %v2732 = vshrl.u32 %v2731, 7
        %v2733 = vsub.s32 0, %v2732
        %v2734 = vrot.slane %v752, %v2733
        %v2735 = vlaneseq
        %v2736 = vshrl.u32 %v2735, 7
        %v2737 = vsub.s32 0, %v2736
        %v2738 = vrot.slane %v767, %v2737
        %v2739 = vlaneseq
        %v2740 = vshrl.u32 %v2739, 7
        %v2741 = vsub.s32 0, %v2740
        %v2742 = vrot.slane %v774, %v2741
        %v2743 = vlaneseq
        %v2744 = vshrl.u32 %v2743, 7
        %v2745 = vsub.s32 0, %v2744
        %v2746 = vrot.slane %v798, %v2745
        %v2747 = vlaneseq
        %v2748 = vshrl.u32 %v2747, 7
        %v2749 = vsub.s32 0, %v2748
        %v2750 = vrot.slane %v812, %v2749
        %v2751 = vlaneseq
        %v2752 = vshrl.u32 %v2751, 7
        %v2753 = vsub.s32 0, %v2752
        %v2754 = vrot.slane %v820, %v2753
        %v2755 = vlaneseq
        %v2756 = vshrl.u32 %v2755, 7
        %v2757 = vsub.s32 0, %v2756
        %v2758 = vrot.slane %v822, %v2757
        %v2759 = vlaneseq
        %v2760 = vshrl.u32 %v2759, 7
        %v2761 = vsub.s32 0, %v2760
        %v2762 = vrot.slane %v805, %v2761
        %v2763 = vlaneseq
        %v2764 = vshrl.u32 %v2763, 7
        %v2765 = vsub.s32 0, %v2764
        %v2766 = vrot.slane %v819, %v2765
        %v2767 = vlaneseq
        %v2768 = vshrl.u32 %v2767, 7
        %v2769 = vsub.s32 0, %v2768
        %v2770 = vrot.slane %v821, %v2769
        %v2771 = vlaneseq
        %v2772 = vshrl.u32 %v2771, 7
        %v2773 = vsub.s32 0, %v2772
        %v2774 = vrot.slane %v823, %v2773
        %v2775 = vlaneseq
        %v2776 = vshrl.u32 %v2775, 7
        %v2777 = vsub.s32 0, %v2776
        %v2778 = vrot.slane %v847, %v2777
        %v2779 = vlaneseq
        %v2780 = vshrl.u32 %v2779, 7
        %v2781 = vsub.s32 0, %v2780
        %v2782 = vrot.slane %v861, %v2781
        %v2783 = vlaneseq
        %v2784 = vshrl.u32 %v2783, 7
        %v2785 = vsub.s32 0, %v2784
        %v2786 = vrot.slane %v869, %v2785
        %v2787 = vlaneseq
        %v2788 = vshrl.u32 %v2787, 7
        %v2789 = vsub.s32 0, %v2788
        %v2790 = vrot.slane %v871, %v2789
        %v2791 = vlaneseq
        %v2792 = vshrl.u32 %v2791, 7
        %v2793 = vsub.s32 0, %v2792
        %v2794 = vrot.slane %v854, %v2793
        %v2795 = vlaneseq
        %v2796 = vshrl.u32 %v2795, 7
        %v2797 = vsub.s32 0, %v2796
        %v2798 = vrot.slane %v868, %v2797
        %v2799 = vlaneseq
        %v2800 = vshrl.u32 %v2799, 7
        %v2801 = vsub.s32 0, %v2800
        %v2802 = vrot.slane %v870, %v2801
        %v2803 = vlaneseq
        %v2804 = vshrl.u32 %v2803, 7
        %v2805 = vsub.s32 0, %v2804
        %v2806 = vrot.slane %v872, %v2805
        %v2807 = vlaneseq
        %v2808 = vshrl.u32 %v2807, 7
        %v2809 = vsub.s32 0, %v2808
        %v2810 = vrot.slane %v887, %v2809
        %v2811 = vlaneseq
        %v2812 = vshrl.u32 %v2811, 7
        %v2813 = vsub.s32 0, %v2812
        %v2814 = vrot.slane %v894, %v2813
        %v2815 = vlaneseq
        %v2816 = vshrl.u32 %v2815, 7
        %v2817 = vsub.s32 0, %v2816
        %v2818 = vrot.slane %v918, %v2817
        %v2819 = vlaneseq
        %v2820 = vshrl.u32 %v2819, 7
        %v2821 = vsub.s32 0, %v2820
        %v2822 = vrot.slane %v932, %v2821
        %v2823 = vlaneseq
        %v2824 = vshrl.u32 %v2823, 7
        %v2825 = vsub.s32 0, %v2824
        %v2826 = vrot.slane %v940, %v2825
        %v2827 = vlaneseq
        %v2828 = vshrl.u32 %v2827, 7
        %v2829 = vsub.s32 0, %v2828
        %v2830 = vrot.slane %v942, %v2829
        %v2831 = vlaneseq
        %v2832 = vshrl.u32 %v2831, 7
        %v2833 = vsub.s32 0, %v2832
        %v2834 = vrot.slane %v925, %v2833
        %v2835 = vlaneseq
        %v2836 = vshrl.u32 %v2835, 7
        %v2837 = vsub.s32 0, %v2836
        %v2838 = vrot.slane %v939, %v2837
        %v2839 = vlaneseq
        %v2840 = vshrl.u32 %v2839, 7
        %v2841 = vsub.s32 0, %v2840
        %v2842 = vrot.slane %v941, %v2841
        %v2843 = vlaneseq
        %v2844 = vshrl.u32 %v2843, 7
        %v2845 = vsub.s32 0, %v2844
        %v2846 = vrot.slane %v943, %v2845
        %v2847 = vlaneseq
        %v2848 = vshrl.u32 %v2847, 7
        %v2849 = vsub.s32 0, %v2848
        %v2850 = vrot.slane %v967, %v2849
        %v2851 = vlaneseq
        %v2852 = vshrl.u32 %v2851, 7
        %v2853 = vsub.s32 0, %v2852
        %v2854 = vrot.slane %v981, %v2853
        %v2855 = vlaneseq
        %v2856 = vshrl.u32 %v2855, 7
        %v2857 = vsub.s32 0, %v2856
        %v2858 = vrot.slane %v989, %v2857
        %v2859 = vlaneseq
        %v2860 = vshrl.u32 %v2859, 7
        %v2861 = vsub.s32 0, %v2860
        %v2862 = vrot.slane %v991, %v2861
        %v2863 = vlaneseq
        %v2864 = vshrl.u32 %v2863, 7
        %v2865 = vsub.s32 0, %v2864
        %v2866 = vrot.slane %v974, %v2865
        %v2867 = vlaneseq
        %v2868 = vshrl.u32 %v2867, 7
        %v2869 = vsub.s32 0, %v2868
        %v2870 = vrot.slane %v988, %v2869
        %v2871 = vlaneseq
        %v2872 = vshrl.u32 %v2871, 7
        %v2873 = vsub.s32 0, %v2872
        %v2874 = vrot.slane %v990, %v2873
        %v2875 = vlaneseq
        %v2876 = vshrl.u32 %v2875, 7
        %v2877 = vsub.s32 0, %v2876
        %v2878 = vrot.slane %v992, %v2877
        %v2879 = vlaneseq
        %v2880 = vshrl.u32 %v2879, 7
        %v2881 = vsub.s32 0, %v2880
        %v2882 = vrot.slane %v1007, %v2881
        %v2883 = vlaneseq
        %v2884 = vshrl.u32 %v2883, 7
        %v2885 = vsub.s32 0, %v2884
        %v2886 = vrot.slane %v1014, %v2885
        %v2887 = vlaneseq
        %v2888 = vshrl.u32 %v2887, 7
        %v2889 = vsub.s32 0, %v2888
        %v2890 = vrot.slane %v1038, %v2889
        %v2891 = vlaneseq
        %v2892 = vshrl.u32 %v2891, 7
        %v2893 = vsub.s32 0, %v2892
        %v2894 = vrot.slane %v1052, %v2893
        %v2895 = vlaneseq
        %v2896 = vshrl.u32 %v2895, 7
        %v2897 = vsub.s32 0, %v2896
        %v2898 = vrot.slane %v1060, %v2897
        %v2899 = vlaneseq
        %v2900 = vshrl.u32 %v2899, 7
        %v2901 = vsub.s32 0, %v2900
        %v2902 = vrot.slane %v1062, %v2901
        %v2903 = vlaneseq
        %v2904 = vshrl.u32 %v2903, 7
        %v2905 = vsub.s32 0, %v2904
        %v2906 = vrot.slane %v1045, %v2905
        %v2907 = vlaneseq
        %v2908 = vshrl.u32 %v2907, 7
        %v2909 = vsub.s32 0, %v2908
        %v2910 = vrot.slane %v1059, %v2909
        %v2911 = vlaneseq
        %v2912 = vshrl.u32 %v2911, 7
        %v2913 = vsub.s32 0, %v2912
        %v2914 = vrot.slane %v1061, %v2913
        %v2915 = vlaneseq
        %v2916 = vshrl.u32 %v2915, 7
        %v2917 = vsub.s32 0, %v2916
        %v2918 = vrot.slane %v1063, %v2917
        %v2919 = vlaneseq
        %v2920 = vshrl.u32 %v2919, 7
        %v2921 = vsub.s32 0, %v2920
        %v2922 = vrot.slane %v1087, %v2921
        %v2923 = vlaneseq
        %v2924 = vshrl.u32 %v2923, 7
        %v2925 = vsub.s32 0, %v2924
        %v2926 = vrot.slane %v1101, %v2925
        %v2927 = vlaneseq
        %v2928 = vshrl.u32 %v2927, 7
        %v2929 = vsub.s32 0, %v2928
        %v2930 = vrot.slane %v1109, %v2929
        %v2931 = vlaneseq
        %v2932 = vshrl.u32 %v2931, 7
        %v2933 = vsub.s32 0, %v2932
        %v2934 = vrot.slane %v1111, %v2933
        %v2935 = vlaneseq
        %v2936 = vshrl.u32 %v2935, 7
        %v2937 = vsub.s32 0, %v2936
        %v2938 = vrot.slane %v1094, %v2937
        %v2939 = vlaneseq
        %v2940 = vshrl.u32 %v2939, 7
        %v2941 = vsub.s32 0, %v2940
        %v2942 = vrot.slane %v1108, %v2941
        %v2943 = vlaneseq
        %v2944 = vshrl.u32 %v2943, 7
        %v2945 = vsub.s32 0, %v2944
        %v2946 = vrot.slane %v1110, %v2945
        %v2947 = vlaneseq
        %v2948 = vshrl.u32 %v2947, 7
        %v2949 = vsub.s32 0, %v2948
        %v2950 = vrot.slane %v1112, %v2949
        %v2951 = vlaneseq
        %v2952 = vshrl.u32 %v2951, 7
        %v2953 = vsub.s32 0, %v2952
        %v2954 = vrot.slane %v1127, %v2953
        %v2955 = vlaneseq
        %v2956 = vshrl.u32 %v2955, 7
        %v2957 = vsub.s32 0, %v2956
        %v2958 = vrot.slane %v1134, %v2957
        %v2959 = vlaneseq
        %v2960 = vshrl.u32 %v2959, 7
        %v2961 = vsub.s32 0, %v2960
        %v2962 = vrot.slane %v1158, %v2961
        %v2963 = vlaneseq
        %v2964 = vshrl.u32 %v2963, 7
        %v2965 = vsub.s32 0, %v2964
        %v2966 = vrot.slane %v1172, %v2965
        %v2967 = vlaneseq
        %v2968 = vshrl.u32 %v2967, 7
        %v2969 = vsub.s32 0, %v2968
        %v2970 = vrot.slane %v1180, %v2969
        %v2971 = vlaneseq
        %v2972 = vshrl.u32 %v2971, 7
        %v2973 = vsub.s32 0, %v2972
        %v2974 = vrot.slane %v1182, %v2973
        %v2975 = vlaneseq
        %v2976 = vshrl.u32 %v2975, 7
        %v2977 = vsub.s32 0, %v2976
        %v2978 = vrot.slane %v1165, %v2977
        %v2979 = vlaneseq
        %v2980 = vshrl.u32 %v2979, 7
        %v2981 = vsub.s32 0, %v2980
        %v2982 = vrot.slane %v1179, %v2981
        %v2983 = vlaneseq
        %v2984 = vshrl.u32 %v2983, 7
        %v2985 = vsub.s32 0, %v2984
        %v2986 = vrot.slane %v1181, %v2985
        %v2987 = vlaneseq
        %v2988 = vshrl.u32 %v2987, 7
        %v2989 = vsub.s32 0, %v2988
        %v2990 = vrot.slane %v1183, %v2989
        %v2991 = vlaneseq
        %v2992 = vshrl.u32 %v2991, 7
        %v2993 = vsub.s32 0, %v2992
        %v2994 = vrot.slane %v1207, %v2993
        %v2995 = vlaneseq
        %v2996 = vshrl.u32 %v2995, 7
        %v2997 = vsub.s32 0, %v2996
        %v2998 = vrot.slane %v1221, %v2997
        %v2999 = vlaneseq
        %v3000 = vshrl.u32 %v2999, 7
        %v3001 = vsub.s32 0, %v3000
        %v3002 = vrot.slane %v1229, %v3001
        %v3003 = vlaneseq
        %v3004 = vshrl.u32 %v3003, 7
        %v3005 = vsub.s32 0, %v3004
        %v3006 = vrot.slane %v1231, %v3005
        %v3007 = vlaneseq
        %v3008 = vshrl.u32 %v3007, 7
        %v3009 = vsub.s32 0, %v3008
        %v3010 = vrot.slane %v1214, %v3009
        %v3011 = vlaneseq
        %v3012 = vshrl.u32 %v3011, 7
        %v3013 = vsub.s32 0, %v3012
        %v3014 = vrot.slane %v1228, %v3013
        %v3015 = vlaneseq
        %v3016 = vshrl.u32 %v3015, 7
        %v3017 = vsub.s32 0, %v3016
        %v3018 = vrot.slane %v1230, %v3017
        %v3019 = vlaneseq
        %v3020 = vshrl.u32 %v3019, 7
        %v3021 = vsub.s32 0, %v3020
        %v3022 = vrot.slane %v1232, %v3021
        %v3023 = vlaneseq
        %v3024 = vshrl.u32 %v3023, 7
        %v3025 = vsub.s32 0, %v3024
        %v3026 = vrot.slane %v1247, %v3025
        %v3027 = vlaneseq
        %v3028 = vshrl.u32 %v3027, 7
        %v3029 = vsub.s32 0, %v3028
        %v3030 = vrot.slane %v1254, %v3029
        %v3031 = vlaneseq
        %v3032 = vshrl.u32 %v3031, 7
        %v3033 = vsub.s32 0, %v3032
        %v3034 = vrot.slane %v1278, %v3033
        %v3035 = vlaneseq
        %v3036 = vshrl.u32 %v3035, 7
        %v3037 = vsub.s32 0, %v3036
        %v3038 = vrot.slane %v1292, %v3037
        %v3039 = vlaneseq
        %v3040 = vshrl.u32 %v3039, 7
        %v3041 = vsub.s32 0, %v3040
        %v3042 = vrot.slane %v1300, %v3041
        %v3043 = vlaneseq
        %v3044 = vshrl.u32 %v3043, 7
        %v3045 = vsub.s32 0, %v3044
        %v3046 = vrot.slane %v1302, %v3045
        %v3047 = vlaneseq
        %v3048 = vshrl.u32 %v3047, 7
        %v3049 = vsub.s32 0, %v3048
        %v3050 = vrot.slane %v1285, %v3049
        %v3051 = vlaneseq
        %v3052 = vshrl.u32 %v3051, 7
        %v3053 = vsub.s32 0, %v3052
        %v3054 = vrot.slane %v1299, %v3053
        %v3055 = vlaneseq
        %v3056 = vshrl.u32 %v3055, 7
        %v3057 = vsub.s32 0, %v3056
        %v3058 = vrot.slane %v1301, %v3057
        %v3059 = vlaneseq
        %v3060 = vshrl.u32 %v3059, 7
        %v3061 = vsub.s32 0, %v3060
        %v3062 = vrot.slane %v1303, %v3061
        %v3063 = vlaneseq
        %v3064 = vshrl.u32 %v3063, 7
        %v3065 = vsub.s32 0, %v3064
        %v3066 = vrot.slane %v1327, %v3065
        %v3067 = vlaneseq
        %v3068 = vshrl.u32 %v3067, 7
        %v3069 = vsub.s32 0, %v3068
        %v3070 = vrot.slane %v1341, %v3069
        %v3071 = vlaneseq
        %v3072 = vshrl.u32 %v3071, 7
        %v3073 = vsub.s32 0, %v3072
        %v3074 = vrot.slane %v1349, %v3073
        %v3075 = vlaneseq
        %v3076 = vshrl.u32 %v3075, 7
        %v3077 = vsub.s32 0, %v3076
        %v3078 = vrot.slane %v1351, %v3077
        %v3079 = vlaneseq
        %v3080 = vshrl.u32 %v3079, 7
        %v3081 = vsub.s32 0, %v3080
        %v3082 = vrot.slane %v1334, %v3081
        %v3083 = vlaneseq
        %v3084 = vshrl.u32 %v3083, 7
        %v3085 = vsub.s32 0, %v3084
        %v3086 = vrot.slane %v1348, %v3085
        %v3087 = vlaneseq
        %v3088 = vshrl.u32 %v3087, 7
        %v3089 = vsub.s32 0, %v3088
        %v3090 = vrot.slane %v1350, %v3089
        %v3091 = vlaneseq
        %v3092 = vshrl.u32 %v3091, 7
        %v3093 = vsub.s32 0, %v3092
        %v3094 = vrot.slane %v1352, %v3093
        %v3095 = vlaneseq
        %v3096 = vshrl.u32 %v3095, 7
        %v3097 = vsub.s32 0, %v3096
        %v3098 = vrot.slane %v1367, %v3097
        %v3099 = vlaneseq
        %v3100 = vshrl.u32 %v3099, 7
        %v3101 = vsub.s32 0, %v3100
        %v3102 = vrot.slane %v1374, %v3101
        %v3103 = vlaneseq
        %v3104 = vshrl.u32 %v3103, 7
        %v3105 = vsub.s32 0, %v3104
        %v3106 = vrot.slane %v1398, %v3105
        %v3107 = vlaneseq
        %v3108 = vshrl.u32 %v3107, 7
        %v3109 = vsub.s32 0, %v3108
        %v3110 = vrot.slane %v1412, %v3109
        %v3111 = vlaneseq
        %v3112 = vshrl.u32 %v3111, 7
        %v3113 = vsub.s32 0, %v3112
        %v3114 = vrot.slane %v1420, %v3113
        %v3115 = vlaneseq
        %v3116 = vshrl.u32 %v3115, 7
        %v3117 = vsub.s32 0, %v3116
        %v3118 = vrot.slane %v1422, %v3117
        %v3119 = vlaneseq
        %v3120 = vshrl.u32 %v3119, 7
        %v3121 = vsub.s32 0, %v3120
        %v3122 = vrot.slane %v1405, %v3121
        %v3123 = vlaneseq
        %v3124 = vshrl.u32 %v3123, 7
        %v3125 = vsub.s32 0, %v3124
        %v3126 = vrot.slane %v1419, %v3125
        %v3127 = vlaneseq
        %v3128 = vshrl.u32 %v3127, 7
        %v3129 = vsub.s32 0, %v3128
        %v3130 = vrot.slane %v1421, %v3129
        %v3131 = vlaneseq
        %v3132 = vshrl.u32 %v3131, 7
        %v3133 = vsub.s32 0, %v3132
        %v3134 = vrot.slane %v1423, %v3133
        %v3135 = vlaneseq
        %v3136 = vshrl.u32 %v3135, 7
        %v3137 = vsub.s32 0, %v3136
        %v3138 = vrot.slane %v1447, %v3137
        %v3139 = vlaneseq
        %v3140 = vshrl.u32 %v3139, 7
        %v3141 = vsub.s32 0, %v3140
        %v3142 = vrot.slane %v1461, %v3141
        %v3143 = vlaneseq
        %v3144 = vshrl.u32 %v3143, 7
        %v3145 = vsub.s32 0, %v3144
        %v3146 = vrot.slane %v1469, %v3145
        %v3147 = vlaneseq
        %v3148 = vshrl.u32 %v3147, 7
        %v3149 = vsub.s32 0, %v3148
        %v3150 = vrot.slane %v1471, %v3149
        %v3151 = vlaneseq
        %v3152 = vshrl.u32 %v3151, 7
        %v3153 = vsub.s32 0, %v3152
        %v3154 = vrot.slane %v1454, %v3153
        %v3155 = vlaneseq
        %v3156 = vshrl.u32 %v3155, 7
        %v3157 = vsub.s32 0, %v3156
        %v3158 = vrot.slane %v1468, %v3157
        %v3159 = vlaneseq
        %v3160 = vshrl.u32 %v3159, 7
        %v3161 = vsub.s32 0, %v3160
        %v3162 = vrot.slane %v1470, %v3161
        %v3163 = vlaneseq
        %v3164 = vshrl.u32 %v3163, 7
        %v3165 = vsub.s32 0, %v3164
        %v3166 = vrot.slane %v1472, %v3165
        %v3167 = vlaneseq
        %v3168 = vshrl.u32 %v3167, 7
        %v3169 = vsub.s32 0, %v3168
        %v3170 = vrot.slane %v1487, %v3169
        %v3171 = vlaneseq
        %v3172 = vshrl.u32 %v3171, 7
        %v3173 = vsub.s32 0, %v3172
        %v3174 = vrot.slane %v1494, %v3173
        %v3175 = vlaneseq
        %v3176 = vshrl.u32 %v3175, 7
        %v3177 = vsub.s32 0, %v3176
        %v3178 = vrot.slane %v1518, %v3177
        %v3179 = vlaneseq
        %v3180 = vshrl.u32 %v3179, 7
        %v3181 = vsub.s32 0, %v3180
        %v3182 = vrot.slane %v1532, %v3181
        %v3183 = vlaneseq
        %v3184 = vshrl.u32 %v3183, 7
        %v3185 = vsub.s32 0, %v3184
        %v3186 = vrot.slane %v1540, %v3185
        %v3187 = vlaneseq
        %v3188 = vshrl.u32 %v3187, 7
        %v3189 = vsub.s32 0, %v3188
        %v3190 = vrot.slane %v1542, %v3189
        %v3191 = vlaneseq
        %v3192 = vshrl.u32 %v3191, 7
        %v3193 = vsub.s32 0, %v3192
        %v3194 = vrot.slane %v1525, %v3193
        %v3195 = vlaneseq
        %v3196 = vshrl.u32 %v3195, 7
        %v3197 = vsub.s32 0, %v3196
        %v3198 = vrot.slane %v1539, %v3197
        %v3199 = vlaneseq
        %v3200 = vshrl.u32 %v3199, 7
        %v3201 = vsub.s32 0, %v3200
        %v3202 = vrot.slane %v1541, %v3201
        %v3203 = vlaneseq
        %v3204 = vshrl.u32 %v3203, 7
        %v3205 = vsub.s32 0, %v3204
        %v3206 = vrot.slane %v1543, %v3205
        %v3207 = vlaneseq
        %v3208 = vshrl.u32 %v3207, 7
        %v3209 = vsub.s32 0, %v3208
        %v3210 = vrot.slane %v1567, %v3209
        %v3211 = vlaneseq
        %v3212 = vshrl.u32 %v3211, 7
        %v3213 = vsub.s32 0, %v3212
        %v3214 = vrot.slane %v1581, %v3213
        %v3215 = vlaneseq
        %v3216 = vshrl.u32 %v3215, 7
        %v3217 = vsub.s32 0, %v3216
        %v3218 = vrot.slane %v1589, %v3217
        %v3219 = vlaneseq
        %v3220 = vshrl.u32 %v3219, 7
        %v3221 = vsub.s32 0, %v3220
        %v3222 = vrot.slane %v1591, %v3221
        %v3223 = vlaneseq
        %v3224 = vshrl.u32 %v3223, 7
        %v3225 = vsub.s32 0, %v3224
        %v3226 = vrot.slane %v1574, %v3225
        %v3227 = vlaneseq
        %v3228 = vshrl.u32 %v3227, 7
        %v3229 = vsub.s32 0, %v3228
        %v3230 = vrot.slane %v1588, %v3229
        %v3231 = vlaneseq
        %v3232 = vshrl.u32 %v3231, 7
        %v3233 = vsub.s32 0, %v3232
        %v3234 = vrot.slane %v1590, %v3233
        %v3235 = vlaneseq
        %v3236 = vshrl.u32 %v3235, 7
        %v3237 = vsub.s32 0, %v3236
        %v3238 = vrot.slane %v1592, %v3237
        %v3239 = vlaneseq
        %v3240 = vshrl.u32 %v3239, 7
        %v3241 = vsub.s32 0, %v3240
        %v3242 = vrot.slane %v1607, %v3241
        %v3243 = vlaneseq
        %v3244 = vshrl.u32 %v3243, 7
        %v3245 = vsub.s32 0, %v3244
        %v3246 = vrot.slane %v1614, %v3245
        %v3247 = vlaneseq
        %v3248 = vshrl.u32 %v3247, 7
        %v3249 = vsub.s32 0, %v3248
        %v3250 = vrot.slane %v1638, %v3249
        %v3251 = vlaneseq
        %v3252 = vshrl.u32 %v3251, 7
        %v3253 = vsub.s32 0, %v3252
        %v3254 = vrot.slane %v1652, %v3253
        %v3255 = vlaneseq
        %v3256 = vshrl.u32 %v3255, 7
        %v3257 = vsub.s32 0, %v3256
        %v3258 = vrot.slane %v1660, %v3257
        %v3259 = vlaneseq
        %v3260 = vshrl.u32 %v3259, 7
        %v3261 = vsub.s32 0, %v3260
        %v3262 = vrot.slane %v1662, %v3261
        %v3263 = vlaneseq
        %v3264 = vshrl.u32 %v3263, 7
        %v3265 = vsub.s32 0, %v3264
        %v3266 = vrot.slane %v1645, %v3265
        %v3267 = vlaneseq
        %v3268 = vshrl.u32 %v3267, 7
        %v3269 = vsub.s32 0, %v3268
        %v3270 = vrot.slane %v1659, %v3269
        %v3271 = vlaneseq
        %v3272 = vshrl.u32 %v3271, 7
        %v3273 = vsub.s32 0, %v3272
        %v3274 = vrot.slane %v1661, %v3273
        %v3275 = vlaneseq
        %v3276 = vshrl.u32 %v3275, 7
        %v3277 = vsub.s32 0, %v3276
        %v3278 = vrot.slane %v1663, %v3277
        %v3279 = vlaneseq
        %v3280 = vshrl.u32 %v3279, 7
        %v3281 = vsub.s32 0, %v3280
        %v3282 = vrot.slane %v1687, %v3281
        %v3283 = vlaneseq
        %v3284 = vshrl.u32 %v3283, 7
        %v3285 = vsub.s32 0, %v3284
        %v3286 = vrot.slane %v1701, %v3285
        %v3287 = vlaneseq
        %v3288 = vshrl.u32 %v3287, 7
        %v3289 = vsub.s32 0, %v3288
        %v3290 = vrot.slane %v1709, %v3289
        %v3291 = vlaneseq
        %v3292 = vshrl.u32 %v3291, 7
        %v3293 = vsub.s32 0, %v3292
        %v3294 = vrot.slane %v1711, %v3293
        %v3295 = vlaneseq
        %v3296 = vshrl.u32 %v3295, 7
        %v3297 = vsub.s32 0, %v3296
        %v3298 = vrot.slane %v1694, %v3297
        %v3299 = vlaneseq
        %v3300 = vshrl.u32 %v3299, 7
        %v3301 = vsub.s32 0, %v3300
        %v3302 = vrot.slane %v1708, %v3301
        %v3303 = vlaneseq
        %v3304 = vshrl.u32 %v3303, 7
        %v3305 = vsub.s32 0, %v3304
        %v3306 = vrot.slane %v1710, %v3305
        %v3307 = vlaneseq
        %v3308 = vshrl.u32 %v3307, 7
        %v3309 = vsub.s32 0, %v3308
        %v3310 = vrot.slane %v1712, %v3309
        %v3311 = vlaneseq
        %v3312 = vshrl.u32 %v3311, 7
        %v3313 = vsub.s32 0, %v3312
        %v3314 = vrot.slane %v1727, %v3313
        %v3315 = vlaneseq
        %v3316 = vshrl.u32 %v3315, 7
        %v3317 = vsub.s32 0, %v3316
        %v3318 = vrot.slane %v1734, %v3317
        %v3319 = vlaneseq
        %v3320 = vshrl.u32 %v3319, 7
        %v3321 = vsub.s32 0, %v3320
        %v3322 = vrot.slane %v1758, %v3321
        %v3323 = vlaneseq
        %v3324 = vshrl.u32 %v3323, 7
        %v3325 = vsub.s32 0, %v3324
        %v3326 = vrot.slane %v1772, %v3325
        %v3327 = vlaneseq
        %v3328 = vshrl.u32 %v3327, 7
        %v3329 = vsub.s32 0, %v3328
        %v3330 = vrot.slane %v1780, %v3329
        %v3331 = vlaneseq
        %v3332 = vshrl.u32 %v3331, 7
        %v3333 = vsub.s32 0, %v3332
        %v3334 = vrot.slane %v1782, %v3333
        %v3335 = vlaneseq
        %v3336 = vshrl.u32 %v3335, 7
        %v3337 = vsub.s32 0, %v3336
        %v3338 = vrot.slane %v1765, %v3337
        %v3339 = vlaneseq
        %v3340 = vshrl.u32 %v3339, 7
        %v3341 = vsub.s32 0, %v3340
        %v3342 = vrot.slane %v1779, %v3341
        %v3343 = vlaneseq
        %v3344 = vshrl.u32 %v3343, 7
        %v3345 = vsub.s32 0, %v3344
        %v3346 = vrot.slane %v1781, %v3345
        %v3347 = vlaneseq
        %v3348 = vshrl.u32 %v3347, 7
        %v3349 = vsub.s32 0, %v3348
        %v3350 = vrot.slane %v1783, %v3349
        %v3351 = vlaneseq
        %v3352 = vshrl.u32 %v3351, 7
        %v3353 = vsub.s32 0, %v3352
        %v3354 = vrot.slane %v1807, %v3353
        %v3355 = vlaneseq
        %v3356 = vshrl.u32 %v3355, 7
        %v3357 = vsub.s32 0, %v3356
        %v3358 = vrot.slane %v1821, %v3357
        %v3359 = vlaneseq
        %v3360 = vshrl.u32 %v3359, 7
        %v3361 = vsub.s32 0, %v3360
        %v3362 = vrot.slane %v1829, %v3361
        %v3363 = vlaneseq
        %v3364 = vshrl.u32 %v3363, 7
        %v3365 = vsub.s32 0, %v3364
        %v3366 = vrot.slane %v1831, %v3365
        %v3367 = vlaneseq
        %v3368 = vshrl.u32 %v3367, 7
        %v3369 = vsub.s32 0, %v3368
        %v3370 = vrot.slane %v1814, %v3369
        %v3371 = vlaneseq
        %v3372 = vshrl.u32 %v3371, 7
        %v3373 = vsub.s32 0, %v3372
        %v3374 = vrot.slane %v1828, %v3373
        %v3375 = vlaneseq
        %v3376 = vshrl.u32 %v3375, 7
        %v3377 = vsub.s32 0, %v3376
        %v3378 = vrot.slane %v1830, %v3377
        %v3379 = vlaneseq
        %v3380 = vshrl.u32 %v3379, 7
        %v3381 = vsub.s32 0, %v3380
        %v3382 = vrot.slane %v1832, %v3381
        %v3383 = vlaneseq
        %v3384 = vshrl.u32 %v3383, 7
        %v3385 = vsub.s32 0, %v3384
        %v3386 = vrot.slane %v1847, %v3385
        %v3387 = vlaneseq
        %v3388 = vshrl.u32 %v3387, 7
        %v3389 = vsub.s32 0, %v3388
        %v3390 = vrot.slane %v1854, %v3389
        %v3391 = vlaneseq
        %v3392 = vshrl.u32 %v3391, 7
        %v3393 = vsub.s32 0, %v3392
        %v3394 = vrot.slane %v1878, %v3393
        %v3395 = vlaneseq
        %v3396 = vshrl.u32 %v3395, 7
        %v3397 = vsub.s32 0, %v3396
        %v3398 = vrot.slane %v1892, %v3397
        %v3399 = vlaneseq
        %v3400 = vshrl.u32 %v3399, 7
        %v3401 = vsub.s32 0, %v3400
        %v3402 = vrot.slane %v1900, %v3401
        %v3403 = vlaneseq
        %v3404 = vshrl.u32 %v3403, 7
        %v3405 = vsub.s32 0, %v3404
        %v3406 = vrot.slane %v1902, %v3405
        %v3407 = vlaneseq
        %v3408 = vshrl.u32 %v3407, 7
        %v3409 = vsub.s32 0, %v3408
        %v3410 = vrot.slane %v1885, %v3409
        %v3411 = vlaneseq
        %v3412 = vshrl.u32 %v3411, 7
        %v3413 = vsub.s32 0, %v3412
        %v3414 = vrot.slane %v1899, %v3413
        %v3415 = vlaneseq
        %v3416 = vshrl.u32 %v3415, 7
        %v3417 = vsub.s32 0, %v3416
        %v3418 = vrot.slane %v1901, %v3417
        %v3419 = vlaneseq
        %v3420 = vshrl.u32 %v3419, 7
        %v3421 = vsub.s32 0, %v3420
        %v3422 = vrot.slane %v1903, %v3421
        %v3423 = vlaneseq
        %v3424 = vshrl.u32 %v3423, 7
        %v3425 = vsub.s32 0, %v3424
        %v3426 = vrot.slane %v1927, %v3425
        %v3427 = vlaneseq
        %v3428 = vshrl.u32 %v3427, 7
        %v3429 = vsub.s32 0, %v3428
        %v3430 = vrot.slane %v1941, %v3429
        %v3431 = vlaneseq
        %v3432 = vshrl.u32 %v3431, 7
        %v3433 = vsub.s32 0, %v3432
        %v3434 = vrot.slane %v1949, %v3433
        %v3435 = vlaneseq
        %v3436 = vshrl.u32 %v3435, 7
        %v3437 = vsub.s32 0, %v3436
        %v3438 = vrot.slane %v1951, %v3437
        %v3439 = vlaneseq
        %v3440 = vshrl.u32 %v3439, 7
        %v3441 = vsub.s32 0, %v3440
        %v3442 = vrot.slane %v1934, %v3441
        %v3443 = vlaneseq
        %v3444 = vshrl.u32 %v3443, 7
        %v3445 = vsub.s32 0, %v3444
        %v3446 = vrot.slane %v1948, %v3445
        %v3447 = vlaneseq
        %v3448 = vshrl.u32 %v3447, 7
        %v3449 = vsub.s32 0, %v3448
        %v3450 = vrot.slane %v1950, %v3449
        %v3451 = vlaneseq
        %v3452 = vshrl.u32 %v3451, 7
        %v3453 = vsub.s32 0, %v3452
        %v3454 = vrot.slane %v1952, %v3453
        %v3455 = vlaneseq
        %v3456 = vshrl.u32 %v3455, 7
        %v3457 = vsub.s32 0, %v3456
        %v3458 = vrot.slane %v1967, %v3457
        %v3459 = vlaneseq
        %v3460 = vshrl.u32 %v3459, 7
        %v3461 = vsub.s32 0, %v3460
        %v3462 = vrot.slane %v1974, %v3461
        %v3463 = vlaneseq
        %v3464 = vshrl.u32 %v3463, 7
        %v3465 = vsub.s32 0, %v3464
        %v3466 = vrot.slane %v1998, %v3465
        %v3467 = vlaneseq
        %v3468 = vshrl.u32 %v3467, 7
        %v3469 = vsub.s32 0, %v3468
        %v3470 = vrot.slane %v2012, %v3469
        %v3471 = vlaneseq
        %v3472 = vshrl.u32 %v3471, 7
        %v3473 = vsub.s32 0, %v3472
        %v3474 = vrot.slane %v2020, %v3473
        %v3475 = vlaneseq
        %v3476 = vshrl.u32 %v3475, 7
        %v3477 = vsub.s32 0, %v3476
        %v3478 = vrot.slane %v2022, %v3477
        %v3479 = vlaneseq
        %v3480 = vshrl.u32 %v3479, 7
        %v3481 = vsub.s32 0, %v3480
        %v3482 = vrot.slane %v2005, %v3481
        %v3483 = vlaneseq
        %v3484 = vshrl.u32 %v3483, 7
        %v3485 = vsub.s32 0, %v3484
        %v3486 = vrot.slane %v2019, %v3485
        %v3487 = vlaneseq
        %v3488 = vshrl.u32 %v3487, 7
        %v3489 = vsub.s32 0, %v3488
        %v3490 = vrot.slane %v2021, %v3489
        %v3491 = vlaneseq
        %v3492 = vshrl.u32 %v3491, 7
        %v3493 = vsub.s32 0, %v3492
        %v3494 = vrot.slane %v2023, %v3493
        %v3495 = vlaneseq
        %v3496 = vshrl.u32 %v3495, 7
        %v3497 = vsub.s32 0, %v3496
        %v3498 = vrot.slane %v2047, %v3497
        %v3499 = vlaneseq
        %v3500 = vshrl.u32 %v3499, 7
        %v3501 = vsub.s32 0, %v3500
        %v3502 = vrot.slane %v2061, %v3501
        %v3503 = vlaneseq
        %v3504 = vshrl.u32 %v3503, 7
        %v3505 = vsub.s32 0, %v3504
        %v3506 = vrot.slane %v2069, %v3505
        %v3507 = vlaneseq
        %v3508 = vshrl.u32 %v3507, 7
        %v3509 = vsub.s32 0, %v3508
        %v3510 = vrot.slane %v2071, %v3509
        %v3511 = vlaneseq
        %v3512 = vshrl.u32 %v3511, 7
        %v3513 = vsub.s32 0, %v3512
        %v3514 = vrot.slane %v2054, %v3513
        %v3515 = vlaneseq
        %v3516 = vshrl.u32 %v3515, 7
        %v3517 = vsub.s32 0, %v3516
        %v3518 = vrot.slane %v2068, %v3517
        %v3519 = vlaneseq
        %v3520 = vshrl.u32 %v3519, 7
        %v3521 = vsub.s32 0, %v3520
        %v3522 = vrot.slane %v2070, %v3521
        %v3523 = vlaneseq
        %v3524 = vshrl.u32 %v3523, 7
        %v3525 = vsub.s32 0, %v3524
        %v3526 = vrot.slane %v2072, %v3525
        %v3527 = vlaneseq
        %v3528 = vshrl.u32 %v3527, 7
        %v3529 = vsub.s32 0, %v3528
        %v3530 = vrot.slane %v2087, %v3529
        %v3531 = vlaneseq
        %v3532 = vshrl.u32 %v3531, 7
        %v3533 = vsub.s32 0, %v3532
        %v3534 = vrot.slane %v2094, %v3533
        %v3535 = vlaneseq
        %v3536 = vshrl.u32 %v3535, 7
        %v3537 = vsub.s32 0, %v3536
        %v3538 = vrot.slane %v2118, %v3537
        %v3539 = vlaneseq
        %v3540 = vshrl.u32 %v3539, 7
        %v3541 = vsub.s32 0, %v3540
        %v3542 = vrot.slane %v2132, %v3541
        %v3543 = vlaneseq
        %v3544 = vshrl.u32 %v3543, 7
        %v3545 = vsub.s32 0, %v3544
        %v3546 = vrot.slane %v2140, %v3545
        %v3547 = vlaneseq
        %v3548 = vshrl.u32 %v3547, 7
        %v3549 = vsub.s32 0, %v3548
        %v3550 = vrot.slane %v2142, %v3549
        %v3551 = vlaneseq
        %v3552 = vshrl.u32 %v3551, 7
        %v3553 = vsub.s32 0, %v3552
        %v3554 = vrot.slane %v2125, %v3553
        %v3555 = vlaneseq
        %v3556 = vshrl.u32 %v3555, 7
        %v3557 = vsub.s32 0, %v3556
        %v3558 = vrot.slane %v2139, %v3557
        %v3559 = vlaneseq
        %v3560 = vshrl.u32 %v3559, 7
        %v3561 = vsub.s32 0, %v3560
        %v3562 = vrot.slane %v2141, %v3561
        %v3563 = vlaneseq
        %v3564 = vshrl.u32 %v3563, 7
        %v3565 = vsub.s32 0, %v3564
        %v3566 = vrot.slane %v2143, %v3565
        %v3567 = vlaneseq
        %v3568 = vshrl.u32 %v3567, 7
        %v3569 = vsub.s32 0, %v3568
        %v3570 = vrot.slane %v2167, %v3569
        %v3571 = vlaneseq
        %v3572 = vshrl.u32 %v3571, 7
        %v3573 = vsub.s32 0, %v3572
        %v3574 = vrot.slane %v2181, %v3573
        %v3575 = vlaneseq
        %v3576 = vshrl.u32 %v3575, 7
        %v3577 = vsub.s32 0, %v3576
        %v3578 = vrot.slane %v2189, %v3577
        %v3579 = vlaneseq
        %v3580 = vshrl.u32 %v3579, 7
        %v3581 = vsub.s32 0, %v3580
        %v3582 = vrot.slane %v2191, %v3581
        %v3583 = vlaneseq
        %v3584 = vshrl.u32 %v3583, 7
        %v3585 = vsub.s32 0, %v3584
        %v3586 = vrot.slane %v2174, %v3585
        %v3587 = vlaneseq
        %v3588 = vshrl.u32 %v3587, 7
        %v3589 = vsub.s32 0, %v3588
        %v3590 = vrot.slane %v2188, %v3589
        %v3591 = vlaneseq
        %v3592 = vshrl.u32 %v3591, 7
        %v3593 = vsub.s32 0, %v3592
        %v3594 = vrot.slane %v2190, %v3593
        %v3595 = vlaneseq
        %v3596 = vshrl.u32 %v3595, 7
        %v3597 = vsub.s32 0, %v3596
        %v3598 = vrot.slane %v2192, %v3597
        %v3599 = vlaneseq
        %v3600 = vshrl.u32 %v3599, 7
        %v3601 = vsub.s32 0, %v3600
        %v3602 = vrot.slane %v2207, %v3601
        %v3603 = vlaneseq
        %v3604 = vshrl.u32 %v3603, 7
        %v3605 = vsub.s32 0, %v3604
        %v3606 = vrot.slane %v2214, %v3605
        %v3607 = vlaneseq
        %v3608 = vshrl.u32 %v3607, 7
        %v3609 = vsub.s32 0, %v3608
        %v3610 = vrot.slane %v2238, %v3609
        %v3611 = vlaneseq
        %v3612 = vshrl.u32 %v3611, 7
        %v3613 = vsub.s32 0, %v3612
        %v3614 = vrot.slane %v2252, %v3613
        %v3615 = vlaneseq
        %v3616 = vshrl.u32 %v3615, 7
        %v3617 = vsub.s32 0, %v3616
        %v3618 = vrot.slane %v2260, %v3617
        %v3619 = vlaneseq
        %v3620 = vshrl.u32 %v3619, 7
        %v3621 = vsub.s32 0, %v3620
        %v3622 = vrot.slane %v2262, %v3621
        %v3623 = vlaneseq
        %v3624 = vshrl.u32 %v3623, 7
        %v3625 = vsub.s32 0, %v3624
        %v3626 = vrot.slane %v2245, %v3625
        %v3627 = vlaneseq
        %v3628 = vshrl.u32 %v3627, 7
        %v3629 = vsub.s32 0, %v3628
        %v3630 = vrot.slane %v2259, %v3629
        %v3631 = vlaneseq
        %v3632 = vshrl.u32 %v3631, 7
        %v3633 = vsub.s32 0, %v3632
        %v3634 = vrot.slane %v2261, %v3633
        %v3635 = vlaneseq
        %v3636 = vshrl.u32 %v3635, 7
        %v3637 = vsub.s32 0, %v3636
        %v3638 = vrot.slane %v2263, %v3637
        %v3639 = vlaneseq
        %v3640 = vshrl.u32 %v3639, 7
        %v3641 = vsub.s32 0, %v3640
        %v3642 = vrot.slane %v2287, %v3641
        %v3643 = vlaneseq
        %v3644 = vshrl.u32 %v3643, 7
        %v3645 = vsub.s32 0, %v3644
        %v3646 = vrot.slane %v2301, %v3645
        %v3647 = vlaneseq
        %v3648 = vshrl.u32 %v3647, 7
        %v3649 = vsub.s32 0, %v3648
        %v3650 = vrot.slane %v2309, %v3649
        %v3651 = vlaneseq
        %v3652 = vshrl.u32 %v3651, 7
        %v3653 = vsub.s32 0, %v3652
        %v3654 = vrot.slane %v2311, %v3653
        %v3655 = vlaneseq
        %v3656 = vshrl.u32 %v3655, 7
        %v3657 = vsub.s32 0, %v3656
        %v3658 = vrot.slane %v2294, %v3657
        %v3659 = vlaneseq
        %v3660 = vshrl.u32 %v3659, 7
        %v3661 = vsub.s32 0, %v3660
        %v3662 = vrot.slane %v2308, %v3661
        %v3663 = vlaneseq
        %v3664 = vshrl.u32 %v3663, 7
        %v3665 = vsub.s32 0, %v3664
        %v3666 = vrot.slane %v2310, %v3665
        %v3667 = vlaneseq
        %v3668 = vshrl.u32 %v3667, 7
        %v3669 = vsub.s32 0, %v3668
        %v3670 = vrot.slane %v2312, %v3669
        %v3671 = vlaneseq
        %v3672 = vshrl.u32 %v3671, 7
        %v3673 = vsub.s32 0, %v3672
        %v3674 = vrot.slane %v2327, %v3673
        %v3675 = vlaneseq
        %v3676 = vshrl.u32 %v3675, 7
        %v3677 = vsub.s32 0, %v3676
        %v3678 = vrot.slane %v2334, %v3677
        %v3679 = vlaneseq
        %v3680 = vshrl.u32 %v3679, 7
        %v3681 = vsub.s32 0, %v3680
        %v3682 = vrot.slane %v2358, %v3681
        %v3683 = vlaneseq
        %v3684 = vshrl.u32 %v3683, 7
        %v3685 = vsub.s32 0, %v3684
        %v3686 = vrot.slane %v2372, %v3685
        %v3687 = vlaneseq
        %v3688 = vshrl.u32 %v3687, 7
        %v3689 = vsub.s32 0, %v3688
        %v3690 = vrot.slane %v2380, %v3689
        %v3691 = vlaneseq
        %v3692 = vshrl.u32 %v3691, 7
        %v3693 = vsub.s32 0, %v3692
        %v3694 = vrot.slane %v2382, %v3693
        %v3695 = vlaneseq
        %v3696 = vshrl.u32 %v3695, 7
        %v3697 = vsub.s32 0, %v3696
        %v3698 = vrot.slane %v2365, %v3697
        %v3699 = vlaneseq
        %v3700 = vshrl.u32 %v3699, 7
        %v3701 = vsub.s32 0, %v3700
        %v3702 = vrot.slane %v2379, %v3701
        %v3703 = vlaneseq
        %v3704 = vshrl.u32 %v3703, 7
        %v3705 = vsub.s32 0, %v3704
        %v3706 = vrot.slane %v2381, %v3705
        %v3707 = vlaneseq
        %v3708 = vshrl.u32 %v3707, 7
        %v3709 = vsub.s32 0, %v3708
        %v3710 = vrot.slane %v2383, %v3709
        %v3711 = vlaneseq
        %v3712 = vshrl.u32 %v3711, 7
        %v3713 = vsub.s32 0, %v3712
        %v3714 = vrot.slane %v2407, %v3713
        %v3715 = vlaneseq
        %v3716 = vshrl.u32 %v3715, 7
        %v3717 = vsub.s32 0, %v3716
        %v3718 = vrot.slane %v2421, %v3717
        %v3719 = vlaneseq
        %v3720 = vshrl.u32 %v3719, 7
        %v3721 = vsub.s32 0, %v3720
        %v3722 = vrot.slane %v2429, %v3721
        %v3723 = vlaneseq
        %v3724 = vshrl.u32 %v3723, 7
        %v3725 = vsub.s32 0, %v3724
        %v3726 = vrot.slane %v2431, %v3725
        %v3727 = vlaneseq
        %v3728 = vshrl.u32 %v3727, 7
        %v3729 = vsub.s32 0, %v3728
        %v3730 = vrot.slane %v2414, %v3729
        %v3731 = vlaneseq
        %v3732 = vshrl.u32 %v3731, 7
        %v3733 = vsub.s32 0, %v3732
        %v3734 = vrot.slane %v2428, %v3733
        %v3735 = vlaneseq
        %v3736 = vshrl.u32 %v3735, 7
        %v3737 = vsub.s32 0, %v3736
        %v3738 = vrot.slane %v2430, %v3737
        %v3739 = vlaneseq
        %v3740 = vshrl.u32 %v3739, 7
        %v3741 = vsub.s32 0, %v3740
        %v3742 = vrot.slane %v2432, %v3741
        %v3743 = vlaneseq
        %v3744 = vshrl.u32 %v3743, 7
        %v3745 = vsub.s32 0, %v3744
        %v3746 = vrot.slane %v2447, %v3745
        %v3747 = vlaneseq
        %v3748 = vshrl.u32 %v3747, 7
        %v3749 = vsub.s32 0, %v3748
        %v3750 = vrot.slane %v2454, %v3749
        %v3751 = vcombine.low %v2458, %v2462
        %v3752 = vcombine.low %v2466, %v2470
        %v3754 = vunpack.c.l.s4 1983009808
        %v3755 = vunpack.c.0.s8 %v3754
        %v3756 = vlaneseq
        %v3757 = vshrl.u32 %v3756, 7
        %v3758 = vsub.s32 %v3755, %v3757
        %v3759 = vrot.slane %v3751, %v3758
        %v3761 = vunpack.c.l.s4 1983009808
        %v3762 = vunpack.c.0.s8 %v3761
        %v3763 = vlaneseq
        %v3764 = vshrl.u32 %v3763, 7
        %v3765 = vsub.s32 %v3762, %v3764
        %v3766 = vrot.slane %v3752, %v3765
        %v3767 = vcombine.low %v3759, %v3766
        %v3768 = vcombine.low %v2474, %v2478
        %v3769 = vcombine.low %v2482, %v2486
        %v3771 = vunpack.c.l.s4 1983009808
        %v3772 = vunpack.c.0.s8 %v3771
        %v3773 = vlaneseq
        %v3774 = vshrl.u32 %v3773, 7
        %v3775 = vsub.s32 %v3772, %v3774
        %v3776 = vrot.slane %v3768, %v3775
        %v3778 = vunpack.c.l.s4 1983009808
        %v3779 = vunpack.c.0.s8 %v3778
        %v3780 = vlaneseq
        %v3781 = vshrl.u32 %v3780, 7
        %v3782 = vsub.s32 %v3779, %v3781
        %v3783 = vrot.slane %v3769, %v3782
        %v3784 = vcombine.low %v3776, %v3783
        %v3785 = vcombine.low %v2490, %v2494
        %v3786 = vcombine.low %v2498, %v2502
        %v3788 = vunpack.c.l.s4 1983009808
        %v3789 = vunpack.c.0.s8 %v3788
        %v3790 = vlaneseq
        %v3791 = vshrl.u32 %v3790, 7
        %v3792 = vsub.s32 %v3789, %v3791
        %v3793 = vrot.slane %v3785, %v3792
        %v3795 = vunpack.c.l.s4 1983009808
        %v3796 = vunpack.c.0.s8 %v3795
        %v3797 = vlaneseq
        %v3798 = vshrl.u32 %v3797, 7
        %v3799 = vsub.s32 %v3796, %v3798
        %v3800 = vrot.slane %v3786, %v3799
        %v3801 = vcombine.low %v3793, %v3800
        %v3802 = vcombine.low %v2506, %v2510
        %v3803 = vcombine.low %v2514, %v2518
        %v3805 = vunpack.c.l.s4 1983009808
        %v3806 = vunpack.c.0.s8 %v3805
        %v3807 = vlaneseq
        %v3808 = vshrl.u32 %v3807, 7
        %v3809 = vsub.s32 %v3806, %v3808
        %v3810 = vrot.slane %v3802, %v3809
        %v3812 = vunpack.c.l.s4 1983009808
        %v3813 = vunpack.c.0.s8 %v3812
        %v3814 = vlaneseq
        %v3815 = vshrl.u32 %v3814, 7
        %v3816 = vsub.s32 %v3813, %v3815
        %v3817 = vrot.slane %v3803, %v3816
        %v3818 = vcombine.low %v3810, %v3817
        %v3820 = vunpack.c.l.s4 1983009808
        %v3821 = vunpack.c.0.s8 %v3820
        %v3822 = vlaneseq
        %v3823 = vshrl.u32 %v3822, 7
        %v3824 = vsub.s32 %v3821, %v3823
        %v3825 = vrot.slane %v2522, %v3824
        %v3826 = vcombine.low %v2530, %v2534
        %v3827 = vcombine.low %v2538, %v2542
        %v3829 = vunpack.c.l.s4 1983009808
        %v3830 = vunpack.c.0.s8 %v3829
        %v3831 = vlaneseq
        %v3832 = vshrl.u32 %v3831, 7
        %v3833 = vsub.s32 %v3830, %v3832
        %v3834 = vrot.slane %v3826, %v3833
        %v3836 = vunpack.c.l.s4 1983009808
        %v3837 = vunpack.c.0.s8 %v3836
        %v3838 = vlaneseq
        %v3839 = vshrl.u32 %v3838, 7
        %v3840 = vsub.s32 %v3837, %v3839
        %v3841 = vrot.slane %v3827, %v3840
        %v3842 = vcombine.low %v3834, %v3841
        %v3843 = vcombine.low %v2546, %v2550
        %v3844 = vcombine.low %v2554, %v2558
        %v3846 = vunpack.c.l.s4 1983009808
        %v3847 = vunpack.c.0.s8 %v3846
        %v3848 = vlaneseq
        %v3849 = vshrl.u32 %v3848, 7
        %v3850 = vsub.s32 %v3847, %v3849
        %v3851 = vrot.slane %v3843, %v3850
        %v3853 = vunpack.c.l.s4 1983009808
        %v3854 = vunpack.c.0.s8 %v3853
        %v3855 = vlaneseq
        %v3856 = vshrl.u32 %v3855, 7
        %v3857 = vsub.s32 %v3854, %v3856
        %v3858 = vrot.slane %v3844, %v3857
        %v3859 = vcombine.low %v3851, %v3858
        %v3860 = vcombine.low %v2562, %v2566
        %v3861 = vcombine.low %v2570, %v2574
        %v3863 = vunpack.c.l.s4 1983009808
        %v3864 = vunpack.c.0.s8 %v3863
        %v3865 = vlaneseq
        %v3866 = vshrl.u32 %v3865, 7
        %v3867 = vsub.s32 %v3864, %v3866
        %v3868 = vrot.slane %v3860, %v3867
        %v3870 = vunpack.c.l.s4 1983009808
        %v3871 = vunpack.c.0.s8 %v3870
        %v3872 = vlaneseq
        %v3873 = vshrl.u32 %v3872, 7
        %v3874 = vsub.s32 %v3871, %v3873
        %v3875 = vrot.slane %v3861, %v3874
        %v3876 = vcombine.low %v3868, %v3875
        %v3877 = vcombine.low %v2578, %v2582
        %v3878 = vcombine.low %v2586, %v2590
        %v3880 = vunpack.c.l.s4 1983009808
        %v3881 = vunpack.c.0.s8 %v3880
        %v3882 = vlaneseq
        %v3883 = vshrl.u32 %v3882, 7
        %v3884 = vsub.s32 %v3881, %v3883
        %v3885 = vrot.slane %v3877, %v3884
        %v3887 = vunpack.c.l.s4 1983009808
        %v3888 = vunpack.c.0.s8 %v3887
        %v3889 = vlaneseq
        %v3890 = vshrl.u32 %v3889, 7
        %v3891 = vsub.s32 %v3888, %v3890
        %v3892 = vrot.slane %v3878, %v3891
        %v3893 = vcombine.low %v3885, %v3892
        %v3895 = vunpack.c.l.s4 1983009808
        %v3896 = vunpack.c.0.s8 %v3895
        %v3897 = vlaneseq
        %v3898 = vshrl.u32 %v3897, 7
        %v3899 = vsub.s32 %v3896, %v3898
        %v3900 = vrot.slane %v2594, %v3899
        %v3901 = vcombine.low %v2602, %v2606
        %v3902 = vcombine.low %v2610, %v2614
        %v3904 = vunpack.c.l.s4 1983009808
        %v3905 = vunpack.c.0.s8 %v3904
        %v3906 = vlaneseq
        %v3907 = vshrl.u32 %v3906, 7
        %v3908 = vsub.s32 %v3905, %v3907
        %v3909 = vrot.slane %v3901, %v3908
        %v3911 = vunpack.c.l.s4 1983009808
        %v3912 = vunpack.c.0.s8 %v3911
        %v3913 = vlaneseq
        %v3914 = vshrl.u32 %v3913, 7
        %v3915 = vsub.s32 %v3912, %v3914
        %v3916 = vrot.slane %v3902, %v3915
        %v3917 = vcombine.low %v3909, %v3916
        %v3918 = vcombine.low %v2618, %v2622
        %v3919 = vcombine.low %v2626, %v2630
        %v3921 = vunpack.c.l.s4 1983009808
        %v3922 = vunpack.c.0.s8 %v3921
        %v3923 = vlaneseq
        %v3924 = vshrl.u32 %v3923, 7
        %v3925 = vsub.s32 %v3922, %v3924
        %v3926 = vrot.slane %v3918, %v3925
        %v3928 = vunpack.c.l.s4 1983009808
        %v3929 = vunpack.c.0.s8 %v3928
        %v3930 = vlaneseq
        %v3931 = vshrl.u32 %v3930, 7
        %v3932 = vsub.s32 %v3929, %v3931
        %v3933 = vrot.slane %v3919, %v3932
        %v3934 = vcombine.low %v3926, %v3933
        %v3935 = vcombine.low %v2634, %v2638
        %v3936 = vcombine.low %v2642, %v2646
        %v3938 = vunpack.c.l.s4 1983009808
        %v3939 = vunpack.c.0.s8 %v3938
        %v3940 = vlaneseq
        %v3941 = vshrl.u32 %v3940, 7
        %v3942 = vsub.s32 %v3939, %v3941
        %v3943 = vrot.slane %v3935, %v3942
        %v3945 = vunpack.c.l.s4 1983009808
        %v3946 = vunpack.c.0.s8 %v3945
        %v3947 = vlaneseq
        %v3948 = vshrl.u32 %v3947, 7
        %v3949 = vsub.s32 %v3946, %v3948
        %v3950 = vrot.slane %v3936, %v3949
        %v3951 = vcombine.low %v3943, %v3950
        %v3952 = vcombine.low %v2650, %v2654
        %v3953 = vcombine.low %v2658, %v2662
        %v3955 = vunpack.c.l.s4 1983009808
        %v3956 = vunpack.c.0.s8 %v3955
        %v3957 = vlaneseq
        %v3958 = vshrl.u32 %v3957, 7
        %v3959 = vsub.s32 %v3956, %v3958
        %v3960 = vrot.slane %v3952, %v3959
        %v3962 = vunpack.c.l.s4 1983009808
        %v3963 = vunpack.c.0.s8 %v3962
        %v3964 = vlaneseq
        %v3965 = vshrl.u32 %v3964, 7
        %v3966 = vsub.s32 %v3963, %v3965
        %v3967 = vrot.slane %v3953, %v3966
        %v3968 = vcombine.low %v3960, %v3967
        %v3970 = vunpack.c.l.s4 1983009808
        %v3971 = vunpack.c.0.s8 %v3970
        %v3972 = vlaneseq
        %v3973 = vshrl.u32 %v3972, 7
        %v3974 = vsub.s32 %v3971, %v3973
        %v3975 = vrot.slane %v2666, %v3974
        %v3976 = vcombine.low %v2674, %v2678
        %v3977 = vcombine.low %v2682, %v2686
        %v3979 = vunpack.c.l.s4 1983009808
        %v3980 = vunpack.c.0.s8 %v3979
        %v3981 = vlaneseq
        %v3982 = vshrl.u32 %v3981, 7
        %v3983 = vsub.s32 %v3980, %v3982
        %v3984 = vrot.slane %v3976, %v3983
        %v3986 = vunpack.c.l.s4 1983009808
        %v3987 = vunpack.c.0.s8 %v3986
        %v3988 = vlaneseq
        %v3989 = vshrl.u32 %v3988, 7
        %v3990 = vsub.s32 %v3987, %v3989
        %v3991 = vrot.slane %v3977, %v3990
        %v3992 = vcombine.low %v3984, %v3991
        %v3993 = vcombine.low %v2690, %v2694
        %v3994 = vcombine.low %v2698, %v2702
        %v3996 = vunpack.c.l.s4 1983009808
        %v3997 = vunpack.c.0.s8 %v3996
        %v3998 = vlaneseq
        %v3999 = vshrl.u32 %v3998, 7
        %v4000 = vsub.s32 %v3997, %v3999
        %v4001 = vrot.slane %v3993, %v4000
        %v4003 = vunpack.c.l.s4 1983009808
        %v4004 = vunpack.c.0.s8 %v4003
        %v4005 = vlaneseq
        %v4006 = vshrl.u32 %v4005, 7
        %v4007 = vsub.s32 %v4004, %v4006
        %v4008 = vrot.slane %v3994, %v4007
        %v4009 = vcombine.low %v4001, %v4008
        %v4010 = vcombine.low %v2706, %v2710
        %v4011 = vcombine.low %v2714, %v2718
        %v4013 = vunpack.c.l.s4 1983009808
        %v4014 = vunpack.c.0.s8 %v4013
        %v4015 = vlaneseq
        %v4016 = vshrl.u32 %v4015, 7
        %v4017 = vsub.s32 %v4014, %v4016
        %v4018 = vrot.slane %v4010, %v4017
        %v4020 = vunpack.c.l.s4 1983009808
        %v4021 = vunpack.c.0.s8 %v4020
        %v4022 = vlaneseq
        %v4023 = vshrl.u32 %v4022, 7
        %v4024 = vsub.s32 %v4021, %v4023
        %v4025 = vrot.slane %v4011, %v4024
        %v4026 = vcombine.low %v4018, %v4025
        %v4027 = vcombine.low %v2722, %v2726
        %v4028 = vcombine.low %v2730, %v2734
        %v4030 = vunpack.c.l.s4 1983009808
        %v4031 = vunpack.c.0.s8 %v4030
        %v4032 = vlaneseq
        %v4033 = vshrl.u32 %v4032, 7
        %v4034 = vsub.s32 %v4031, %v4033
        %v4035 = vrot.slane %v4027, %v4034
        %v4037 = vunpack.c.l.s4 1983009808
        %v4038 = vunpack.c.0.s8 %v4037
        %v4039 = vlaneseq
        %v4040 = vshrl.u32 %v4039, 7
        %v4041 = vsub.s32 %v4038, %v4040
        %v4042 = vrot.slane %v4028, %v4041
        %v4043 = vcombine.low %v4035, %v4042
        %v4045 = vunpack.c.l.s4 1983009808
        %v4046 = vunpack.c.0.s8 %v4045
        %v4047 = vlaneseq
        %v4048 = vshrl.u32 %v4047, 7
        %v4049 = vsub.s32 %v4046, %v4048
        %v4050 = vrot.slane %v2738, %v4049
        %v4051 = vcombine.low %v2746, %v2750
        %v4052 = vcombine.low %v2754, %v2758
        %v4054 = vunpack.c.l.s4 1983009808
        %v4055 = vunpack.c.0.s8 %v4054
        %v4056 = vlaneseq
        %v4057 = vshrl.u32 %v4056, 7
        %v4058 = vsub.s32 %v4055, %v4057
        %v4059 = vrot.slane %v4051, %v4058
        %v4061 = vunpack.c.l.s4 1983009808
        %v4062 = vunpack.c.0.s8 %v4061
        %v4063 = vlaneseq
        %v4064 = vshrl.u32 %v4063, 7
        %v4065 = vsub.s32 %v4062, %v4064
        %v4066 = vrot.slane %v4052, %v4065
        %v4067 = vcombine.low %v4059, %v4066
        %v4068 = vcombine.low %v2762, %v2766
        %v4069 = vcombine.low %v2770, %v2774
        %v4071 = vunpack.c.l.s4 1983009808
        %v4072 = vunpack.c.0.s8 %v4071
        %v4073 = vlaneseq
        %v4074 = vshrl.u32 %v4073, 7
        %v4075 = vsub.s32 %v4072, %v4074
        %v4076 = vrot.slane %v4068, %v4075
        %v4078 = vunpack.c.l.s4 1983009808
        %v4079 = vunpack.c.0.s8 %v4078
        %v4080 = vlaneseq
        %v4081 = vshrl.u32 %v4080, 7
        %v4082 = vsub.s32 %v4079, %v4081
        %v4083 = vrot.slane %v4069, %v4082
        %v4084 = vcombine.low %v4076, %v4083
        %v4085 = vcombine.low %v2778, %v2782
        %v4086 = vcombine.low %v2786, %v2790
        %v4088 = vunpack.c.l.s4 1983009808
        %v4089 = vunpack.c.0.s8 %v4088
        %v4090 = vlaneseq
        %v4091 = vshrl.u32 %v4090, 7
        %v4092 = vsub.s32 %v4089, %v4091
        %v4093 = vrot.slane %v4085, %v4092
        %v4095 = vunpack.c.l.s4 1983009808
        %v4096 = vunpack.c.0.s8 %v4095
        %v4097 = vlaneseq
        %v4098 = vshrl.u32 %v4097, 7
        %v4099 = vsub.s32 %v4096, %v4098
        %v4100 = vrot.slane %v4086, %v4099
        %v4101 = vcombine.low %v4093, %v4100
        %v4102 = vcombine.low %v2794, %v2798
        %v4103 = vcombine.low %v2802, %v2806
        %v4105 = vunpack.c.l.s4 1983009808
        %v4106 = vunpack.c.0.s8 %v4105
        %v4107 = vlaneseq
        %v4108 = vshrl.u32 %v4107, 7
        %v4109 = vsub.s32 %v4106, %v4108
        %v4110 = vrot.slane %v4102, %v4109
        %v4112 = vunpack.c.l.s4 1983009808
        %v4113 = vunpack.c.0.s8 %v4112
        %v4114 = vlaneseq
        %v4115 = vshrl.u32 %v4114, 7
        %v4116 = vsub.s32 %v4113, %v4115
        %v4117 = vrot.slane %v4103, %v4116
        %v4118 = vcombine.low %v4110, %v4117
        %v4120 = vunpack.c.l.s4 1983009808
        %v4121 = vunpack.c.0.s8 %v4120
        %v4122 = vlaneseq
        %v4123 = vshrl.u32 %v4122, 7
        %v4124 = vsub.s32 %v4121, %v4123
        %v4125 = vrot.slane %v2810, %v4124
        %v4126 = vcombine.low %v2818, %v2822
        %v4127 = vcombine.low %v2826, %v2830
        %v4129 = vunpack.c.l.s4 1983009808
        %v4130 = vunpack.c.0.s8 %v4129
        %v4131 = vlaneseq
        %v4132 = vshrl.u32 %v4131, 7
        %v4133 = vsub.s32 %v4130, %v4132
        %v4134 = vrot.slane %v4126, %v4133
        %v4136 = vunpack.c.l.s4 1983009808
        %v4137 = vunpack.c.0.s8 %v4136
        %v4138 = vlaneseq
        %v4139 = vshrl.u32 %v4138, 7
        %v4140 = vsub.s32 %v4137, %v4139
        %v4141 = vrot.slane %v4127, %v4140
        %v4142 = vcombine.low %v4134, %v4141
        %v4143 = vcombine.low %v2834, %v2838
        %v4144 = vcombine.low %v2842, %v2846
        %v4146 = vunpack.c.l.s4 1983009808
        %v4147 = vunpack.c.0.s8 %v4146
        %v4148 = vlaneseq
        %v4149 = vshrl.u32 %v4148, 7
        %v4150 = vsub.s32 %v4147, %v4149
        %v4151 = vrot.slane %v4143, %v4150
        %v4153 = vunpack.c.l.s4 1983009808
        %v4154 = vunpack.c.0.s8 %v4153
        %v4155 = vlaneseq
        %v4156 = vshrl.u32 %v4155, 7
        %v4157 = vsub.s32 %v4154, %v4156
        %v4158 = vrot.slane %v4144, %v4157
        %v4159 = vcombine.low %v4151, %v4158
        %v4160 = vcombine.low %v2850, %v2854
        %v4161 = vcombine.low %v2858, %v2862
        %v4163 = vunpack.c.l.s4 1983009808
        %v4164 = vunpack.c.0.s8 %v4163
        %v4165 = vlaneseq
        %v4166 = vshrl.u32 %v4165, 7
        %v4167 = vsub.s32 %v4164, %v4166
        %v4168 = vrot.slane %v4160, %v4167
        %v4170 = vunpack.c.l.s4 1983009808
        %v4171 = vunpack.c.0.s8 %v4170
        %v4172 = vlaneseq
        %v4173 = vshrl.u32 %v4172, 7
        %v4174 = vsub.s32 %v4171, %v4173
        %v4175 = vrot.slane %v4161, %v4174
        %v4176 = vcombine.low %v4168, %v4175
        %v4177 = vcombine.low %v2866, %v2870
        %v4178 = vcombine.low %v2874, %v2878
        %v4180 = vunpack.c.l.s4 1983009808
        %v4181 = vunpack.c.0.s8 %v4180
        %v4182 = vlaneseq
        %v4183 = vshrl.u32 %v4182, 7
        %v4184 = vsub.s32 %v4181, %v4183
        %v4185 = vrot.slane %v4177, %v4184
        %v4187 = vunpack.c.l.s4 1983009808
        %v4188 = vunpack.c.0.s8 %v4187
        %v4189 = vlaneseq
        %v4190 = vshrl.u32 %v4189, 7
        %v4191 = vsub.s32 %v4188, %v4190
        %v4192 = vrot.slane %v4178, %v4191
        %v4193 = vcombine.low %v4185, %v4192
        %v4195 = vunpack.c.l.s4 1983009808
        %v4196 = vunpack.c.0.s8 %v4195
        %v4197 = vlaneseq
        %v4198 = vshrl.u32 %v4197, 7
        %v4199 = vsub.s32 %v4196, %v4198
        %v4200 = vrot.slane %v2882, %v4199
        %v4201 = vcombine.low %v2890, %v2894
        %v4202 = vcombine.low %v2898, %v2902
        %v4204 = vunpack.c.l.s4 1983009808
        %v4205 = vunpack.c.0.s8 %v4204
        %v4206 = vlaneseq
        %v4207 = vshrl.u32 %v4206, 7
        %v4208 = vsub.s32 %v4205, %v4207
        %v4209 = vrot.slane %v4201, %v4208
        %v4211 = vunpack.c.l.s4 1983009808
        %v4212 = vunpack.c.0.s8 %v4211
        %v4213 = vlaneseq
        %v4214 = vshrl.u32 %v4213, 7
        %v4215 = vsub.s32 %v4212, %v4214
        %v4216 = vrot.slane %v4202, %v4215
        %v4217 = vcombine.low %v4209, %v4216
        %v4218 = vcombine.low %v2906, %v2910
        %v4219 = vcombine.low %v2914, %v2918
        %v4221 = vunpack.c.l.s4 1983009808
        %v4222 = vunpack.c.0.s8 %v4221
        %v4223 = vlaneseq
        %v4224 = vshrl.u32 %v4223, 7
        %v4225 = vsub.s32 %v4222, %v4224
        %v4226 = vrot.slane %v4218, %v4225
        %v4228 = vunpack.c.l.s4 1983009808
        %v4229 = vunpack.c.0.s8 %v4228
        %v4230 = vlaneseq
        %v4231 = vshrl.u32 %v4230, 7
        %v4232 = vsub.s32 %v4229, %v4231
        %v4233 = vrot.slane %v4219, %v4232
        %v4234 = vcombine.low %v4226, %v4233
        %v4235 = vcombine.low %v2922, %v2926
        %v4236 = vcombine.low %v2930, %v2934
        %v4238 = vunpack.c.l.s4 1983009808
        %v4239 = vunpack.c.0.s8 %v4238
        %v4240 = vlaneseq
        %v4241 = vshrl.u32 %v4240, 7
        %v4242 = vsub.s32 %v4239, %v4241
        %v4243 = vrot.slane %v4235, %v4242
        %v4245 = vunpack.c.l.s4 1983009808
        %v4246 = vunpack.c.0.s8 %v4245
        %v4247 = vlaneseq
        %v4248 = vshrl.u32 %v4247, 7
        %v4249 = vsub.s32 %v4246, %v4248
        %v4250 = vrot.slane %v4236, %v4249
        %v4251 = vcombine.low %v4243, %v4250
        %v4252 = vcombine.low %v2938, %v2942
        %v4253 = vcombine.low %v2946, %v2950
        %v4255 = vunpack.c.l.s4 1983009808
        %v4256 = vunpack.c.0.s8 %v4255
        %v4257 = vlaneseq
        %v4258 = vshrl.u32 %v4257, 7
        %v4259 = vsub.s32 %v4256, %v4258
        %v4260 = vrot.slane %v4252, %v4259
        %v4262 = vunpack.c.l.s4 1983009808
        %v4263 = vunpack.c.0.s8 %v4262
        %v4264 = vlaneseq
        %v4265 = vshrl.u32 %v4264, 7
        %v4266 = vsub.s32 %v4263, %v4265
        %v4267 = vrot.slane %v4253, %v4266
        %v4268 = vcombine.low %v4260, %v4267
        %v4270 = vunpack.c.l.s4 1983009808
        %v4271 = vunpack.c.0.s8 %v4270
        %v4272 = vlaneseq
        %v4273 = vshrl.u32 %v4272, 7
        %v4274 = vsub.s32 %v4271, %v4273
        %v4275 = vrot.slane %v2954, %v4274
        %v4276 = vcombine.low %v2962, %v2966
        %v4277 = vcombine.low %v2970, %v2974
        %v4279 = vunpack.c.l.s4 1983009808
        %v4280 = vunpack.c.0.s8 %v4279
        %v4281 = vlaneseq
        %v4282 = vshrl.u32 %v4281, 7
        %v4283 = vsub.s32 %v4280, %v4282
        %v4284 = vrot.slane %v4276, %v4283
        %v4286 = vunpack.c.l.s4 1983009808
        %v4287 = vunpack.c.0.s8 %v4286
        %v4288 = vlaneseq
        %v4289 = vshrl.u32 %v4288, 7
        %v4290 = vsub.s32 %v4287, %v4289
        %v4291 = vrot.slane %v4277, %v4290
        %v4292 = vcombine.low %v4284, %v4291
        %v4293 = vcombine.low %v2978, %v2982
        %v4294 = vcombine.low %v2986, %v2990
        %v4296 = vunpack.c.l.s4 1983009808
        %v4297 = vunpack.c.0.s8 %v4296
        %v4298 = vlaneseq
        %v4299 = vshrl.u32 %v4298, 7
        %v4300 = vsub.s32 %v4297, %v4299
        %v4301 = vrot.slane %v4293, %v4300
        %v4303 = vunpack.c.l.s4 1983009808
        %v4304 = vunpack.c.0.s8 %v4303
        %v4305 = vlaneseq
        %v4306 = vshrl.u32 %v4305, 7
        %v4307 = vsub.s32 %v4304, %v4306
        %v4308 = vrot.slane %v4294, %v4307
        %v4309 = vcombine.low %v4301, %v4308
        %v4310 = vcombine.low %v2994, %v2998
        %v4311 = vcombine.low %v3002, %v3006
        %v4313 = vunpack.c.l.s4 1983009808
        %v4314 = vunpack.c.0.s8 %v4313
        %v4315 = vlaneseq
        %v4316 = vshrl.u32 %v4315, 7
        %v4317 = vsub.s32 %v4314, %v4316
        %v4318 = vrot.slane %v4310, %v4317
        %v4320 = vunpack.c.l.s4 1983009808
        %v4321 = vunpack.c.0.s8 %v4320
        %v4322 = vlaneseq
        %v4323 = vshrl.u32 %v4322, 7
        %v4324 = vsub.s32 %v4321, %v4323
        %v4325 = vrot.slane %v4311, %v4324
        %v4326 = vcombine.low %v4318, %v4325
        %v4327 = vcombine.low %v3010, %v3014
        %v4328 = vcombine.low %v3018, %v3022
        %v4330 = vunpack.c.l.s4 1983009808
        %v4331 = vunpack.c.0.s8 %v4330
        %v4332 = vlaneseq
        %v4333 = vshrl.u32 %v4332, 7
        %v4334 = vsub.s32 %v4331, %v4333
        %v4335 = vrot.slane %v4327, %v4334
        %v4337 = vunpack.c.l.s4 1983009808
        %v4338 = vunpack.c.0.s8 %v4337
        %v4339 = vlaneseq
        %v4340 = vshrl.u32 %v4339, 7
        %v4341 = vsub.s32 %v4338, %v4340
        %v4342 = vrot.slane %v4328, %v4341
        %v4343 = vcombine.low %v4335, %v4342
        %v4345 = vunpack.c.l.s4 1983009808
        %v4346 = vunpack.c.0.s8 %v4345
        %v4347 = vlaneseq
        %v4348 = vshrl.u32 %v4347, 7
        %v4349 = vsub.s32 %v4346, %v4348
        %v4350 = vrot.slane %v3026, %v4349
        %v4351 = vcombine.low %v3034, %v3038
        %v4352 = vcombine.low %v3042, %v3046
        %v4354 = vunpack.c.l.s4 1983009808
        %v4355 = vunpack.c.0.s8 %v4354
        %v4356 = vlaneseq
        %v4357 = vshrl.u32 %v4356, 7
        %v4358 = vsub.s32 %v4355, %v4357
        %v4359 = vrot.slane %v4351, %v4358
        %v4361 = vunpack.c.l.s4 1983009808
        %v4362 = vunpack.c.0.s8 %v4361
        %v4363 = vlaneseq
        %v4364 = vshrl.u32 %v4363, 7
        %v4365 = vsub.s32 %v4362, %v4364
        %v4366 = vrot.slane %v4352, %v4365
        %v4367 = vcombine.low %v4359, %v4366
        %v4368 = vcombine.low %v3050, %v3054
        %v4369 = vcombine.low %v3058, %v3062
        %v4371 = vunpack.c.l.s4 1983009808
        %v4372 = vunpack.c.0.s8 %v4371
        %v4373 = vlaneseq
        %v4374 = vshrl.u32 %v4373, 7
        %v4375 = vsub.s32 %v4372, %v4374
        %v4376 = vrot.slane %v4368, %v4375
        %v4378 = vunpack.c.l.s4 1983009808
        %v4379 = vunpack.c.0.s8 %v4378
        %v4380 = vlaneseq
        %v4381 = vshrl.u32 %v4380, 7
        %v4382 = vsub.s32 %v4379, %v4381
        %v4383 = vrot.slane %v4369, %v4382
        %v4384 = vcombine.low %v4376, %v4383
        %v4385 = vcombine.low %v3066, %v3070
        %v4386 = vcombine.low %v3074, %v3078
        %v4388 = vunpack.c.l.s4 1983009808
        %v4389 = vunpack.c.0.s8 %v4388
        %v4390 = vlaneseq
        %v4391 = vshrl.u32 %v4390, 7
        %v4392 = vsub.s32 %v4389, %v4391
        %v4393 = vrot.slane %v4385, %v4392
        %v4395 = vunpack.c.l.s4 1983009808
        %v4396 = vunpack.c.0.s8 %v4395
        %v4397 = vlaneseq
        %v4398 = vshrl.u32 %v4397, 7
        %v4399 = vsub.s32 %v4396, %v4398
        %v4400 = vrot.slane %v4386, %v4399
        %v4401 = vcombine.low %v4393, %v4400
        %v4402 = vcombine.low %v3082, %v3086
        %v4403 = vcombine.low %v3090, %v3094
        %v4405 = vunpack.c.l.s4 1983009808
        %v4406 = vunpack.c.0.s8 %v4405
        %v4407 = vlaneseq
        %v4408 = vshrl.u32 %v4407, 7
        %v4409 = vsub.s32 %v4406, %v4408
        %v4410 = vrot.slane %v4402, %v4409
        %v4412 = vunpack.c.l.s4 1983009808
        %v4413 = vunpack.c.0.s8 %v4412
        %v4414 = vlaneseq
        %v4415 = vshrl.u32 %v4414, 7
        %v4416 = vsub.s32 %v4413, %v4415
        %v4417 = vrot.slane %v4403, %v4416
        %v4418 = vcombine.low %v4410, %v4417
        %v4420 = vunpack.c.l.s4 1983009808
        %v4421 = vunpack.c.0.s8 %v4420
        %v4422 = vlaneseq
        %v4423 = vshrl.u32 %v4422, 7
        %v4424 = vsub.s32 %v4421, %v4423
        %v4425 = vrot.slane %v3098, %v4424
        %v4426 = vcombine.low %v3106, %v3110
        %v4427 = vcombine.low %v3114, %v3118
        %v4429 = vunpack.c.l.s4 1983009808
        %v4430 = vunpack.c.0.s8 %v4429
        %v4431 = vlaneseq
        %v4432 = vshrl.u32 %v4431, 7
        %v4433 = vsub.s32 %v4430, %v4432
        %v4434 = vrot.slane %v4426, %v4433
        %v4436 = vunpack.c.l.s4 1983009808
        %v4437 = vunpack.c.0.s8 %v4436
        %v4438 = vlaneseq
        %v4439 = vshrl.u32 %v4438, 7
        %v4440 = vsub.s32 %v4437, %v4439
        %v4441 = vrot.slane %v4427, %v4440
        %v4442 = vcombine.low %v4434, %v4441
        %v4443 = vcombine.low %v3122, %v3126
        %v4444 = vcombine.low %v3130, %v3134
        %v4446 = vunpack.c.l.s4 1983009808
        %v4447 = vunpack.c.0.s8 %v4446
        %v4448 = vlaneseq
        %v4449 = vshrl.u32 %v4448, 7
        %v4450 = vsub.s32 %v4447, %v4449
        %v4451 = vrot.slane %v4443, %v4450
        %v4453 = vunpack.c.l.s4 1983009808
        %v4454 = vunpack.c.0.s8 %v4453
        %v4455 = vlaneseq
        %v4456 = vshrl.u32 %v4455, 7
        %v4457 = vsub.s32 %v4454, %v4456
        %v4458 = vrot.slane %v4444, %v4457
        %v4459 = vcombine.low %v4451, %v4458
        %v4460 = vcombine.low %v3138, %v3142
        %v4461 = vcombine.low %v3146, %v3150
        %v4463 = vunpack.c.l.s4 1983009808
        %v4464 = vunpack.c.0.s8 %v4463
        %v4465 = vlaneseq
        %v4466 = vshrl.u32 %v4465, 7
        %v4467 = vsub.s32 %v4464, %v4466
        %v4468 = vrot.slane %v4460, %v4467
        %v4470 = vunpack.c.l.s4 1983009808
        %v4471 = vunpack.c.0.s8 %v4470
        %v4472 = vlaneseq
        %v4473 = vshrl.u32 %v4472, 7
        %v4474 = vsub.s32 %v4471, %v4473
        %v4475 = vrot.slane %v4461, %v4474
        %v4476 = vcombine.low %v4468, %v4475
        %v4477 = vcombine.low %v3154, %v3158
        %v4478 = vcombine.low %v3162, %v3166
        %v4480 = vunpack.c.l.s4 1983009808
        %v4481 = vunpack.c.0.s8 %v4480
        %v4482 = vlaneseq
        %v4483 = vshrl.u32 %v4482, 7
        %v4484 = vsub.s32 %v4481, %v4483
        %v4485 = vrot.slane %v4477, %v4484
        %v4487 = vunpack.c.l.s4 1983009808
        %v4488 = vunpack.c.0.s8 %v4487
        %v4489 = vlaneseq
        %v4490 = vshrl.u32 %v4489, 7
        %v4491 = vsub.s32 %v4488, %v4490
        %v4492 = vrot.slane %v4478, %v4491
        %v4493 = vcombine.low %v4485, %v4492
        %v4495 = vunpack.c.l.s4 1983009808
        %v4496 = vunpack.c.0.s8 %v4495
        %v4497 = vlaneseq
        %v4498 = vshrl.u32 %v4497, 7
        %v4499 = vsub.s32 %v4496, %v4498
        %v4500 = vrot.slane %v3170, %v4499
        %v4501 = vcombine.low %v3178, %v3182
        %v4502 = vcombine.low %v3186, %v3190
        %v4504 = vunpack.c.l.s4 1983009808
        %v4505 = vunpack.c.0.s8 %v4504
        %v4506 = vlaneseq
        %v4507 = vshrl.u32 %v4506, 7
        %v4508 = vsub.s32 %v4505, %v4507
        %v4509 = vrot.slane %v4501, %v4508
        %v4511 = vunpack.c.l.s4 1983009808
        %v4512 = vunpack.c.0.s8 %v4511
        %v4513 = vlaneseq
        %v4514 = vshrl.u32 %v4513, 7
        %v4515 = vsub.s32 %v4512, %v4514
        %v4516 = vrot.slane %v4502, %v4515
        %v4517 = vcombine.low %v4509, %v4516
        %v4518 = vcombine.low %v3194, %v3198
        %v4519 = vcombine.low %v3202, %v3206
        %v4521 = vunpack.c.l.s4 1983009808
        %v4522 = vunpack.c.0.s8 %v4521
        %v4523 = vlaneseq
        %v4524 = vshrl.u32 %v4523, 7
        %v4525 = vsub.s32 %v4522, %v4524
        %v4526 = vrot.slane %v4518, %v4525
        %v4528 = vunpack.c.l.s4 1983009808
        %v4529 = vunpack.c.0.s8 %v4528
        %v4530 = vlaneseq
        %v4531 = vshrl.u32 %v4530, 7
        %v4532 = vsub.s32 %v4529, %v4531
        %v4533 = vrot.slane %v4519, %v4532
        %v4534 = vcombine.low %v4526, %v4533
        %v4535 = vcombine.low %v3210, %v3214
        %v4536 = vcombine.low %v3218, %v3222
        %v4538 = vunpack.c.l.s4 1983009808
        %v4539 = vunpack.c.0.s8 %v4538
        %v4540 = vlaneseq
        %v4541 = vshrl.u32 %v4540, 7
        %v4542 = vsub.s32 %v4539, %v4541
        %v4543 = vrot.slane %v4535, %v4542
        %v4545 = vunpack.c.l.s4 1983009808
        %v4546 = vunpack.c.0.s8 %v4545
        %v4547 = vlaneseq
        %v4548 = vshrl.u32 %v4547, 7
        %v4549 = vsub.s32 %v4546, %v4548
        %v4550 = vrot.slane %v4536, %v4549
        %v4551 = vcombine.low %v4543, %v4550
        %v4552 = vcombine.low %v3226, %v3230
        %v4553 = vcombine.low %v3234, %v3238
        %v4555 = vunpack.c.l.s4 1983009808
        %v4556 = vunpack.c.0.s8 %v4555
        %v4557 = vlaneseq
        %v4558 = vshrl.u32 %v4557, 7
        %v4559 = vsub.s32 %v4556, %v4558
        %v4560 = vrot.slane %v4552, %v4559
        %v4562 = vunpack.c.l.s4 1983009808
        %v4563 = vunpack.c.0.s8 %v4562
        %v4564 = vlaneseq
        %v4565 = vshrl.u32 %v4564, 7
        %v4566 = vsub.s32 %v4563, %v4565
        %v4567 = vrot.slane %v4553, %v4566
        %v4568 = vcombine.low %v4560, %v4567
        %v4570 = vunpack.c.l.s4 1983009808
        %v4571 = vunpack.c.0.s8 %v4570
        %v4572 = vlaneseq
        %v4573 = vshrl.u32 %v4572, 7
        %v4574 = vsub.s32 %v4571, %v4573
        %v4575 = vrot.slane %v3242, %v4574
        %v4576 = vcombine.low %v3250, %v3254
        %v4577 = vcombine.low %v3258, %v3262
        %v4579 = vunpack.c.l.s4 1983009808
        %v4580 = vunpack.c.0.s8 %v4579
        %v4581 = vlaneseq
        %v4582 = vshrl.u32 %v4581, 7
        %v4583 = vsub.s32 %v4580, %v4582
        %v4584 = vrot.slane %v4576, %v4583
        %v4586 = vunpack.c.l.s4 1983009808
        %v4587 = vunpack.c.0.s8 %v4586
        %v4588 = vlaneseq
        %v4589 = vshrl.u32 %v4588, 7
        %v4590 = vsub.s32 %v4587, %v4589
        %v4591 = vrot.slane %v4577, %v4590
        %v4592 = vcombine.low %v4584, %v4591
        %v4593 = vcombine.low %v3266, %v3270
        %v4594 = vcombine.low %v3274, %v3278
        %v4596 = vunpack.c.l.s4 1983009808
        %v4597 = vunpack.c.0.s8 %v4596
        %v4598 = vlaneseq
        %v4599 = vshrl.u32 %v4598, 7
        %v4600 = vsub.s32 %v4597, %v4599
        %v4601 = vrot.slane %v4593, %v4600
        %v4603 = vunpack.c.l.s4 1983009808
        %v4604 = vunpack.c.0.s8 %v4603
        %v4605 = vlaneseq
        %v4606 = vshrl.u32 %v4605, 7
        %v4607 = vsub.s32 %v4604, %v4606
        %v4608 = vrot.slane %v4594, %v4607
        %v4609 = vcombine.low %v4601, %v4608
        %v4610 = vcombine.low %v3282, %v3286
        %v4611 = vcombine.low %v3290, %v3294
        %v4613 = vunpack.c.l.s4 1983009808
        %v4614 = vunpack.c.0.s8 %v4613
        %v4615 = vlaneseq
        %v4616 = vshrl.u32 %v4615, 7
        %v4617 = vsub.s32 %v4614, %v4616
        %v4618 = vrot.slane %v4610, %v4617
        %v4620 = vunpack.c.l.s4 1983009808
        %v4621 = vunpack.c.0.s8 %v4620
        %v4622 = vlaneseq
        %v4623 = vshrl.u32 %v4622, 7
        %v4624 = vsub.s32 %v4621, %v4623
        %v4625 = vrot.slane %v4611, %v4624
        %v4626 = vcombine.low %v4618, %v4625
        %v4627 = vcombine.low %v3298, %v3302
        %v4628 = vcombine.low %v3306, %v3310
        %v4630 = vunpack.c.l.s4 1983009808
        %v4631 = vunpack.c.0.s8 %v4630
        %v4632 = vlaneseq
        %v4633 = vshrl.u32 %v4632, 7
        %v4634 = vsub.s32 %v4631, %v4633
        %v4635 = vrot.slane %v4627, %v4634
        %v4637 = vunpack.c.l.s4 1983009808
        %v4638 = vunpack.c.0.s8 %v4637
        %v4639 = vlaneseq
        %v4640 = vshrl.u32 %v4639, 7
        %v4641 = vsub.s32 %v4638, %v4640
        %v4642 = vrot.slane %v4628, %v4641
        %v4643 = vcombine.low %v4635, %v4642
        %v4645 = vunpack.c.l.s4 1983009808
        %v4646 = vunpack.c.0.s8 %v4645
        %v4647 = vlaneseq
        %v4648 = vshrl.u32 %v4647, 7
        %v4649 = vsub.s32 %v4646, %v4648
        %v4650 = vrot.slane %v3314, %v4649
        %v4651 = vcombine.low %v3322, %v3326
        %v4652 = vcombine.low %v3330, %v3334
        %v4654 = vunpack.c.l.s4 1983009808
        %v4655 = vunpack.c.0.s8 %v4654
        %v4656 = vlaneseq
        %v4657 = vshrl.u32 %v4656, 7
        %v4658 = vsub.s32 %v4655, %v4657
        %v4659 = vrot.slane %v4651, %v4658
        %v4661 = vunpack.c.l.s4 1983009808
        %v4662 = vunpack.c.0.s8 %v4661
        %v4663 = vlaneseq
        %v4664 = vshrl.u32 %v4663, 7
        %v4665 = vsub.s32 %v4662, %v4664
        %v4666 = vrot.slane %v4652, %v4665
        %v4667 = vcombine.low %v4659, %v4666
        %v4668 = vcombine.low %v3338, %v3342
        %v4669 = vcombine.low %v3346, %v3350
        %v4671 = vunpack.c.l.s4 1983009808
        %v4672 = vunpack.c.0.s8 %v4671
        %v4673 = vlaneseq
        %v4674 = vshrl.u32 %v4673, 7
        %v4675 = vsub.s32 %v4672, %v4674
        %v4676 = vrot.slane %v4668, %v4675
        %v4678 = vunpack.c.l.s4 1983009808
        %v4679 = vunpack.c.0.s8 %v4678
        %v4680 = vlaneseq
        %v4681 = vshrl.u32 %v4680, 7
        %v4682 = vsub.s32 %v4679, %v4681
        %v4683 = vrot.slane %v4669, %v4682
        %v4684 = vcombine.low %v4676, %v4683
        %v4685 = vcombine.low %v3354, %v3358
        %v4686 = vcombine.low %v3362, %v3366
        %v4688 = vunpack.c.l.s4 1983009808
        %v4689 = vunpack.c.0.s8 %v4688
        %v4690 = vlaneseq
        %v4691 = vshrl.u32 %v4690, 7
        %v4692 = vsub.s32 %v4689, %v4691
        %v4693 = vrot.slane %v4685, %v4692
        %v4695 = vunpack.c.l.s4 1983009808
        %v4696 = vunpack.c.0.s8 %v4695
        %v4697 = vlaneseq
        %v4698 = vshrl.u32 %v4697, 7
        %v4699 = vsub.s32 %v4696, %v4698
        %v4700 = vrot.slane %v4686, %v4699
        %v4701 = vcombine.low %v4693, %v4700
        %v4702 = vcombine.low %v3370, %v3374
        %v4703 = vcombine.low %v3378, %v3382
        %v4705 = vunpack.c.l.s4 1983009808
        %v4706 = vunpack.c.0.s8 %v4705
        %v4707 = vlaneseq
        %v4708 = vshrl.u32 %v4707, 7
        %v4709 = vsub.s32 %v4706, %v4708
        %v4710 = vrot.slane %v4702, %v4709
        %v4712 = vunpack.c.l.s4 1983009808
        %v4713 = vunpack.c.0.s8 %v4712
        %v4714 = vlaneseq
        %v4715 = vshrl.u32 %v4714, 7
        %v4716 = vsub.s32 %v4713, %v4715
        %v4717 = vrot.slane %v4703, %v4716
        %v4718 = vcombine.low %v4710, %v4717
        %v4720 = vunpack.c.l.s4 1983009808
        %v4721 = vunpack.c.0.s8 %v4720
        %v4722 = vlaneseq
        %v4723 = vshrl.u32 %v4722, 7
        %v4724 = vsub.s32 %v4721, %v4723
        %v4725 = vrot.slane %v3386, %v4724
        %v4726 = vcombine.low %v3394, %v3398
        %v4727 = vcombine.low %v3402, %v3406
        %v4729 = vunpack.c.l.s4 1983009808
        %v4730 = vunpack.c.0.s8 %v4729
        %v4731 = vlaneseq
        %v4732 = vshrl.u32 %v4731, 7
        %v4733 = vsub.s32 %v4730, %v4732
        %v4734 = vrot.slane %v4726, %v4733
        %v4736 = vunpack.c.l.s4 1983009808
        %v4737 = vunpack.c.0.s8 %v4736
        %v4738 = vlaneseq
        %v4739 = vshrl.u32 %v4738, 7
        %v4740 = vsub.s32 %v4737, %v4739
        %v4741 = vrot.slane %v4727, %v4740
        %v4742 = vcombine.low %v4734, %v4741
        %v4743 = vcombine.low %v3410, %v3414
        %v4744 = vcombine.low %v3418, %v3422
        %v4746 = vunpack.c.l.s4 1983009808
        %v4747 = vunpack.c.0.s8 %v4746
        %v4748 = vlaneseq
        %v4749 = vshrl.u32 %v4748, 7
        %v4750 = vsub.s32 %v4747, %v4749
        %v4751 = vrot.slane %v4743, %v4750
        %v4753 = vunpack.c.l.s4 1983009808
        %v4754 = vunpack.c.0.s8 %v4753
        %v4755 = vlaneseq
        %v4756 = vshrl.u32 %v4755, 7
        %v4757 = vsub.s32 %v4754, %v4756
        %v4758 = vrot.slane %v4744, %v4757
        %v4759 = vcombine.low %v4751, %v4758
        %v4760 = vcombine.low %v3426, %v3430
        %v4761 = vcombine.low %v3434, %v3438
        %v4763 = vunpack.c.l.s4 1983009808
        %v4764 = vunpack.c.0.s8 %v4763
        %v4765 = vlaneseq
        %v4766 = vshrl.u32 %v4765, 7
        %v4767 = vsub.s32 %v4764, %v4766
        %v4768 = vrot.slane %v4760, %v4767
        %v4770 = vunpack.c.l.s4 1983009808
        %v4771 = vunpack.c.0.s8 %v4770
        %v4772 = vlaneseq
        %v4773 = vshrl.u32 %v4772, 7
        %v4774 = vsub.s32 %v4771, %v4773
        %v4775 = vrot.slane %v4761, %v4774
        %v4776 = vcombine.low %v4768, %v4775
        %v4777 = vcombine.low %v3442, %v3446
        %v4778 = vcombine.low %v3450, %v3454
        %v4780 = vunpack.c.l.s4 1983009808
        %v4781 = vunpack.c.0.s8 %v4780
        %v4782 = vlaneseq
        %v4783 = vshrl.u32 %v4782, 7
        %v4784 = vsub.s32 %v4781, %v4783
        %v4785 = vrot.slane %v4777, %v4784
        %v4787 = vunpack.c.l.s4 1983009808
        %v4788 = vunpack.c.0.s8 %v4787
        %v4789 = vlaneseq
        %v4790 = vshrl.u32 %v4789, 7
        %v4791 = vsub.s32 %v4788, %v4790
        %v4792 = vrot.slane %v4778, %v4791
        %v4793 = vcombine.low %v4785, %v4792
        %v4795 = vunpack.c.l.s4 1983009808
        %v4796 = vunpack.c.0.s8 %v4795
        %v4797 = vlaneseq
        %v4798 = vshrl.u32 %v4797, 7
        %v4799 = vsub.s32 %v4796, %v4798
        %v4800 = vrot.slane %v3458, %v4799
        %v4801 = vcombine.low %v3466, %v3470
        %v4802 = vcombine.low %v3474, %v3478
        %v4804 = vunpack.c.l.s4 1983009808
        %v4805 = vunpack.c.0.s8 %v4804
        %v4806 = vlaneseq
        %v4807 = vshrl.u32 %v4806, 7
        %v4808 = vsub.s32 %v4805, %v4807
        %v4809 = vrot.slane %v4801, %v4808
        %v4811 = vunpack.c.l.s4 1983009808
        %v4812 = vunpack.c.0.s8 %v4811
        %v4813 = vlaneseq
        %v4814 = vshrl.u32 %v4813, 7
        %v4815 = vsub.s32 %v4812, %v4814
        %v4816 = vrot.slane %v4802, %v4815
        %v4817 = vcombine.low %v4809, %v4816
        %v4818 = vcombine.low %v3482, %v3486
        %v4819 = vcombine.low %v3490, %v3494
        %v4821 = vunpack.c.l.s4 1983009808
        %v4822 = vunpack.c.0.s8 %v4821
        %v4823 = vlaneseq
        %v4824 = vshrl.u32 %v4823, 7
        %v4825 = vsub.s32 %v4822, %v4824
        %v4826 = vrot.slane %v4818, %v4825
        %v4828 = vunpack.c.l.s4 1983009808
        %v4829 = vunpack.c.0.s8 %v4828
        %v4830 = vlaneseq
        %v4831 = vshrl.u32 %v4830, 7
        %v4832 = vsub.s32 %v4829, %v4831
        %v4833 = vrot.slane %v4819, %v4832
        %v4834 = vcombine.low %v4826, %v4833
        %v4835 = vcombine.low %v3498, %v3502
        %v4836 = vcombine.low %v3506, %v3510
        %v4838 = vunpack.c.l.s4 1983009808
        %v4839 = vunpack.c.0.s8 %v4838
        %v4840 = vlaneseq
        %v4841 = vshrl.u32 %v4840, 7
        %v4842 = vsub.s32 %v4839, %v4841
        %v4843 = vrot.slane %v4835, %v4842
        %v4845 = vunpack.c.l.s4 1983009808
        %v4846 = vunpack.c.0.s8 %v4845
        %v4847 = vlaneseq
        %v4848 = vshrl.u32 %v4847, 7
        %v4849 = vsub.s32 %v4846, %v4848
        %v4850 = vrot.slane %v4836, %v4849
        %v4851 = vcombine.low %v4843, %v4850
        %v4852 = vcombine.low %v3514, %v3518
        %v4853 = vcombine.low %v3522, %v3526
        %v4855 = vunpack.c.l.s4 1983009808
        %v4856 = vunpack.c.0.s8 %v4855
        %v4857 = vlaneseq
        %v4858 = vshrl.u32 %v4857, 7
        %v4859 = vsub.s32 %v4856, %v4858
        %v4860 = vrot.slane %v4852, %v4859
        %v4862 = vunpack.c.l.s4 1983009808
        %v4863 = vunpack.c.0.s8 %v4862
        %v4864 = vlaneseq
        %v4865 = vshrl.u32 %v4864, 7
        %v4866 = vsub.s32 %v4863, %v4865
        %v4867 = vrot.slane %v4853, %v4866
        %v4868 = vcombine.low %v4860, %v4867
        %v4870 = vunpack.c.l.s4 1983009808
        %v4871 = vunpack.c.0.s8 %v4870
        %v4872 = vlaneseq
        %v4873 = vshrl.u32 %v4872, 7
        %v4874 = vsub.s32 %v4871, %v4873
        %v4875 = vrot.slane %v3530, %v4874
        %v4876 = vcombine.low %v3538, %v3542
        %v4877 = vcombine.low %v3546, %v3550
        %v4879 = vunpack.c.l.s4 1983009808
        %v4880 = vunpack.c.0.s8 %v4879
        %v4881 = vlaneseq
        %v4882 = vshrl.u32 %v4881, 7
        %v4883 = vsub.s32 %v4880, %v4882
        %v4884 = vrot.slane %v4876, %v4883
        %v4886 = vunpack.c.l.s4 1983009808
        %v4887 = vunpack.c.0.s8 %v4886
        %v4888 = vlaneseq
        %v4889 = vshrl.u32 %v4888, 7
        %v4890 = vsub.s32 %v4887, %v4889
        %v4891 = vrot.slane %v4877, %v4890
        %v4892 = vcombine.low %v4884, %v4891
        %v4893 = vcombine.low %v3554, %v3558
        %v4894 = vcombine.low %v3562, %v3566
        %v4896 = vunpack.c.l.s4 1983009808
        %v4897 = vunpack.c.0.s8 %v4896
        %v4898 = vlaneseq
        %v4899 = vshrl.u32 %v4898, 7
        %v4900 = vsub.s32 %v4897, %v4899
        %v4901 = vrot.slane %v4893, %v4900
        %v4903 = vunpack.c.l.s4 1983009808
        %v4904 = vunpack.c.0.s8 %v4903
        %v4905 = vlaneseq
        %v4906 = vshrl.u32 %v4905, 7
        %v4907 = vsub.s32 %v4904, %v4906
        %v4908 = vrot.slane %v4894, %v4907
        %v4909 = vcombine.low %v4901, %v4908
        %v4910 = vcombine.low %v3570, %v3574
        %v4911 = vcombine.low %v3578, %v3582
        %v4913 = vunpack.c.l.s4 1983009808
        %v4914 = vunpack.c.0.s8 %v4913
        %v4915 = vlaneseq
        %v4916 = vshrl.u32 %v4915, 7
        %v4917 = vsub.s32 %v4914, %v4916
        %v4918 = vrot.slane %v4910, %v4917
        %v4920 = vunpack.c.l.s4 1983009808
        %v4921 = vunpack.c.0.s8 %v4920
        %v4922 = vlaneseq
        %v4923 = vshrl.u32 %v4922, 7
        %v4924 = vsub.s32 %v4921, %v4923
        %v4925 = vrot.slane %v4911, %v4924
        %v4926 = vcombine.low %v4918, %v4925
        %v4927 = vcombine.low %v3586, %v3590
        %v4928 = vcombine.low %v3594, %v3598
        %v4930 = vunpack.c.l.s4 1983009808
        %v4931 = vunpack.c.0.s8 %v4930
        %v4932 = vlaneseq
        %v4933 = vshrl.u32 %v4932, 7
        %v4934 = vsub.s32 %v4931, %v4933
        %v4935 = vrot.slane %v4927, %v4934
        %v4937 = vunpack.c.l.s4 1983009808
        %v4938 = vunpack.c.0.s8 %v4937
        %v4939 = vlaneseq
        %v4940 = vshrl.u32 %v4939, 7
        %v4941 = vsub.s32 %v4938, %v4940
        %v4942 = vrot.slane %v4928, %v4941
        %v4943 = vcombine.low %v4935, %v4942
        %v4945 = vunpack.c.l.s4 1983009808
        %v4946 = vunpack.c.0.s8 %v4945
        %v4947 = vlaneseq
        %v4948 = vshrl.u32 %v4947, 7
        %v4949 = vsub.s32 %v4946, %v4948
        %v4950 = vrot.slane %v3602, %v4949
        %v4951 = vcombine.low %v3610, %v3614
        %v4952 = vcombine.low %v3618, %v3622
        %v4954 = vunpack.c.l.s4 1983009808
        %v4955 = vunpack.c.0.s8 %v4954
        %v4956 = vlaneseq
        %v4957 = vshrl.u32 %v4956, 7
        %v4958 = vsub.s32 %v4955, %v4957
        %v4959 = vrot.slane %v4951, %v4958
        %v4961 = vunpack.c.l.s4 1983009808
        %v4962 = vunpack.c.0.s8 %v4961
        %v4963 = vlaneseq
        %v4964 = vshrl.u32 %v4963, 7
        %v4965 = vsub.s32 %v4962, %v4964
        %v4966 = vrot.slane %v4952, %v4965
        %v4967 = vcombine.low %v4959, %v4966
        %v4968 = vcombine.low %v3626, %v3630
        %v4969 = vcombine.low %v3634, %v3638
        %v4971 = vunpack.c.l.s4 1983009808
        %v4972 = vunpack.c.0.s8 %v4971
        %v4973 = vlaneseq
        %v4974 = vshrl.u32 %v4973, 7
        %v4975 = vsub.s32 %v4972, %v4974
        %v4976 = vrot.slane %v4968, %v4975
        %v4978 = vunpack.c.l.s4 1983009808
        %v4979 = vunpack.c.0.s8 %v4978
        %v4980 = vlaneseq
        %v4981 = vshrl.u32 %v4980, 7
        %v4982 = vsub.s32 %v4979, %v4981
        %v4983 = vrot.slane %v4969, %v4982
        %v4984 = vcombine.low %v4976, %v4983
        %v4985 = vcombine.low %v3642, %v3646
        %v4986 = vcombine.low %v3650, %v3654
        %v4988 = vunpack.c.l.s4 1983009808
        %v4989 = vunpack.c.0.s8 %v4988
        %v4990 = vlaneseq
        %v4991 = vshrl.u32 %v4990, 7
        %v4992 = vsub.s32 %v4989, %v4991
        %v4993 = vrot.slane %v4985, %v4992
        %v4995 = vunpack.c.l.s4 1983009808
        %v4996 = vunpack.c.0.s8 %v4995
        %v4997 = vlaneseq
        %v4998 = vshrl.u32 %v4997, 7
        %v4999 = vsub.s32 %v4996, %v4998
        %v5000 = vrot.slane %v4986, %v4999
        %v5001 = vcombine.low %v4993, %v5000
        %v5002 = vcombine.low %v3658, %v3662
        %v5003 = vcombine.low %v3666, %v3670
        %v5005 = vunpack.c.l.s4 1983009808
        %v5006 = vunpack.c.0.s8 %v5005
        %v5007 = vlaneseq
        %v5008 = vshrl.u32 %v5007, 7
        %v5009 = vsub.s32 %v5006, %v5008
        %v5010 = vrot.slane %v5002, %v5009
        %v5012 = vunpack.c.l.s4 1983009808
        %v5013 = vunpack.c.0.s8 %v5012
        %v5014 = vlaneseq
        %v5015 = vshrl.u32 %v5014, 7
        %v5016 = vsub.s32 %v5013, %v5015
        %v5017 = vrot.slane %v5003, %v5016
        %v5018 = vcombine.low %v5010, %v5017
        %v5020 = vunpack.c.l.s4 1983009808
        %v5021 = vunpack.c.0.s8 %v5020
        %v5022 = vlaneseq
        %v5023 = vshrl.u32 %v5022, 7
        %v5024 = vsub.s32 %v5021, %v5023
        %v5025 = vrot.slane %v3674, %v5024
        %v5111 = vcombine.low %v2462, %v2466
        %v5112 = vcombine.low %v2470, %v2474
        %v5114 = vunpack.c.l.s4 1983009808
        %v5115 = vunpack.c.0.s8 %v5114
        %v5116 = vlaneseq
        %v5117 = vshrl.u32 %v5116, 7
        %v5118 = vsub.s32 %v5115, %v5117
        %v5119 = vrot.slane %v5111, %v5118
        %v5121 = vunpack.c.l.s4 1983009808
        %v5122 = vunpack.c.0.s8 %v5121
        %v5123 = vlaneseq
        %v5124 = vshrl.u32 %v5123, 7
        %v5125 = vsub.s32 %v5122, %v5124
        %v5126 = vrot.slane %v5112, %v5125
        %v5127 = vcombine.low %v5119, %v5126
        %v5128 = vcombine.low %v2478, %v2482
        %v5129 = vcombine.low %v2486, %v2490
        %v5131 = vunpack.c.l.s4 1983009808
        %v5132 = vunpack.c.0.s8 %v5131
        %v5133 = vlaneseq
        %v5134 = vshrl.u32 %v5133, 7
        %v5135 = vsub.s32 %v5132, %v5134
        %v5136 = vrot.slane %v5128, %v5135
        %v5138 = vunpack.c.l.s4 1983009808
        %v5139 = vunpack.c.0.s8 %v5138
        %v5140 = vlaneseq
        %v5141 = vshrl.u32 %v5140, 7
        %v5142 = vsub.s32 %v5139, %v5141
        %v5143 = vrot.slane %v5129, %v5142
        %v5144 = vcombine.low %v5136, %v5143
        %v5145 = vcombine.low %v2494, %v2498
        %v5146 = vcombine.low %v2502, %v2506
        %v5148 = vunpack.c.l.s4 1983009808
        %v5149 = vunpack.c.0.s8 %v5148
        %v5150 = vlaneseq
        %v5151 = vshrl.u32 %v5150, 7
        %v5152 = vsub.s32 %v5149, %v5151
        %v5153 = vrot.slane %v5145, %v5152
        %v5155 = vunpack.c.l.s4 1983009808
        %v5156 = vunpack.c.0.s8 %v5155
        %v5157 = vlaneseq
        %v5158 = vshrl.u32 %v5157, 7
        %v5159 = vsub.s32 %v5156, %v5158
        %v5160 = vrot.slane %v5146, %v5159
        %v5161 = vcombine.low %v5153, %v5160
        %v5162 = vcombine.low %v2510, %v2514
        %v5163 = vcombine.low %v2518, %v2522
        %v5165 = vunpack.c.l.s4 1983009808
        %v5166 = vunpack.c.0.s8 %v5165
        %v5167 = vlaneseq
        %v5168 = vshrl.u32 %v5167, 7
        %v5169 = vsub.s32 %v5166, %v5168
        %v5170 = vrot.slane %v5162, %v5169
        %v5172 = vunpack.c.l.s4 1983009808
        %v5173 = vunpack.c.0.s8 %v5172
        %v5174 = vlaneseq
        %v5175 = vshrl.u32 %v5174, 7
        %v5176 = vsub.s32 %v5173, %v5175
        %v5177 = vrot.slane %v5163, %v5176
        %v5178 = vcombine.low %v5170, %v5177
        %v5179 = vcombine.low %v2534, %v2538
        %v5180 = vcombine.low %v2542, %v2546
        %v5182 = vunpack.c.l.s4 1983009808
        %v5183 = vunpack.c.0.s8 %v5182
        %v5184 = vlaneseq
        %v5185 = vshrl.u32 %v5184, 7
        %v5186 = vsub.s32 %v5183, %v5185
        %v5187 = vrot.slane %v5179, %v5186
        %v5189 = vunpack.c.l.s4 1983009808
        %v5190 = vunpack.c.0.s8 %v5189
        %v5191 = vlaneseq
        %v5192 = vshrl.u32 %v5191, 7
        %v5193 = vsub.s32 %v5190, %v5192
        %v5194 = vrot.slane %v5180, %v5193
        %v5195 = vcombine.low %v5187, %v5194
        %v5196 = vcombine.low %v2550, %v2554
        %v5197 = vcombine.low %v2558, %v2562
        %v5199 = vunpack.c.l.s4 1983009808
        %v5200 = vunpack.c.0.s8 %v5199
        %v5201 = vlaneseq
        %v5202 = vshrl.u32 %v5201, 7
        %v5203 = vsub.s32 %v5200, %v5202
        %v5204 = vrot.slane %v5196, %v5203
        %v5206 = vunpack.c.l.s4 1983009808
        %v5207 = vunpack.c.0.s8 %v5206
        %v5208 = vlaneseq
        %v5209 = vshrl.u32 %v5208, 7
        %v5210 = vsub.s32 %v5207, %v5209
        %v5211 = vrot.slane %v5197, %v5210
        %v5212 = vcombine.low %v5204, %v5211
        %v5213 = vcombine.low %v2566, %v2570
        %v5214 = vcombine.low %v2574, %v2578
        %v5216 = vunpack.c.l.s4 1983009808
        %v5217 = vunpack.c.0.s8 %v5216
        %v5218 = vlaneseq
        %v5219 = vshrl.u32 %v5218, 7
        %v5220 = vsub.s32 %v5217, %v5219
        %v5221 = vrot.slane %v5213, %v5220
        %v5223 = vunpack.c.l.s4 1983009808
        %v5224 = vunpack.c.0.s8 %v5223
        %v5225 = vlaneseq
        %v5226 = vshrl.u32 %v5225, 7
        %v5227 = vsub.s32 %v5224, %v5226
        %v5228 = vrot.slane %v5214, %v5227
        %v5229 = vcombine.low %v5221, %v5228
        %v5230 = vcombine.low %v2582, %v2586
        %v5231 = vcombine.low %v2590, %v2594
        %v5233 = vunpack.c.l.s4 1983009808
        %v5234 = vunpack.c.0.s8 %v5233
        %v5235 = vlaneseq
        %v5236 = vshrl.u32 %v5235, 7
        %v5237 = vsub.s32 %v5234, %v5236
        %v5238 = vrot.slane %v5230, %v5237
        %v5240 = vunpack.c.l.s4 1983009808
        %v5241 = vunpack.c.0.s8 %v5240
        %v5242 = vlaneseq
        %v5243 = vshrl.u32 %v5242, 7
        %v5244 = vsub.s32 %v5241, %v5243
        %v5245 = vrot.slane %v5231, %v5244
        %v5246 = vcombine.low %v5238, %v5245
        %v5247 = vcombine.low %v2606, %v2610
        %v5248 = vcombine.low %v2614, %v2618
        %v5250 = vunpack.c.l.s4 1983009808
        %v5251 = vunpack.c.0.s8 %v5250
        %v5252 = vlaneseq
        %v5253 = vshrl.u32 %v5252, 7
        %v5254 = vsub.s32 %v5251, %v5253
        %v5255 = vrot.slane %v5247, %v5254
        %v5257 = vunpack.c.l.s4 1983009808
        %v5258 = vunpack.c.0.s8 %v5257
        %v5259 = vlaneseq
        %v5260 = vshrl.u32 %v5259, 7
        %v5261 = vsub.s32 %v5258, %v5260
        %v5262 = vrot.slane %v5248, %v5261
        %v5263 = vcombine.low %v5255, %v5262
        %v5264 = vcombine.low %v2622, %v2626
        %v5265 = vcombine.low %v2630, %v2634
        %v5267 = vunpack.c.l.s4 1983009808
        %v5268 = vunpack.c.0.s8 %v5267
        %v5269 = vlaneseq
        %v5270 = vshrl.u32 %v5269, 7
        %v5271 = vsub.s32 %v5268, %v5270
        %v5272 = vrot.slane %v5264, %v5271
        %v5274 = vunpack.c.l.s4 1983009808
        %v5275 = vunpack.c.0.s8 %v5274
        %v5276 = vlaneseq
        %v5277 = vshrl.u32 %v5276, 7
        %v5278 = vsub.s32 %v5275, %v5277
        %v5279 = vrot.slane %v5265, %v5278
        %v5280 = vcombine.low %v5272, %v5279
        %v5281 = vcombine.low %v2638, %v2642
        %v5282 = vcombine.low %v2646, %v2650
        %v5284 = vunpack.c.l.s4 1983009808
        %v5285 = vunpack.c.0.s8 %v5284
        %v5286 = vlaneseq
        %v5287 = vshrl.u32 %v5286, 7
        %v5288 = vsub.s32 %v5285, %v5287
        %v5289 = vrot.slane %v5281, %v5288
        %v5291 = vunpack.c.l.s4 1983009808
        %v5292 = vunpack.c.0.s8 %v5291
        %v5293 = vlaneseq
        %v5294 = vshrl.u32 %v5293, 7
        %v5295 = vsub.s32 %v5292, %v5294
        %v5296 = vrot.slane %v5282, %v5295
        %v5297 = vcombine.low %v5289, %v5296
        %v5298 = vcombine.low %v2654, %v2658
        %v5299 = vcombine.low %v2662, %v2666
        %v5301 = vunpack.c.l.s4 1983009808
        %v5302 = vunpack.c.0.s8 %v5301
        %v5303 = vlaneseq
        %v5304 = vshrl.u32 %v5303, 7
        %v5305 = vsub.s32 %v5302, %v5304
        %v5306 = vrot.slane %v5298, %v5305
        %v5308 = vunpack.c.l.s4 1983009808
        %v5309 = vunpack.c.0.s8 %v5308
        %v5310 = vlaneseq
        %v5311 = vshrl.u32 %v5310, 7
        %v5312 = vsub.s32 %v5309, %v5311
        %v5313 = vrot.slane %v5299, %v5312
        %v5314 = vcombine.low %v5306, %v5313
        %v5315 = vcombine.low %v2678, %v2682
        %v5316 = vcombine.low %v2686, %v2690
        %v5318 = vunpack.c.l.s4 1983009808
        %v5319 = vunpack.c.0.s8 %v5318
        %v5320 = vlaneseq
        %v5321 = vshrl.u32 %v5320, 7
        %v5322 = vsub.s32 %v5319, %v5321
        %v5323 = vrot.slane %v5315, %v5322
        %v5325 = vunpack.c.l.s4 1983009808
        %v5326 = vunpack.c.0.s8 %v5325
        %v5327 = vlaneseq
        %v5328 = vshrl.u32 %v5327, 7
        %v5329 = vsub.s32 %v5326, %v5328
        %v5330 = vrot.slane %v5316, %v5329
        %v5331 = vcombine.low %v5323, %v5330
        %v5332 = vcombine.low %v2694, %v2698
        %v5333 = vcombine.low %v2702, %v2706
        %v5335 = vunpack.c.l.s4 1983009808
        %v5336 = vunpack.c.0.s8 %v5335
        %v5337 = vlaneseq
        %v5338 = vshrl.u32 %v5337, 7
        %v5339 = vsub.s32 %v5336, %v5338
        %v5340 = vrot.slane %v5332, %v5339
        %v5342 = vunpack.c.l.s4 1983009808
        %v5343 = vunpack.c.0.s8 %v5342
        %v5344 = vlaneseq
        %v5345 = vshrl.u32 %v5344, 7
        %v5346 = vsub.s32 %v5343, %v5345
        %v5347 = vrot.slane %v5333, %v5346
        %v5348 = vcombine.low %v5340, %v5347
        %v5349 = vcombine.low %v2710, %v2714
        %v5350 = vcombine.low %v2718, %v2722
        %v5352 = vunpack.c.l.s4 1983009808
        %v5353 = vunpack.c.0.s8 %v5352
        %v5354 = vlaneseq
        %v5355 = vshrl.u32 %v5354, 7
        %v5356 = vsub.s32 %v5353, %v5355
        %v5357 = vrot.slane %v5349, %v5356
        %v5359 = vunpack.c.l.s4 1983009808
        %v5360 = vunpack.c.0.s8 %v5359
        %v5361 = vlaneseq
        %v5362 = vshrl.u32 %v5361, 7
        %v5363 = vsub.s32 %v5360, %v5362
        %v5364 = vrot.slane %v5350, %v5363
        %v5365 = vcombine.low %v5357, %v5364
        %v5366 = vcombine.low %v2726, %v2730
        %v5367 = vcombine.low %v2734, %v2738
        %v5369 = vunpack.c.l.s4 1983009808
        %v5370 = vunpack.c.0.s8 %v5369
        %v5371 = vlaneseq
        %v5372 = vshrl.u32 %v5371, 7
        %v5373 = vsub.s32 %v5370, %v5372
        %v5374 = vrot.slane %v5366, %v5373
        %v5376 = vunpack.c.l.s4 1983009808
        %v5377 = vunpack.c.0.s8 %v5376
        %v5378 = vlaneseq
        %v5379 = vshrl.u32 %v5378, 7
        %v5380 = vsub.s32 %v5377, %v5379
        %v5381 = vrot.slane %v5367, %v5380
        %v5382 = vcombine.low %v5374, %v5381
        %v5383 = vcombine.low %v2750, %v2754
        %v5384 = vcombine.low %v2758, %v2762
        %v5386 = vunpack.c.l.s4 1983009808
        %v5387 = vunpack.c.0.s8 %v5386
        %v5388 = vlaneseq
        %v5389 = vshrl.u32 %v5388, 7
        %v5390 = vsub.s32 %v5387, %v5389
        %v5391 = vrot.slane %v5383, %v5390
        %v5393 = vunpack.c.l.s4 1983009808
        %v5394 = vunpack.c.0.s8 %v5393
        %v5395 = vlaneseq
        %v5396 = vshrl.u32 %v5395, 7
        %v5397 = vsub.s32 %v5394, %v5396
        %v5398 = vrot.slane %v5384, %v5397
        %v5399 = vcombine.low %v5391, %v5398
        %v5400 = vcombine.low %v2766, %v2770
        %v5401 = vcombine.low %v2774, %v2778
        %v5403 = vunpack.c.l.s4 1983009808
        %v5404 = vunpack.c.0.s8 %v5403
        %v5405 = vlaneseq
        %v5406 = vshrl.u32 %v5405, 7
        %v5407 = vsub.s32 %v5404, %v5406
        %v5408 = vrot.slane %v5400, %v5407
        %v5410 = vunpack.c.l.s4 1983009808
        %v5411 = vunpack.c.0.s8 %v5410
        %v5412 = vlaneseq
        %v5413 = vshrl.u32 %v5412, 7
        %v5414 = vsub.s32 %v5411, %v5413
        %v5415 = vrot.slane %v5401, %v5414
        %v5416 = vcombine.low %v5408, %v5415
        %v5417 = vcombine.low %v2782, %v2786
        %v5418 = vcombine.low %v2790, %v2794
        %v5420 = vunpack.c.l.s4 1983009808
        %v5421 = vunpack.c.0.s8 %v5420
        %v5422 = vlaneseq
        %v5423 = vshrl.u32 %v5422, 7
        %v5424 = vsub.s32 %v5421, %v5423
        %v5425 = vrot.slane %v5417, %v5424
        %v5427 = vunpack.c.l.s4 1983009808
        %v5428 = vunpack.c.0.s8 %v5427
        %v5429 = vlaneseq
        %v5430 = vshrl.u32 %v5429, 7
        %v5431 = vsub.s32 %v5428, %v5430
        %v5432 = vrot.slane %v5418, %v5431
        %v5433 = vcombine.low %v5425, %v5432
        %v5434 = vcombine.low %v2798, %v2802
        %v5435 = vcombine.low %v2806, %v2810
        %v5437 = vunpack.c.l.s4 1983009808
        %v5438 = vunpack.c.0.s8 %v5437
        %v5439 = vlaneseq
        %v5440 = vshrl.u32 %v5439, 7
        %v5441 = vsub.s32 %v5438, %v5440
        %v5442 = vrot.slane %v5434, %v5441
        %v5444 = vunpack.c.l.s4 1983009808
        %v5445 = vunpack.c.0.s8 %v5444
        %v5446 = vlaneseq
        %v5447 = vshrl.u32 %v5446, 7
        %v5448 = vsub.s32 %v5445, %v5447
        %v5449 = vrot.slane %v5435, %v5448
        %v5450 = vcombine.low %v5442, %v5449
        %v5451 = vcombine.low %v2822, %v2826
        %v5452 = vcombine.low %v2830, %v2834
        %v5454 = vunpack.c.l.s4 1983009808
        %v5455 = vunpack.c.0.s8 %v5454
        %v5456 = vlaneseq
        %v5457 = vshrl.u32 %v5456, 7
        %v5458 = vsub.s32 %v5455, %v5457
        %v5459 = vrot.slane %v5451, %v5458
        %v5461 = vunpack.c.l.s4 1983009808
        %v5462 = vunpack.c.0.s8 %v5461
        %v5463 = vlaneseq
        %v5464 = vshrl.u32 %v5463, 7
        %v5465 = vsub.s32 %v5462, %v5464
        %v5466 = vrot.slane %v5452, %v5465
        %v5467 = vcombine.low %v5459, %v5466
        %v5468 = vcombine.low %v2838, %v2842
        %v5469 = vcombine.low %v2846, %v2850
        %v5471 = vunpack.c.l.s4 1983009808
        %v5472 = vunpack.c.0.s8 %v5471
        %v5473 = vlaneseq
        %v5474 = vshrl.u32 %v5473, 7
        %v5475 = vsub.s32 %v5472, %v5474
        %v5476 = vrot.slane %v5468, %v5475
        %v5478 = vunpack.c.l.s4 1983009808
        %v5479 = vunpack.c.0.s8 %v5478
        %v5480 = vlaneseq
        %v5481 = vshrl.u32 %v5480, 7
        %v5482 = vsub.s32 %v5479, %v5481
        %v5483 = vrot.slane %v5469, %v5482
        %v5484 = vcombine.low %v5476, %v5483
        %v5485 = vcombine.low %v2854, %v2858
        %v5486 = vcombine.low %v2862, %v2866
        %v5488 = vunpack.c.l.s4 1983009808
        %v5489 = vunpack.c.0.s8 %v5488
        %v5490 = vlaneseq
        %v5491 = vshrl.u32 %v5490, 7
        %v5492 = vsub.s32 %v5489, %v5491
        %v5493 = vrot.slane %v5485, %v5492
        %v5495 = vunpack.c.l.s4 1983009808
        %v5496 = vunpack.c.0.s8 %v5495
        %v5497 = vlaneseq
        %v5498 = vshrl.u32 %v5497, 7
        %v5499 = vsub.s32 %v5496, %v5498
        %v5500 = vrot.slane %v5486, %v5499
        %v5501 = vcombine.low %v5493, %v5500
        %v5502 = vcombine.low %v2870, %v2874
        %v5503 = vcombine.low %v2878, %v2882
        %v5505 = vunpack.c.l.s4 1983009808
        %v5506 = vunpack.c.0.s8 %v5505
        %v5507 = vlaneseq
        %v5508 = vshrl.u32 %v5507, 7
        %v5509 = vsub.s32 %v5506, %v5508
        %v5510 = vrot.slane %v5502, %v5509
        %v5512 = vunpack.c.l.s4 1983009808
        %v5513 = vunpack.c.0.s8 %v5512
        %v5514 = vlaneseq
        %v5515 = vshrl.u32 %v5514, 7
        %v5516 = vsub.s32 %v5513, %v5515
        %v5517 = vrot.slane %v5503, %v5516
        %v5518 = vcombine.low %v5510, %v5517
        %v5519 = vcombine.low %v2894, %v2898
        %v5520 = vcombine.low %v2902, %v2906
        %v5522 = vunpack.c.l.s4 1983009808
        %v5523 = vunpack.c.0.s8 %v5522
        %v5524 = vlaneseq
        %v5525 = vshrl.u32 %v5524, 7
        %v5526 = vsub.s32 %v5523, %v5525
        %v5527 = vrot.slane %v5519, %v5526
        %v5529 = vunpack.c.l.s4 1983009808
        %v5530 = vunpack.c.0.s8 %v5529
        %v5531 = vlaneseq
        %v5532 = vshrl.u32 %v5531, 7
        %v5533 = vsub.s32 %v5530, %v5532
        %v5534 = vrot.slane %v5520, %v5533
        %v5535 = vcombine.low %v5527, %v5534
        %v5536 = vcombine.low %v2910, %v2914
        %v5537 = vcombine.low %v2918, %v2922
        %v5539 = vunpack.c.l.s4 1983009808
        %v5540 = vunpack.c.0.s8 %v5539
        %v5541 = vlaneseq
        %v5542 = vshrl.u32 %v5541, 7
        %v5543 = vsub.s32 %v5540, %v5542
        %v5544 = vrot.slane %v5536, %v5543
        %v5546 = vunpack.c.l.s4 1983009808
        %v5547 = vunpack.c.0.s8 %v5546
        %v5548 = vlaneseq
        %v5549 = vshrl.u32 %v5548, 7
        %v5550 = vsub.s32 %v5547, %v5549
        %v5551 = vrot.slane %v5537, %v5550
        %v5552 = vcombine.low %v5544, %v5551
        %v5553 = vcombine.low %v2926, %v2930
        %v5554 = vcombine.low %v2934, %v2938
        %v5556 = vunpack.c.l.s4 1983009808
        %v5557 = vunpack.c.0.s8 %v5556
        %v5558 = vlaneseq
        %v5559 = vshrl.u32 %v5558, 7
        %v5560 = vsub.s32 %v5557, %v5559
        %v5561 = vrot.slane %v5553, %v5560
        %v5563 = vunpack.c.l.s4 1983009808
        %v5564 = vunpack.c.0.s8 %v5563
        %v5565 = vlaneseq
        %v5566 = vshrl.u32 %v5565, 7
        %v5567 = vsub.s32 %v5564, %v5566
        %v5568 = vrot.slane %v5554, %v5567
        %v5569 = vcombine.low %v5561, %v5568
        %v5570 = vcombine.low %v2942, %v2946
        %v5571 = vcombine.low %v2950, %v2954
        %v5573 = vunpack.c.l.s4 1983009808
        %v5574 = vunpack.c.0.s8 %v5573
        %v5575 = vlaneseq
        %v5576 = vshrl.u32 %v5575, 7
        %v5577 = vsub.s32 %v5574, %v5576
        %v5578 = vrot.slane %v5570, %v5577
        %v5580 = vunpack.c.l.s4 1983009808
        %v5581 = vunpack.c.0.s8 %v5580
        %v5582 = vlaneseq
        %v5583 = vshrl.u32 %v5582, 7
        %v5584 = vsub.s32 %v5581, %v5583
        %v5585 = vrot.slane %v5571, %v5584
        %v5586 = vcombine.low %v5578, %v5585
        %v5587 = vcombine.low %v2966, %v2970
        %v5588 = vcombine.low %v2974, %v2978
        %v5590 = vunpack.c.l.s4 1983009808
        %v5591 = vunpack.c.0.s8 %v5590
        %v5592 = vlaneseq
        %v5593 = vshrl.u32 %v5592, 7
        %v5594 = vsub.s32 %v5591, %v5593
        %v5595 = vrot.slane %v5587, %v5594
        %v5597 = vunpack.c.l.s4 1983009808
        %v5598 = vunpack.c.0.s8 %v5597
        %v5599 = vlaneseq
        %v5600 = vshrl.u32 %v5599, 7
        %v5601 = vsub.s32 %v5598, %v5600
        %v5602 = vrot.slane %v5588, %v5601
        %v5603 = vcombine.low %v5595, %v5602
        %v5604 = vcombine.low %v2982, %v2986
        %v5605 = vcombine.low %v2990, %v2994
        %v5607 = vunpack.c.l.s4 1983009808
        %v5608 = vunpack.c.0.s8 %v5607
        %v5609 = vlaneseq
        %v5610 = vshrl.u32 %v5609, 7
        %v5611 = vsub.s32 %v5608, %v5610
        %v5612 = vrot.slane %v5604, %v5611
        %v5614 = vunpack.c.l.s4 1983009808
        %v5615 = vunpack.c.0.s8 %v5614
        %v5616 = vlaneseq
        %v5617 = vshrl.u32 %v5616, 7
        %v5618 = vsub.s32 %v5615, %v5617
        %v5619 = vrot.slane %v5605, %v5618
        %v5620 = vcombine.low %v5612, %v5619
        %v5621 = vcombine.low %v2998, %v3002
        %v5622 = vcombine.low %v3006, %v3010
        %v5624 = vunpack.c.l.s4 1983009808
        %v5625 = vunpack.c.0.s8 %v5624
        %v5626 = vlaneseq
        %v5627 = vshrl.u32 %v5626, 7
        %v5628 = vsub.s32 %v5625, %v5627
        %v5629 = vrot.slane %v5621, %v5628
        %v5631 = vunpack.c.l.s4 1983009808
        %v5632 = vunpack.c.0.s8 %v5631
        %v5633 = vlaneseq
        %v5634 = vshrl.u32 %v5633, 7
        %v5635 = vsub.s32 %v5632, %v5634
        %v5636 = vrot.slane %v5622, %v5635
        %v5637 = vcombine.low %v5629, %v5636
        %v5638 = vcombine.low %v3014, %v3018
        %v5639 = vcombine.low %v3022, %v3026
        %v5641 = vunpack.c.l.s4 1983009808
        %v5642 = vunpack.c.0.s8 %v5641
        %v5643 = vlaneseq
        %v5644 = vshrl.u32 %v5643, 7
        %v5645 = vsub.s32 %v5642, %v5644
        %v5646 = vrot.slane %v5638, %v5645
        %v5648 = vunpack.c.l.s4 1983009808
        %v5649 = vunpack.c.0.s8 %v5648
        %v5650 = vlaneseq
        %v5651 = vshrl.u32 %v5650, 7
        %v5652 = vsub.s32 %v5649, %v5651
        %v5653 = vrot.slane %v5639, %v5652
        %v5654 = vcombine.low %v5646, %v5653
        %v5655 = vcombine.low %v3038, %v3042
        %v5656 = vcombine.low %v3046, %v3050
        %v5658 = vunpack.c.l.s4 1983009808
        %v5659 = vunpack.c.0.s8 %v5658
        %v5660 = vlaneseq
        %v5661 = vshrl.u32 %v5660, 7
        %v5662 = vsub.s32 %v5659, %v5661
        %v5663 = vrot.slane %v5655, %v5662
        %v5665 = vunpack.c.l.s4 1983009808
        %v5666 = vunpack.c.0.s8 %v5665
        %v5667 = vlaneseq
        %v5668 = vshrl.u32 %v5667, 7
        %v5669 = vsub.s32 %v5666, %v5668
        %v5670 = vrot.slane %v5656, %v5669
        %v5671 = vcombine.low %v5663, %v5670
        %v5672 = vcombine.low %v3054, %v3058
        %v5673 = vcombine.low %v3062, %v3066
        %v5675 = vunpack.c.l.s4 1983009808
        %v5676 = vunpack.c.0.s8 %v5675
        %v5677 = vlaneseq
        %v5678 = vshrl.u32 %v5677, 7
        %v5679 = vsub.s32 %v5676, %v5678
        %v5680 = vrot.slane %v5672, %v5679
        %v5682 = vunpack.c.l.s4 1983009808
        %v5683 = vunpack.c.0.s8 %v5682
        %v5684 = vlaneseq
        %v5685 = vshrl.u32 %v5684, 7
        %v5686 = vsub.s32 %v5683, %v5685
        %v5687 = vrot.slane %v5673, %v5686
        %v5688 = vcombine.low %v5680, %v5687
        %v5689 = vcombine.low %v3070, %v3074
        %v5690 = vcombine.low %v3078, %v3082
        %v5692 = vunpack.c.l.s4 1983009808
        %v5693 = vunpack.c.0.s8 %v5692
        %v5694 = vlaneseq
        %v5695 = vshrl.u32 %v5694, 7
        %v5696 = vsub.s32 %v5693, %v5695
        %v5697 = vrot.slane %v5689, %v5696
        %v5699 = vunpack.c.l.s4 1983009808
        %v5700 = vunpack.c.0.s8 %v5699
        %v5701 = vlaneseq
        %v5702 = vshrl.u32 %v5701, 7
        %v5703 = vsub.s32 %v5700, %v5702
        %v5704 = vrot.slane %v5690, %v5703
        %v5705 = vcombine.low %v5697, %v5704
        %v5706 = vcombine.low %v3086, %v3090
        %v5707 = vcombine.low %v3094, %v3098
        %v5709 = vunpack.c.l.s4 1983009808
        %v5710 = vunpack.c.0.s8 %v5709
        %v5711 = vlaneseq
        %v5712 = vshrl.u32 %v5711, 7
        %v5713 = vsub.s32 %v5710, %v5712
        %v5714 = vrot.slane %v5706, %v5713
        %v5716 = vunpack.c.l.s4 1983009808
        %v5717 = vunpack.c.0.s8 %v5716
        %v5718 = vlaneseq
        %v5719 = vshrl.u32 %v5718, 7
        %v5720 = vsub.s32 %v5717, %v5719
        %v5721 = vrot.slane %v5707, %v5720
        %v5722 = vcombine.low %v5714, %v5721
        %v5723 = vcombine.low %v3110, %v3114
        %v5724 = vcombine.low %v3118, %v3122
        %v5726 = vunpack.c.l.s4 1983009808
        %v5727 = vunpack.c.0.s8 %v5726
        %v5728 = vlaneseq
        %v5729 = vshrl.u32 %v5728, 7
        %v5730 = vsub.s32 %v5727, %v5729
        %v5731 = vrot.slane %v5723, %v5730
        %v5733 = vunpack.c.l.s4 1983009808
        %v5734 = vunpack.c.0.s8 %v5733
        %v5735 = vlaneseq
        %v5736 = vshrl.u32 %v5735, 7
        %v5737 = vsub.s32 %v5734, %v5736
        %v5738 = vrot.slane %v5724, %v5737
        %v5739 = vcombine.low %v5731, %v5738
        %v5740 = vcombine.low %v3126, %v3130
        %v5741 = vcombine.low %v3134, %v3138
        %v5743 = vunpack.c.l.s4 1983009808
        %v5744 = vunpack.c.0.s8 %v5743
        %v5745 = vlaneseq
        %v5746 = vshrl.u32 %v5745, 7
        %v5747 = vsub.s32 %v5744, %v5746
        %v5748 = vrot.slane %v5740, %v5747
        %v5750 = vunpack.c.l.s4 1983009808
        %v5751 = vunpack.c.0.s8 %v5750
        %v5752 = vlaneseq
        %v5753 = vshrl.u32 %v5752, 7
        %v5754 = vsub.s32 %v5751, %v5753
        %v5755 = vrot.slane %v5741, %v5754
        %v5756 = vcombine.low %v5748, %v5755
        %v5757 = vcombine.low %v3142, %v3146
        %v5758 = vcombine.low %v3150, %v3154
        %v5760 = vunpack.c.l.s4 1983009808
        %v5761 = vunpack.c.0.s8 %v5760
        %v5762 = vlaneseq
        %v5763 = vshrl.u32 %v5762, 7
        %v5764 = vsub.s32 %v5761, %v5763
        %v5765 = vrot.slane %v5757, %v5764
        %v5767 = vunpack.c.l.s4 1983009808
        %v5768 = vunpack.c.0.s8 %v5767
        %v5769 = vlaneseq
        %v5770 = vshrl.u32 %v5769, 7
        %v5771 = vsub.s32 %v5768, %v5770
        %v5772 = vrot.slane %v5758, %v5771
        %v5773 = vcombine.low %v5765, %v5772
        %v5774 = vcombine.low %v3158, %v3162
        %v5775 = vcombine.low %v3166, %v3170
        %v5777 = vunpack.c.l.s4 1983009808
        %v5778 = vunpack.c.0.s8 %v5777
        %v5779 = vlaneseq
        %v5780 = vshrl.u32 %v5779, 7
        %v5781 = vsub.s32 %v5778, %v5780
        %v5782 = vrot.slane %v5774, %v5781
        %v5784 = vunpack.c.l.s4 1983009808
        %v5785 = vunpack.c.0.s8 %v5784
        %v5786 = vlaneseq
        %v5787 = vshrl.u32 %v5786, 7
        %v5788 = vsub.s32 %v5785, %v5787
        %v5789 = vrot.slane %v5775, %v5788
        %v5790 = vcombine.low %v5782, %v5789
        %v5791 = vcombine.low %v3182, %v3186
        %v5792 = vcombine.low %v3190, %v3194
        %v5794 = vunpack.c.l.s4 1983009808
        %v5795 = vunpack.c.0.s8 %v5794
        %v5796 = vlaneseq
        %v5797 = vshrl.u32 %v5796, 7
        %v5798 = vsub.s32 %v5795, %v5797
        %v5799 = vrot.slane %v5791, %v5798
        %v5801 = vunpack.c.l.s4 1983009808
        %v5802 = vunpack.c.0.s8 %v5801
        %v5803 = vlaneseq
        %v5804 = vshrl.u32 %v5803, 7
        %v5805 = vsub.s32 %v5802, %v5804
        %v5806 = vrot.slane %v5792, %v5805
        %v5807 = vcombine.low %v5799, %v5806
        %v5808 = vcombine.low %v3198, %v3202
        %v5809 = vcombine.low %v3206, %v3210
        %v5811 = vunpack.c.l.s4 1983009808
        %v5812 = vunpack.c.0.s8 %v5811
        %v5813 = vlaneseq
        %v5814 = vshrl.u32 %v5813, 7
        %v5815 = vsub.s32 %v5812, %v5814
        %v5816 = vrot.slane %v5808, %v5815
        %v5818 = vunpack.c.l.s4 1983009808
        %v5819 = vunpack.c.0.s8 %v5818
        %v5820 = vlaneseq
        %v5821 = vshrl.u32 %v5820, 7
        %v5822 = vsub.s32 %v5819, %v5821
        %v5823 = vrot.slane %v5809, %v5822
        %v5824 = vcombine.low %v5816, %v5823
        %v5825 = vcombine.low %v3214, %v3218
        %v5826 = vcombine.low %v3222, %v3226
        %v5828 = vunpack.c.l.s4 1983009808
        %v5829 = vunpack.c.0.s8 %v5828
        %v5830 = vlaneseq
        %v5831 = vshrl.u32 %v5830, 7
        %v5832 = vsub.s32 %v5829, %v5831
        %v5833 = vrot.slane %v5825, %v5832
        %v5835 = vunpack.c.l.s4 1983009808
        %v5836 = vunpack.c.0.s8 %v5835
        %v5837 = vlaneseq
        %v5838 = vshrl.u32 %v5837, 7
        %v5839 = vsub.s32 %v5836, %v5838
        %v5840 = vrot.slane %v5826, %v5839
        %v5841 = vcombine.low %v5833, %v5840
        %v5842 = vcombine.low %v3230, %v3234
        %v5843 = vcombine.low %v3238, %v3242
        %v5845 = vunpack.c.l.s4 1983009808
        %v5846 = vunpack.c.0.s8 %v5845
        %v5847 = vlaneseq
        %v5848 = vshrl.u32 %v5847, 7
        %v5849 = vsub.s32 %v5846, %v5848
        %v5850 = vrot.slane %v5842, %v5849
        %v5852 = vunpack.c.l.s4 1983009808
        %v5853 = vunpack.c.0.s8 %v5852
        %v5854 = vlaneseq
        %v5855 = vshrl.u32 %v5854, 7
        %v5856 = vsub.s32 %v5853, %v5855
        %v5857 = vrot.slane %v5843, %v5856
        %v5858 = vcombine.low %v5850, %v5857
        %v5859 = vcombine.low %v3254, %v3258
        %v5860 = vcombine.low %v3262, %v3266
        %v5862 = vunpack.c.l.s4 1983009808
        %v5863 = vunpack.c.0.s8 %v5862
        %v5864 = vlaneseq
        %v5865 = vshrl.u32 %v5864, 7
        %v5866 = vsub.s32 %v5863, %v5865
        %v5867 = vrot.slane %v5859, %v5866
        %v5869 = vunpack.c.l.s4 1983009808
        %v5870 = vunpack.c.0.s8 %v5869
        %v5871 = vlaneseq
        %v5872 = vshrl.u32 %v5871, 7
        %v5873 = vsub.s32 %v5870, %v5872
        %v5874 = vrot.slane %v5860, %v5873
        %v5875 = vcombine.low %v5867, %v5874
        %v5876 = vcombine.low %v3270, %v3274
        %v5877 = vcombine.low %v3278, %v3282
        %v5879 = vunpack.c.l.s4 1983009808
        %v5880 = vunpack.c.0.s8 %v5879
        %v5881 = vlaneseq
        %v5882 = vshrl.u32 %v5881, 7
        %v5883 = vsub.s32 %v5880, %v5882
        %v5884 = vrot.slane %v5876, %v5883
        %v5886 = vunpack.c.l.s4 1983009808
        %v5887 = vunpack.c.0.s8 %v5886
        %v5888 = vlaneseq
        %v5889 = vshrl.u32 %v5888, 7
        %v5890 = vsub.s32 %v5887, %v5889
        %v5891 = vrot.slane %v5877, %v5890
        %v5892 = vcombine.low %v5884, %v5891
        %v5893 = vcombine.low %v3286, %v3290
        %v5894 = vcombine.low %v3294, %v3298
        %v5896 = vunpack.c.l.s4 1983009808
        %v5897 = vunpack.c.0.s8 %v5896
        %v5898 = vlaneseq
        %v5899 = vshrl.u32 %v5898, 7
        %v5900 = vsub.s32 %v5897, %v5899
        %v5901 = vrot.slane %v5893, %v5900
        %v5903 = vunpack.c.l.s4 1983009808
        %v5904 = vunpack.c.0.s8 %v5903
        %v5905 = vlaneseq
        %v5906 = vshrl.u32 %v5905, 7
        %v5907 = vsub.s32 %v5904, %v5906
        %v5908 = vrot.slane %v5894, %v5907
        %v5909 = vcombine.low %v5901, %v5908
        %v5910 = vcombine.low %v3302, %v3306
        %v5911 = vcombine.low %v3310, %v3314
        %v5913 = vunpack.c.l.s4 1983009808
        %v5914 = vunpack.c.0.s8 %v5913
        %v5915 = vlaneseq
        %v5916 = vshrl.u32 %v5915, 7
        %v5917 = vsub.s32 %v5914, %v5916
        %v5918 = vrot.slane %v5910, %v5917
        %v5920 = vunpack.c.l.s4 1983009808
        %v5921 = vunpack.c.0.s8 %v5920
        %v5922 = vlaneseq
        %v5923 = vshrl.u32 %v5922, 7
        %v5924 = vsub.s32 %v5921, %v5923
        %v5925 = vrot.slane %v5911, %v5924
        %v5926 = vcombine.low %v5918, %v5925
        %v5927 = vcombine.low %v3326, %v3330
        %v5928 = vcombine.low %v3334, %v3338
        %v5930 = vunpack.c.l.s4 1983009808
        %v5931 = vunpack.c.0.s8 %v5930
        %v5932 = vlaneseq
        %v5933 = vshrl.u32 %v5932, 7
        %v5934 = vsub.s32 %v5931, %v5933
        %v5935 = vrot.slane %v5927, %v5934
        %v5937 = vunpack.c.l.s4 1983009808
        %v5938 = vunpack.c.0.s8 %v5937
        %v5939 = vlaneseq
        %v5940 = vshrl.u32 %v5939, 7
        %v5941 = vsub.s32 %v5938, %v5940
        %v5942 = vrot.slane %v5928, %v5941
        %v5943 = vcombine.low %v5935, %v5942
        %v5944 = vcombine.low %v3342, %v3346
        %v5945 = vcombine.low %v3350, %v3354
        %v5947 = vunpack.c.l.s4 1983009808
        %v5948 = vunpack.c.0.s8 %v5947
        %v5949 = vlaneseq
        %v5950 = vshrl.u32 %v5949, 7
        %v5951 = vsub.s32 %v5948, %v5950
        %v5952 = vrot.slane %v5944, %v5951
        %v5954 = vunpack.c.l.s4 1983009808
        %v5955 = vunpack.c.0.s8 %v5954
        %v5956 = vlaneseq
        %v5957 = vshrl.u32 %v5956, 7
        %v5958 = vsub.s32 %v5955, %v5957
        %v5959 = vrot.slane %v5945, %v5958
        %v5960 = vcombine.low %v5952, %v5959
        %v5961 = vcombine.low %v3358, %v3362
        %v5962 = vcombine.low %v3366, %v3370
        %v5964 = vunpack.c.l.s4 1983009808
        %v5965 = vunpack.c.0.s8 %v5964
        %v5966 = vlaneseq
        %v5967 = vshrl.u32 %v5966, 7
        %v5968 = vsub.s32 %v5965, %v5967
        %v5969 = vrot.slane %v5961, %v5968
        %v5971 = vunpack.c.l.s4 1983009808
        %v5972 = vunpack.c.0.s8 %v5971
        %v5973 = vlaneseq
        %v5974 = vshrl.u32 %v5973, 7
        %v5975 = vsub.s32 %v5972, %v5974
        %v5976 = vrot.slane %v5962, %v5975
        %v5977 = vcombine.low %v5969, %v5976
        %v5978 = vcombine.low %v3374, %v3378
        %v5979 = vcombine.low %v3382, %v3386
        %v5981 = vunpack.c.l.s4 1983009808
        %v5982 = vunpack.c.0.s8 %v5981
        %v5983 = vlaneseq
        %v5984 = vshrl.u32 %v5983, 7
        %v5985 = vsub.s32 %v5982, %v5984
        %v5986 = vrot.slane %v5978, %v5985
        %v5988 = vunpack.c.l.s4 1983009808
        %v5989 = vunpack.c.0.s8 %v5988
        %v5990 = vlaneseq
        %v5991 = vshrl.u32 %v5990, 7
        %v5992 = vsub.s32 %v5989, %v5991
        %v5993 = vrot.slane %v5979, %v5992
        %v5994 = vcombine.low %v5986, %v5993
        %v5995 = vcombine.low %v3398, %v3402
        %v5996 = vcombine.low %v3406, %v3410
        %v5998 = vunpack.c.l.s4 1983009808
        %v5999 = vunpack.c.0.s8 %v5998
        %v6000 = vlaneseq
        %v6001 = vshrl.u32 %v6000, 7
        %v6002 = vsub.s32 %v5999, %v6001
        %v6003 = vrot.slane %v5995, %v6002
        %v6005 = vunpack.c.l.s4 1983009808
        %v6006 = vunpack.c.0.s8 %v6005
        %v6007 = vlaneseq
        %v6008 = vshrl.u32 %v6007, 7
        %v6009 = vsub.s32 %v6006, %v6008
        %v6010 = vrot.slane %v5996, %v6009
        %v6011 = vcombine.low %v6003, %v6010
        %v6012 = vcombine.low %v3414, %v3418
        %v6013 = vcombine.low %v3422, %v3426
        %v6015 = vunpack.c.l.s4 1983009808
        %v6016 = vunpack.c.0.s8 %v6015
        %v6017 = vlaneseq
        %v6018 = vshrl.u32 %v6017, 7
        %v6019 = vsub.s32 %v6016, %v6018
        %v6020 = vrot.slane %v6012, %v6019
        %v6022 = vunpack.c.l.s4 1983009808
        %v6023 = vunpack.c.0.s8 %v6022
        %v6024 = vlaneseq
        %v6025 = vshrl.u32 %v6024, 7
        %v6026 = vsub.s32 %v6023, %v6025
        %v6027 = vrot.slane %v6013, %v6026
        %v6028 = vcombine.low %v6020, %v6027
        %v6029 = vcombine.low %v3430, %v3434
        %v6030 = vcombine.low %v3438, %v3442
        %v6032 = vunpack.c.l.s4 1983009808
        %v6033 = vunpack.c.0.s8 %v6032
        %v6034 = vlaneseq
        %v6035 = vshrl.u32 %v6034, 7
        %v6036 = vsub.s32 %v6033, %v6035
        %v6037 = vrot.slane %v6029, %v6036
        %v6039 = vunpack.c.l.s4 1983009808
        %v6040 = vunpack.c.0.s8 %v6039
        %v6041 = vlaneseq
        %v6042 = vshrl.u32 %v6041, 7
        %v6043 = vsub.s32 %v6040, %v6042
        %v6044 = vrot.slane %v6030, %v6043
        %v6045 = vcombine.low %v6037, %v6044
        %v6046 = vcombine.low %v3446, %v3450
        %v6047 = vcombine.low %v3454, %v3458
        %v6049 = vunpack.c.l.s4 1983009808
        %v6050 = vunpack.c.0.s8 %v6049
        %v6051 = vlaneseq
        %v6052 = vshrl.u32 %v6051, 7
        %v6053 = vsub.s32 %v6050, %v6052
        %v6054 = vrot.slane %v6046, %v6053
        %v6056 = vunpack.c.l.s4 1983009808
        %v6057 = vunpack.c.0.s8 %v6056
        %v6058 = vlaneseq
        %v6059 = vshrl.u32 %v6058, 7
        %v6060 = vsub.s32 %v6057, %v6059
        %v6061 = vrot.slane %v6047, %v6060
        %v6062 = vcombine.low %v6054, %v6061
        %v6063 = vcombine.low %v3470, %v3474
        %v6064 = vcombine.low %v3478, %v3482
        %v6066 = vunpack.c.l.s4 1983009808
        %v6067 = vunpack.c.0.s8 %v6066
        %v6068 = vlaneseq
        %v6069 = vshrl.u32 %v6068, 7
        %v6070 = vsub.s32 %v6067, %v6069
        %v6071 = vrot.slane %v6063, %v6070
        %v6073 = vunpack.c.l.s4 1983009808
        %v6074 = vunpack.c.0.s8 %v6073
        %v6075 = vlaneseq
        %v6076 = vshrl.u32 %v6075, 7
        %v6077 = vsub.s32 %v6074, %v6076
        %v6078 = vrot.slane %v6064, %v6077
        %v6079 = vcombine.low %v6071, %v6078
        %v6080 = vcombine.low %v3486, %v3490
        %v6081 = vcombine.low %v3494, %v3498
        %v6083 = vunpack.c.l.s4 1983009808
        %v6084 = vunpack.c.0.s8 %v6083
        %v6085 = vlaneseq
        %v6086 = vshrl.u32 %v6085, 7
        %v6087 = vsub.s32 %v6084, %v6086
        %v6088 = vrot.slane %v6080, %v6087
        %v6090 = vunpack.c.l.s4 1983009808
        %v6091 = vunpack.c.0.s8 %v6090
        %v6092 = vlaneseq
        %v6093 = vshrl.u32 %v6092, 7
        %v6094 = vsub.s32 %v6091, %v6093
        %v6095 = vrot.slane %v6081, %v6094
        %v6096 = vcombine.low %v6088, %v6095
        %v6097 = vcombine.low %v3502, %v3506
        %v6098 = vcombine.low %v3510, %v3514
        %v6100 = vunpack.c.l.s4 1983009808
        %v6101 = vunpack.c.0.s8 %v6100
        %v6102 = vlaneseq
        %v6103 = vshrl.u32 %v6102, 7
        %v6104 = vsub.s32 %v6101, %v6103
        %v6105 = vrot.slane %v6097, %v6104
        %v6107 = vunpack.c.l.s4 1983009808
        %v6108 = vunpack.c.0.s8 %v6107
        %v6109 = vlaneseq
        %v6110 = vshrl.u32 %v6109, 7
        %v6111 = vsub.s32 %v6108, %v6110
        %v6112 = vrot.slane %v6098, %v6111
        %v6113 = vcombine.low %v6105, %v6112
        %v6114 = vcombine.low %v3518, %v3522
        %v6115 = vcombine.low %v3526, %v3530
        %v6117 = vunpack.c.l.s4 1983009808
        %v6118 = vunpack.c.0.s8 %v6117
        %v6119 = vlaneseq
        %v6120 = vshrl.u32 %v6119, 7
        %v6121 = vsub.s32 %v6118, %v6120
        %v6122 = vrot.slane %v6114, %v6121
        %v6124 = vunpack.c.l.s4 1983009808
        %v6125 = vunpack.c.0.s8 %v6124
        %v6126 = vlaneseq
        %v6127 = vshrl.u32 %v6126, 7
        %v6128 = vsub.s32 %v6125, %v6127
        %v6129 = vrot.slane %v6115, %v6128
        %v6130 = vcombine.low %v6122, %v6129
        %v6131 = vcombine.low %v3542, %v3546
        %v6132 = vcombine.low %v3550, %v3554
        %v6134 = vunpack.c.l.s4 1983009808
        %v6135 = vunpack.c.0.s8 %v6134
        %v6136 = vlaneseq
        %v6137 = vshrl.u32 %v6136, 7
        %v6138 = vsub.s32 %v6135, %v6137
        %v6139 = vrot.slane %v6131, %v6138
        %v6141 = vunpack.c.l.s4 1983009808
        %v6142 = vunpack.c.0.s8 %v6141
        %v6143 = vlaneseq
        %v6144 = vshrl.u32 %v6143, 7
        %v6145 = vsub.s32 %v6142, %v6144
        %v6146 = vrot.slane %v6132, %v6145
        %v6147 = vcombine.low %v6139, %v6146
        %v6148 = vcombine.low %v3558, %v3562
        %v6149 = vcombine.low %v3566, %v3570
        %v6151 = vunpack.c.l.s4 1983009808
        %v6152 = vunpack.c.0.s8 %v6151
        %v6153 = vlaneseq
        %v6154 = vshrl.u32 %v6153, 7
        %v6155 = vsub.s32 %v6152, %v6154
        %v6156 = vrot.slane %v6148, %v6155
        %v6158 = vunpack.c.l.s4 1983009808
        %v6159 = vunpack.c.0.s8 %v6158
        %v6160 = vlaneseq
        %v6161 = vshrl.u32 %v6160, 7
        %v6162 = vsub.s32 %v6159, %v6161
        %v6163 = vrot.slane %v6149, %v6162
        %v6164 = vcombine.low %v6156, %v6163
        %v6165 = vcombine.low %v3574, %v3578
        %v6166 = vcombine.low %v3582, %v3586
        %v6168 = vunpack.c.l.s4 1983009808
        %v6169 = vunpack.c.0.s8 %v6168
        %v6170 = vlaneseq
        %v6171 = vshrl.u32 %v6170, 7
        %v6172 = vsub.s32 %v6169, %v6171
        %v6173 = vrot.slane %v6165, %v6172
        %v6175 = vunpack.c.l.s4 1983009808
        %v6176 = vunpack.c.0.s8 %v6175
        %v6177 = vlaneseq
        %v6178 = vshrl.u32 %v6177, 7
        %v6179 = vsub.s32 %v6176, %v6178
        %v6180 = vrot.slane %v6166, %v6179
        %v6181 = vcombine.low %v6173, %v6180
        %v6182 = vcombine.low %v3590, %v3594
        %v6183 = vcombine.low %v3598, %v3602
        %v6185 = vunpack.c.l.s4 1983009808
        %v6186 = vunpack.c.0.s8 %v6185
        %v6187 = vlaneseq
        %v6188 = vshrl.u32 %v6187, 7
        %v6189 = vsub.s32 %v6186, %v6188
        %v6190 = vrot.slane %v6182, %v6189
        %v6192 = vunpack.c.l.s4 1983009808
        %v6193 = vunpack.c.0.s8 %v6192
        %v6194 = vlaneseq
        %v6195 = vshrl.u32 %v6194, 7
        %v6196 = vsub.s32 %v6193, %v6195
        %v6197 = vrot.slane %v6183, %v6196
        %v6198 = vcombine.low %v6190, %v6197
        %v6199 = vcombine.low %v3614, %v3618
        %v6200 = vcombine.low %v3622, %v3626
        %v6202 = vunpack.c.l.s4 1983009808
        %v6203 = vunpack.c.0.s8 %v6202
        %v6204 = vlaneseq
        %v6205 = vshrl.u32 %v6204, 7
        %v6206 = vsub.s32 %v6203, %v6205
        %v6207 = vrot.slane %v6199, %v6206
        %v6209 = vunpack.c.l.s4 1983009808
        %v6210 = vunpack.c.0.s8 %v6209
        %v6211 = vlaneseq
        %v6212 = vshrl.u32 %v6211, 7
        %v6213 = vsub.s32 %v6210, %v6212
        %v6214 = vrot.slane %v6200, %v6213
        %v6215 = vcombine.low %v6207, %v6214
        %v6216 = vcombine.low %v3630, %v3634
        %v6217 = vcombine.low %v3638, %v3642
        %v6219 = vunpack.c.l.s4 1983009808
        %v6220 = vunpack.c.0.s8 %v6219
        %v6221 = vlaneseq
        %v6222 = vshrl.u32 %v6221, 7
        %v6223 = vsub.s32 %v6220, %v6222
        %v6224 = vrot.slane %v6216, %v6223
        %v6226 = vunpack.c.l.s4 1983009808
        %v6227 = vunpack.c.0.s8 %v6226
        %v6228 = vlaneseq
        %v6229 = vshrl.u32 %v6228, 7
        %v6230 = vsub.s32 %v6227, %v6229
        %v6231 = vrot.slane %v6217, %v6230
        %v6232 = vcombine.low %v6224, %v6231
        %v6233 = vcombine.low %v3646, %v3650
        %v6234 = vcombine.low %v3654, %v3658
        %v6236 = vunpack.c.l.s4 1983009808
        %v6237 = vunpack.c.0.s8 %v6236
        %v6238 = vlaneseq
        %v6239 = vshrl.u32 %v6238, 7
        %v6240 = vsub.s32 %v6237, %v6239
        %v6241 = vrot.slane %v6233, %v6240
        %v6243 = vunpack.c.l.s4 1983009808
        %v6244 = vunpack.c.0.s8 %v6243
        %v6245 = vlaneseq
        %v6246 = vshrl.u32 %v6245, 7
        %v6247 = vsub.s32 %v6244, %v6246
        %v6248 = vrot.slane %v6234, %v6247
        %v6249 = vcombine.low %v6241, %v6248
        %v6250 = vcombine.low %v3662, %v3666
        %v6251 = vcombine.low %v3670, %v3674
        %v6253 = vunpack.c.l.s4 1983009808
        %v6254 = vunpack.c.0.s8 %v6253
        %v6255 = vlaneseq
        %v6256 = vshrl.u32 %v6255, 7
        %v6257 = vsub.s32 %v6254, %v6256
        %v6258 = vrot.slane %v6250, %v6257
        %v6260 = vunpack.c.l.s4 1983009808
        %v6261 = vunpack.c.0.s8 %v6260
        %v6262 = vlaneseq
        %v6263 = vshrl.u32 %v6262, 7
        %v6264 = vsub.s32 %v6261, %v6263
        %v6265 = vrot.slane %v6251, %v6264
        %v6266 = vcombine.low %v6258, %v6265
        %vm6267 = vcmask 1040384
        %v6268 = vrot.slane %v5127, 7
        %v6269 = vrot.slane %v5144, 7
        %v6270 = vsel %vm6267, %v6268, %v6269
        %v6271 = vrot.slane %v5161, 7
        %v6272 = vsel %vm6267, %v6269, %v6271
        %v6273 = vrot.slane %v5178, 7
        %v6274 = vsel %vm6267, %v6271, %v6273
        %v6275 = vrot.slane %v5195, 7
        %v6276 = vrot.slane %v5212, 7
        %v6277 = vsel %vm6267, %v6275, %v6276
        %v6278 = vrot.slane %v5229, 7
        %v6279 = vsel %vm6267, %v6276, %v6278
        %v6280 = vrot.slane %v5246, 7
        %v6281 = vsel %vm6267, %v6278, %v6280
        %v6282 = vrot.slane %v5263, 7
        %v6283 = vrot.slane %v5280, 7
        %v6284 = vsel %vm6267, %v6282, %v6283
        %v6285 = vrot.slane %v5297, 7
        %v6286 = vsel %vm6267, %v6283, %v6285
        %v6287 = vrot.slane %v5314, 7
        %v6288 = vsel %vm6267, %v6285, %v6287
        %v6289 = vrot.slane %v5331, 7
        %v6290 = vrot.slane %v5348, 7
        %v6291 = vsel %vm6267, %v6289, %v6290
        %v6292 = vrot.slane %v5365, 7
        %v6293 = vsel %vm6267, %v6290, %v6292
        %v6294 = vrot.slane %v5382, 7
        %v6295 = vsel %vm6267, %v6292, %v6294
        %v6296 = vrot.slane %v5399, 7
        %v6297 = vrot.slane %v5416, 7
        %v6298 = vsel %vm6267, %v6296, %v6297
        %v6299 = vrot.slane %v5433, 7
        %v6300 = vsel %vm6267, %v6297, %v6299
        %v6301 = vrot.slane %v5450, 7
        %v6302 = vsel %vm6267, %v6299, %v6301
        %v6303 = vrot.slane %v5467, 7
        %v6304 = vrot.slane %v5484, 7
        %v6305 = vsel %vm6267, %v6303, %v6304
        %v6306 = vrot.slane %v5501, 7
        %v6307 = vsel %vm6267, %v6304, %v6306
        %v6308 = vrot.slane %v5518, 7
        %v6309 = vsel %vm6267, %v6306, %v6308
        %v6310 = vrot.slane %v5535, 7
        %v6311 = vrot.slane %v5552, 7
        %v6312 = vsel %vm6267, %v6310, %v6311
        %v6313 = vrot.slane %v5569, 7
        %v6314 = vsel %vm6267, %v6311, %v6313
        %v6315 = vrot.slane %v5586, 7
        %v6316 = vsel %vm6267, %v6313, %v6315
        %v6317 = vrot.slane %v5603, 7
        %v6318 = vrot.slane %v5620, 7
        %v6319 = vsel %vm6267, %v6317, %v6318
        %v6320 = vrot.slane %v5637, 7
        %v6321 = vsel %vm6267, %v6318, %v6320
        %v6322 = vrot.slane %v5654, 7
        %v6323 = vsel %vm6267, %v6320, %v6322
        %v6324 = vrot.slane %v5671, 7
        %v6325 = vrot.slane %v5688, 7
        %v6326 = vsel %vm6267, %v6324, %v6325
        %v6327 = vrot.slane %v5705, 7
        %v6328 = vsel %vm6267, %v6325, %v6327
        %v6329 = vrot.slane %v5722, 7
        %v6330 = vsel %vm6267, %v6327, %v6329
        %v6331 = vrot.slane %v5739, 7
        %v6332 = vrot.slane %v5756, 7
        %v6333 = vsel %vm6267, %v6331, %v6332
        %v6334 = vrot.slane %v5773, 7
        %v6335 = vsel %vm6267, %v6332, %v6334
        %v6336 = vrot.slane %v5790, 7
        %v6337 = vsel %vm6267, %v6334, %v6336
        %v6338 = vrot.slane %v5807, 7
        %v6339 = vrot.slane %v5824, 7
        %v6340 = vsel %vm6267, %v6338, %v6339
        %v6341 = vrot.slane %v5841, 7
        %v6342 = vsel %vm6267, %v6339, %v6341
        %v6343 = vrot.slane %v5858, 7
        %v6344 = vsel %vm6267, %v6341, %v6343
        %v6345 = vrot.slane %v5875, 7
        %v6346 = vrot.slane %v5892, 7
        %v6347 = vsel %vm6267, %v6345, %v6346
        %v6348 = vrot.slane %v5909, 7
        %v6349 = vsel %vm6267, %v6346, %v6348
        %v6350 = vrot.slane %v5926, 7
        %v6351 = vsel %vm6267, %v6348, %v6350
        %v6352 = vrot.slane %v5943, 7
        %v6353 = vrot.slane %v5960, 7
        %v6354 = vsel %vm6267, %v6352, %v6353
        %v6355 = vrot.slane %v5977, 7
        %v6356 = vsel %vm6267, %v6353, %v6355
        %v6357 = vrot.slane %v5994, 7
        %v6358 = vsel %vm6267, %v6355, %v6357
        %v6359 = vrot.slane %v6011, 7
        %v6360 = vrot.slane %v6028, 7
        %v6361 = vsel %vm6267, %v6359, %v6360
        %v6362 = vrot.slane %v6045, 7
        %v6363 = vsel %vm6267, %v6360, %v6362
        %v6364 = vrot.slane %v6062, 7
        %v6365 = vsel %vm6267, %v6362, %v6364
        %v6366 = vrot.slane %v6079, 7
        %v6367 = vrot.slane %v6096, 7
        %v6368 = vsel %vm6267, %v6366, %v6367
        %v6369 = vrot.slane %v6113, 7
        %v6370 = vsel %vm6267, %v6367, %v6369
        %v6371 = vrot.slane %v6130, 7
        %v6372 = vsel %vm6267, %v6369, %v6371
        %v6373 = vrot.slane %v6147, 7
        %v6374 = vrot.slane %v6164, 7
        %v6375 = vsel %vm6267, %v6373, %v6374
        %v6376 = vrot.slane %v6181, 7
        %v6377 = vsel %vm6267, %v6374, %v6376
        %v6378 = vrot.slane %v6198, 7
        %v6379 = vsel %vm6267, %v6376, %v6378
        %v6380 = vrot.slane %v6215, 7
        %v6381 = vrot.slane %v6232, 7
        %v6382 = vsel %vm6267, %v6380, %v6381
        %v6383 = vrot.slane %v6249, 7
        %v6384 = vsel %vm6267, %v6381, %v6383
        %v6385 = vrot.slane %v6266, 7
        %v6386 = vsel %vm6267, %v6383, %v6385
        %6387 = vrot.lane.b32.xlu0 %v6268, 4
        %v6388 = vpop.permute.xlu0 %6387
        %6389 = vrot.lane.b32.xlu0 %v6270, 4
        %v6390 = vpop.permute.xlu0 %6389
        %6391 = vrot.lane.b32.xlu0 %v6272, 4
        %v6392 = vpop.permute.xlu0 %6391
        %6393 = vrot.lane.b32.xlu0 %v6274, 4
        %v6394 = vpop.permute.xlu0 %6393
        %6395 = vrot.lane.b32.xlu0 %v6273, 4
        %v6396 = vpop.permute.xlu0 %6395
        %6397 = vrot.lane.b32.xlu0 %v6275, 4
        %v6398 = vpop.permute.xlu0 %6397
        %6399 = vrot.lane.b32.xlu0 %v6277, 4
        %v6400 = vpop.permute.xlu0 %6399
        %6401 = vrot.lane.b32.xlu0 %v6279, 4
        %v6402 = vpop.permute.xlu0 %6401
        %6403 = vrot.lane.b32.xlu0 %v6281, 4
        %v6404 = vpop.permute.xlu0 %6403
        %6405 = vrot.lane.b32.xlu0 %v6280, 4
        %v6406 = vpop.permute.xlu0 %6405
        %6407 = vrot.lane.b32.xlu0 %v6282, 4
        %v6408 = vpop.permute.xlu0 %6407
        %6409 = vrot.lane.b32.xlu0 %v6284, 4
        %v6410 = vpop.permute.xlu0 %6409
        %6411 = vrot.lane.b32.xlu0 %v6286, 4
        %v6412 = vpop.permute.xlu0 %6411
        %6413 = vrot.lane.b32.xlu0 %v6288, 4
        %v6414 = vpop.permute.xlu0 %6413
        %6415 = vrot.lane.b32.xlu0 %v6287, 4
        %v6416 = vpop.permute.xlu0 %6415
        %6417 = vrot.lane.b32.xlu0 %v6289, 4
        %v6418 = vpop.permute.xlu0 %6417
        %6419 = vrot.lane.b32.xlu0 %v6291, 4
        %v6420 = vpop.permute.xlu0 %6419
        %6421 = vrot.lane.b32.xlu0 %v6293, 4
        %v6422 = vpop.permute.xlu0 %6421
        %6423 = vrot.lane.b32.xlu0 %v6295, 4
        %v6424 = vpop.permute.xlu0 %6423
        %6425 = vrot.lane.b32.xlu0 %v6294, 4
        %v6426 = vpop.permute.xlu0 %6425
        %6427 = vrot.lane.b32.xlu0 %v6296, 4
        %v6428 = vpop.permute.xlu0 %6427
        %6429 = vrot.lane.b32.xlu0 %v6298, 4
        %v6430 = vpop.permute.xlu0 %6429
        %6431 = vrot.lane.b32.xlu0 %v6300, 4
        %v6432 = vpop.permute.xlu0 %6431
        %6433 = vrot.lane.b32.xlu0 %v6302, 4
        %v6434 = vpop.permute.xlu0 %6433
        %6435 = vrot.lane.b32.xlu0 %v6301, 4
        %v6436 = vpop.permute.xlu0 %6435
        %6437 = vrot.lane.b32.xlu0 %v6303, 4
        %v6438 = vpop.permute.xlu0 %6437
        %6439 = vrot.lane.b32.xlu0 %v6305, 4
        %v6440 = vpop.permute.xlu0 %6439
        %6441 = vrot.lane.b32.xlu0 %v6307, 4
        %v6442 = vpop.permute.xlu0 %6441
        %6443 = vrot.lane.b32.xlu0 %v6309, 4
        %v6444 = vpop.permute.xlu0 %6443
        %6445 = vrot.lane.b32.xlu0 %v6308, 4
        %v6446 = vpop.permute.xlu0 %6445
        %6447 = vrot.lane.b32.xlu0 %v6310, 4
        %v6448 = vpop.permute.xlu0 %6447
        %6449 = vrot.lane.b32.xlu0 %v6312, 4
        %v6450 = vpop.permute.xlu0 %6449
        %6451 = vrot.lane.b32.xlu0 %v6314, 4
        %v6452 = vpop.permute.xlu0 %6451
        %6453 = vrot.lane.b32.xlu0 %v6316, 4
        %v6454 = vpop.permute.xlu0 %6453
        %6455 = vrot.lane.b32.xlu0 %v6315, 4
        %v6456 = vpop.permute.xlu0 %6455
        %6457 = vrot.lane.b32.xlu0 %v6317, 4
        %v6458 = vpop.permute.xlu0 %6457
        %6459 = vrot.lane.b32.xlu0 %v6319, 4
        %v6460 = vpop.permute.xlu0 %6459
        %6461 = vrot.lane.b32.xlu0 %v6321, 4
        %v6462 = vpop.permute.xlu0 %6461
        %6463 = vrot.lane.b32.xlu0 %v6323, 4
        %v6464 = vpop.permute.xlu0 %6463
        %6465 = vrot.lane.b32.xlu0 %v6322, 4
        %v6466 = vpop.permute.xlu0 %6465
        %6467 = vrot.lane.b32.xlu0 %v6324, 4
        %v6468 = vpop.permute.xlu0 %6467
        %6469 = vrot.lane.b32.xlu0 %v6326, 4
        %v6470 = vpop.permute.xlu0 %6469
        %6471 = vrot.lane.b32.xlu0 %v6328, 4
        %v6472 = vpop.permute.xlu0 %6471
        %6473 = vrot.lane.b32.xlu0 %v6330, 4
        %v6474 = vpop.permute.xlu0 %6473
        %6475 = vrot.lane.b32.xlu0 %v6329, 4
        %v6476 = vpop.permute.xlu0 %6475
        %6477 = vrot.lane.b32.xlu0 %v6331, 4
        %v6478 = vpop.permute.xlu0 %6477
        %6479 = vrot.lane.b32.xlu0 %v6333, 4
        %v6480 = vpop.permute.xlu0 %6479
        %6481 = vrot.lane.b32.xlu0 %v6335, 4
        %v6482 = vpop.permute.xlu0 %6481
        %6483 = vrot.lane.b32.xlu0 %v6337, 4
        %v6484 = vpop.permute.xlu0 %6483
        %6485 = vrot.lane.b32.xlu0 %v6336, 4
        %v6486 = vpop.permute.xlu0 %6485
        %6487 = vrot.lane.b32.xlu0 %v6338, 4
        %v6488 = vpop.permute.xlu0 %6487
        %6489 = vrot.lane.b32.xlu0 %v6340, 4
        %v6490 = vpop.permute.xlu0 %6489
        %6491 = vrot.lane.b32.xlu0 %v6342, 4
        %v6492 = vpop.permute.xlu0 %6491
        %6493 = vrot.lane.b32.xlu0 %v6344, 4
        %v6494 = vpop.permute.xlu0 %6493
        %6495 = vrot.lane.b32.xlu0 %v6343, 4
        %v6496 = vpop.permute.xlu0 %6495
        %6497 = vrot.lane.b32.xlu0 %v6345, 4
        %v6498 = vpop.permute.xlu0 %6497
        %6499 = vrot.lane.b32.xlu0 %v6347, 4
        %v6500 = vpop.permute.xlu0 %6499
        %6501 = vrot.lane.b32.xlu0 %v6349, 4
        %v6502 = vpop.permute.xlu0 %6501
        %6503 = vrot.lane.b32.xlu0 %v6351, 4
        %v6504 = vpop.permute.xlu0 %6503
        %6505 = vrot.lane.b32.xlu0 %v6350, 4
        %v6506 = vpop.permute.xlu0 %6505
        %6507 = vrot.lane.b32.xlu0 %v6352, 4
        %v6508 = vpop.permute.xlu0 %6507
        %6509 = vrot.lane.b32.xlu0 %v6354, 4
        %v6510 = vpop.permute.xlu0 %6509
        %6511 = vrot.lane.b32.xlu0 %v6356, 4
        %v6512 = vpop.permute.xlu0 %6511
        %6513 = vrot.lane.b32.xlu0 %v6358, 4
        %v6514 = vpop.permute.xlu0 %6513
        %6515 = vrot.lane.b32.xlu0 %v6357, 4
        %v6516 = vpop.permute.xlu0 %6515
        %6517 = vrot.lane.b32.xlu0 %v6359, 4
        %v6518 = vpop.permute.xlu0 %6517
        %6519 = vrot.lane.b32.xlu0 %v6361, 4
        %v6520 = vpop.permute.xlu0 %6519
        %6521 = vrot.lane.b32.xlu0 %v6363, 4
        %v6522 = vpop.permute.xlu0 %6521
        %6523 = vrot.lane.b32.xlu0 %v6365, 4
        %v6524 = vpop.permute.xlu0 %6523
        %6525 = vrot.lane.b32.xlu0 %v6364, 4
        %v6526 = vpop.permute.xlu0 %6525
        %6527 = vrot.lane.b32.xlu0 %v6366, 4
        %v6528 = vpop.permute.xlu0 %6527
        %6529 = vrot.lane.b32.xlu0 %v6368, 4
        %v6530 = vpop.permute.xlu0 %6529
        %6531 = vrot.lane.b32.xlu0 %v6370, 4
        %v6532 = vpop.permute.xlu0 %6531
        %6533 = vrot.lane.b32.xlu0 %v6372, 4
        %v6534 = vpop.permute.xlu0 %6533
        %6535 = vrot.lane.b32.xlu0 %v6371, 4
        %v6536 = vpop.permute.xlu0 %6535
        %6537 = vrot.lane.b32.xlu0 %v6373, 4
        %v6538 = vpop.permute.xlu0 %6537
        %6539 = vrot.lane.b32.xlu0 %v6375, 4
        %v6540 = vpop.permute.xlu0 %6539
        %6541 = vrot.lane.b32.xlu0 %v6377, 4
        %v6542 = vpop.permute.xlu0 %6541
        %6543 = vrot.lane.b32.xlu0 %v6379, 4
        %v6544 = vpop.permute.xlu0 %6543
        %6545 = vrot.lane.b32.xlu0 %v6378, 4
        %v6546 = vpop.permute.xlu0 %6545
        %6547 = vrot.lane.b32.xlu0 %v6380, 4
        %v6548 = vpop.permute.xlu0 %6547
        %6549 = vrot.lane.b32.xlu0 %v6382, 4
        %v6550 = vpop.permute.xlu0 %6549
        %6551 = vrot.lane.b32.xlu0 %v6384, 4
        %v6552 = vpop.permute.xlu0 %6551
        %6553 = vrot.lane.b32.xlu0 %v6386, 4
        %v6554 = vpop.permute.xlu0 %6553
        %6555 = vrot.lane.b32.xlu0 %v6385, 4
        %v6556 = vpop.permute.xlu0 %6555
        %v6643 = vunpack.c.l.s4 1983009808
        %v6644 = vunpack.c.0.s8 %v6643
        %v6645 = vlaneseq
        %v6646 = vshrl.u32 %v6645, 7
        %v6647 = vsub.s32 %v6644, %v6646
        %v6648 = vrot.slane %v2526, %v6647
        %v6650 = vunpack.c.l.s4 1983009808
        %v6651 = vunpack.c.0.s8 %v6650
        %v6652 = vlaneseq
        %v6653 = vshrl.u32 %v6652, 7
        %v6654 = vsub.s32 %v6651, %v6653
        %v6655 = vrot.slane %v2598, %v6654
        %v6657 = vunpack.c.l.s4 1983009808
        %v6658 = vunpack.c.0.s8 %v6657
        %v6659 = vlaneseq
        %v6660 = vshrl.u32 %v6659, 7
        %v6661 = vsub.s32 %v6658, %v6660
        %v6662 = vrot.slane %v2670, %v6661
        %v6664 = vunpack.c.l.s4 1983009808
        %v6665 = vunpack.c.0.s8 %v6664
        %v6666 = vlaneseq
        %v6667 = vshrl.u32 %v6666, 7
        %v6668 = vsub.s32 %v6665, %v6667
        %v6669 = vrot.slane %v2742, %v6668
        %v6671 = vunpack.c.l.s4 1983009808
        %v6672 = vunpack.c.0.s8 %v6671
        %v6673 = vlaneseq
        %v6674 = vshrl.u32 %v6673, 7
        %v6675 = vsub.s32 %v6672, %v6674
        %v6676 = vrot.slane %v2814, %v6675
        %v6678 = vunpack.c.l.s4 1983009808
        %v6679 = vunpack.c.0.s8 %v6678
        %v6680 = vlaneseq
        %v6681 = vshrl.u32 %v6680, 7
        %v6682 = vsub.s32 %v6679, %v6681
        %v6683 = vrot.slane %v2886, %v6682
        %v6685 = vunpack.c.l.s4 1983009808
        %v6686 = vunpack.c.0.s8 %v6685
        %v6687 = vlaneseq
        %v6688 = vshrl.u32 %v6687, 7
        %v6689 = vsub.s32 %v6686, %v6688
        %v6690 = vrot.slane %v2958, %v6689
        %v6692 = vunpack.c.l.s4 1983009808
        %v6693 = vunpack.c.0.s8 %v6692
        %v6694 = vlaneseq
        %v6695 = vshrl.u32 %v6694, 7
        %v6696 = vsub.s32 %v6693, %v6695
        %v6697 = vrot.slane %v3030, %v6696
        %v6699 = vunpack.c.l.s4 1983009808
        %v6700 = vunpack.c.0.s8 %v6699
        %v6701 = vlaneseq
        %v6702 = vshrl.u32 %v6701, 7
        %v6703 = vsub.s32 %v6700, %v6702
        %v6704 = vrot.slane %v3102, %v6703
        %v6706 = vunpack.c.l.s4 1983009808
        %v6707 = vunpack.c.0.s8 %v6706
        %v6708 = vlaneseq
        %v6709 = vshrl.u32 %v6708, 7
        %v6710 = vsub.s32 %v6707, %v6709
        %v6711 = vrot.slane %v3174, %v6710
        %v6713 = vunpack.c.l.s4 1983009808
        %v6714 = vunpack.c.0.s8 %v6713
        %v6715 = vlaneseq
        %v6716 = vshrl.u32 %v6715, 7
        %v6717 = vsub.s32 %v6714, %v6716
        %v6718 = vrot.slane %v3246, %v6717
        %v6720 = vunpack.c.l.s4 1983009808
        %v6721 = vunpack.c.0.s8 %v6720
        %v6722 = vlaneseq
        %v6723 = vshrl.u32 %v6722, 7
        %v6724 = vsub.s32 %v6721, %v6723
        %v6725 = vrot.slane %v3318, %v6724
        %v6727 = vunpack.c.l.s4 1983009808
        %v6728 = vunpack.c.0.s8 %v6727
        %v6729 = vlaneseq
        %v6730 = vshrl.u32 %v6729, 7
        %v6731 = vsub.s32 %v6728, %v6730
        %v6732 = vrot.slane %v3390, %v6731
        %v6734 = vunpack.c.l.s4 1983009808
        %v6735 = vunpack.c.0.s8 %v6734
        %v6736 = vlaneseq
        %v6737 = vshrl.u32 %v6736, 7
        %v6738 = vsub.s32 %v6735, %v6737
        %v6739 = vrot.slane %v3462, %v6738
        %v6741 = vunpack.c.l.s4 1983009808
        %v6742 = vunpack.c.0.s8 %v6741
        %v6743 = vlaneseq
        %v6744 = vshrl.u32 %v6743, 7
        %v6745 = vsub.s32 %v6742, %v6744
        %v6746 = vrot.slane %v3534, %v6745
        %v6748 = vunpack.c.l.s4 1983009808
        %v6749 = vunpack.c.0.s8 %v6748
        %v6750 = vlaneseq
        %v6751 = vshrl.u32 %v6750, 7
        %v6752 = vsub.s32 %v6749, %v6751
        %v6753 = vrot.slane %v3606, %v6752
        %v6755 = vunpack.c.l.s4 1983009808
        %v6756 = vunpack.c.0.s8 %v6755
        %v6757 = vlaneseq
        %v6758 = vshrl.u32 %v6757, 7
        %v6759 = vsub.s32 %v6756, %v6758
        %v6760 = vrot.slane %v3678, %v6759
        %6761 = vrot.lane.b32.xlu0 %v5127, 8
        %v6762 = vpop.permute.xlu0 %6761
        %6763 = vrot.lane.b32.xlu0 %v5144, 8
        %v6764 = vpop.permute.xlu0 %6763
        %6765 = vrot.lane.b32.xlu0 %v5161, 8
        %v6766 = vpop.permute.xlu0 %6765
        %6767 = vrot.lane.b32.xlu0 %v5178, 8
        %v6768 = vpop.permute.xlu0 %6767
        %6769 = vrot.lane.b32.xlu0 %v6648, 8
        %v6770 = vpop.permute.xlu0 %6769
        %6771 = vrot.lane.b32.xlu0 %v5195, 8
        %v6772 = vpop.permute.xlu0 %6771
        %6773 = vrot.lane.b32.xlu0 %v5212, 8
        %v6774 = vpop.permute.xlu0 %6773
        %6775 = vrot.lane.b32.xlu0 %v5229, 8
        %v6776 = vpop.permute.xlu0 %6775
        %6777 = vrot.lane.b32.xlu0 %v5246, 8
        %v6778 = vpop.permute.xlu0 %6777
        %6779 = vrot.lane.b32.xlu0 %v6655, 8
        %v6780 = vpop.permute.xlu0 %6779
        %6781 = vrot.lane.b32.xlu0 %v5263, 8
        %v6782 = vpop.permute.xlu0 %6781
        %6783 = vrot.lane.b32.xlu0 %v5280, 8
        %v6784 = vpop.permute.xlu0 %6783
        %6785 = vrot.lane.b32.xlu0 %v5297, 8
        %v6786 = vpop.permute.xlu0 %6785
        %6787 = vrot.lane.b32.xlu0 %v5314, 8
        %v6788 = vpop.permute.xlu0 %6787
        %6789 = vrot.lane.b32.xlu0 %v6662, 8
        %v6790 = vpop.permute.xlu0 %6789
        %6791 = vrot.lane.b32.xlu0 %v5331, 8
        %v6792 = vpop.permute.xlu0 %6791
        %6793 = vrot.lane.b32.xlu0 %v5348, 8
        %v6794 = vpop.permute.xlu0 %6793
        %6795 = vrot.lane.b32.xlu0 %v5365, 8
        %v6796 = vpop.permute.xlu0 %6795
        %6797 = vrot.lane.b32.xlu0 %v5382, 8
        %v6798 = vpop.permute.xlu0 %6797
        %6799 = vrot.lane.b32.xlu0 %v6669, 8
        %v6800 = vpop.permute.xlu0 %6799
        %6801 = vrot.lane.b32.xlu0 %v5399, 8
        %v6802 = vpop.permute.xlu0 %6801
        %6803 = vrot.lane.b32.xlu0 %v5416, 8
        %v6804 = vpop.permute.xlu0 %6803
        %6805 = vrot.lane.b32.xlu0 %v5433, 8
        %v6806 = vpop.permute.xlu0 %6805
        %6807 = vrot.lane.b32.xlu0 %v5450, 8
        %v6808 = vpop.permute.xlu0 %6807
        %6809 = vrot.lane.b32.xlu0 %v6676, 8
        %v6810 = vpop.permute.xlu0 %6809
        %6811 = vrot.lane.b32.xlu0 %v5467, 8
        %v6812 = vpop.permute.xlu0 %6811
        %6813 = vrot.lane.b32.xlu0 %v5484, 8
        %v6814 = vpop.permute.xlu0 %6813
        %6815 = vrot.lane.b32.xlu0 %v5501, 8
        %v6816 = vpop.permute.xlu0 %6815
        %6817 = vrot.lane.b32.xlu0 %v5518, 8
        %v6818 = vpop.permute.xlu0 %6817
        %6819 = vrot.lane.b32.xlu0 %v6683, 8
        %v6820 = vpop.permute.xlu0 %6819
        %6821 = vrot.lane.b32.xlu0 %v5535, 8
        %v6822 = vpop.permute.xlu0 %6821
        %6823 = vrot.lane.b32.xlu0 %v5552, 8
        %v6824 = vpop.permute.xlu0 %6823
        %6825 = vrot.lane.b32.xlu0 %v5569, 8
        %v6826 = vpop.permute.xlu0 %6825
        %6827 = vrot.lane.b32.xlu0 %v5586, 8
        %v6828 = vpop.permute.xlu0 %6827
        %6829 = vrot.lane.b32.xlu0 %v6690, 8
        %v6830 = vpop.permute.xlu0 %6829
        %6831 = vrot.lane.b32.xlu0 %v5603, 8
        %v6832 = vpop.permute.xlu0 %6831
        %6833 = vrot.lane.b32.xlu0 %v5620, 8
        %v6834 = vpop.permute.xlu0 %6833
        %6835 = vrot.lane.b32.xlu0 %v5637, 8
        %v6836 = vpop.permute.xlu0 %6835
        %6837 = vrot.lane.b32.xlu0 %v5654, 8
        %v6838 = vpop.permute.xlu0 %6837
        %6839 = vrot.lane.b32.xlu0 %v6697, 8
        %v6840 = vpop.permute.xlu0 %6839
        %6841 = vrot.lane.b32.xlu0 %v5671, 8
        %v6842 = vpop.permute.xlu0 %6841
        %6843 = vrot.lane.b32.xlu0 %v5688, 8
        %v6844 = vpop.permute.xlu0 %6843
        %6845 = vrot.lane.b32.xlu0 %v5705, 8
        %v6846 = vpop.permute.xlu0 %6845
        %6847 = vrot.lane.b32.xlu0 %v5722, 8
        %v6848 = vpop.permute.xlu0 %6847
        %6849 = vrot.lane.b32.xlu0 %v6704, 8
        %v6850 = vpop.permute.xlu0 %6849
        %6851 = vrot.lane.b32.xlu0 %v5739, 8
        %v6852 = vpop.permute.xlu0 %6851
        %6853 = vrot.lane.b32.xlu0 %v5756, 8
        %v6854 = vpop.permute.xlu0 %6853
        %6855 = vrot.lane.b32.xlu0 %v5773, 8
        %v6856 = vpop.permute.xlu0 %6855
        %6857 = vrot.lane.b32.xlu0 %v5790, 8
        %v6858 = vpop.permute.xlu0 %6857
        %6859 = vrot.lane.b32.xlu0 %v6711, 8
        %v6860 = vpop.permute.xlu0 %6859
        %6861 = vrot.lane.b32.xlu0 %v5807, 8
        %v6862 = vpop.permute.xlu0 %6861
        %6863 = vrot.lane.b32.xlu0 %v5824, 8
        %v6864 = vpop.permute.xlu0 %6863
        %6865 = vrot.lane.b32.xlu0 %v5841, 8
        %v6866 = vpop.permute.xlu0 %6865
        %6867 = vrot.lane.b32.xlu0 %v5858, 8
        %v6868 = vpop.permute.xlu0 %6867
        %6869 = vrot.lane.b32.xlu0 %v6718, 8
        %v6870 = vpop.permute.xlu0 %6869
        %6871 = vrot.lane.b32.xlu0 %v5875, 8
        %v6872 = vpop.permute.xlu0 %6871
        %6873 = vrot.lane.b32.xlu0 %v5892, 8
        %v6874 = vpop.permute.xlu0 %6873
        %6875 = vrot.lane.b32.xlu0 %v5909, 8
        %v6876 = vpop.permute.xlu0 %6875
        %6877 = vrot.lane.b32.xlu0 %v5926, 8
        %v6878 = vpop.permute.xlu0 %6877
        %6879 = vrot.lane.b32.xlu0 %v6725, 8
        %v6880 = vpop.permute.xlu0 %6879
        %6881 = vrot.lane.b32.xlu0 %v5943, 8
        %v6882 = vpop.permute.xlu0 %6881
        %6883 = vrot.lane.b32.xlu0 %v5960, 8
        %v6884 = vpop.permute.xlu0 %6883
        %6885 = vrot.lane.b32.xlu0 %v5977, 8
        %v6886 = vpop.permute.xlu0 %6885
        %6887 = vrot.lane.b32.xlu0 %v5994, 8
        %v6888 = vpop.permute.xlu0 %6887
        %6889 = vrot.lane.b32.xlu0 %v6732, 8
        %v6890 = vpop.permute.xlu0 %6889
        %6891 = vrot.lane.b32.xlu0 %v6011, 8
        %v6892 = vpop.permute.xlu0 %6891
        %6893 = vrot.lane.b32.xlu0 %v6028, 8
        %v6894 = vpop.permute.xlu0 %6893
        %6895 = vrot.lane.b32.xlu0 %v6045, 8
        %v6896 = vpop.permute.xlu0 %6895
        %6897 = vrot.lane.b32.xlu0 %v6062, 8
        %v6898 = vpop.permute.xlu0 %6897
        %6899 = vrot.lane.b32.xlu0 %v6739, 8
        %v6900 = vpop.permute.xlu0 %6899
        %6901 = vrot.lane.b32.xlu0 %v6079, 8
        %v6902 = vpop.permute.xlu0 %6901
        %6903 = vrot.lane.b32.xlu0 %v6096, 8
        %v6904 = vpop.permute.xlu0 %6903
        %6905 = vrot.lane.b32.xlu0 %v6113, 8
        %v6906 = vpop.permute.xlu0 %6905
        %6907 = vrot.lane.b32.xlu0 %v6130, 8
        %v6908 = vpop.permute.xlu0 %6907
        %6909 = vrot.lane.b32.xlu0 %v6746, 8
        %v6910 = vpop.permute.xlu0 %6909
        %6911 = vrot.lane.b32.xlu0 %v6147, 8
        %v6912 = vpop.permute.xlu0 %6911
        %6913 = vrot.lane.b32.xlu0 %v6164, 8
        %v6914 = vpop.permute.xlu0 %6913
        %6915 = vrot.lane.b32.xlu0 %v6181, 8
        %v6916 = vpop.permute.xlu0 %6915
        %6917 = vrot.lane.b32.xlu0 %v6198, 8
        %v6918 = vpop.permute.xlu0 %6917
        %6919 = vrot.lane.b32.xlu0 %v6753, 8
        %v6920 = vpop.permute.xlu0 %6919
        %6921 = vrot.lane.b32.xlu0 %v6215, 8
        %v6922 = vpop.permute.xlu0 %6921
        %6923 = vrot.lane.b32.xlu0 %v6232, 8
        %v6924 = vpop.permute.xlu0 %6923
        %6925 = vrot.lane.b32.xlu0 %v6249, 8
        %v6926 = vpop.permute.xlu0 %6925
        %6927 = vrot.lane.b32.xlu0 %v6266, 8
        %v6928 = vpop.permute.xlu0 %6927
        %6929 = vrot.lane.b32.xlu0 %v6760, 8
        %v6930 = vpop.permute.xlu0 %6929
        %7016 = vrot.lane.b32.xlu0 %v3842, 12
        %v7017 = vpop.permute.xlu0 %7016
        %7018 = vrot.lane.b32.xlu0 %v3859, 12
        %v7019 = vpop.permute.xlu0 %7018
        %7020 = vrot.lane.b32.xlu0 %v3876, 12
        %v7021 = vpop.permute.xlu0 %7020
        %7022 = vrot.lane.b32.xlu0 %v3893, 12
        %v7023 = vpop.permute.xlu0 %7022
        %7024 = vrot.lane.b32.xlu0 %v3900, 12
        %v7025 = vpop.permute.xlu0 %7024
        %7026 = vrot.lane.b32.xlu0 %v3917, 12
        %v7027 = vpop.permute.xlu0 %7026
        %7028 = vrot.lane.b32.xlu0 %v3934, 12
        %v7029 = vpop.permute.xlu0 %7028
        %7030 = vrot.lane.b32.xlu0 %v3951, 12
        %v7031 = vpop.permute.xlu0 %7030
        %7032 = vrot.lane.b32.xlu0 %v3968, 12
        %v7033 = vpop.permute.xlu0 %7032
        %7034 = vrot.lane.b32.xlu0 %v3975, 12
        %v7035 = vpop.permute.xlu0 %7034
        %7036 = vrot.lane.b32.xlu0 %v3992, 12
        %v7037 = vpop.permute.xlu0 %7036
        %7038 = vrot.lane.b32.xlu0 %v4009, 12
        %v7039 = vpop.permute.xlu0 %7038
        %7040 = vrot.lane.b32.xlu0 %v4026, 12
        %v7041 = vpop.permute.xlu0 %7040
        %7042 = vrot.lane.b32.xlu0 %v4043, 12
        %v7043 = vpop.permute.xlu0 %7042
        %7044 = vrot.lane.b32.xlu0 %v4050, 12
        %v7045 = vpop.permute.xlu0 %7044
        %7046 = vrot.lane.b32.xlu0 %v4067, 12
        %v7047 = vpop.permute.xlu0 %7046
        %7048 = vrot.lane.b32.xlu0 %v4084, 12
        %v7049 = vpop.permute.xlu0 %7048
        %7050 = vrot.lane.b32.xlu0 %v4101, 12
        %v7051 = vpop.permute.xlu0 %7050
        %7052 = vrot.lane.b32.xlu0 %v4118, 12
        %v7053 = vpop.permute.xlu0 %7052
        %7054 = vrot.lane.b32.xlu0 %v4125, 12
        %v7055 = vpop.permute.xlu0 %7054
        %7056 = vrot.lane.b32.xlu0 %v4142, 12
        %v7057 = vpop.permute.xlu0 %7056
        %7058 = vrot.lane.b32.xlu0 %v4159, 12
        %v7059 = vpop.permute.xlu0 %7058
        %7060 = vrot.lane.b32.xlu0 %v4176, 12
        %v7061 = vpop.permute.xlu0 %7060
        %7062 = vrot.lane.b32.xlu0 %v4193, 12
        %v7063 = vpop.permute.xlu0 %7062
        %7064 = vrot.lane.b32.xlu0 %v4200, 12
        %v7065 = vpop.permute.xlu0 %7064
        %7066 = vrot.lane.b32.xlu0 %v4217, 12
        %v7067 = vpop.permute.xlu0 %7066
        %7068 = vrot.lane.b32.xlu0 %v4234, 12
        %v7069 = vpop.permute.xlu0 %7068
        %7070 = vrot.lane.b32.xlu0 %v4251, 12
        %v7071 = vpop.permute.xlu0 %7070
        %7072 = vrot.lane.b32.xlu0 %v4268, 12
        %v7073 = vpop.permute.xlu0 %7072
        %7074 = vrot.lane.b32.xlu0 %v4275, 12
        %v7075 = vpop.permute.xlu0 %7074
        %7076 = vrot.lane.b32.xlu0 %v4292, 12
        %v7077 = vpop.permute.xlu0 %7076
        %7078 = vrot.lane.b32.xlu0 %v4309, 12
        %v7079 = vpop.permute.xlu0 %7078
        %7080 = vrot.lane.b32.xlu0 %v4326, 12
        %v7081 = vpop.permute.xlu0 %7080
        %7082 = vrot.lane.b32.xlu0 %v4343, 12
        %v7083 = vpop.permute.xlu0 %7082
        %7084 = vrot.lane.b32.xlu0 %v4350, 12
        %v7085 = vpop.permute.xlu0 %7084
        %7086 = vrot.lane.b32.xlu0 %v4367, 12
        %v7087 = vpop.permute.xlu0 %7086
        %7088 = vrot.lane.b32.xlu0 %v4384, 12
        %v7089 = vpop.permute.xlu0 %7088
        %7090 = vrot.lane.b32.xlu0 %v4401, 12
        %v7091 = vpop.permute.xlu0 %7090
        %7092 = vrot.lane.b32.xlu0 %v4418, 12
        %v7093 = vpop.permute.xlu0 %7092
        %7094 = vrot.lane.b32.xlu0 %v4425, 12
        %v7095 = vpop.permute.xlu0 %7094
        %7096 = vrot.lane.b32.xlu0 %v4442, 12
        %v7097 = vpop.permute.xlu0 %7096
        %7098 = vrot.lane.b32.xlu0 %v4459, 12
        %v7099 = vpop.permute.xlu0 %7098
        %7100 = vrot.lane.b32.xlu0 %v4476, 12
        %v7101 = vpop.permute.xlu0 %7100
        %7102 = vrot.lane.b32.xlu0 %v4493, 12
        %v7103 = vpop.permute.xlu0 %7102
        %7104 = vrot.lane.b32.xlu0 %v4500, 12
        %v7105 = vpop.permute.xlu0 %7104
        %7106 = vrot.lane.b32.xlu0 %v4517, 12
        %v7107 = vpop.permute.xlu0 %7106
        %7108 = vrot.lane.b32.xlu0 %v4534, 12
        %v7109 = vpop.permute.xlu0 %7108
        %7110 = vrot.lane.b32.xlu0 %v4551, 12
        %v7111 = vpop.permute.xlu0 %7110
        %7112 = vrot.lane.b32.xlu0 %v4568, 12
        %v7113 = vpop.permute.xlu0 %7112
        %7114 = vrot.lane.b32.xlu0 %v4575, 12
        %v7115 = vpop.permute.xlu0 %7114
        %7116 = vrot.lane.b32.xlu0 %v4592, 12
        %v7117 = vpop.permute.xlu0 %7116
        %7118 = vrot.lane.b32.xlu0 %v4609, 12
        %v7119 = vpop.permute.xlu0 %7118
        %7120 = vrot.lane.b32.xlu0 %v4626, 12
        %v7121 = vpop.permute.xlu0 %7120
        %7122 = vrot.lane.b32.xlu0 %v4643, 12
        %v7123 = vpop.permute.xlu0 %7122
        %7124 = vrot.lane.b32.xlu0 %v4650, 12
        %v7125 = vpop.permute.xlu0 %7124
        %7126 = vrot.lane.b32.xlu0 %v4667, 12
        %v7127 = vpop.permute.xlu0 %7126
        %7128 = vrot.lane.b32.xlu0 %v4684, 12
        %v7129 = vpop.permute.xlu0 %7128
        %7130 = vrot.lane.b32.xlu0 %v4701, 12
        %v7131 = vpop.permute.xlu0 %7130
        %7132 = vrot.lane.b32.xlu0 %v4718, 12
        %v7133 = vpop.permute.xlu0 %7132
        %7134 = vrot.lane.b32.xlu0 %v4725, 12
        %v7135 = vpop.permute.xlu0 %7134
        %7136 = vrot.lane.b32.xlu0 %v4742, 12
        %v7137 = vpop.permute.xlu0 %7136
        %7138 = vrot.lane.b32.xlu0 %v4759, 12
        %v7139 = vpop.permute.xlu0 %7138
        %7140 = vrot.lane.b32.xlu0 %v4776, 12
        %v7141 = vpop.permute.xlu0 %7140
        %7142 = vrot.lane.b32.xlu0 %v4793, 12
        %v7143 = vpop.permute.xlu0 %7142
        %7144 = vrot.lane.b32.xlu0 %v4800, 12
        %v7145 = vpop.permute.xlu0 %7144
        %7146 = vrot.lane.b32.xlu0 %v4817, 12
        %v7147 = vpop.permute.xlu0 %7146
        %7148 = vrot.lane.b32.xlu0 %v4834, 12
        %v7149 = vpop.permute.xlu0 %7148
        %7150 = vrot.lane.b32.xlu0 %v4851, 12
        %v7151 = vpop.permute.xlu0 %7150
        %7152 = vrot.lane.b32.xlu0 %v4868, 12
        %v7153 = vpop.permute.xlu0 %7152
        %7154 = vrot.lane.b32.xlu0 %v4875, 12
        %v7155 = vpop.permute.xlu0 %7154
        %7156 = vrot.lane.b32.xlu0 %v4892, 12
        %v7157 = vpop.permute.xlu0 %7156
        %7158 = vrot.lane.b32.xlu0 %v4909, 12
        %v7159 = vpop.permute.xlu0 %7158
        %7160 = vrot.lane.b32.xlu0 %v4926, 12
        %v7161 = vpop.permute.xlu0 %7160
        %7162 = vrot.lane.b32.xlu0 %v4943, 12
        %v7163 = vpop.permute.xlu0 %7162
        %7164 = vrot.lane.b32.xlu0 %v4950, 12
        %v7165 = vpop.permute.xlu0 %7164
        %7166 = vrot.lane.b32.xlu0 %v4967, 12
        %v7167 = vpop.permute.xlu0 %7166
        %7168 = vrot.lane.b32.xlu0 %v4984, 12
        %v7169 = vpop.permute.xlu0 %7168
        %7170 = vrot.lane.b32.xlu0 %v5001, 12
        %v7171 = vpop.permute.xlu0 %7170
        %7172 = vrot.lane.b32.xlu0 %v5018, 12
        %v7173 = vpop.permute.xlu0 %7172
        %7174 = vrot.lane.b32.xlu0 %v5025, 12
        %v7175 = vpop.permute.xlu0 %7174
        %7256 = vrot.lane.b32.xlu0 %v6275, 16
        %v7257 = vpop.permute.xlu0 %7256
        %7258 = vrot.lane.b32.xlu0 %v6277, 16
        %v7259 = vpop.permute.xlu0 %7258
        %7260 = vrot.lane.b32.xlu0 %v6279, 16
        %v7261 = vpop.permute.xlu0 %7260
        %7262 = vrot.lane.b32.xlu0 %v6281, 16
        %v7263 = vpop.permute.xlu0 %7262
        %7264 = vrot.lane.b32.xlu0 %v6280, 16
        %v7265 = vpop.permute.xlu0 %7264
        %7266 = vrot.lane.b32.xlu0 %v6282, 16
        %v7267 = vpop.permute.xlu0 %7266
        %7268 = vrot.lane.b32.xlu0 %v6284, 16
        %v7269 = vpop.permute.xlu0 %7268
        %7270 = vrot.lane.b32.xlu0 %v6286, 16
        %v7271 = vpop.permute.xlu0 %7270
        %7272 = vrot.lane.b32.xlu0 %v6288, 16
        %v7273 = vpop.permute.xlu0 %7272
        %7274 = vrot.lane.b32.xlu0 %v6287, 16
        %v7275 = vpop.permute.xlu0 %7274
        %7276 = vrot.lane.b32.xlu0 %v6289, 16
        %v7277 = vpop.permute.xlu0 %7276
        %7278 = vrot.lane.b32.xlu0 %v6291, 16
        %v7279 = vpop.permute.xlu0 %7278
        %7280 = vrot.lane.b32.xlu0 %v6293, 16
        %v7281 = vpop.permute.xlu0 %7280
        %7282 = vrot.lane.b32.xlu0 %v6295, 16
        %v7283 = vpop.permute.xlu0 %7282
        %7284 = vrot.lane.b32.xlu0 %v6294, 16
        %v7285 = vpop.permute.xlu0 %7284
        %7286 = vrot.lane.b32.xlu0 %v6296, 16
        %v7287 = vpop.permute.xlu0 %7286
        %7288 = vrot.lane.b32.xlu0 %v6298, 16
        %v7289 = vpop.permute.xlu0 %7288
        %7290 = vrot.lane.b32.xlu0 %v6300, 16
        %v7291 = vpop.permute.xlu0 %7290
        %7292 = vrot.lane.b32.xlu0 %v6302, 16
        %v7293 = vpop.permute.xlu0 %7292
        %7294 = vrot.lane.b32.xlu0 %v6301, 16
        %v7295 = vpop.permute.xlu0 %7294
        %7296 = vrot.lane.b32.xlu0 %v6303, 16
        %v7297 = vpop.permute.xlu0 %7296
        %7298 = vrot.lane.b32.xlu0 %v6305, 16
        %v7299 = vpop.permute.xlu0 %7298
        %7300 = vrot.lane.b32.xlu0 %v6307, 16
        %v7301 = vpop.permute.xlu0 %7300
        %7302 = vrot.lane.b32.xlu0 %v6309, 16
        %v7303 = vpop.permute.xlu0 %7302
        %7304 = vrot.lane.b32.xlu0 %v6308, 16
        %v7305 = vpop.permute.xlu0 %7304
        %7306 = vrot.lane.b32.xlu0 %v6310, 16
        %v7307 = vpop.permute.xlu0 %7306
        %7308 = vrot.lane.b32.xlu0 %v6312, 16
        %v7309 = vpop.permute.xlu0 %7308
        %7310 = vrot.lane.b32.xlu0 %v6314, 16
        %v7311 = vpop.permute.xlu0 %7310
        %7312 = vrot.lane.b32.xlu0 %v6316, 16
        %v7313 = vpop.permute.xlu0 %7312
        %7314 = vrot.lane.b32.xlu0 %v6315, 16
        %v7315 = vpop.permute.xlu0 %7314
        %7316 = vrot.lane.b32.xlu0 %v6317, 16
        %v7317 = vpop.permute.xlu0 %7316
        %7318 = vrot.lane.b32.xlu0 %v6319, 16
        %v7319 = vpop.permute.xlu0 %7318
        %7320 = vrot.lane.b32.xlu0 %v6321, 16
        %v7321 = vpop.permute.xlu0 %7320
        %7322 = vrot.lane.b32.xlu0 %v6323, 16
        %v7323 = vpop.permute.xlu0 %7322
        %7324 = vrot.lane.b32.xlu0 %v6322, 16
        %v7325 = vpop.permute.xlu0 %7324
        %7326 = vrot.lane.b32.xlu0 %v6324, 16
        %v7327 = vpop.permute.xlu0 %7326
        %7328 = vrot.lane.b32.xlu0 %v6326, 16
        %v7329 = vpop.permute.xlu0 %7328
        %7330 = vrot.lane.b32.xlu0 %v6328, 16
        %v7331 = vpop.permute.xlu0 %7330
        %7332 = vrot.lane.b32.xlu0 %v6330, 16
        %v7333 = vpop.permute.xlu0 %7332
        %7334 = vrot.lane.b32.xlu0 %v6329, 16
        %v7335 = vpop.permute.xlu0 %7334
        %7336 = vrot.lane.b32.xlu0 %v6331, 16
        %v7337 = vpop.permute.xlu0 %7336
        %7338 = vrot.lane.b32.xlu0 %v6333, 16
        %v7339 = vpop.permute.xlu0 %7338
        %7340 = vrot.lane.b32.xlu0 %v6335, 16
        %v7341 = vpop.permute.xlu0 %7340
        %7342 = vrot.lane.b32.xlu0 %v6337, 16
        %v7343 = vpop.permute.xlu0 %7342
        %7344 = vrot.lane.b32.xlu0 %v6336, 16
        %v7345 = vpop.permute.xlu0 %7344
        %7346 = vrot.lane.b32.xlu0 %v6338, 16
        %v7347 = vpop.permute.xlu0 %7346
        %7348 = vrot.lane.b32.xlu0 %v6340, 16
        %v7349 = vpop.permute.xlu0 %7348
        %7350 = vrot.lane.b32.xlu0 %v6342, 16
        %v7351 = vpop.permute.xlu0 %7350
        %7352 = vrot.lane.b32.xlu0 %v6344, 16
        %v7353 = vpop.permute.xlu0 %7352
        %7354 = vrot.lane.b32.xlu0 %v6343, 16
        %v7355 = vpop.permute.xlu0 %7354
        %7356 = vrot.lane.b32.xlu0 %v6345, 16
        %v7357 = vpop.permute.xlu0 %7356
        %7358 = vrot.lane.b32.xlu0 %v6347, 16
        %v7359 = vpop.permute.xlu0 %7358
        %7360 = vrot.lane.b32.xlu0 %v6349, 16
        %v7361 = vpop.permute.xlu0 %7360
        %7362 = vrot.lane.b32.xlu0 %v6351, 16
        %v7363 = vpop.permute.xlu0 %7362
        %7364 = vrot.lane.b32.xlu0 %v6350, 16
        %v7365 = vpop.permute.xlu0 %7364
        %7366 = vrot.lane.b32.xlu0 %v6352, 16
        %v7367 = vpop.permute.xlu0 %7366
        %7368 = vrot.lane.b32.xlu0 %v6354, 16
        %v7369 = vpop.permute.xlu0 %7368
        %7370 = vrot.lane.b32.xlu0 %v6356, 16
        %v7371 = vpop.permute.xlu0 %7370
        %7372 = vrot.lane.b32.xlu0 %v6358, 16
        %v7373 = vpop.permute.xlu0 %7372
        %7374 = vrot.lane.b32.xlu0 %v6357, 16
        %v7375 = vpop.permute.xlu0 %7374
        %7376 = vrot.lane.b32.xlu0 %v6359, 16
        %v7377 = vpop.permute.xlu0 %7376
        %7378 = vrot.lane.b32.xlu0 %v6361, 16
        %v7379 = vpop.permute.xlu0 %7378
        %7380 = vrot.lane.b32.xlu0 %v6363, 16
        %v7381 = vpop.permute.xlu0 %7380
        %7382 = vrot.lane.b32.xlu0 %v6365, 16
        %v7383 = vpop.permute.xlu0 %7382
        %7384 = vrot.lane.b32.xlu0 %v6364, 16
        %v7385 = vpop.permute.xlu0 %7384
        %7386 = vrot.lane.b32.xlu0 %v6366, 16
        %v7387 = vpop.permute.xlu0 %7386
        %7388 = vrot.lane.b32.xlu0 %v6368, 16
        %v7389 = vpop.permute.xlu0 %7388
        %7390 = vrot.lane.b32.xlu0 %v6370, 16
        %v7391 = vpop.permute.xlu0 %7390
        %7392 = vrot.lane.b32.xlu0 %v6372, 16
        %v7393 = vpop.permute.xlu0 %7392
        %7394 = vrot.lane.b32.xlu0 %v6371, 16
        %v7395 = vpop.permute.xlu0 %7394
        %7396 = vrot.lane.b32.xlu0 %v6373, 16
        %v7397 = vpop.permute.xlu0 %7396
        %7398 = vrot.lane.b32.xlu0 %v6375, 16
        %v7399 = vpop.permute.xlu0 %7398
        %7400 = vrot.lane.b32.xlu0 %v6377, 16
        %v7401 = vpop.permute.xlu0 %7400
        %7402 = vrot.lane.b32.xlu0 %v6379, 16
        %v7403 = vpop.permute.xlu0 %7402
        %7404 = vrot.lane.b32.xlu0 %v6378, 16
        %v7405 = vpop.permute.xlu0 %7404
        %7406 = vrot.lane.b32.xlu0 %v6380, 16
        %v7407 = vpop.permute.xlu0 %7406
        %7408 = vrot.lane.b32.xlu0 %v6382, 16
        %v7409 = vpop.permute.xlu0 %7408
        %7410 = vrot.lane.b32.xlu0 %v6384, 16
        %v7411 = vpop.permute.xlu0 %7410
        %7412 = vrot.lane.b32.xlu0 %v6386, 16
        %v7413 = vpop.permute.xlu0 %7412
        %7414 = vrot.lane.b32.xlu0 %v6385, 16
        %v7415 = vpop.permute.xlu0 %7414
        %7496 = vrot.lane.b32.xlu0 %v5195, 20
        %v7497 = vpop.permute.xlu0 %7496
        %7498 = vrot.lane.b32.xlu0 %v5212, 20
        %v7499 = vpop.permute.xlu0 %7498
        %7500 = vrot.lane.b32.xlu0 %v5229, 20
        %v7501 = vpop.permute.xlu0 %7500
        %7502 = vrot.lane.b32.xlu0 %v5246, 20
        %v7503 = vpop.permute.xlu0 %7502
        %7504 = vrot.lane.b32.xlu0 %v6655, 20
        %v7505 = vpop.permute.xlu0 %7504
        %7506 = vrot.lane.b32.xlu0 %v5263, 20
        %v7507 = vpop.permute.xlu0 %7506
        %7508 = vrot.lane.b32.xlu0 %v5280, 20
        %v7509 = vpop.permute.xlu0 %7508
        %7510 = vrot.lane.b32.xlu0 %v5297, 20
        %v7511 = vpop.permute.xlu0 %7510
        %7512 = vrot.lane.b32.xlu0 %v5314, 20
        %v7513 = vpop.permute.xlu0 %7512
        %7514 = vrot.lane.b32.xlu0 %v6662, 20
        %v7515 = vpop.permute.xlu0 %7514
        %7516 = vrot.lane.b32.xlu0 %v5331, 20
        %v7517 = vpop.permute.xlu0 %7516
        %7518 = vrot.lane.b32.xlu0 %v5348, 20
        %v7519 = vpop.permute.xlu0 %7518
        %7520 = vrot.lane.b32.xlu0 %v5365, 20
        %v7521 = vpop.permute.xlu0 %7520
        %7522 = vrot.lane.b32.xlu0 %v5382, 20
        %v7523 = vpop.permute.xlu0 %7522
        %7524 = vrot.lane.b32.xlu0 %v6669, 20
        %v7525 = vpop.permute.xlu0 %7524
        %7526 = vrot.lane.b32.xlu0 %v5399, 20
        %v7527 = vpop.permute.xlu0 %7526
        %7528 = vrot.lane.b32.xlu0 %v5416, 20
        %v7529 = vpop.permute.xlu0 %7528
        %7530 = vrot.lane.b32.xlu0 %v5433, 20
        %v7531 = vpop.permute.xlu0 %7530
        %7532 = vrot.lane.b32.xlu0 %v5450, 20
        %v7533 = vpop.permute.xlu0 %7532
        %7534 = vrot.lane.b32.xlu0 %v6676, 20
        %v7535 = vpop.permute.xlu0 %7534
        %7536 = vrot.lane.b32.xlu0 %v5467, 20
        %v7537 = vpop.permute.xlu0 %7536
        %7538 = vrot.lane.b32.xlu0 %v5484, 20
        %v7539 = vpop.permute.xlu0 %7538
        %7540 = vrot.lane.b32.xlu0 %v5501, 20
        %v7541 = vpop.permute.xlu0 %7540
        %7542 = vrot.lane.b32.xlu0 %v5518, 20
        %v7543 = vpop.permute.xlu0 %7542
        %7544 = vrot.lane.b32.xlu0 %v6683, 20
        %v7545 = vpop.permute.xlu0 %7544
        %7546 = vrot.lane.b32.xlu0 %v5535, 20
        %v7547 = vpop.permute.xlu0 %7546
        %7548 = vrot.lane.b32.xlu0 %v5552, 20
        %v7549 = vpop.permute.xlu0 %7548
        %7550 = vrot.lane.b32.xlu0 %v5569, 20
        %v7551 = vpop.permute.xlu0 %7550
        %7552 = vrot.lane.b32.xlu0 %v5586, 20
        %v7553 = vpop.permute.xlu0 %7552
        %7554 = vrot.lane.b32.xlu0 %v6690, 20
        %v7555 = vpop.permute.xlu0 %7554
        %7556 = vrot.lane.b32.xlu0 %v5603, 20
        %v7557 = vpop.permute.xlu0 %7556
        %7558 = vrot.lane.b32.xlu0 %v5620, 20
        %v7559 = vpop.permute.xlu0 %7558
        %7560 = vrot.lane.b32.xlu0 %v5637, 20
        %v7561 = vpop.permute.xlu0 %7560
        %7562 = vrot.lane.b32.xlu0 %v5654, 20
        %v7563 = vpop.permute.xlu0 %7562
        %7564 = vrot.lane.b32.xlu0 %v6697, 20
        %v7565 = vpop.permute.xlu0 %7564
        %7566 = vrot.lane.b32.xlu0 %v5671, 20
        %v7567 = vpop.permute.xlu0 %7566
        %7568 = vrot.lane.b32.xlu0 %v5688, 20
        %v7569 = vpop.permute.xlu0 %7568
        %7570 = vrot.lane.b32.xlu0 %v5705, 20
        %v7571 = vpop.permute.xlu0 %7570
        %7572 = vrot.lane.b32.xlu0 %v5722, 20
        %v7573 = vpop.permute.xlu0 %7572
        %7574 = vrot.lane.b32.xlu0 %v6704, 20
        %v7575 = vpop.permute.xlu0 %7574
        %7576 = vrot.lane.b32.xlu0 %v5739, 20
        %v7577 = vpop.permute.xlu0 %7576
        %7578 = vrot.lane.b32.xlu0 %v5756, 20
        %v7579 = vpop.permute.xlu0 %7578
        %7580 = vrot.lane.b32.xlu0 %v5773, 20
        %v7581 = vpop.permute.xlu0 %7580
        %7582 = vrot.lane.b32.xlu0 %v5790, 20
        %v7583 = vpop.permute.xlu0 %7582
        %7584 = vrot.lane.b32.xlu0 %v6711, 20
        %v7585 = vpop.permute.xlu0 %7584
        %7586 = vrot.lane.b32.xlu0 %v5807, 20
        %v7587 = vpop.permute.xlu0 %7586
        %7588 = vrot.lane.b32.xlu0 %v5824, 20
        %v7589 = vpop.permute.xlu0 %7588
        %7590 = vrot.lane.b32.xlu0 %v5841, 20
        %v7591 = vpop.permute.xlu0 %7590
        %7592 = vrot.lane.b32.xlu0 %v5858, 20
        %v7593 = vpop.permute.xlu0 %7592
        %7594 = vrot.lane.b32.xlu0 %v6718, 20
        %v7595 = vpop.permute.xlu0 %7594
        %7596 = vrot.lane.b32.xlu0 %v5875, 20
        %v7597 = vpop.permute.xlu0 %7596
        %7598 = vrot.lane.b32.xlu0 %v5892, 20
        %v7599 = vpop.permute.xlu0 %7598
        %7600 = vrot.lane.b32.xlu0 %v5909, 20
        %v7601 = vpop.permute.xlu0 %7600
        %7602 = vrot.lane.b32.xlu0 %v5926, 20
        %v7603 = vpop.permute.xlu0 %7602
        %7604 = vrot.lane.b32.xlu0 %v6725, 20
        %v7605 = vpop.permute.xlu0 %7604
        %7606 = vrot.lane.b32.xlu0 %v5943, 20
        %v7607 = vpop.permute.xlu0 %7606
        %7608 = vrot.lane.b32.xlu0 %v5960, 20
        %v7609 = vpop.permute.xlu0 %7608
        %7610 = vrot.lane.b32.xlu0 %v5977, 20
        %v7611 = vpop.permute.xlu0 %7610
        %7612 = vrot.lane.b32.xlu0 %v5994, 20
        %v7613 = vpop.permute.xlu0 %7612
        %7614 = vrot.lane.b32.xlu0 %v6732, 20
        %v7615 = vpop.permute.xlu0 %7614
        %7616 = vrot.lane.b32.xlu0 %v6011, 20
        %v7617 = vpop.permute.xlu0 %7616
        %7618 = vrot.lane.b32.xlu0 %v6028, 20
        %v7619 = vpop.permute.xlu0 %7618
        %7620 = vrot.lane.b32.xlu0 %v6045, 20
        %v7621 = vpop.permute.xlu0 %7620
        %7622 = vrot.lane.b32.xlu0 %v6062, 20
        %v7623 = vpop.permute.xlu0 %7622
        %7624 = vrot.lane.b32.xlu0 %v6739, 20
        %v7625 = vpop.permute.xlu0 %7624
        %7626 = vrot.lane.b32.xlu0 %v6079, 20
        %v7627 = vpop.permute.xlu0 %7626
        %7628 = vrot.lane.b32.xlu0 %v6096, 20
        %v7629 = vpop.permute.xlu0 %7628
        %7630 = vrot.lane.b32.xlu0 %v6113, 20
        %v7631 = vpop.permute.xlu0 %7630
        %7632 = vrot.lane.b32.xlu0 %v6130, 20
        %v7633 = vpop.permute.xlu0 %7632
        %7634 = vrot.lane.b32.xlu0 %v6746, 20
        %v7635 = vpop.permute.xlu0 %7634
        %7636 = vrot.lane.b32.xlu0 %v6147, 20
        %v7637 = vpop.permute.xlu0 %7636
        %7638 = vrot.lane.b32.xlu0 %v6164, 20
        %v7639 = vpop.permute.xlu0 %7638
        %7640 = vrot.lane.b32.xlu0 %v6181, 20
        %v7641 = vpop.permute.xlu0 %7640
        %7642 = vrot.lane.b32.xlu0 %v6198, 20
        %v7643 = vpop.permute.xlu0 %7642
        %7644 = vrot.lane.b32.xlu0 %v6753, 20
        %v7645 = vpop.permute.xlu0 %7644
        %7646 = vrot.lane.b32.xlu0 %v6215, 20
        %v7647 = vpop.permute.xlu0 %7646
        %7648 = vrot.lane.b32.xlu0 %v6232, 20
        %v7649 = vpop.permute.xlu0 %7648
        %7650 = vrot.lane.b32.xlu0 %v6249, 20
        %v7651 = vpop.permute.xlu0 %7650
        %7652 = vrot.lane.b32.xlu0 %v6266, 20
        %v7653 = vpop.permute.xlu0 %7652
        %7654 = vrot.lane.b32.xlu0 %v6760, 20
        %v7655 = vpop.permute.xlu0 %7654
        %v7736 = vcombine.low %v3682, %v3686
        %v7737 = vcombine.low %v3690, %v3694
        %v7739 = vunpack.c.l.s4 1983009808
        %v7740 = vunpack.c.0.s8 %v7739
        %v7741 = vlaneseq
        %v7742 = vshrl.u32 %v7741, 7
        %v7743 = vsub.s32 %v7740, %v7742
        %v7744 = vrot.slane %v7736, %v7743
        %v7746 = vunpack.c.l.s4 1983009808
        %v7747 = vunpack.c.0.s8 %v7746
        %v7748 = vlaneseq
        %v7749 = vshrl.u32 %v7748, 7
        %v7750 = vsub.s32 %v7747, %v7749
        %v7751 = vrot.slane %v7737, %v7750
        %v7752 = vcombine.low %v7744, %v7751
        %v7753 = vcombine.low %v3698, %v3702
        %v7754 = vcombine.low %v3706, %v3710
        %v7756 = vunpack.c.l.s4 1983009808
        %v7757 = vunpack.c.0.s8 %v7756
        %v7758 = vlaneseq
        %v7759 = vshrl.u32 %v7758, 7
        %v7760 = vsub.s32 %v7757, %v7759
        %v7761 = vrot.slane %v7753, %v7760
        %v7763 = vunpack.c.l.s4 1983009808
        %v7764 = vunpack.c.0.s8 %v7763
        %v7765 = vlaneseq
        %v7766 = vshrl.u32 %v7765, 7
        %v7767 = vsub.s32 %v7764, %v7766
        %v7768 = vrot.slane %v7754, %v7767
        %v7769 = vcombine.low %v7761, %v7768
        %v7770 = vcombine.low %v3714, %v3718
        %v7771 = vcombine.low %v3722, %v3726
        %v7773 = vunpack.c.l.s4 1983009808
        %v7774 = vunpack.c.0.s8 %v7773
        %v7775 = vlaneseq
        %v7776 = vshrl.u32 %v7775, 7
        %v7777 = vsub.s32 %v7774, %v7776
        %v7778 = vrot.slane %v7770, %v7777
        %v7780 = vunpack.c.l.s4 1983009808
        %v7781 = vunpack.c.0.s8 %v7780
        %v7782 = vlaneseq
        %v7783 = vshrl.u32 %v7782, 7
        %v7784 = vsub.s32 %v7781, %v7783
        %v7785 = vrot.slane %v7771, %v7784
        %v7786 = vcombine.low %v7778, %v7785
        %v7787 = vcombine.low %v3730, %v3734
        %v7788 = vcombine.low %v3738, %v3742
        %v7790 = vunpack.c.l.s4 1983009808
        %v7791 = vunpack.c.0.s8 %v7790
        %v7792 = vlaneseq
        %v7793 = vshrl.u32 %v7792, 7
        %v7794 = vsub.s32 %v7791, %v7793
        %v7795 = vrot.slane %v7787, %v7794
        %v7797 = vunpack.c.l.s4 1983009808
        %v7798 = vunpack.c.0.s8 %v7797
        %v7799 = vlaneseq
        %v7800 = vshrl.u32 %v7799, 7
        %v7801 = vsub.s32 %v7798, %v7800
        %v7802 = vrot.slane %v7788, %v7801
        %v7803 = vcombine.low %v7795, %v7802
        %v7805 = vunpack.c.l.s4 1983009808
        %v7806 = vunpack.c.0.s8 %v7805
        %v7807 = vlaneseq
        %v7808 = vshrl.u32 %v7807, 7
        %v7809 = vsub.s32 %v7806, %v7808
        %v7810 = vrot.slane %v3746, %v7809
        %7811 = vrot.lane.b32.xlu0 %v3842, 24
        %v7812 = vpop.permute.xlu0 %7811
        %7813 = vrot.lane.b32.xlu0 %v3859, 24
        %v7814 = vpop.permute.xlu0 %7813
        %7815 = vrot.lane.b32.xlu0 %v3876, 24
        %v7816 = vpop.permute.xlu0 %7815
        %7817 = vrot.lane.b32.xlu0 %v3893, 24
        %v7818 = vpop.permute.xlu0 %7817
        %7819 = vrot.lane.b32.xlu0 %v3900, 24
        %v7820 = vpop.permute.xlu0 %7819
        %7821 = vrot.lane.b32.xlu0 %v3917, 24
        %v7822 = vpop.permute.xlu0 %7821
        %7823 = vrot.lane.b32.xlu0 %v3934, 24
        %v7824 = vpop.permute.xlu0 %7823
        %7825 = vrot.lane.b32.xlu0 %v3951, 24
        %v7826 = vpop.permute.xlu0 %7825
        %7827 = vrot.lane.b32.xlu0 %v3968, 24
        %v7828 = vpop.permute.xlu0 %7827
        %7829 = vrot.lane.b32.xlu0 %v3975, 24
        %v7830 = vpop.permute.xlu0 %7829
        %7831 = vrot.lane.b32.xlu0 %v3992, 24
        %v7832 = vpop.permute.xlu0 %7831
        %7833 = vrot.lane.b32.xlu0 %v4009, 24
        %v7834 = vpop.permute.xlu0 %7833
        %7835 = vrot.lane.b32.xlu0 %v4026, 24
        %v7836 = vpop.permute.xlu0 %7835
        %7837 = vrot.lane.b32.xlu0 %v4043, 24
        %v7838 = vpop.permute.xlu0 %7837
        %7839 = vrot.lane.b32.xlu0 %v4050, 24
        %v7840 = vpop.permute.xlu0 %7839
        %7841 = vrot.lane.b32.xlu0 %v4067, 24
        %v7842 = vpop.permute.xlu0 %7841
        %7843 = vrot.lane.b32.xlu0 %v4084, 24
        %v7844 = vpop.permute.xlu0 %7843
        %7845 = vrot.lane.b32.xlu0 %v4101, 24
        %v7846 = vpop.permute.xlu0 %7845
        %7847 = vrot.lane.b32.xlu0 %v4118, 24
        %v7848 = vpop.permute.xlu0 %7847
        %7849 = vrot.lane.b32.xlu0 %v4125, 24
        %v7850 = vpop.permute.xlu0 %7849
        %7851 = vrot.lane.b32.xlu0 %v4142, 24
        %v7852 = vpop.permute.xlu0 %7851
        %7853 = vrot.lane.b32.xlu0 %v4159, 24
        %v7854 = vpop.permute.xlu0 %7853
        %7855 = vrot.lane.b32.xlu0 %v4176, 24
        %v7856 = vpop.permute.xlu0 %7855
        %7857 = vrot.lane.b32.xlu0 %v4193, 24
        %v7858 = vpop.permute.xlu0 %7857
        %7859 = vrot.lane.b32.xlu0 %v4200, 24
        %v7860 = vpop.permute.xlu0 %7859
        %7861 = vrot.lane.b32.xlu0 %v4217, 24
        %v7862 = vpop.permute.xlu0 %7861
        %7863 = vrot.lane.b32.xlu0 %v4234, 24
        %v7864 = vpop.permute.xlu0 %7863
        %7865 = vrot.lane.b32.xlu0 %v4251, 24
        %v7866 = vpop.permute.xlu0 %7865
        %7867 = vrot.lane.b32.xlu0 %v4268, 24
        %v7868 = vpop.permute.xlu0 %7867
        %7869 = vrot.lane.b32.xlu0 %v4275, 24
        %v7870 = vpop.permute.xlu0 %7869
        %7871 = vrot.lane.b32.xlu0 %v4292, 24
        %v7872 = vpop.permute.xlu0 %7871
        %7873 = vrot.lane.b32.xlu0 %v4309, 24
        %v7874 = vpop.permute.xlu0 %7873
        %7875 = vrot.lane.b32.xlu0 %v4326, 24
        %v7876 = vpop.permute.xlu0 %7875
        %7877 = vrot.lane.b32.xlu0 %v4343, 24
        %v7878 = vpop.permute.xlu0 %7877
        %7879 = vrot.lane.b32.xlu0 %v4350, 24
        %v7880 = vpop.permute.xlu0 %7879
        %7881 = vrot.lane.b32.xlu0 %v4367, 24
        %v7882 = vpop.permute.xlu0 %7881
        %7883 = vrot.lane.b32.xlu0 %v4384, 24
        %v7884 = vpop.permute.xlu0 %7883
        %7885 = vrot.lane.b32.xlu0 %v4401, 24
        %v7886 = vpop.permute.xlu0 %7885
        %7887 = vrot.lane.b32.xlu0 %v4418, 24
        %v7888 = vpop.permute.xlu0 %7887
        %7889 = vrot.lane.b32.xlu0 %v4425, 24
        %v7890 = vpop.permute.xlu0 %7889
        %7891 = vrot.lane.b32.xlu0 %v4442, 24
        %v7892 = vpop.permute.xlu0 %7891
        %7893 = vrot.lane.b32.xlu0 %v4459, 24
        %v7894 = vpop.permute.xlu0 %7893
        %7895 = vrot.lane.b32.xlu0 %v4476, 24
        %v7896 = vpop.permute.xlu0 %7895
        %7897 = vrot.lane.b32.xlu0 %v4493, 24
        %v7898 = vpop.permute.xlu0 %7897
        %7899 = vrot.lane.b32.xlu0 %v4500, 24
        %v7900 = vpop.permute.xlu0 %7899
        %7901 = vrot.lane.b32.xlu0 %v4517, 24
        %v7902 = vpop.permute.xlu0 %7901
        %7903 = vrot.lane.b32.xlu0 %v4534, 24
        %v7904 = vpop.permute.xlu0 %7903
        %7905 = vrot.lane.b32.xlu0 %v4551, 24
        %v7906 = vpop.permute.xlu0 %7905
        %7907 = vrot.lane.b32.xlu0 %v4568, 24
        %v7908 = vpop.permute.xlu0 %7907
        %7909 = vrot.lane.b32.xlu0 %v4575, 24
        %v7910 = vpop.permute.xlu0 %7909
        %7911 = vrot.lane.b32.xlu0 %v4592, 24
        %v7912 = vpop.permute.xlu0 %7911
        %7913 = vrot.lane.b32.xlu0 %v4609, 24
        %v7914 = vpop.permute.xlu0 %7913
        %7915 = vrot.lane.b32.xlu0 %v4626, 24
        %v7916 = vpop.permute.xlu0 %7915
        %7917 = vrot.lane.b32.xlu0 %v4643, 24
        %v7918 = vpop.permute.xlu0 %7917
        %7919 = vrot.lane.b32.xlu0 %v4650, 24
        %v7920 = vpop.permute.xlu0 %7919
        %7921 = vrot.lane.b32.xlu0 %v4667, 24
        %v7922 = vpop.permute.xlu0 %7921
        %7923 = vrot.lane.b32.xlu0 %v4684, 24
        %v7924 = vpop.permute.xlu0 %7923
        %7925 = vrot.lane.b32.xlu0 %v4701, 24
        %v7926 = vpop.permute.xlu0 %7925
        %7927 = vrot.lane.b32.xlu0 %v4718, 24
        %v7928 = vpop.permute.xlu0 %7927
        %7929 = vrot.lane.b32.xlu0 %v4725, 24
        %v7930 = vpop.permute.xlu0 %7929
        %7931 = vrot.lane.b32.xlu0 %v4742, 24
        %v7932 = vpop.permute.xlu0 %7931
        %7933 = vrot.lane.b32.xlu0 %v4759, 24
        %v7934 = vpop.permute.xlu0 %7933
        %7935 = vrot.lane.b32.xlu0 %v4776, 24
        %v7936 = vpop.permute.xlu0 %7935
        %7937 = vrot.lane.b32.xlu0 %v4793, 24
        %v7938 = vpop.permute.xlu0 %7937
        %7939 = vrot.lane.b32.xlu0 %v4800, 24
        %v7940 = vpop.permute.xlu0 %7939
        %7941 = vrot.lane.b32.xlu0 %v4817, 24
        %v7942 = vpop.permute.xlu0 %7941
        %7943 = vrot.lane.b32.xlu0 %v4834, 24
        %v7944 = vpop.permute.xlu0 %7943
        %7945 = vrot.lane.b32.xlu0 %v4851, 24
        %v7946 = vpop.permute.xlu0 %7945
        %7947 = vrot.lane.b32.xlu0 %v4868, 24
        %v7948 = vpop.permute.xlu0 %7947
        %7949 = vrot.lane.b32.xlu0 %v4875, 24
        %v7950 = vpop.permute.xlu0 %7949
        %7951 = vrot.lane.b32.xlu0 %v4892, 24
        %v7952 = vpop.permute.xlu0 %7951
        %7953 = vrot.lane.b32.xlu0 %v4909, 24
        %v7954 = vpop.permute.xlu0 %7953
        %7955 = vrot.lane.b32.xlu0 %v4926, 24
        %v7956 = vpop.permute.xlu0 %7955
        %7957 = vrot.lane.b32.xlu0 %v4943, 24
        %v7958 = vpop.permute.xlu0 %7957
        %7959 = vrot.lane.b32.xlu0 %v4950, 24
        %v7960 = vpop.permute.xlu0 %7959
        %7961 = vrot.lane.b32.xlu0 %v4967, 24
        %v7962 = vpop.permute.xlu0 %7961
        %7963 = vrot.lane.b32.xlu0 %v4984, 24
        %v7964 = vpop.permute.xlu0 %7963
        %7965 = vrot.lane.b32.xlu0 %v5001, 24
        %v7966 = vpop.permute.xlu0 %7965
        %7967 = vrot.lane.b32.xlu0 %v5018, 24
        %v7968 = vpop.permute.xlu0 %7967
        %7969 = vrot.lane.b32.xlu0 %v5025, 24
        %v7970 = vpop.permute.xlu0 %7969
        %7971 = vrot.lane.b32.xlu0 %v7752, 24
        %v7972 = vpop.permute.xlu0 %7971
        %7973 = vrot.lane.b32.xlu0 %v7769, 24
        %v7974 = vpop.permute.xlu0 %7973
        %7975 = vrot.lane.b32.xlu0 %v7786, 24
        %v7976 = vpop.permute.xlu0 %7975
        %7977 = vrot.lane.b32.xlu0 %v7803, 24
        %v7978 = vpop.permute.xlu0 %7977
        %7979 = vrot.lane.b32.xlu0 %v7810, 24
        %v7980 = vpop.permute.xlu0 %7979
        %v8066 = vcombine.low %v3686, %v3690
        %v8067 = vcombine.low %v3694, %v3698
        %v8069 = vunpack.c.l.s4 1983009808
        %v8070 = vunpack.c.0.s8 %v8069
        %v8071 = vlaneseq
        %v8072 = vshrl.u32 %v8071, 7
        %v8073 = vsub.s32 %v8070, %v8072
        %v8074 = vrot.slane %v8066, %v8073
        %v8076 = vunpack.c.l.s4 1983009808
        %v8077 = vunpack.c.0.s8 %v8076
        %v8078 = vlaneseq
        %v8079 = vshrl.u32 %v8078, 7
        %v8080 = vsub.s32 %v8077, %v8079
        %v8081 = vrot.slane %v8067, %v8080
        %v8082 = vcombine.low %v8074, %v8081
        %v8083 = vcombine.low %v3702, %v3706
        %v8084 = vcombine.low %v3710, %v3714
        %v8086 = vunpack.c.l.s4 1983009808
        %v8087 = vunpack.c.0.s8 %v8086
        %v8088 = vlaneseq
        %v8089 = vshrl.u32 %v8088, 7
        %v8090 = vsub.s32 %v8087, %v8089
        %v8091 = vrot.slane %v8083, %v8090
        %v8093 = vunpack.c.l.s4 1983009808
        %v8094 = vunpack.c.0.s8 %v8093
        %v8095 = vlaneseq
        %v8096 = vshrl.u32 %v8095, 7
        %v8097 = vsub.s32 %v8094, %v8096
        %v8098 = vrot.slane %v8084, %v8097
        %v8099 = vcombine.low %v8091, %v8098
        %v8100 = vcombine.low %v3718, %v3722
        %v8101 = vcombine.low %v3726, %v3730
        %v8103 = vunpack.c.l.s4 1983009808
        %v8104 = vunpack.c.0.s8 %v8103
        %v8105 = vlaneseq
        %v8106 = vshrl.u32 %v8105, 7
        %v8107 = vsub.s32 %v8104, %v8106
        %v8108 = vrot.slane %v8100, %v8107
        %v8110 = vunpack.c.l.s4 1983009808
        %v8111 = vunpack.c.0.s8 %v8110
        %v8112 = vlaneseq
        %v8113 = vshrl.u32 %v8112, 7
        %v8114 = vsub.s32 %v8111, %v8113
        %v8115 = vrot.slane %v8101, %v8114
        %v8116 = vcombine.low %v8108, %v8115
        %v8117 = vcombine.low %v3734, %v3738
        %v8118 = vcombine.low %v3742, %v3746
        %v8120 = vunpack.c.l.s4 1983009808
        %v8121 = vunpack.c.0.s8 %v8120
        %v8122 = vlaneseq
        %v8123 = vshrl.u32 %v8122, 7
        %v8124 = vsub.s32 %v8121, %v8123
        %v8125 = vrot.slane %v8117, %v8124
        %v8127 = vunpack.c.l.s4 1983009808
        %v8128 = vunpack.c.0.s8 %v8127
        %v8129 = vlaneseq
        %v8130 = vshrl.u32 %v8129, 7
        %v8131 = vsub.s32 %v8128, %v8130
        %v8132 = vrot.slane %v8118, %v8131
        %v8133 = vcombine.low %v8125, %v8132
        %v8134 = vrot.slane %v8082, 7
        %v8135 = vrot.slane %v8099, 7
        %v8136 = vsel %vm6267, %v8134, %v8135
        %v8137 = vrot.slane %v8116, 7
        %v8138 = vsel %vm6267, %v8135, %v8137
        %v8139 = vrot.slane %v8133, 7
        %v8140 = vsel %vm6267, %v8137, %v8139
        %8141 = vrot.lane.b32.xlu0 %v6275, 28
        %v8142 = vpop.permute.xlu0 %8141
        %8143 = vrot.lane.b32.xlu0 %v6277, 28
        %v8144 = vpop.permute.xlu0 %8143
        %8145 = vrot.lane.b32.xlu0 %v6279, 28
        %v8146 = vpop.permute.xlu0 %8145
        %8147 = vrot.lane.b32.xlu0 %v6281, 28
        %v8148 = vpop.permute.xlu0 %8147
        %8149 = vrot.lane.b32.xlu0 %v6280, 28
        %v8150 = vpop.permute.xlu0 %8149
        %8151 = vrot.lane.b32.xlu0 %v6282, 28
        %v8152 = vpop.permute.xlu0 %8151
        %8153 = vrot.lane.b32.xlu0 %v6284, 28
        %v8154 = vpop.permute.xlu0 %8153
        %8155 = vrot.lane.b32.xlu0 %v6286, 28
        %v8156 = vpop.permute.xlu0 %8155
        %8157 = vrot.lane.b32.xlu0 %v6288, 28
        %v8158 = vpop.permute.xlu0 %8157
        %8159 = vrot.lane.b32.xlu0 %v6287, 28
        %v8160 = vpop.permute.xlu0 %8159
        %8161 = vrot.lane.b32.xlu0 %v6289, 28
        %v8162 = vpop.permute.xlu0 %8161
        %8163 = vrot.lane.b32.xlu0 %v6291, 28
        %v8164 = vpop.permute.xlu0 %8163
        %8165 = vrot.lane.b32.xlu0 %v6293, 28
        %v8166 = vpop.permute.xlu0 %8165
        %8167 = vrot.lane.b32.xlu0 %v6295, 28
        %v8168 = vpop.permute.xlu0 %8167
        %8169 = vrot.lane.b32.xlu0 %v6294, 28
        %v8170 = vpop.permute.xlu0 %8169
        %8171 = vrot.lane.b32.xlu0 %v6296, 28
        %v8172 = vpop.permute.xlu0 %8171
        %8173 = vrot.lane.b32.xlu0 %v6298, 28
        %v8174 = vpop.permute.xlu0 %8173
        %8175 = vrot.lane.b32.xlu0 %v6300, 28
        %v8176 = vpop.permute.xlu0 %8175
        %8177 = vrot.lane.b32.xlu0 %v6302, 28
        %v8178 = vpop.permute.xlu0 %8177
        %8179 = vrot.lane.b32.xlu0 %v6301, 28
        %v8180 = vpop.permute.xlu0 %8179
        %8181 = vrot.lane.b32.xlu0 %v6303, 28
        %v8182 = vpop.permute.xlu0 %8181
        %8183 = vrot.lane.b32.xlu0 %v6305, 28
        %v8184 = vpop.permute.xlu0 %8183
        %8185 = vrot.lane.b32.xlu0 %v6307, 28
        %v8186 = vpop.permute.xlu0 %8185
        %8187 = vrot.lane.b32.xlu0 %v6309, 28
        %v8188 = vpop.permute.xlu0 %8187
        %8189 = vrot.lane.b32.xlu0 %v6308, 28
        %v8190 = vpop.permute.xlu0 %8189
        %8191 = vrot.lane.b32.xlu0 %v6310, 28
        %v8192 = vpop.permute.xlu0 %8191
        %8193 = vrot.lane.b32.xlu0 %v6312, 28
        %v8194 = vpop.permute.xlu0 %8193
        %8195 = vrot.lane.b32.xlu0 %v6314, 28
        %v8196 = vpop.permute.xlu0 %8195
        %8197 = vrot.lane.b32.xlu0 %v6316, 28
        %v8198 = vpop.permute.xlu0 %8197
        %8199 = vrot.lane.b32.xlu0 %v6315, 28
        %v8200 = vpop.permute.xlu0 %8199
        %8201 = vrot.lane.b32.xlu0 %v6317, 28
        %v8202 = vpop.permute.xlu0 %8201
        %8203 = vrot.lane.b32.xlu0 %v6319, 28
        %v8204 = vpop.permute.xlu0 %8203
        %8205 = vrot.lane.b32.xlu0 %v6321, 28
        %v8206 = vpop.permute.xlu0 %8205
        %8207 = vrot.lane.b32.xlu0 %v6323, 28
        %v8208 = vpop.permute.xlu0 %8207
        %8209 = vrot.lane.b32.xlu0 %v6322, 28
        %v8210 = vpop.permute.xlu0 %8209
        %8211 = vrot.lane.b32.xlu0 %v6324, 28
        %v8212 = vpop.permute.xlu0 %8211
        %8213 = vrot.lane.b32.xlu0 %v6326, 28
        %v8214 = vpop.permute.xlu0 %8213
        %8215 = vrot.lane.b32.xlu0 %v6328, 28
        %v8216 = vpop.permute.xlu0 %8215
        %8217 = vrot.lane.b32.xlu0 %v6330, 28
        %v8218 = vpop.permute.xlu0 %8217
        %8219 = vrot.lane.b32.xlu0 %v6329, 28
        %v8220 = vpop.permute.xlu0 %8219
        %8221 = vrot.lane.b32.xlu0 %v6331, 28
        %v8222 = vpop.permute.xlu0 %8221
        %8223 = vrot.lane.b32.xlu0 %v6333, 28
        %v8224 = vpop.permute.xlu0 %8223
        %8225 = vrot.lane.b32.xlu0 %v6335, 28
        %v8226 = vpop.permute.xlu0 %8225
        %8227 = vrot.lane.b32.xlu0 %v6337, 28
        %v8228 = vpop.permute.xlu0 %8227
        %8229 = vrot.lane.b32.xlu0 %v6336, 28
        %v8230 = vpop.permute.xlu0 %8229
        %8231 = vrot.lane.b32.xlu0 %v6338, 28
        %v8232 = vpop.permute.xlu0 %8231
        %8233 = vrot.lane.b32.xlu0 %v6340, 28
        %v8234 = vpop.permute.xlu0 %8233
        %8235 = vrot.lane.b32.xlu0 %v6342, 28
        %v8236 = vpop.permute.xlu0 %8235
        %8237 = vrot.lane.b32.xlu0 %v6344, 28
        %v8238 = vpop.permute.xlu0 %8237
        %8239 = vrot.lane.b32.xlu0 %v6343, 28
        %v8240 = vpop.permute.xlu0 %8239
        %8241 = vrot.lane.b32.xlu0 %v6345, 28
        %v8242 = vpop.permute.xlu0 %8241
        %8243 = vrot.lane.b32.xlu0 %v6347, 28
        %v8244 = vpop.permute.xlu0 %8243
        %8245 = vrot.lane.b32.xlu0 %v6349, 28
        %v8246 = vpop.permute.xlu0 %8245
        %8247 = vrot.lane.b32.xlu0 %v6351, 28
        %v8248 = vpop.permute.xlu0 %8247
        %8249 = vrot.lane.b32.xlu0 %v6350, 28
        %v8250 = vpop.permute.xlu0 %8249
        %8251 = vrot.lane.b32.xlu0 %v6352, 28
        %v8252 = vpop.permute.xlu0 %8251
        %8253 = vrot.lane.b32.xlu0 %v6354, 28
        %v8254 = vpop.permute.xlu0 %8253
        %8255 = vrot.lane.b32.xlu0 %v6356, 28
        %v8256 = vpop.permute.xlu0 %8255
        %8257 = vrot.lane.b32.xlu0 %v6358, 28
        %v8258 = vpop.permute.xlu0 %8257
        %8259 = vrot.lane.b32.xlu0 %v6357, 28
        %v8260 = vpop.permute.xlu0 %8259
        %8261 = vrot.lane.b32.xlu0 %v6359, 28
        %v8262 = vpop.permute.xlu0 %8261
        %8263 = vrot.lane.b32.xlu0 %v6361, 28
        %v8264 = vpop.permute.xlu0 %8263
        %8265 = vrot.lane.b32.xlu0 %v6363, 28
        %v8266 = vpop.permute.xlu0 %8265
        %8267 = vrot.lane.b32.xlu0 %v6365, 28
        %v8268 = vpop.permute.xlu0 %8267
        %8269 = vrot.lane.b32.xlu0 %v6364, 28
        %v8270 = vpop.permute.xlu0 %8269
        %8271 = vrot.lane.b32.xlu0 %v6366, 28
        %v8272 = vpop.permute.xlu0 %8271
        %8273 = vrot.lane.b32.xlu0 %v6368, 28
        %v8274 = vpop.permute.xlu0 %8273
        %8275 = vrot.lane.b32.xlu0 %v6370, 28
        %v8276 = vpop.permute.xlu0 %8275
        %8277 = vrot.lane.b32.xlu0 %v6372, 28
        %v8278 = vpop.permute.xlu0 %8277
        %8279 = vrot.lane.b32.xlu0 %v6371, 28
        %v8280 = vpop.permute.xlu0 %8279
        %8281 = vrot.lane.b32.xlu0 %v6373, 28
        %v8282 = vpop.permute.xlu0 %8281
        %8283 = vrot.lane.b32.xlu0 %v6375, 28
        %v8284 = vpop.permute.xlu0 %8283
        %8285 = vrot.lane.b32.xlu0 %v6377, 28
        %v8286 = vpop.permute.xlu0 %8285
        %8287 = vrot.lane.b32.xlu0 %v6379, 28
        %v8288 = vpop.permute.xlu0 %8287
        %8289 = vrot.lane.b32.xlu0 %v6378, 28
        %v8290 = vpop.permute.xlu0 %8289
        %8291 = vrot.lane.b32.xlu0 %v6380, 28
        %v8292 = vpop.permute.xlu0 %8291
        %8293 = vrot.lane.b32.xlu0 %v6382, 28
        %v8294 = vpop.permute.xlu0 %8293
        %8295 = vrot.lane.b32.xlu0 %v6384, 28
        %v8296 = vpop.permute.xlu0 %8295
        %8297 = vrot.lane.b32.xlu0 %v6386, 28
        %v8298 = vpop.permute.xlu0 %8297
        %8299 = vrot.lane.b32.xlu0 %v6385, 28
        %v8300 = vpop.permute.xlu0 %8299
        %8301 = vrot.lane.b32.xlu0 %v8134, 28
        %v8302 = vpop.permute.xlu0 %8301
        %8303 = vrot.lane.b32.xlu0 %v8136, 28
        %v8304 = vpop.permute.xlu0 %8303
        %8305 = vrot.lane.b32.xlu0 %v8138, 28
        %v8306 = vpop.permute.xlu0 %8305
        %8307 = vrot.lane.b32.xlu0 %v8140, 28
        %v8308 = vpop.permute.xlu0 %8307
        %8309 = vrot.lane.b32.xlu0 %v8139, 28
        %v8310 = vpop.permute.xlu0 %8309
        %v8397 = vunpack.c.l.s4 1983009808
        %v8398 = vunpack.c.0.s8 %v8397
        %v8399 = vlaneseq
        %v8400 = vshrl.u32 %v8399, 7
        %v8401 = vsub.s32 %v8398, %v8400
        %v8402 = vrot.slane %v3750, %v8401
        %8403 = vrot.lane.b32.xlu0 %v5195, 32
        %v8404 = vpop.permute.xlu0 %8403
        %8405 = vrot.lane.b32.xlu0 %v5212, 32
        %v8406 = vpop.permute.xlu0 %8405
        %8407 = vrot.lane.b32.xlu0 %v5229, 32
        %v8408 = vpop.permute.xlu0 %8407
        %8409 = vrot.lane.b32.xlu0 %v5246, 32
        %v8410 = vpop.permute.xlu0 %8409
        %8411 = vrot.lane.b32.xlu0 %v6655, 32
        %v8412 = vpop.permute.xlu0 %8411
        %8413 = vrot.lane.b32.xlu0 %v5263, 32
        %v8414 = vpop.permute.xlu0 %8413
        %8415 = vrot.lane.b32.xlu0 %v5280, 32
        %v8416 = vpop.permute.xlu0 %8415
        %8417 = vrot.lane.b32.xlu0 %v5297, 32
        %v8418 = vpop.permute.xlu0 %8417
        %8419 = vrot.lane.b32.xlu0 %v5314, 32
        %v8420 = vpop.permute.xlu0 %8419
        %8421 = vrot.lane.b32.xlu0 %v6662, 32
        %v8422 = vpop.permute.xlu0 %8421
        %8423 = vrot.lane.b32.xlu0 %v5331, 32
        %v8424 = vpop.permute.xlu0 %8423
        %8425 = vrot.lane.b32.xlu0 %v5348, 32
        %v8426 = vpop.permute.xlu0 %8425
        %8427 = vrot.lane.b32.xlu0 %v5365, 32
        %v8428 = vpop.permute.xlu0 %8427
        %8429 = vrot.lane.b32.xlu0 %v5382, 32
        %v8430 = vpop.permute.xlu0 %8429
        %8431 = vrot.lane.b32.xlu0 %v6669, 32
        %v8432 = vpop.permute.xlu0 %8431
        %8433 = vrot.lane.b32.xlu0 %v5399, 32
        %v8434 = vpop.permute.xlu0 %8433
        %8435 = vrot.lane.b32.xlu0 %v5416, 32
        %v8436 = vpop.permute.xlu0 %8435
        %8437 = vrot.lane.b32.xlu0 %v5433, 32
        %v8438 = vpop.permute.xlu0 %8437
        %8439 = vrot.lane.b32.xlu0 %v5450, 32
        %v8440 = vpop.permute.xlu0 %8439
        %8441 = vrot.lane.b32.xlu0 %v6676, 32
        %v8442 = vpop.permute.xlu0 %8441
        %8443 = vrot.lane.b32.xlu0 %v5467, 32
        %v8444 = vpop.permute.xlu0 %8443
        %8445 = vrot.lane.b32.xlu0 %v5484, 32
        %v8446 = vpop.permute.xlu0 %8445
        %8447 = vrot.lane.b32.xlu0 %v5501, 32
        %v8448 = vpop.permute.xlu0 %8447
        %8449 = vrot.lane.b32.xlu0 %v5518, 32
        %v8450 = vpop.permute.xlu0 %8449
        %8451 = vrot.lane.b32.xlu0 %v6683, 32
        %v8452 = vpop.permute.xlu0 %8451
        %8453 = vrot.lane.b32.xlu0 %v5535, 32
        %v8454 = vpop.permute.xlu0 %8453
        %8455 = vrot.lane.b32.xlu0 %v5552, 32
        %v8456 = vpop.permute.xlu0 %8455
        %8457 = vrot.lane.b32.xlu0 %v5569, 32
        %v8458 = vpop.permute.xlu0 %8457
        %8459 = vrot.lane.b32.xlu0 %v5586, 32
        %v8460 = vpop.permute.xlu0 %8459
        %8461 = vrot.lane.b32.xlu0 %v6690, 32
        %v8462 = vpop.permute.xlu0 %8461
        %8463 = vrot.lane.b32.xlu0 %v5603, 32
        %v8464 = vpop.permute.xlu0 %8463
        %8465 = vrot.lane.b32.xlu0 %v5620, 32
        %v8466 = vpop.permute.xlu0 %8465
        %8467 = vrot.lane.b32.xlu0 %v5637, 32
        %v8468 = vpop.permute.xlu0 %8467
        %8469 = vrot.lane.b32.xlu0 %v5654, 32
        %v8470 = vpop.permute.xlu0 %8469
        %8471 = vrot.lane.b32.xlu0 %v6697, 32
        %v8472 = vpop.permute.xlu0 %8471
        %8473 = vrot.lane.b32.xlu0 %v5671, 32
        %v8474 = vpop.permute.xlu0 %8473
        %8475 = vrot.lane.b32.xlu0 %v5688, 32
        %v8476 = vpop.permute.xlu0 %8475
        %8477 = vrot.lane.b32.xlu0 %v5705, 32
        %v8478 = vpop.permute.xlu0 %8477
        %8479 = vrot.lane.b32.xlu0 %v5722, 32
        %v8480 = vpop.permute.xlu0 %8479
        %8481 = vrot.lane.b32.xlu0 %v6704, 32
        %v8482 = vpop.permute.xlu0 %8481
        %8483 = vrot.lane.b32.xlu0 %v5739, 32
        %v8484 = vpop.permute.xlu0 %8483
        %8485 = vrot.lane.b32.xlu0 %v5756, 32
        %v8486 = vpop.permute.xlu0 %8485
        %8487 = vrot.lane.b32.xlu0 %v5773, 32
        %v8488 = vpop.permute.xlu0 %8487
        %8489 = vrot.lane.b32.xlu0 %v5790, 32
        %v8490 = vpop.permute.xlu0 %8489
        %8491 = vrot.lane.b32.xlu0 %v6711, 32
        %v8492 = vpop.permute.xlu0 %8491
        %8493 = vrot.lane.b32.xlu0 %v5807, 32
        %v8494 = vpop.permute.xlu0 %8493
        %8495 = vrot.lane.b32.xlu0 %v5824, 32
        %v8496 = vpop.permute.xlu0 %8495
        %8497 = vrot.lane.b32.xlu0 %v5841, 32
        %v8498 = vpop.permute.xlu0 %8497
        %8499 = vrot.lane.b32.xlu0 %v5858, 32
        %v8500 = vpop.permute.xlu0 %8499
        %8501 = vrot.lane.b32.xlu0 %v6718, 32
        %v8502 = vpop.permute.xlu0 %8501
        %8503 = vrot.lane.b32.xlu0 %v5875, 32
        %v8504 = vpop.permute.xlu0 %8503
        %8505 = vrot.lane.b32.xlu0 %v5892, 32
        %v8506 = vpop.permute.xlu0 %8505
        %8507 = vrot.lane.b32.xlu0 %v5909, 32
        %v8508 = vpop.permute.xlu0 %8507
        %8509 = vrot.lane.b32.xlu0 %v5926, 32
        %v8510 = vpop.permute.xlu0 %8509
        %8511 = vrot.lane.b32.xlu0 %v6725, 32
        %v8512 = vpop.permute.xlu0 %8511
        %8513 = vrot.lane.b32.xlu0 %v5943, 32
        %v8514 = vpop.permute.xlu0 %8513
        %8515 = vrot.lane.b32.xlu0 %v5960, 32
        %v8516 = vpop.permute.xlu0 %8515
        %8517 = vrot.lane.b32.xlu0 %v5977, 32
        %v8518 = vpop.permute.xlu0 %8517
        %8519 = vrot.lane.b32.xlu0 %v5994, 32
        %v8520 = vpop.permute.xlu0 %8519
        %8521 = vrot.lane.b32.xlu0 %v6732, 32
        %v8522 = vpop.permute.xlu0 %8521
        %8523 = vrot.lane.b32.xlu0 %v6011, 32
        %v8524 = vpop.permute.xlu0 %8523
        %8525 = vrot.lane.b32.xlu0 %v6028, 32
        %v8526 = vpop.permute.xlu0 %8525
        %8527 = vrot.lane.b32.xlu0 %v6045, 32
        %v8528 = vpop.permute.xlu0 %8527
        %8529 = vrot.lane.b32.xlu0 %v6062, 32
        %v8530 = vpop.permute.xlu0 %8529
        %8531 = vrot.lane.b32.xlu0 %v6739, 32
        %v8532 = vpop.permute.xlu0 %8531
        %8533 = vrot.lane.b32.xlu0 %v6079, 32
        %v8534 = vpop.permute.xlu0 %8533
        %8535 = vrot.lane.b32.xlu0 %v6096, 32
        %v8536 = vpop.permute.xlu0 %8535
        %8537 = vrot.lane.b32.xlu0 %v6113, 32
        %v8538 = vpop.permute.xlu0 %8537
        %8539 = vrot.lane.b32.xlu0 %v6130, 32
        %v8540 = vpop.permute.xlu0 %8539
        %8541 = vrot.lane.b32.xlu0 %v6746, 32
        %v8542 = vpop.permute.xlu0 %8541
        %8543 = vrot.lane.b32.xlu0 %v6147, 32
        %v8544 = vpop.permute.xlu0 %8543
        %8545 = vrot.lane.b32.xlu0 %v6164, 32
        %v8546 = vpop.permute.xlu0 %8545
        %8547 = vrot.lane.b32.xlu0 %v6181, 32
        %v8548 = vpop.permute.xlu0 %8547
        %8549 = vrot.lane.b32.xlu0 %v6198, 32
        %v8550 = vpop.permute.xlu0 %8549
        %8551 = vrot.lane.b32.xlu0 %v6753, 32
        %v8552 = vpop.permute.xlu0 %8551
        %8553 = vrot.lane.b32.xlu0 %v6215, 32
        %v8554 = vpop.permute.xlu0 %8553
        %8555 = vrot.lane.b32.xlu0 %v6232, 32
        %v8556 = vpop.permute.xlu0 %8555
        %8557 = vrot.lane.b32.xlu0 %v6249, 32
        %v8558 = vpop.permute.xlu0 %8557
        %8559 = vrot.lane.b32.xlu0 %v6266, 32
        %v8560 = vpop.permute.xlu0 %8559
        %8561 = vrot.lane.b32.xlu0 %v6760, 32
        %v8562 = vpop.permute.xlu0 %8561
        %8563 = vrot.lane.b32.xlu0 %v8082, 32
        %v8564 = vpop.permute.xlu0 %8563
        %8565 = vrot.lane.b32.xlu0 %v8099, 32
        %v8566 = vpop.permute.xlu0 %8565
        %8567 = vrot.lane.b32.xlu0 %v8116, 32
        %v8568 = vpop.permute.xlu0 %8567
        %8569 = vrot.lane.b32.xlu0 %v8133, 32
        %v8570 = vpop.permute.xlu0 %8569
        %8571 = vrot.lane.b32.xlu0 %v8402, 32
        %v8572 = vpop.permute.xlu0 %8571
        %vm8658 = vcmask 31744
        %v8659 = vsel %vm8658, %v3767, %v6388
        %v8660 = vsel %vm8658, %v3784, %v6390
        %v8661 = vsel %vm8658, %v3801, %v6392
        %v8662 = vsel %vm8658, %v3818, %v6394
        %v8663 = vsel %vm8658, %v3825, %v6396
        %v8664 = vsel %vm8658, %v3842, %v6398
        %v8665 = vsel %vm8658, %v3859, %v6400
        %v8666 = vsel %vm8658, %v3876, %v6402
        %v8667 = vsel %vm8658, %v3893, %v6404
        %v8668 = vsel %vm8658, %v3900, %v6406
        %v8669 = vsel %vm8658, %v3917, %v6408
        %v8670 = vsel %vm8658, %v3934, %v6410
        %v8671 = vsel %vm8658, %v3951, %v6412
        %v8672 = vsel %vm8658, %v3968, %v6414
        %v8673 = vsel %vm8658, %v3975, %v6416
        %v8674 = vsel %vm8658, %v3992, %v6418
        %v8675 = vsel %vm8658, %v4009, %v6420
        %v8676 = vsel %vm8658, %v4026, %v6422
        %v8677 = vsel %vm8658, %v4043, %v6424
        %v8678 = vsel %vm8658, %v4050, %v6426
        %v8679 = vsel %vm8658, %v4067, %v6428
        %v8680 = vsel %vm8658, %v4084, %v6430
        %v8681 = vsel %vm8658, %v4101, %v6432
        %v8682 = vsel %vm8658, %v4118, %v6434
        %v8683 = vsel %vm8658, %v4125, %v6436
        %v8684 = vsel %vm8658, %v4142, %v6438
        %v8685 = vsel %vm8658, %v4159, %v6440
        %v8686 = vsel %vm8658, %v4176, %v6442
        %v8687 = vsel %vm8658, %v4193, %v6444
        %v8688 = vsel %vm8658, %v4200, %v6446
        %v8689 = vsel %vm8658, %v4217, %v6448
        %v8690 = vsel %vm8658, %v4234, %v6450
        %v8691 = vsel %vm8658, %v4251, %v6452
        %v8692 = vsel %vm8658, %v4268, %v6454
        %v8693 = vsel %vm8658, %v4275, %v6456
        %v8694 = vsel %vm8658, %v4292, %v6458
        %v8695 = vsel %vm8658, %v4309, %v6460
        %v8696 = vsel %vm8658, %v4326, %v6462
        %v8697 = vsel %vm8658, %v4343, %v6464
        %v8698 = vsel %vm8658, %v4350, %v6466
        %v8699 = vsel %vm8658, %v4367, %v6468
        %v8700 = vsel %vm8658, %v4384, %v6470
        %v8701 = vsel %vm8658, %v4401, %v6472
        %v8702 = vsel %vm8658, %v4418, %v6474
        %v8703 = vsel %vm8658, %v4425, %v6476
        %v8704 = vsel %vm8658, %v4442, %v6478
        %v8705 = vsel %vm8658, %v4459, %v6480
        %v8706 = vsel %vm8658, %v4476, %v6482
        %v8707 = vsel %vm8658, %v4493, %v6484
        %v8708 = vsel %vm8658, %v4500, %v6486
        %v8709 = vsel %vm8658, %v4517, %v6488
        %v8710 = vsel %vm8658, %v4534, %v6490
        %v8711 = vsel %vm8658, %v4551, %v6492
        %v8712 = vsel %vm8658, %v4568, %v6494
        %v8713 = vsel %vm8658, %v4575, %v6496
        %v8714 = vsel %vm8658, %v4592, %v6498
        %v8715 = vsel %vm8658, %v4609, %v6500
        %v8716 = vsel %vm8658, %v4626, %v6502
        %v8717 = vsel %vm8658, %v4643, %v6504
        %v8718 = vsel %vm8658, %v4650, %v6506
        %v8719 = vsel %vm8658, %v4667, %v6508
        %v8720 = vsel %vm8658, %v4684, %v6510
        %v8721 = vsel %vm8658, %v4701, %v6512
        %v8722 = vsel %vm8658, %v4718, %v6514
        %v8723 = vsel %vm8658, %v4725, %v6516
        %v8724 = vsel %vm8658, %v4742, %v6518
        %v8725 = vsel %vm8658, %v4759, %v6520
        %v8726 = vsel %vm8658, %v4776, %v6522
        %v8727 = vsel %vm8658, %v4793, %v6524
        %v8728 = vsel %vm8658, %v4800, %v6526
        %v8729 = vsel %vm8658, %v4817, %v6528
        %v8730 = vsel %vm8658, %v4834, %v6530
        %v8731 = vsel %vm8658, %v4851, %v6532
        %v8732 = vsel %vm8658, %v4868, %v6534
        %v8733 = vsel %vm8658, %v4875, %v6536
        %v8734 = vsel %vm8658, %v4892, %v6538
        %v8735 = vsel %vm8658, %v4909, %v6540
        %v8736 = vsel %vm8658, %v4926, %v6542
        %v8737 = vsel %vm8658, %v4943, %v6544
        %v8738 = vsel %vm8658, %v4950, %v6546
        %v8739 = vsel %vm8658, %v4967, %v6548
        %v8740 = vsel %vm8658, %v4984, %v6550
        %v8741 = vsel %vm8658, %v5001, %v6552
        %v8742 = vsel %vm8658, %v5018, %v6554
        %v8743 = vsel %vm8658, %v5025, %v6556
        %vm8744 = vcmask 64512
        %v8745 = vsel %vm8744, %v8659, %v6762
        %v8746 = vsel %vm8744, %v8660, %v6764
        %v8747 = vsel %vm8744, %v8661, %v6766
        %v8748 = vsel %vm8744, %v8662, %v6768
        %v8749 = vsel %vm8744, %v8663, %v6770
        %v8750 = vsel %vm8744, %v8664, %v6772
        %v8751 = vsel %vm8744, %v8665, %v6774
        %v8752 = vsel %vm8744, %v8666, %v6776
        %v8753 = vsel %vm8744, %v8667, %v6778
        %v8754 = vsel %vm8744, %v8668, %v6780
        %v8755 = vsel %vm8744, %v8669, %v6782
        %v8756 = vsel %vm8744, %v8670, %v6784
        %v8757 = vsel %vm8744, %v8671, %v6786
        %v8758 = vsel %vm8744, %v8672, %v6788
        %v8759 = vsel %vm8744, %v8673, %v6790
        %v8760 = vsel %vm8744, %v8674, %v6792
        %v8761 = vsel %vm8744, %v8675, %v6794
        %v8762 = vsel %vm8744, %v8676, %v6796
        %v8763 = vsel %vm8744, %v8677, %v6798
        %v8764 = vsel %vm8744, %v8678, %v6800
        %v8765 = vsel %vm8744, %v8679, %v6802
        %v8766 = vsel %vm8744, %v8680, %v6804
        %v8767 = vsel %vm8744, %v8681, %v6806
        %v8768 = vsel %vm8744, %v8682, %v6808
        %v8769 = vsel %vm8744, %v8683, %v6810
        %v8770 = vsel %vm8744, %v8684, %v6812
        %v8771 = vsel %vm8744, %v8685, %v6814
        %v8772 = vsel %vm8744, %v8686, %v6816
        %v8773 = vsel %vm8744, %v8687, %v6818
        %v8774 = vsel %vm8744, %v8688, %v6820
        %v8775 = vsel %vm8744, %v8689, %v6822
        %v8776 = vsel %vm8744, %v8690, %v6824
        %v8777 = vsel %vm8744, %v8691, %v6826
        %v8778 = vsel %vm8744, %v8692, %v6828
        %v8779 = vsel %vm8744, %v8693, %v6830
        %v8780 = vsel %vm8744, %v8694, %v6832
        %v8781 = vsel %vm8744, %v8695, %v6834
        %v8782 = vsel %vm8744, %v8696, %v6836
        %v8783 = vsel %vm8744, %v8697, %v6838
        %v8784 = vsel %vm8744, %v8698, %v6840
        %v8785 = vsel %vm8744, %v8699, %v6842
        %v8786 = vsel %vm8744, %v8700, %v6844
        %v8787 = vsel %vm8744, %v8701, %v6846
        %v8788 = vsel %vm8744, %v8702, %v6848
        %v8789 = vsel %vm8744, %v8703, %v6850
        %v8790 = vsel %vm8744, %v8704, %v6852
        %v8791 = vsel %vm8744, %v8705, %v6854
        %v8792 = vsel %vm8744, %v8706, %v6856
        %v8793 = vsel %vm8744, %v8707, %v6858
        %v8794 = vsel %vm8744, %v8708, %v6860
        %v8795 = vsel %vm8744, %v8709, %v6862
        %v8796 = vsel %vm8744, %v8710, %v6864
        %v8797 = vsel %vm8744, %v8711, %v6866
        %v8798 = vsel %vm8744, %v8712, %v6868
        %v8799 = vsel %vm8744, %v8713, %v6870
        %v8800 = vsel %vm8744, %v8714, %v6872
        %v8801 = vsel %vm8744, %v8715, %v6874
        %v8802 = vsel %vm8744, %v8716, %v6876
        %v8803 = vsel %vm8744, %v8717, %v6878
        %v8804 = vsel %vm8744, %v8718, %v6880
        %v8805 = vsel %vm8744, %v8719, %v6882
        %v8806 = vsel %vm8744, %v8720, %v6884
        %v8807 = vsel %vm8744, %v8721, %v6886
        %v8808 = vsel %vm8744, %v8722, %v6888
        %v8809 = vsel %vm8744, %v8723, %v6890
        %v8810 = vsel %vm8744, %v8724, %v6892
        %v8811 = vsel %vm8744, %v8725, %v6894
        %v8812 = vsel %vm8744, %v8726, %v6896
        %v8813 = vsel %vm8744, %v8727, %v6898
        %v8814 = vsel %vm8744, %v8728, %v6900
        %v8815 = vsel %vm8744, %v8729, %v6902
        %v8816 = vsel %vm8744, %v8730, %v6904
        %v8817 = vsel %vm8744, %v8731, %v6906
        %v8818 = vsel %vm8744, %v8732, %v6908
        %v8819 = vsel %vm8744, %v8733, %v6910
        %v8820 = vsel %vm8744, %v8734, %v6912
        %v8821 = vsel %vm8744, %v8735, %v6914
        %v8822 = vsel %vm8744, %v8736, %v6916
        %v8823 = vsel %vm8744, %v8737, %v6918
        %v8824 = vsel %vm8744, %v8738, %v6920
        %v8825 = vsel %vm8744, %v8739, %v6922
        %v8826 = vsel %vm8744, %v8740, %v6924
        %v8827 = vsel %vm8744, %v8741, %v6926
        %v8828 = vsel %vm8744, %v8742, %v6928
        %v8829 = vsel %vm8744, %v8743, %v6930
        %vm8830 = vcmask 97280
        %v8831 = vsel %vm8830, %v8745, %v7017
        %v8832 = vsel %vm8830, %v8746, %v7019
        %v8833 = vsel %vm8830, %v8747, %v7021
        %v8834 = vsel %vm8830, %v8748, %v7023
        %v8835 = vsel %vm8830, %v8749, %v7025
        %v8836 = vsel %vm8830, %v8750, %v7017
        %v8837 = vsel %vm8830, %v8751, %v7019
        %v8838 = vsel %vm8830, %v8752, %v7021
        %v8839 = vsel %vm8830, %v8753, %v7023
        %v8840 = vsel %vm8830, %v8754, %v7025
        %v8841 = vsel %vm8830, %v8750, %v7027
        %v8842 = vsel %vm8830, %v8751, %v7029
        %v8843 = vsel %vm8830, %v8752, %v7031
        %v8844 = vsel %vm8830, %v8753, %v7033
        %v8845 = vsel %vm8830, %v8754, %v7035
        %v8846 = vsel %vm8830, %v8755, %v7027
        %v8847 = vsel %vm8830, %v8756, %v7029
        %v8848 = vsel %vm8830, %v8757, %v7031
        %v8849 = vsel %vm8830, %v8758, %v7033
        %v8850 = vsel %vm8830, %v8759, %v7035
        %v8851 = vsel %vm8830, %v8755, %v7037
        %v8852 = vsel %vm8830, %v8756, %v7039
        %v8853 = vsel %vm8830, %v8757, %v7041
        %v8854 = vsel %vm8830, %v8758, %v7043
        %v8855 = vsel %vm8830, %v8759, %v7045
        %v8856 = vsel %vm8830, %v8760, %v7037
        %v8857 = vsel %vm8830, %v8761, %v7039
        %v8858 = vsel %vm8830, %v8762, %v7041
        %v8859 = vsel %vm8830, %v8763, %v7043
        %v8860 = vsel %vm8830, %v8764, %v7045
        %v8861 = vsel %vm8830, %v8760, %v7047
        %v8862 = vsel %vm8830, %v8761, %v7049
        %v8863 = vsel %vm8830, %v8762, %v7051
        %v8864 = vsel %vm8830, %v8763, %v7053
        %v8865 = vsel %vm8830, %v8764, %v7055
        %v8866 = vsel %vm8830, %v8765, %v7047
        %v8867 = vsel %vm8830, %v8766, %v7049
        %v8868 = vsel %vm8830, %v8767, %v7051
        %v8869 = vsel %vm8830, %v8768, %v7053
        %v8870 = vsel %vm8830, %v8769, %v7055
        %v8871 = vsel %vm8830, %v8765, %v7057
        %v8872 = vsel %vm8830, %v8766, %v7059
        %v8873 = vsel %vm8830, %v8767, %v7061
        %v8874 = vsel %vm8830, %v8768, %v7063
        %v8875 = vsel %vm8830, %v8769, %v7065
        %v8876 = vsel %vm8830, %v8770, %v7057
        %v8877 = vsel %vm8830, %v8771, %v7059
        %v8878 = vsel %vm8830, %v8772, %v7061
        %v8879 = vsel %vm8830, %v8773, %v7063
        %v8880 = vsel %vm8830, %v8774, %v7065
        %v8881 = vsel %vm8830, %v8770, %v7067
        %v8882 = vsel %vm8830, %v8771, %v7069
        %v8883 = vsel %vm8830, %v8772, %v7071
        %v8884 = vsel %vm8830, %v8773, %v7073
        %v8885 = vsel %vm8830, %v8774, %v7075
        %v8886 = vsel %vm8830, %v8775, %v7067
        %v8887 = vsel %vm8830, %v8776, %v7069
        %v8888 = vsel %vm8830, %v8777, %v7071
        %v8889 = vsel %vm8830, %v8778, %v7073
        %v8890 = vsel %vm8830, %v8779, %v7075
        %v8891 = vsel %vm8830, %v8775, %v7077
        %v8892 = vsel %vm8830, %v8776, %v7079
        %v8893 = vsel %vm8830, %v8777, %v7081
        %v8894 = vsel %vm8830, %v8778, %v7083
        %v8895 = vsel %vm8830, %v8779, %v7085
        %v8896 = vsel %vm8830, %v8780, %v7077
        %v8897 = vsel %vm8830, %v8781, %v7079
        %v8898 = vsel %vm8830, %v8782, %v7081
        %v8899 = vsel %vm8830, %v8783, %v7083
        %v8900 = vsel %vm8830, %v8784, %v7085
        %v8901 = vsel %vm8830, %v8780, %v7087
        %v8902 = vsel %vm8830, %v8781, %v7089
        %v8903 = vsel %vm8830, %v8782, %v7091
        %v8904 = vsel %vm8830, %v8783, %v7093
        %v8905 = vsel %vm8830, %v8784, %v7095
        %v8906 = vsel %vm8830, %v8785, %v7087
        %v8907 = vsel %vm8830, %v8786, %v7089
        %v8908 = vsel %vm8830, %v8787, %v7091
        %v8909 = vsel %vm8830, %v8788, %v7093
        %v8910 = vsel %vm8830, %v8789, %v7095
        %v8911 = vsel %vm8830, %v8785, %v7097
        %v8912 = vsel %vm8830, %v8786, %v7099
        %v8913 = vsel %vm8830, %v8787, %v7101
        %v8914 = vsel %vm8830, %v8788, %v7103
        %v8915 = vsel %vm8830, %v8789, %v7105
        %v8916 = vsel %vm8830, %v8790, %v7097
        %v8917 = vsel %vm8830, %v8791, %v7099
        %v8918 = vsel %vm8830, %v8792, %v7101
        %v8919 = vsel %vm8830, %v8793, %v7103
        %v8920 = vsel %vm8830, %v8794, %v7105
        %v8921 = vsel %vm8830, %v8790, %v7107
        %v8922 = vsel %vm8830, %v8791, %v7109
        %v8923 = vsel %vm8830, %v8792, %v7111
        %v8924 = vsel %vm8830, %v8793, %v7113
        %v8925 = vsel %vm8830, %v8794, %v7115
        %v8926 = vsel %vm8830, %v8795, %v7107
        %v8927 = vsel %vm8830, %v8796, %v7109
        %v8928 = vsel %vm8830, %v8797, %v7111
        %v8929 = vsel %vm8830, %v8798, %v7113
        %v8930 = vsel %vm8830, %v8799, %v7115
        %v8931 = vsel %vm8830, %v8795, %v7117
        %v8932 = vsel %vm8830, %v8796, %v7119
        %v8933 = vsel %vm8830, %v8797, %v7121
        %v8934 = vsel %vm8830, %v8798, %v7123
        %v8935 = vsel %vm8830, %v8799, %v7125
        %v8936 = vsel %vm8830, %v8800, %v7117
        %v8937 = vsel %vm8830, %v8801, %v7119
        %v8938 = vsel %vm8830, %v8802, %v7121
        %v8939 = vsel %vm8830, %v8803, %v7123
        %v8940 = vsel %vm8830, %v8804, %v7125
        %v8941 = vsel %vm8830, %v8800, %v7127
        %v8942 = vsel %vm8830, %v8801, %v7129
        %v8943 = vsel %vm8830, %v8802, %v7131
        %v8944 = vsel %vm8830, %v8803, %v7133
        %v8945 = vsel %vm8830, %v8804, %v7135
        %v8946 = vsel %vm8830, %v8805, %v7127
        %v8947 = vsel %vm8830, %v8806, %v7129
        %v8948 = vsel %vm8830, %v8807, %v7131
        %v8949 = vsel %vm8830, %v8808, %v7133
        %v8950 = vsel %vm8830, %v8809, %v7135
        %v8951 = vsel %vm8830, %v8805, %v7137
        %v8952 = vsel %vm8830, %v8806, %v7139
        %v8953 = vsel %vm8830, %v8807, %v7141
        %v8954 = vsel %vm8830, %v8808, %v7143
        %v8955 = vsel %vm8830, %v8809, %v7145
        %v8956 = vsel %vm8830, %v8810, %v7137
        %v8957 = vsel %vm8830, %v8811, %v7139
        %v8958 = vsel %vm8830, %v8812, %v7141
        %v8959 = vsel %vm8830, %v8813, %v7143
        %v8960 = vsel %vm8830, %v8814, %v7145
        %v8961 = vsel %vm8830, %v8810, %v7147
        %v8962 = vsel %vm8830, %v8811, %v7149
        %v8963 = vsel %vm8830, %v8812, %v7151
        %v8964 = vsel %vm8830, %v8813, %v7153
        %v8965 = vsel %vm8830, %v8814, %v7155
        %v8966 = vsel %vm8830, %v8815, %v7147
        %v8967 = vsel %vm8830, %v8816, %v7149
        %v8968 = vsel %vm8830, %v8817, %v7151
        %v8969 = vsel %vm8830, %v8818, %v7153
        %v8970 = vsel %vm8830, %v8819, %v7155
        %v8971 = vsel %vm8830, %v8815, %v7157
        %v8972 = vsel %vm8830, %v8816, %v7159
        %v8973 = vsel %vm8830, %v8817, %v7161
        %v8974 = vsel %vm8830, %v8818, %v7163
        %v8975 = vsel %vm8830, %v8819, %v7165
        %v8976 = vsel %vm8830, %v8820, %v7157
        %v8977 = vsel %vm8830, %v8821, %v7159
        %v8978 = vsel %vm8830, %v8822, %v7161
        %v8979 = vsel %vm8830, %v8823, %v7163
        %v8980 = vsel %vm8830, %v8824, %v7165
        %v8981 = vsel %vm8830, %v8820, %v7167
        %v8982 = vsel %vm8830, %v8821, %v7169
        %v8983 = vsel %vm8830, %v8822, %v7171
        %v8984 = vsel %vm8830, %v8823, %v7173
        %v8985 = vsel %vm8830, %v8824, %v7175
        %v8986 = vsel %vm8830, %v8825, %v7167
        %v8987 = vsel %vm8830, %v8826, %v7169
        %v8988 = vsel %vm8830, %v8827, %v7171
        %v8989 = vsel %vm8830, %v8828, %v7173
        %v8990 = vsel %vm8830, %v8829, %v7175
        %vm8991 = vcmask 130048
        %v8992 = vsel %vm8991, %v8831, %v7257
        %v8993 = vsel %vm8991, %v8832, %v7259
        %v8994 = vsel %vm8991, %v8833, %v7261
        %v8995 = vsel %vm8991, %v8834, %v7263
        %v8996 = vsel %vm8991, %v8835, %v7265
        %v8997 = vsel %vm8991, %v8836, %v7257
        %v8998 = vsel %vm8991, %v8837, %v7259
        %v8999 = vsel %vm8991, %v8838, %v7261
        %v9000 = vsel %vm8991, %v8839, %v7263
        %v9001 = vsel %vm8991, %v8840, %v7265
        %v9002 = vsel %vm8991, %v8841, %v7267
        %v9003 = vsel %vm8991, %v8842, %v7269
        %v9004 = vsel %vm8991, %v8843, %v7271
        %v9005 = vsel %vm8991, %v8844, %v7273
        %v9006 = vsel %vm8991, %v8845, %v7275
        %v9007 = vsel %vm8991, %v8846, %v7267
        %v9008 = vsel %vm8991, %v8847, %v7269
        %v9009 = vsel %vm8991, %v8848, %v7271
        %v9010 = vsel %vm8991, %v8849, %v7273
        %v9011 = vsel %vm8991, %v8850, %v7275
        %v9012 = vsel %vm8991, %v8851, %v7277
        %v9013 = vsel %vm8991, %v8852, %v7279
        %v9014 = vsel %vm8991, %v8853, %v7281
        %v9015 = vsel %vm8991, %v8854, %v7283
        %v9016 = vsel %vm8991, %v8855, %v7285
        %v9017 = vsel %vm8991, %v8856, %v7277
        %v9018 = vsel %vm8991, %v8857, %v7279
        %v9019 = vsel %vm8991, %v8858, %v7281
        %v9020 = vsel %vm8991, %v8859, %v7283
        %v9021 = vsel %vm8991, %v8860, %v7285
        %v9022 = vsel %vm8991, %v8861, %v7287
        %v9023 = vsel %vm8991, %v8862, %v7289
        %v9024 = vsel %vm8991, %v8863, %v7291
        %v9025 = vsel %vm8991, %v8864, %v7293
        %v9026 = vsel %vm8991, %v8865, %v7295
        %v9027 = vsel %vm8991, %v8866, %v7287
        %v9028 = vsel %vm8991, %v8867, %v7289
        %v9029 = vsel %vm8991, %v8868, %v7291
        %v9030 = vsel %vm8991, %v8869, %v7293
        %v9031 = vsel %vm8991, %v8870, %v7295
        %v9032 = vsel %vm8991, %v8871, %v7297
        %v9033 = vsel %vm8991, %v8872, %v7299
        %v9034 = vsel %vm8991, %v8873, %v7301
        %v9035 = vsel %vm8991, %v8874, %v7303
        %v9036 = vsel %vm8991, %v8875, %v7305
        %v9037 = vsel %vm8991, %v8876, %v7297
        %v9038 = vsel %vm8991, %v8877, %v7299
        %v9039 = vsel %vm8991, %v8878, %v7301
        %v9040 = vsel %vm8991, %v8879, %v7303
        %v9041 = vsel %vm8991, %v8880, %v7305
        %v9042 = vsel %vm8991, %v8881, %v7307
        %v9043 = vsel %vm8991, %v8882, %v7309
        %v9044 = vsel %vm8991, %v8883, %v7311
        %v9045 = vsel %vm8991, %v8884, %v7313
        %v9046 = vsel %vm8991, %v8885, %v7315
        %v9047 = vsel %vm8991, %v8886, %v7307
        %v9048 = vsel %vm8991, %v8887, %v7309
        %v9049 = vsel %vm8991, %v8888, %v7311
        %v9050 = vsel %vm8991, %v8889, %v7313
        %v9051 = vsel %vm8991, %v8890, %v7315
        %v9052 = vsel %vm8991, %v8891, %v7317
        %v9053 = vsel %vm8991, %v8892, %v7319
        %v9054 = vsel %vm8991, %v8893, %v7321
        %v9055 = vsel %vm8991, %v8894, %v7323
        %v9056 = vsel %vm8991, %v8895, %v7325
        %v9057 = vsel %vm8991, %v8896, %v7317
        %v9058 = vsel %vm8991, %v8897, %v7319
        %v9059 = vsel %vm8991, %v8898, %v7321
        %v9060 = vsel %vm8991, %v8899, %v7323
        %v9061 = vsel %vm8991, %v8900, %v7325
        %v9062 = vsel %vm8991, %v8901, %v7327
        %v9063 = vsel %vm8991, %v8902, %v7329
        %v9064 = vsel %vm8991, %v8903, %v7331
        %v9065 = vsel %vm8991, %v8904, %v7333
        %v9066 = vsel %vm8991, %v8905, %v7335
        %v9067 = vsel %vm8991, %v8906, %v7327
        %v9068 = vsel %vm8991, %v8907, %v7329
        %v9069 = vsel %vm8991, %v8908, %v7331
        %v9070 = vsel %vm8991, %v8909, %v7333
        %v9071 = vsel %vm8991, %v8910, %v7335
        %v9072 = vsel %vm8991, %v8911, %v7337
        %v9073 = vsel %vm8991, %v8912, %v7339
        %v9074 = vsel %vm8991, %v8913, %v7341
        %v9075 = vsel %vm8991, %v8914, %v7343
        %v9076 = vsel %vm8991, %v8915, %v7345
        %v9077 = vsel %vm8991, %v8916, %v7337
        %v9078 = vsel %vm8991, %v8917, %v7339
        %v9079 = vsel %vm8991, %v8918, %v7341
        %v9080 = vsel %vm8991, %v8919, %v7343
        %v9081 = vsel %vm8991, %v8920, %v7345
        %v9082 = vsel %vm8991, %v8921, %v7347
        %v9083 = vsel %vm8991, %v8922, %v7349
        %v9084 = vsel %vm8991, %v8923, %v7351
        %v9085 = vsel %vm8991, %v8924, %v7353
        %v9086 = vsel %vm8991, %v8925, %v7355
        %v9087 = vsel %vm8991, %v8926, %v7347
        %v9088 = vsel %vm8991, %v8927, %v7349
        %v9089 = vsel %vm8991, %v8928, %v7351
        %v9090 = vsel %vm8991, %v8929, %v7353
        %v9091 = vsel %vm8991, %v8930, %v7355
        %v9092 = vsel %vm8991, %v8931, %v7357
        %v9093 = vsel %vm8991, %v8932, %v7359
        %v9094 = vsel %vm8991, %v8933, %v7361
        %v9095 = vsel %vm8991, %v8934, %v7363
        %v9096 = vsel %vm8991, %v8935, %v7365
        %v9097 = vsel %vm8991, %v8936, %v7357
        %v9098 = vsel %vm8991, %v8937, %v7359
        %v9099 = vsel %vm8991, %v8938, %v7361
        %v9100 = vsel %vm8991, %v8939, %v7363
        %v9101 = vsel %vm8991, %v8940, %v7365
        %v9102 = vsel %vm8991, %v8941, %v7367
        %v9103 = vsel %vm8991, %v8942, %v7369
        %v9104 = vsel %vm8991, %v8943, %v7371
        %v9105 = vsel %vm8991, %v8944, %v7373
        %v9106 = vsel %vm8991, %v8945, %v7375
        %v9107 = vsel %vm8991, %v8946, %v7367
        %v9108 = vsel %vm8991, %v8947, %v7369
        %v9109 = vsel %vm8991, %v8948, %v7371
        %v9110 = vsel %vm8991, %v8949, %v7373
        %v9111 = vsel %vm8991, %v8950, %v7375
        %v9112 = vsel %vm8991, %v8951, %v7377
        %v9113 = vsel %vm8991, %v8952, %v7379
        %v9114 = vsel %vm8991, %v8953, %v7381
        %v9115 = vsel %vm8991, %v8954, %v7383
        %v9116 = vsel %vm8991, %v8955, %v7385
        %v9117 = vsel %vm8991, %v8956, %v7377
        %v9118 = vsel %vm8991, %v8957, %v7379
        %v9119 = vsel %vm8991, %v8958, %v7381
        %v9120 = vsel %vm8991, %v8959, %v7383
        %v9121 = vsel %vm8991, %v8960, %v7385
        %v9122 = vsel %vm8991, %v8961, %v7387
        %v9123 = vsel %vm8991, %v8962, %v7389
        %v9124 = vsel %vm8991, %v8963, %v7391
        %v9125 = vsel %vm8991, %v8964, %v7393
        %v9126 = vsel %vm8991, %v8965, %v7395
        %v9127 = vsel %vm8991, %v8966, %v7387
        %v9128 = vsel %vm8991, %v8967, %v7389
        %v9129 = vsel %vm8991, %v8968, %v7391
        %v9130 = vsel %vm8991, %v8969, %v7393
        %v9131 = vsel %vm8991, %v8970, %v7395
        %v9132 = vsel %vm8991, %v8971, %v7397
        %v9133 = vsel %vm8991, %v8972, %v7399
        %v9134 = vsel %vm8991, %v8973, %v7401
        %v9135 = vsel %vm8991, %v8974, %v7403
        %v9136 = vsel %vm8991, %v8975, %v7405
        %v9137 = vsel %vm8991, %v8976, %v7397
        %v9138 = vsel %vm8991, %v8977, %v7399
        %v9139 = vsel %vm8991, %v8978, %v7401
        %v9140 = vsel %vm8991, %v8979, %v7403
        %v9141 = vsel %vm8991, %v8980, %v7405
        %v9142 = vsel %vm8991, %v8981, %v7407
        %v9143 = vsel %vm8991, %v8982, %v7409
        %v9144 = vsel %vm8991, %v8983, %v7411
        %v9145 = vsel %vm8991, %v8984, %v7413
        %v9146 = vsel %vm8991, %v8985, %v7415
        %v9147 = vsel %vm8991, %v8986, %v7407
        %v9148 = vsel %vm8991, %v8987, %v7409
        %v9149 = vsel %vm8991, %v8988, %v7411
        %v9150 = vsel %vm8991, %v8989, %v7413
        %v9151 = vsel %vm8991, %v8990, %v7415
        %vm9152 = vcmask 162816
        %v9153 = vsel %vm9152, %v8992, %v7497
        %v9154 = vsel %vm9152, %v8993, %v7499
        %v9155 = vsel %vm9152, %v8994, %v7501
        %v9156 = vsel %vm9152, %v8995, %v7503
        %v9157 = vsel %vm9152, %v8996, %v7505
        %v9158 = vsel %vm9152, %v8997, %v7497
        %v9159 = vsel %vm9152, %v8998, %v7499
        %v9160 = vsel %vm9152, %v8999, %v7501
        %v9161 = vsel %vm9152, %v9000, %v7503
        %v9162 = vsel %vm9152, %v9001, %v7505
        %v9163 = vsel %vm9152, %v9002, %v7507
        %v9164 = vsel %vm9152, %v9003, %v7509
        %v9165 = vsel %vm9152, %v9004, %v7511
        %v9166 = vsel %vm9152, %v9005, %v7513
        %v9167 = vsel %vm9152, %v9006, %v7515
        %v9168 = vsel %vm9152, %v9007, %v7507
        %v9169 = vsel %vm9152, %v9008, %v7509
        %v9170 = vsel %vm9152, %v9009, %v7511
        %v9171 = vsel %vm9152, %v9010, %v7513
        %v9172 = vsel %vm9152, %v9011, %v7515
        %v9173 = vsel %vm9152, %v9012, %v7517
        %v9174 = vsel %vm9152, %v9013, %v7519
        %v9175 = vsel %vm9152, %v9014, %v7521
        %v9176 = vsel %vm9152, %v9015, %v7523
        %v9177 = vsel %vm9152, %v9016, %v7525
        %v9178 = vsel %vm9152, %v9017, %v7517
        %v9179 = vsel %vm9152, %v9018, %v7519
        %v9180 = vsel %vm9152, %v9019, %v7521
        %v9181 = vsel %vm9152, %v9020, %v7523
        %v9182 = vsel %vm9152, %v9021, %v7525
        %v9183 = vsel %vm9152, %v9022, %v7527
        %v9184 = vsel %vm9152, %v9023, %v7529
        %v9185 = vsel %vm9152, %v9024, %v7531
        %v9186 = vsel %vm9152, %v9025, %v7533
        %v9187 = vsel %vm9152, %v9026, %v7535
        %v9188 = vsel %vm9152, %v9027, %v7527
        %v9189 = vsel %vm9152, %v9028, %v7529
        %v9190 = vsel %vm9152, %v9029, %v7531
        %v9191 = vsel %vm9152, %v9030, %v7533
        %v9192 = vsel %vm9152, %v9031, %v7535
        %v9193 = vsel %vm9152, %v9032, %v7537
        %v9194 = vsel %vm9152, %v9033, %v7539
        %v9195 = vsel %vm9152, %v9034, %v7541
        %v9196 = vsel %vm9152, %v9035, %v7543
        %v9197 = vsel %vm9152, %v9036, %v7545
        %v9198 = vsel %vm9152, %v9037, %v7537
        %v9199 = vsel %vm9152, %v9038, %v7539
        %v9200 = vsel %vm9152, %v9039, %v7541
        %v9201 = vsel %vm9152, %v9040, %v7543
        %v9202 = vsel %vm9152, %v9041, %v7545
        %v9203 = vsel %vm9152, %v9042, %v7547
        %v9204 = vsel %vm9152, %v9043, %v7549
        %v9205 = vsel %vm9152, %v9044, %v7551
        %v9206 = vsel %vm9152, %v9045, %v7553
        %v9207 = vsel %vm9152, %v9046, %v7555
        %v9208 = vsel %vm9152, %v9047, %v7547
        %v9209 = vsel %vm9152, %v9048, %v7549
        %v9210 = vsel %vm9152, %v9049, %v7551
        %v9211 = vsel %vm9152, %v9050, %v7553
        %v9212 = vsel %vm9152, %v9051, %v7555
        %v9213 = vsel %vm9152, %v9052, %v7557
        %v9214 = vsel %vm9152, %v9053, %v7559
        %v9215 = vsel %vm9152, %v9054, %v7561
        %v9216 = vsel %vm9152, %v9055, %v7563
        %v9217 = vsel %vm9152, %v9056, %v7565
        %v9218 = vsel %vm9152, %v9057, %v7557
        %v9219 = vsel %vm9152, %v9058, %v7559
        %v9220 = vsel %vm9152, %v9059, %v7561
        %v9221 = vsel %vm9152, %v9060, %v7563
        %v9222 = vsel %vm9152, %v9061, %v7565
        %v9223 = vsel %vm9152, %v9062, %v7567
        %v9224 = vsel %vm9152, %v9063, %v7569
        %v9225 = vsel %vm9152, %v9064, %v7571
        %v9226 = vsel %vm9152, %v9065, %v7573
        %v9227 = vsel %vm9152, %v9066, %v7575
        %v9228 = vsel %vm9152, %v9067, %v7567
        %v9229 = vsel %vm9152, %v9068, %v7569
        %v9230 = vsel %vm9152, %v9069, %v7571
        %v9231 = vsel %vm9152, %v9070, %v7573
        %v9232 = vsel %vm9152, %v9071, %v7575
        %v9233 = vsel %vm9152, %v9072, %v7577
        %v9234 = vsel %vm9152, %v9073, %v7579
        %v9235 = vsel %vm9152, %v9074, %v7581
        %v9236 = vsel %vm9152, %v9075, %v7583
        %v9237 = vsel %vm9152, %v9076, %v7585
        %v9238 = vsel %vm9152, %v9077, %v7577
        %v9239 = vsel %vm9152, %v9078, %v7579
        %v9240 = vsel %vm9152, %v9079, %v7581
        %v9241 = vsel %vm9152, %v9080, %v7583
        %v9242 = vsel %vm9152, %v9081, %v7585
        %v9243 = vsel %vm9152, %v9082, %v7587
        %v9244 = vsel %vm9152, %v9083, %v7589
        %v9245 = vsel %vm9152, %v9084, %v7591
        %v9246 = vsel %vm9152, %v9085, %v7593
        %v9247 = vsel %vm9152, %v9086, %v7595
        %v9248 = vsel %vm9152, %v9087, %v7587
        %v9249 = vsel %vm9152, %v9088, %v7589
        %v9250 = vsel %vm9152, %v9089, %v7591
        %v9251 = vsel %vm9152, %v9090, %v7593
        %v9252 = vsel %vm9152, %v9091, %v7595
        %v9253 = vsel %vm9152, %v9092, %v7597
        %v9254 = vsel %vm9152, %v9093, %v7599
        %v9255 = vsel %vm9152, %v9094, %v7601
        %v9256 = vsel %vm9152, %v9095, %v7603
        %v9257 = vsel %vm9152, %v9096, %v7605
        %v9258 = vsel %vm9152, %v9097, %v7597
        %v9259 = vsel %vm9152, %v9098, %v7599
        %v9260 = vsel %vm9152, %v9099, %v7601
        %v9261 = vsel %vm9152, %v9100, %v7603
        %v9262 = vsel %vm9152, %v9101, %v7605
        %v9263 = vsel %vm9152, %v9102, %v7607
        %v9264 = vsel %vm9152, %v9103, %v7609
        %v9265 = vsel %vm9152, %v9104, %v7611
        %v9266 = vsel %vm9152, %v9105, %v7613
        %v9267 = vsel %vm9152, %v9106, %v7615
        %v9268 = vsel %vm9152, %v9107, %v7607
        %v9269 = vsel %vm9152, %v9108, %v7609
        %v9270 = vsel %vm9152, %v9109, %v7611
        %v9271 = vsel %vm9152, %v9110, %v7613
        %v9272 = vsel %vm9152, %v9111, %v7615
        %v9273 = vsel %vm9152, %v9112, %v7617
        %v9274 = vsel %vm9152, %v9113, %v7619
        %v9275 = vsel %vm9152, %v9114, %v7621
        %v9276 = vsel %vm9152, %v9115, %v7623
        %v9277 = vsel %vm9152, %v9116, %v7625
        %v9278 = vsel %vm9152, %v9117, %v7617
        %v9279 = vsel %vm9152, %v9118, %v7619
        %v9280 = vsel %vm9152, %v9119, %v7621
        %v9281 = vsel %vm9152, %v9120, %v7623
        %v9282 = vsel %vm9152, %v9121, %v7625
        %v9283 = vsel %vm9152, %v9122, %v7627
        %v9284 = vsel %vm9152, %v9123, %v7629
        %v9285 = vsel %vm9152, %v9124, %v7631
        %v9286 = vsel %vm9152, %v9125, %v7633
        %v9287 = vsel %vm9152, %v9126, %v7635
        %v9288 = vsel %vm9152, %v9127, %v7627
        %v9289 = vsel %vm9152, %v9128, %v7629
        %v9290 = vsel %vm9152, %v9129, %v7631
        %v9291 = vsel %vm9152, %v9130, %v7633
        %v9292 = vsel %vm9152, %v9131, %v7635
        %v9293 = vsel %vm9152, %v9132, %v7637
        %v9294 = vsel %vm9152, %v9133, %v7639
        %v9295 = vsel %vm9152, %v9134, %v7641
        %v9296 = vsel %vm9152, %v9135, %v7643
        %v9297 = vsel %vm9152, %v9136, %v7645
        %v9298 = vsel %vm9152, %v9137, %v7637
        %v9299 = vsel %vm9152, %v9138, %v7639
        %v9300 = vsel %vm9152, %v9139, %v7641
        %v9301 = vsel %vm9152, %v9140, %v7643
        %v9302 = vsel %vm9152, %v9141, %v7645
        %v9303 = vsel %vm9152, %v9142, %v7647
        %v9304 = vsel %vm9152, %v9143, %v7649
        %v9305 = vsel %vm9152, %v9144, %v7651
        %v9306 = vsel %vm9152, %v9145, %v7653
        %v9307 = vsel %vm9152, %v9146, %v7655
        %v9308 = vsel %vm9152, %v9147, %v7647
        %v9309 = vsel %vm9152, %v9148, %v7649
        %v9310 = vsel %vm9152, %v9149, %v7651
        %v9311 = vsel %vm9152, %v9150, %v7653
        %v9312 = vsel %vm9152, %v9151, %v7655
        %vm9313 = vcmask 195584
        %v9314 = vsel %vm9313, %v9153, %v7812
        %v9315 = vsel %vm9313, %v9154, %v7814
        %v9316 = vsel %vm9313, %v9155, %v7816
        %v9317 = vsel %vm9313, %v9156, %v7818
        %v9318 = vsel %vm9313, %v9157, %v7820
        %v9319 = vsel %vm9313, %v9158, %v7822
        %v9320 = vsel %vm9313, %v9159, %v7824
        %v9321 = vsel %vm9313, %v9160, %v7826
        %v9322 = vsel %vm9313, %v9161, %v7828
        %v9323 = vsel %vm9313, %v9162, %v7830
        %v9324 = vsel %vm9313, %v9163, %v7822
        %v9325 = vsel %vm9313, %v9164, %v7824
        %v9326 = vsel %vm9313, %v9165, %v7826
        %v9327 = vsel %vm9313, %v9166, %v7828
        %v9328 = vsel %vm9313, %v9167, %v7830
        %v9329 = vsel %vm9313, %v9168, %v7832
        %v9330 = vsel %vm9313, %v9169, %v7834
        %v9331 = vsel %vm9313, %v9170, %v7836
        %v9332 = vsel %vm9313, %v9171, %v7838
        %v9333 = vsel %vm9313, %v9172, %v7840
        %v9334 = vsel %vm9313, %v9173, %v7832
        %v9335 = vsel %vm9313, %v9174, %v7834
        %v9336 = vsel %vm9313, %v9175, %v7836
        %v9337 = vsel %vm9313, %v9176, %v7838
        %v9338 = vsel %vm9313, %v9177, %v7840
        %v9339 = vsel %vm9313, %v9178, %v7842
        %v9340 = vsel %vm9313, %v9179, %v7844
        %v9341 = vsel %vm9313, %v9180, %v7846
        %v9342 = vsel %vm9313, %v9181, %v7848
        %v9343 = vsel %vm9313, %v9182, %v7850
        %v9344 = vsel %vm9313, %v9183, %v7842
        %v9345 = vsel %vm9313, %v9184, %v7844
        %v9346 = vsel %vm9313, %v9185, %v7846
        %v9347 = vsel %vm9313, %v9186, %v7848
        %v9348 = vsel %vm9313, %v9187, %v7850
        %v9349 = vsel %vm9313, %v9188, %v7852
        %v9350 = vsel %vm9313, %v9189, %v7854
        %v9351 = vsel %vm9313, %v9190, %v7856
        %v9352 = vsel %vm9313, %v9191, %v7858
        %v9353 = vsel %vm9313, %v9192, %v7860
        %v9354 = vsel %vm9313, %v9193, %v7852
        %v9355 = vsel %vm9313, %v9194, %v7854
        %v9356 = vsel %vm9313, %v9195, %v7856
        %v9357 = vsel %vm9313, %v9196, %v7858
        %v9358 = vsel %vm9313, %v9197, %v7860
        %v9359 = vsel %vm9313, %v9198, %v7862
        %v9360 = vsel %vm9313, %v9199, %v7864
        %v9361 = vsel %vm9313, %v9200, %v7866
        %v9362 = vsel %vm9313, %v9201, %v7868
        %v9363 = vsel %vm9313, %v9202, %v7870
        %v9364 = vsel %vm9313, %v9203, %v7862
        %v9365 = vsel %vm9313, %v9204, %v7864
        %v9366 = vsel %vm9313, %v9205, %v7866
        %v9367 = vsel %vm9313, %v9206, %v7868
        %v9368 = vsel %vm9313, %v9207, %v7870
        %v9369 = vsel %vm9313, %v9208, %v7872
        %v9370 = vsel %vm9313, %v9209, %v7874
        %v9371 = vsel %vm9313, %v9210, %v7876
        %v9372 = vsel %vm9313, %v9211, %v7878
        %v9373 = vsel %vm9313, %v9212, %v7880
        %v9374 = vsel %vm9313, %v9213, %v7872
        %v9375 = vsel %vm9313, %v9214, %v7874
        %v9376 = vsel %vm9313, %v9215, %v7876
        %v9377 = vsel %vm9313, %v9216, %v7878
        %v9378 = vsel %vm9313, %v9217, %v7880
        %v9379 = vsel %vm9313, %v9218, %v7882
        %v9380 = vsel %vm9313, %v9219, %v7884
        %v9381 = vsel %vm9313, %v9220, %v7886
        %v9382 = vsel %vm9313, %v9221, %v7888
        %v9383 = vsel %vm9313, %v9222, %v7890
        %v9384 = vsel %vm9313, %v9223, %v7882
        %v9385 = vsel %vm9313, %v9224, %v7884
        %v9386 = vsel %vm9313, %v9225, %v7886
        %v9387 = vsel %vm9313, %v9226, %v7888
        %v9388 = vsel %vm9313, %v9227, %v7890
        %v9389 = vsel %vm9313, %v9228, %v7892
        %v9390 = vsel %vm9313, %v9229, %v7894
        %v9391 = vsel %vm9313, %v9230, %v7896
        %v9392 = vsel %vm9313, %v9231, %v7898
        %v9393 = vsel %vm9313, %v9232, %v7900
        %v9394 = vsel %vm9313, %v9233, %v7892
        %v9395 = vsel %vm9313, %v9234, %v7894
        %v9396 = vsel %vm9313, %v9235, %v7896
        %v9397 = vsel %vm9313, %v9236, %v7898
        %v9398 = vsel %vm9313, %v9237, %v7900
        %v9399 = vsel %vm9313, %v9238, %v7902
        %v9400 = vsel %vm9313, %v9239, %v7904
        %v9401 = vsel %vm9313, %v9240, %v7906
        %v9402 = vsel %vm9313, %v9241, %v7908
        %v9403 = vsel %vm9313, %v9242, %v7910
        %v9404 = vsel %vm9313, %v9243, %v7902
        %v9405 = vsel %vm9313, %v9244, %v7904
        %v9406 = vsel %vm9313, %v9245, %v7906
        %v9407 = vsel %vm9313, %v9246, %v7908
        %v9408 = vsel %vm9313, %v9247, %v7910
        %v9409 = vsel %vm9313, %v9248, %v7912
        %v9410 = vsel %vm9313, %v9249, %v7914
        %v9411 = vsel %vm9313, %v9250, %v7916
        %v9412 = vsel %vm9313, %v9251, %v7918
        %v9413 = vsel %vm9313, %v9252, %v7920
        %v9414 = vsel %vm9313, %v9253, %v7912
        %v9415 = vsel %vm9313, %v9254, %v7914
        %v9416 = vsel %vm9313, %v9255, %v7916
        %v9417 = vsel %vm9313, %v9256, %v7918
        %v9418 = vsel %vm9313, %v9257, %v7920
        %v9419 = vsel %vm9313, %v9258, %v7922
        %v9420 = vsel %vm9313, %v9259, %v7924
        %v9421 = vsel %vm9313, %v9260, %v7926
        %v9422 = vsel %vm9313, %v9261, %v7928
        %v9423 = vsel %vm9313, %v9262, %v7930
        %v9424 = vsel %vm9313, %v9263, %v7922
        %v9425 = vsel %vm9313, %v9264, %v7924
        %v9426 = vsel %vm9313, %v9265, %v7926
        %v9427 = vsel %vm9313, %v9266, %v7928
        %v9428 = vsel %vm9313, %v9267, %v7930
        %v9429 = vsel %vm9313, %v9268, %v7932
        %v9430 = vsel %vm9313, %v9269, %v7934
        %v9431 = vsel %vm9313, %v9270, %v7936
        %v9432 = vsel %vm9313, %v9271, %v7938
        %v9433 = vsel %vm9313, %v9272, %v7940
        %v9434 = vsel %vm9313, %v9273, %v7932
        %v9435 = vsel %vm9313, %v9274, %v7934
        %v9436 = vsel %vm9313, %v9275, %v7936
        %v9437 = vsel %vm9313, %v9276, %v7938
        %v9438 = vsel %vm9313, %v9277, %v7940
        %v9439 = vsel %vm9313, %v9278, %v7942
        %v9440 = vsel %vm9313, %v9279, %v7944
        %v9441 = vsel %vm9313, %v9280, %v7946
        %v9442 = vsel %vm9313, %v9281, %v7948
        %v9443 = vsel %vm9313, %v9282, %v7950
        %v9444 = vsel %vm9313, %v9283, %v7942
        %v9445 = vsel %vm9313, %v9284, %v7944
        %v9446 = vsel %vm9313, %v9285, %v7946
        %v9447 = vsel %vm9313, %v9286, %v7948
        %v9448 = vsel %vm9313, %v9287, %v7950
        %v9449 = vsel %vm9313, %v9288, %v7952
        %v9450 = vsel %vm9313, %v9289, %v7954
        %v9451 = vsel %vm9313, %v9290, %v7956
        %v9452 = vsel %vm9313, %v9291, %v7958
        %v9453 = vsel %vm9313, %v9292, %v7960
        %v9454 = vsel %vm9313, %v9293, %v7952
        %v9455 = vsel %vm9313, %v9294, %v7954
        %v9456 = vsel %vm9313, %v9295, %v7956
        %v9457 = vsel %vm9313, %v9296, %v7958
        %v9458 = vsel %vm9313, %v9297, %v7960
        %v9459 = vsel %vm9313, %v9298, %v7962
        %v9460 = vsel %vm9313, %v9299, %v7964
        %v9461 = vsel %vm9313, %v9300, %v7966
        %v9462 = vsel %vm9313, %v9301, %v7968
        %v9463 = vsel %vm9313, %v9302, %v7970
        %v9464 = vsel %vm9313, %v9303, %v7962
        %v9465 = vsel %vm9313, %v9304, %v7964
        %v9466 = vsel %vm9313, %v9305, %v7966
        %v9467 = vsel %vm9313, %v9306, %v7968
        %v9468 = vsel %vm9313, %v9307, %v7970
        %v9469 = vsel %vm9313, %v9308, %v7972
        %v9470 = vsel %vm9313, %v9309, %v7974
        %v9471 = vsel %vm9313, %v9310, %v7976
        %v9472 = vsel %vm9313, %v9311, %v7978
        %v9473 = vsel %vm9313, %v9312, %v7980
        %vm9474 = vcmask 228352
        %v9475 = vsel %vm9474, %v9314, %v8142
        %v9476 = vsel %vm9474, %v9315, %v8144
        %v9477 = vsel %vm9474, %v9316, %v8146
        %v9478 = vsel %vm9474, %v9317, %v8148
        %v9479 = vsel %vm9474, %v9318, %v8150
        %v9480 = vsel %vm9474, %v9319, %v8152
        %v9481 = vsel %vm9474, %v9320, %v8154
        %v9482 = vsel %vm9474, %v9321, %v8156
        %v9483 = vsel %vm9474, %v9322, %v8158
        %v9484 = vsel %vm9474, %v9323, %v8160
        %v9485 = vsel %vm9474, %v9324, %v8152
        %v9486 = vsel %vm9474, %v9325, %v8154
        %v9487 = vsel %vm9474, %v9326, %v8156
        %v9488 = vsel %vm9474, %v9327, %v8158
        %v9489 = vsel %vm9474, %v9328, %v8160
        %v9490 = vsel %vm9474, %v9329, %v8162
        %v9491 = vsel %vm9474, %v9330, %v8164
        %v9492 = vsel %vm9474, %v9331, %v8166
        %v9493 = vsel %vm9474, %v9332, %v8168
        %v9494 = vsel %vm9474, %v9333, %v8170
        %v9495 = vsel %vm9474, %v9334, %v8162
        %v9496 = vsel %vm9474, %v9335, %v8164
        %v9497 = vsel %vm9474, %v9336, %v8166
        %v9498 = vsel %vm9474, %v9337, %v8168
        %v9499 = vsel %vm9474, %v9338, %v8170
        %v9500 = vsel %vm9474, %v9339, %v8172
        %v9501 = vsel %vm9474, %v9340, %v8174
        %v9502 = vsel %vm9474, %v9341, %v8176
        %v9503 = vsel %vm9474, %v9342, %v8178
        %v9504 = vsel %vm9474, %v9343, %v8180
        %v9505 = vsel %vm9474, %v9344, %v8172
        %v9506 = vsel %vm9474, %v9345, %v8174
        %v9507 = vsel %vm9474, %v9346, %v8176
        %v9508 = vsel %vm9474, %v9347, %v8178
        %v9509 = vsel %vm9474, %v9348, %v8180
        %v9510 = vsel %vm9474, %v9349, %v8182
        %v9511 = vsel %vm9474, %v9350, %v8184
        %v9512 = vsel %vm9474, %v9351, %v8186
        %v9513 = vsel %vm9474, %v9352, %v8188
        %v9514 = vsel %vm9474, %v9353, %v8190
        %v9515 = vsel %vm9474, %v9354, %v8182
        %v9516 = vsel %vm9474, %v9355, %v8184
        %v9517 = vsel %vm9474, %v9356, %v8186
        %v9518 = vsel %vm9474, %v9357, %v8188
        %v9519 = vsel %vm9474, %v9358, %v8190
        %v9520 = vsel %vm9474, %v9359, %v8192
        %v9521 = vsel %vm9474, %v9360, %v8194
        %v9522 = vsel %vm9474, %v9361, %v8196
        %v9523 = vsel %vm9474, %v9362, %v8198
        %v9524 = vsel %vm9474, %v9363, %v8200
        %v9525 = vsel %vm9474, %v9364, %v8192
        %v9526 = vsel %vm9474, %v9365, %v8194
        %v9527 = vsel %vm9474, %v9366, %v8196
        %v9528 = vsel %vm9474, %v9367, %v8198
        %v9529 = vsel %vm9474, %v9368, %v8200
        %v9530 = vsel %vm9474, %v9369, %v8202
        %v9531 = vsel %vm9474, %v9370, %v8204
        %v9532 = vsel %vm9474, %v9371, %v8206
        %v9533 = vsel %vm9474, %v9372, %v8208
        %v9534 = vsel %vm9474, %v9373, %v8210
        %v9535 = vsel %vm9474, %v9374, %v8202
        %v9536 = vsel %vm9474, %v9375, %v8204
        %v9537 = vsel %vm9474, %v9376, %v8206
        %v9538 = vsel %vm9474, %v9377, %v8208
        %v9539 = vsel %vm9474, %v9378, %v8210
        %v9540 = vsel %vm9474, %v9379, %v8212
        %v9541 = vsel %vm9474, %v9380, %v8214
        %v9542 = vsel %vm9474, %v9381, %v8216
        %v9543 = vsel %vm9474, %v9382, %v8218
        %v9544 = vsel %vm9474, %v9383, %v8220
        %v9545 = vsel %vm9474, %v9384, %v8212
        %v9546 = vsel %vm9474, %v9385, %v8214
        %v9547 = vsel %vm9474, %v9386, %v8216
        %v9548 = vsel %vm9474, %v9387, %v8218
        %v9549 = vsel %vm9474, %v9388, %v8220
        %v9550 = vsel %vm9474, %v9389, %v8222
        %v9551 = vsel %vm9474, %v9390, %v8224
        %v9552 = vsel %vm9474, %v9391, %v8226
        %v9553 = vsel %vm9474, %v9392, %v8228
        %v9554 = vsel %vm9474, %v9393, %v8230
        %v9555 = vsel %vm9474, %v9394, %v8222
        %v9556 = vsel %vm9474, %v9395, %v8224
        %v9557 = vsel %vm9474, %v9396, %v8226
        %v9558 = vsel %vm9474, %v9397, %v8228
        %v9559 = vsel %vm9474, %v9398, %v8230
        %v9560 = vsel %vm9474, %v9399, %v8232
        %v9561 = vsel %vm9474, %v9400, %v8234
        %v9562 = vsel %vm9474, %v9401, %v8236
        %v9563 = vsel %vm9474, %v9402, %v8238
        %v9564 = vsel %vm9474, %v9403, %v8240
        %v9565 = vsel %vm9474, %v9404, %v8232
        %v9566 = vsel %vm9474, %v9405, %v8234
        %v9567 = vsel %vm9474, %v9406, %v8236
        %v9568 = vsel %vm9474, %v9407, %v8238
        %v9569 = vsel %vm9474, %v9408, %v8240
        %v9570 = vsel %vm9474, %v9409, %v8242
        %v9571 = vsel %vm9474, %v9410, %v8244
        %v9572 = vsel %vm9474, %v9411, %v8246
        %v9573 = vsel %vm9474, %v9412, %v8248
        %v9574 = vsel %vm9474, %v9413, %v8250
        %v9575 = vsel %vm9474, %v9414, %v8242
        %v9576 = vsel %vm9474, %v9415, %v8244
        %v9577 = vsel %vm9474, %v9416, %v8246
        %v9578 = vsel %vm9474, %v9417, %v8248
        %v9579 = vsel %vm9474, %v9418, %v8250
        %v9580 = vsel %vm9474, %v9419, %v8252
        %v9581 = vsel %vm9474, %v9420, %v8254
        %v9582 = vsel %vm9474, %v9421, %v8256
        %v9583 = vsel %vm9474, %v9422, %v8258
        %v9584 = vsel %vm9474, %v9423, %v8260
        %v9585 = vsel %vm9474, %v9424, %v8252
        %v9586 = vsel %vm9474, %v9425, %v8254
        %v9587 = vsel %vm9474, %v9426, %v8256
        %v9588 = vsel %vm9474, %v9427, %v8258
        %v9589 = vsel %vm9474, %v9428, %v8260
        %v9590 = vsel %vm9474, %v9429, %v8262
        %v9591 = vsel %vm9474, %v9430, %v8264
        %v9592 = vsel %vm9474, %v9431, %v8266
        %v9593 = vsel %vm9474, %v9432, %v8268
        %v9594 = vsel %vm9474, %v9433, %v8270
        %v9595 = vsel %vm9474, %v9434, %v8262
        %v9596 = vsel %vm9474, %v9435, %v8264
        %v9597 = vsel %vm9474, %v9436, %v8266
        %v9598 = vsel %vm9474, %v9437, %v8268
        %v9599 = vsel %vm9474, %v9438, %v8270
        %v9600 = vsel %vm9474, %v9439, %v8272
        %v9601 = vsel %vm9474, %v9440, %v8274
        %v9602 = vsel %vm9474, %v9441, %v8276
        %v9603 = vsel %vm9474, %v9442, %v8278
        %v9604 = vsel %vm9474, %v9443, %v8280
        %v9605 = vsel %vm9474, %v9444, %v8272
        %v9606 = vsel %vm9474, %v9445, %v8274
        %v9607 = vsel %vm9474, %v9446, %v8276
        %v9608 = vsel %vm9474, %v9447, %v8278
        %v9609 = vsel %vm9474, %v9448, %v8280
        %v9610 = vsel %vm9474, %v9449, %v8282
        %v9611 = vsel %vm9474, %v9450, %v8284
        %v9612 = vsel %vm9474, %v9451, %v8286
        %v9613 = vsel %vm9474, %v9452, %v8288
        %v9614 = vsel %vm9474, %v9453, %v8290
        %v9615 = vsel %vm9474, %v9454, %v8282
        %v9616 = vsel %vm9474, %v9455, %v8284
        %v9617 = vsel %vm9474, %v9456, %v8286
        %v9618 = vsel %vm9474, %v9457, %v8288
        %v9619 = vsel %vm9474, %v9458, %v8290
        %v9620 = vsel %vm9474, %v9459, %v8292
        %v9621 = vsel %vm9474, %v9460, %v8294
        %v9622 = vsel %vm9474, %v9461, %v8296
        %v9623 = vsel %vm9474, %v9462, %v8298
        %v9624 = vsel %vm9474, %v9463, %v8300
        %v9625 = vsel %vm9474, %v9464, %v8292
        %v9626 = vsel %vm9474, %v9465, %v8294
        %v9627 = vsel %vm9474, %v9466, %v8296
        %v9628 = vsel %vm9474, %v9467, %v8298
        %v9629 = vsel %vm9474, %v9468, %v8300
        %v9630 = vsel %vm9474, %v9469, %v8302
        %v9631 = vsel %vm9474, %v9470, %v8304
        %v9632 = vsel %vm9474, %v9471, %v8306
        %v9633 = vsel %vm9474, %v9472, %v8308
        %v9634 = vsel %vm9474, %v9473, %v8310
        %vm9635 = vcmask 261120
        %v9636 = vsel %vm9635, %v9475, %v8404
        %v9637 = vsel %vm9635, %v9476, %v8406
        %v9638 = vsel %vm9635, %v9477, %v8408
        %v9639 = vsel %vm9635, %v9478, %v8410
        %v9640 = vsel %vm9635, %v9479, %v8412
        %v9641 = vsel %vm9635, %v9480, %v8414
        %v9642 = vsel %vm9635, %v9481, %v8416
        %v9643 = vsel %vm9635, %v9482, %v8418
        %v9644 = vsel %vm9635, %v9483, %v8420
        %v9645 = vsel %vm9635, %v9484, %v8422
        %v9646 = vsel %vm9635, %v9485, %v8414
        %v9647 = vsel %vm9635, %v9486, %v8416
        %v9648 = vsel %vm9635, %v9487, %v8418
        %v9649 = vsel %vm9635, %v9488, %v8420
        %v9650 = vsel %vm9635, %v9489, %v8422
        %v9651 = vsel %vm9635, %v9490, %v8424
        %v9652 = vsel %vm9635, %v9491, %v8426
        %v9653 = vsel %vm9635, %v9492, %v8428
        %v9654 = vsel %vm9635, %v9493, %v8430
        %v9655 = vsel %vm9635, %v9494, %v8432
        %v9656 = vsel %vm9635, %v9495, %v8424
        %v9657 = vsel %vm9635, %v9496, %v8426
        %v9658 = vsel %vm9635, %v9497, %v8428
        %v9659 = vsel %vm9635, %v9498, %v8430
        %v9660 = vsel %vm9635, %v9499, %v8432
        %v9661 = vsel %vm9635, %v9500, %v8434
        %v9662 = vsel %vm9635, %v9501, %v8436
        %v9663 = vsel %vm9635, %v9502, %v8438
        %v9664 = vsel %vm9635, %v9503, %v8440
        %v9665 = vsel %vm9635, %v9504, %v8442
        %v9666 = vsel %vm9635, %v9505, %v8434
        %v9667 = vsel %vm9635, %v9506, %v8436
        %v9668 = vsel %vm9635, %v9507, %v8438
        %v9669 = vsel %vm9635, %v9508, %v8440
        %v9670 = vsel %vm9635, %v9509, %v8442
        %v9671 = vsel %vm9635, %v9510, %v8444
        %v9672 = vsel %vm9635, %v9511, %v8446
        %v9673 = vsel %vm9635, %v9512, %v8448
        %v9674 = vsel %vm9635, %v9513, %v8450
        %v9675 = vsel %vm9635, %v9514, %v8452
        %v9676 = vsel %vm9635, %v9515, %v8444
        %v9677 = vsel %vm9635, %v9516, %v8446
        %v9678 = vsel %vm9635, %v9517, %v8448
        %v9679 = vsel %vm9635, %v9518, %v8450
        %v9680 = vsel %vm9635, %v9519, %v8452
        %v9681 = vsel %vm9635, %v9520, %v8454
        %v9682 = vsel %vm9635, %v9521, %v8456
        %v9683 = vsel %vm9635, %v9522, %v8458
        %v9684 = vsel %vm9635, %v9523, %v8460
        %v9685 = vsel %vm9635, %v9524, %v8462
        %v9686 = vsel %vm9635, %v9525, %v8454
        %v9687 = vsel %vm9635, %v9526, %v8456
        %v9688 = vsel %vm9635, %v9527, %v8458
        %v9689 = vsel %vm9635, %v9528, %v8460
        %v9690 = vsel %vm9635, %v9529, %v8462
        %v9691 = vsel %vm9635, %v9530, %v8464
        %v9692 = vsel %vm9635, %v9531, %v8466
        %v9693 = vsel %vm9635, %v9532, %v8468
        %v9694 = vsel %vm9635, %v9533, %v8470
        %v9695 = vsel %vm9635, %v9534, %v8472
        %v9696 = vsel %vm9635, %v9535, %v8464
        %v9697 = vsel %vm9635, %v9536, %v8466
        %v9698 = vsel %vm9635, %v9537, %v8468
        %v9699 = vsel %vm9635, %v9538, %v8470
        %v9700 = vsel %vm9635, %v9539, %v8472
        %v9701 = vsel %vm9635, %v9540, %v8474
        %v9702 = vsel %vm9635, %v9541, %v8476
        %v9703 = vsel %vm9635, %v9542, %v8478
        %v9704 = vsel %vm9635, %v9543, %v8480
        %v9705 = vsel %vm9635, %v9544, %v8482
        %v9706 = vsel %vm9635, %v9545, %v8474
        %v9707 = vsel %vm9635, %v9546, %v8476
        %v9708 = vsel %vm9635, %v9547, %v8478
        %v9709 = vsel %vm9635, %v9548, %v8480
        %v9710 = vsel %vm9635, %v9549, %v8482
        %v9711 = vsel %vm9635, %v9550, %v8484
        %v9712 = vsel %vm9635, %v9551, %v8486
        %v9713 = vsel %vm9635, %v9552, %v8488
        %v9714 = vsel %vm9635, %v9553, %v8490
        %v9715 = vsel %vm9635, %v9554, %v8492
        %v9716 = vsel %vm9635, %v9555, %v8484
        %v9717 = vsel %vm9635, %v9556, %v8486
        %v9718 = vsel %vm9635, %v9557, %v8488
        %v9719 = vsel %vm9635, %v9558, %v8490
        %v9720 = vsel %vm9635, %v9559, %v8492
        %v9721 = vsel %vm9635, %v9560, %v8494
        %v9722 = vsel %vm9635, %v9561, %v8496
        %v9723 = vsel %vm9635, %v9562, %v8498
        %v9724 = vsel %vm9635, %v9563, %v8500
        %v9725 = vsel %vm9635, %v9564, %v8502
        %v9726 = vsel %vm9635, %v9565, %v8494
        %v9727 = vsel %vm9635, %v9566, %v8496
        %v9728 = vsel %vm9635, %v9567, %v8498
        %v9729 = vsel %vm9635, %v9568, %v8500
        %v9730 = vsel %vm9635, %v9569, %v8502
        %v9731 = vsel %vm9635, %v9570, %v8504
        %v9732 = vsel %vm9635, %v9571, %v8506
        %v9733 = vsel %vm9635, %v9572, %v8508
        %v9734 = vsel %vm9635, %v9573, %v8510
        %v9735 = vsel %vm9635, %v9574, %v8512
        %v9736 = vsel %vm9635, %v9575, %v8504
        %v9737 = vsel %vm9635, %v9576, %v8506
        %v9738 = vsel %vm9635, %v9577, %v8508
        %v9739 = vsel %vm9635, %v9578, %v8510
        %v9740 = vsel %vm9635, %v9579, %v8512
        %v9741 = vsel %vm9635, %v9580, %v8514
        %v9742 = vsel %vm9635, %v9581, %v8516
        %v9743 = vsel %vm9635, %v9582, %v8518
        %v9744 = vsel %vm9635, %v9583, %v8520
        %v9745 = vsel %vm9635, %v9584, %v8522
        %v9746 = vsel %vm9635, %v9585, %v8514
        %v9747 = vsel %vm9635, %v9586, %v8516
        %v9748 = vsel %vm9635, %v9587, %v8518
        %v9749 = vsel %vm9635, %v9588, %v8520
        %v9750 = vsel %vm9635, %v9589, %v8522
        %v9751 = vsel %vm9635, %v9590, %v8524
        %v9752 = vsel %vm9635, %v9591, %v8526
        %v9753 = vsel %vm9635, %v9592, %v8528
        %v9754 = vsel %vm9635, %v9593, %v8530
        %v9755 = vsel %vm9635, %v9594, %v8532
        %v9756 = vsel %vm9635, %v9595, %v8524
        %v9757 = vsel %vm9635, %v9596, %v8526
        %v9758 = vsel %vm9635, %v9597, %v8528
        %v9759 = vsel %vm9635, %v9598, %v8530
        %v9760 = vsel %vm9635, %v9599, %v8532
        %v9761 = vsel %vm9635, %v9600, %v8534
        %v9762 = vsel %vm9635, %v9601, %v8536
        %v9763 = vsel %vm9635, %v9602, %v8538
        %v9764 = vsel %vm9635, %v9603, %v8540
        %v9765 = vsel %vm9635, %v9604, %v8542
        %v9766 = vsel %vm9635, %v9605, %v8534
        %v9767 = vsel %vm9635, %v9606, %v8536
        %v9768 = vsel %vm9635, %v9607, %v8538
        %v9769 = vsel %vm9635, %v9608, %v8540
        %v9770 = vsel %vm9635, %v9609, %v8542
        %v9771 = vsel %vm9635, %v9610, %v8544
        %v9772 = vsel %vm9635, %v9611, %v8546
        %v9773 = vsel %vm9635, %v9612, %v8548
        %v9774 = vsel %vm9635, %v9613, %v8550
        %v9775 = vsel %vm9635, %v9614, %v8552
        %v9776 = vsel %vm9635, %v9615, %v8544
        %v9777 = vsel %vm9635, %v9616, %v8546
        %v9778 = vsel %vm9635, %v9617, %v8548
        %v9779 = vsel %vm9635, %v9618, %v8550
        %v9780 = vsel %vm9635, %v9619, %v8552
        %v9781 = vsel %vm9635, %v9620, %v8554
        %v9782 = vsel %vm9635, %v9621, %v8556
        %v9783 = vsel %vm9635, %v9622, %v8558
        %v9784 = vsel %vm9635, %v9623, %v8560
        %v9785 = vsel %vm9635, %v9624, %v8562
        %v9786 = vsel %vm9635, %v9625, %v8554
        %v9787 = vsel %vm9635, %v9626, %v8556
        %v9788 = vsel %vm9635, %v9627, %v8558
        %v9789 = vsel %vm9635, %v9628, %v8560
        %v9790 = vsel %vm9635, %v9629, %v8562
        %v9791 = vsel %vm9635, %v9630, %v8564
        %v9792 = vsel %vm9635, %v9631, %v8566
        %v9793 = vsel %vm9635, %v9632, %v8568
        %v9794 = vsel %vm9635, %v9633, %v8570
        %v9795 = vsel %vm9635, %v9634, %v8572
        %vm9956 = vcmask 1046528
        %v9957 = vrot.slane %v9636, 1
        %v9958 = vrot.slane %v9637, 1
        %v9959 = vsel %vm9956, %v9957, %v9958
        %v9960 = vrot.slane %v9638, 1
        %v9961 = vsel %vm9956, %v9958, %v9960
        %v9962 = vrot.slane %v9639, 1
        %v9963 = vsel %vm9956, %v9960, %v9962
        %v9964 = vrot.slane %v9640, 1
        %v9965 = vsel %vm9956, %v9962, %v9964
        %v9966 = vrot.slane %v9641, 1
        %v9967 = vrot.slane %v9642, 1
        %v9968 = vsel %vm9956, %v9966, %v9967
        %v9969 = vrot.slane %v9643, 1
        %v9970 = vsel %vm9956, %v9967, %v9969
        %v9971 = vrot.slane %v9644, 1
        %v9972 = vsel %vm9956, %v9969, %v9971
        %v9973 = vrot.slane %v9645, 1
        %v9974 = vsel %vm9956, %v9971, %v9973
        %v9975 = vrot.slane %v9646, 1
        %v9976 = vrot.slane %v9647, 1
        %v9977 = vsel %vm9956, %v9975, %v9976
        %v9978 = vrot.slane %v9648, 1
        %v9979 = vsel %vm9956, %v9976, %v9978
        %v9980 = vrot.slane %v9649, 1
        %v9981 = vsel %vm9956, %v9978, %v9980
        %v9982 = vrot.slane %v9650, 1
        %v9983 = vsel %vm9956, %v9980, %v9982
        %v9984 = vrot.slane %v9651, 1
        %v9985 = vrot.slane %v9652, 1
        %v9986 = vsel %vm9956, %v9984, %v9985
        %v9987 = vrot.slane %v9653, 1
        %v9988 = vsel %vm9956, %v9985, %v9987
        %v9989 = vrot.slane %v9654, 1
        %v9990 = vsel %vm9956, %v9987, %v9989
        %v9991 = vrot.slane %v9655, 1
        %v9992 = vsel %vm9956, %v9989, %v9991
        %v9993 = vrot.slane %v9656, 1
        %v9994 = vrot.slane %v9657, 1
        %v9995 = vsel %vm9956, %v9993, %v9994
        %v9996 = vrot.slane %v9658, 1
        %v9997 = vsel %vm9956, %v9994, %v9996
        %v9998 = vrot.slane %v9659, 1
        %v9999 = vsel %vm9956, %v9996, %v9998
        %v10000 = vrot.slane %v9660, 1
        %v10001 = vsel %vm9956, %v9998, %v10000
        %v10002 = vrot.slane %v9661, 1
        %v10003 = vrot.slane %v9662, 1
        %v10004 = vsel %vm9956, %v10002, %v10003
        %v10005 = vrot.slane %v9663, 1
        %v10006 = vsel %vm9956, %v10003, %v10005
        %v10007 = vrot.slane %v9664, 1
        %v10008 = vsel %vm9956, %v10005, %v10007
        %v10009 = vrot.slane %v9665, 1
        %v10010 = vsel %vm9956, %v10007, %v10009
        %v10011 = vrot.slane %v9666, 1
        %v10012 = vrot.slane %v9667, 1
        %v10013 = vsel %vm9956, %v10011, %v10012
        %v10014 = vrot.slane %v9668, 1
        %v10015 = vsel %vm9956, %v10012, %v10014
        %v10016 = vrot.slane %v9669, 1
        %v10017 = vsel %vm9956, %v10014, %v10016
        %v10018 = vrot.slane %v9670, 1
        %v10019 = vsel %vm9956, %v10016, %v10018
        %v10020 = vrot.slane %v9671, 1
        %v10021 = vrot.slane %v9672, 1
        %v10022 = vsel %vm9956, %v10020, %v10021
        %v10023 = vrot.slane %v9673, 1
        %v10024 = vsel %vm9956, %v10021, %v10023
        %v10025 = vrot.slane %v9674, 1
        %v10026 = vsel %vm9956, %v10023, %v10025
        %v10027 = vrot.slane %v9675, 1
        %v10028 = vsel %vm9956, %v10025, %v10027
        %v10029 = vrot.slane %v9676, 1
        %v10030 = vrot.slane %v9677, 1
        %v10031 = vsel %vm9956, %v10029, %v10030
        %v10032 = vrot.slane %v9678, 1
        %v10033 = vsel %vm9956, %v10030, %v10032
        %v10034 = vrot.slane %v9679, 1
        %v10035 = vsel %vm9956, %v10032, %v10034
        %v10036 = vrot.slane %v9680, 1
        %v10037 = vsel %vm9956, %v10034, %v10036
        %v10038 = vrot.slane %v9681, 1
        %v10039 = vrot.slane %v9682, 1
        %v10040 = vsel %vm9956, %v10038, %v10039
        %v10041 = vrot.slane %v9683, 1
        %v10042 = vsel %vm9956, %v10039, %v10041
        %v10043 = vrot.slane %v9684, 1
        %v10044 = vsel %vm9956, %v10041, %v10043
        %v10045 = vrot.slane %v9685, 1
        %v10046 = vsel %vm9956, %v10043, %v10045
        %v10047 = vrot.slane %v9686, 1
        %v10048 = vrot.slane %v9687, 1
        %v10049 = vsel %vm9956, %v10047, %v10048
        %v10050 = vrot.slane %v9688, 1
        %v10051 = vsel %vm9956, %v10048, %v10050
        %v10052 = vrot.slane %v9689, 1
        %v10053 = vsel %vm9956, %v10050, %v10052
        %v10054 = vrot.slane %v9690, 1
        %v10055 = vsel %vm9956, %v10052, %v10054
        %v10056 = vrot.slane %v9691, 1
        %v10057 = vrot.slane %v9692, 1
        %v10058 = vsel %vm9956, %v10056, %v10057
        %v10059 = vrot.slane %v9693, 1
        %v10060 = vsel %vm9956, %v10057, %v10059
        %v10061 = vrot.slane %v9694, 1
        %v10062 = vsel %vm9956, %v10059, %v10061
        %v10063 = vrot.slane %v9695, 1
        %v10064 = vsel %vm9956, %v10061, %v10063
        %v10065 = vrot.slane %v9696, 1
        %v10066 = vrot.slane %v9697, 1
        %v10067 = vsel %vm9956, %v10065, %v10066
        %v10068 = vrot.slane %v9698, 1
        %v10069 = vsel %vm9956, %v10066, %v10068
        %v10070 = vrot.slane %v9699, 1
        %v10071 = vsel %vm9956, %v10068, %v10070
        %v10072 = vrot.slane %v9700, 1
        %v10073 = vsel %vm9956, %v10070, %v10072
        %v10074 = vrot.slane %v9701, 1
        %v10075 = vrot.slane %v9702, 1
        %v10076 = vsel %vm9956, %v10074, %v10075
        %v10077 = vrot.slane %v9703, 1
        %v10078 = vsel %vm9956, %v10075, %v10077
        %v10079 = vrot.slane %v9704, 1
        %v10080 = vsel %vm9956, %v10077, %v10079
        %v10081 = vrot.slane %v9705, 1
        %v10082 = vsel %vm9956, %v10079, %v10081
        %v10083 = vrot.slane %v9706, 1
        %v10084 = vrot.slane %v9707, 1
        %v10085 = vsel %vm9956, %v10083, %v10084
        %v10086 = vrot.slane %v9708, 1
        %v10087 = vsel %vm9956, %v10084, %v10086
        %v10088 = vrot.slane %v9709, 1
        %v10089 = vsel %vm9956, %v10086, %v10088
        %v10090 = vrot.slane %v9710, 1
        %v10091 = vsel %vm9956, %v10088, %v10090
        %v10092 = vrot.slane %v9711, 1
        %v10093 = vrot.slane %v9712, 1
        %v10094 = vsel %vm9956, %v10092, %v10093
        %v10095 = vrot.slane %v9713, 1
        %v10096 = vsel %vm9956, %v10093, %v10095
        %v10097 = vrot.slane %v9714, 1
        %v10098 = vsel %vm9956, %v10095, %v10097
        %v10099 = vrot.slane %v9715, 1
        %v10100 = vsel %vm9956, %v10097, %v10099
        %v10101 = vrot.slane %v9716, 1
        %v10102 = vrot.slane %v9717, 1
        %v10103 = vsel %vm9956, %v10101, %v10102
        %v10104 = vrot.slane %v9718, 1
        %v10105 = vsel %vm9956, %v10102, %v10104
        %v10106 = vrot.slane %v9719, 1
        %v10107 = vsel %vm9956, %v10104, %v10106
        %v10108 = vrot.slane %v9720, 1
        %v10109 = vsel %vm9956, %v10106, %v10108
        %v10110 = vrot.slane %v9721, 1
        %v10111 = vrot.slane %v9722, 1
        %v10112 = vsel %vm9956, %v10110, %v10111
        %v10113 = vrot.slane %v9723, 1
        %v10114 = vsel %vm9956, %v10111, %v10113
        %v10115 = vrot.slane %v9724, 1
        %v10116 = vsel %vm9956, %v10113, %v10115
        %v10117 = vrot.slane %v9725, 1
        %v10118 = vsel %vm9956, %v10115, %v10117
        %v10119 = vrot.slane %v9726, 1
        %v10120 = vrot.slane %v9727, 1
        %v10121 = vsel %vm9956, %v10119, %v10120
        %v10122 = vrot.slane %v9728, 1
        %v10123 = vsel %vm9956, %v10120, %v10122
        %v10124 = vrot.slane %v9729, 1
        %v10125 = vsel %vm9956, %v10122, %v10124
        %v10126 = vrot.slane %v9730, 1
        %v10127 = vsel %vm9956, %v10124, %v10126
        %v10128 = vrot.slane %v9731, 1
        %v10129 = vrot.slane %v9732, 1
        %v10130 = vsel %vm9956, %v10128, %v10129
        %v10131 = vrot.slane %v9733, 1
        %v10132 = vsel %vm9956, %v10129, %v10131
        %v10133 = vrot.slane %v9734, 1
        %v10134 = vsel %vm9956, %v10131, %v10133
        %v10135 = vrot.slane %v9735, 1
        %v10136 = vsel %vm9956, %v10133, %v10135
        %v10137 = vrot.slane %v9736, 1
        %v10138 = vrot.slane %v9737, 1
        %v10139 = vsel %vm9956, %v10137, %v10138
        %v10140 = vrot.slane %v9738, 1
        %v10141 = vsel %vm9956, %v10138, %v10140
        %v10142 = vrot.slane %v9739, 1
        %v10143 = vsel %vm9956, %v10140, %v10142
        %v10144 = vrot.slane %v9740, 1
        %v10145 = vsel %vm9956, %v10142, %v10144
        %v10146 = vrot.slane %v9741, 1
        %v10147 = vrot.slane %v9742, 1
        %v10148 = vsel %vm9956, %v10146, %v10147
        %v10149 = vrot.slane %v9743, 1
        %v10150 = vsel %vm9956, %v10147, %v10149
        %v10151 = vrot.slane %v9744, 1
        %v10152 = vsel %vm9956, %v10149, %v10151
        %v10153 = vrot.slane %v9745, 1
        %v10154 = vsel %vm9956, %v10151, %v10153
        %v10155 = vrot.slane %v9746, 1
        %v10156 = vrot.slane %v9747, 1
        %v10157 = vsel %vm9956, %v10155, %v10156
        %v10158 = vrot.slane %v9748, 1
        %v10159 = vsel %vm9956, %v10156, %v10158
        %v10160 = vrot.slane %v9749, 1
        %v10161 = vsel %vm9956, %v10158, %v10160
        %v10162 = vrot.slane %v9750, 1
        %v10163 = vsel %vm9956, %v10160, %v10162
        %v10164 = vrot.slane %v9751, 1
        %v10165 = vrot.slane %v9752, 1
        %v10166 = vsel %vm9956, %v10164, %v10165
        %v10167 = vrot.slane %v9753, 1
        %v10168 = vsel %vm9956, %v10165, %v10167
        %v10169 = vrot.slane %v9754, 1
        %v10170 = vsel %vm9956, %v10167, %v10169
        %v10171 = vrot.slane %v9755, 1
        %v10172 = vsel %vm9956, %v10169, %v10171
        %v10173 = vrot.slane %v9756, 1
        %v10174 = vrot.slane %v9757, 1
        %v10175 = vsel %vm9956, %v10173, %v10174
        %v10176 = vrot.slane %v9758, 1
        %v10177 = vsel %vm9956, %v10174, %v10176
        %v10178 = vrot.slane %v9759, 1
        %v10179 = vsel %vm9956, %v10176, %v10178
        %v10180 = vrot.slane %v9760, 1
        %v10181 = vsel %vm9956, %v10178, %v10180
        %v10182 = vrot.slane %v9761, 1
        %v10183 = vrot.slane %v9762, 1
        %v10184 = vsel %vm9956, %v10182, %v10183
        %v10185 = vrot.slane %v9763, 1
        %v10186 = vsel %vm9956, %v10183, %v10185
        %v10187 = vrot.slane %v9764, 1
        %v10188 = vsel %vm9956, %v10185, %v10187
        %v10189 = vrot.slane %v9765, 1
        %v10190 = vsel %vm9956, %v10187, %v10189
        %v10191 = vrot.slane %v9766, 1
        %v10192 = vrot.slane %v9767, 1
        %v10193 = vsel %vm9956, %v10191, %v10192
        %v10194 = vrot.slane %v9768, 1
        %v10195 = vsel %vm9956, %v10192, %v10194
        %v10196 = vrot.slane %v9769, 1
        %v10197 = vsel %vm9956, %v10194, %v10196
        %v10198 = vrot.slane %v9770, 1
        %v10199 = vsel %vm9956, %v10196, %v10198
        %v10200 = vrot.slane %v9771, 1
        %v10201 = vrot.slane %v9772, 1
        %v10202 = vsel %vm9956, %v10200, %v10201
        %v10203 = vrot.slane %v9773, 1
        %v10204 = vsel %vm9956, %v10201, %v10203
        %v10205 = vrot.slane %v9774, 1
        %v10206 = vsel %vm9956, %v10203, %v10205
        %v10207 = vrot.slane %v9775, 1
        %v10208 = vsel %vm9956, %v10205, %v10207
        %v10209 = vrot.slane %v9776, 1
        %v10210 = vrot.slane %v9777, 1
        %v10211 = vsel %vm9956, %v10209, %v10210
        %v10212 = vrot.slane %v9778, 1
        %v10213 = vsel %vm9956, %v10210, %v10212
        %v10214 = vrot.slane %v9779, 1
        %v10215 = vsel %vm9956, %v10212, %v10214
        %v10216 = vrot.slane %v9780, 1
        %v10217 = vsel %vm9956, %v10214, %v10216
        %v10218 = vrot.slane %v9781, 1
        %v10219 = vrot.slane %v9782, 1
        %v10220 = vsel %vm9956, %v10218, %v10219
        %v10221 = vrot.slane %v9783, 1
        %v10222 = vsel %vm9956, %v10219, %v10221
        %v10223 = vrot.slane %v9784, 1
        %v10224 = vsel %vm9956, %v10221, %v10223
        %v10225 = vrot.slane %v9785, 1
        %v10226 = vsel %vm9956, %v10223, %v10225
        %v10227 = vrot.slane %v9786, 1
        %v10228 = vrot.slane %v9787, 1
        %v10229 = vsel %vm9956, %v10227, %v10228
        %v10230 = vrot.slane %v9788, 1
        %v10231 = vsel %vm9956, %v10228, %v10230
        %v10232 = vrot.slane %v9789, 1
        %v10233 = vsel %vm9956, %v10230, %v10232
        %v10234 = vrot.slane %v9790, 1
        %v10235 = vsel %vm9956, %v10232, %v10234
        %v10236 = vrot.slane %v9791, 1
        %v10237 = vrot.slane %v9792, 1
        %v10238 = vsel %vm9956, %v10236, %v10237
        %v10239 = vrot.slane %v9793, 1
        %v10240 = vsel %vm9956, %v10237, %v10239
        %v10241 = vrot.slane %v9794, 1
        %v10242 = vsel %vm9956, %v10239, %v10241
        %v10243 = vrot.slane %v9795, 1
        %v10244 = vsel %vm9956, %v10241, %v10243
        %v10245 = vld [vmem:[%s1] sm:$0xff]
        %v10246 = vld [vmem:[%s2] sm:$0xff]
        %10248 = vset.pattern.permute.xlu0 0
        %10249 = vperm.xlu0 %10248, %v10246
        %v10250 = vpop.permute.xlu0 %10249
        %vm10252 = vcmask 293888
        %v10254 = vsel %vm10252, %v10245, 0
        %v10256 = vsel %vm10252, %v9959, 0
        %v10258 = vsel %vm10252, %v9961, 0
        %v10260 = vsel %vm10252, %v9963, 0
        %v10262 = vsel %vm10252, %v9965, 0
        %v10264 = vsel %vm10252, %v9968, 0
        %v10266 = vsel %vm10252, %v9970, 0
        %v10268 = vsel %vm10252, %v9972, 0
        %v10270 = vsel %vm10252, %v9974, 0
        %v10272 = vsel %vm10252, %v9977, 0
        %v10274 = vsel %vm10252, %v9979, 0
        %v10276 = vsel %vm10252, %v9981, 0
        %v10278 = vsel %vm10252, %v9983, 0
        %v10280 = vsel %vm10252, %v9986, 0
        %v10282 = vsel %vm10252, %v9988, 0
        %v10284 = vsel %vm10252, %v9990, 0
        %v10286 = vsel %vm10252, %v9992, 0
        %v10288 = vsel %vm10252, %v9995, 0
        %v10290 = vsel %vm10252, %v9997, 0
        %v10292 = vsel %vm10252, %v9999, 0
        %v10294 = vsel %vm10252, %v10001, 0
        %v10296 = vsel %vm10252, %v10004, 0
        %v10298 = vsel %vm10252, %v10006, 0
        %v10300 = vsel %vm10252, %v10008, 0
        %v10302 = vsel %vm10252, %v10010, 0
        %v10304 = vsel %vm10252, %v10013, 0
        %v10306 = vsel %vm10252, %v10015, 0
        %v10308 = vsel %vm10252, %v10017, 0
        %v10310 = vsel %vm10252, %v10019, 0
        %v10312 = vsel %vm10252, %v10022, 0
        %v10314 = vsel %vm10252, %v10024, 0
        %v10316 = vsel %vm10252, %v10026, 0
        %v10318 = vsel %vm10252, %v10028, 0
        %v10320 = vsel %vm10252, %v10031, 0
        %v10322 = vsel %vm10252, %v10033, 0
        %v10324 = vsel %vm10252, %v10035, 0
        %v10326 = vsel %vm10252, %v10037, 0
        %v10328 = vsel %vm10252, %v10040, 0
        %v10330 = vsel %vm10252, %v10042, 0
        %v10332 = vsel %vm10252, %v10044, 0
        %v10334 = vsel %vm10252, %v10046, 0
        %v10336 = vsel %vm10252, %v10049, 0
        %v10338 = vsel %vm10252, %v10051, 0
        %v10340 = vsel %vm10252, %v10053, 0
        %v10342 = vsel %vm10252, %v10055, 0
        %v10344 = vsel %vm10252, %v10058, 0
        %v10346 = vsel %vm10252, %v10060, 0
        %v10348 = vsel %vm10252, %v10062, 0
        %v10350 = vsel %vm10252, %v10064, 0
        %v10352 = vsel %vm10252, %v10067, 0
        %v10354 = vsel %vm10252, %v10069, 0
        %v10356 = vsel %vm10252, %v10071, 0
        %v10358 = vsel %vm10252, %v10073, 0
        %v10360 = vsel %vm10252, %v10076, 0
        %v10362 = vsel %vm10252, %v10078, 0
        %v10364 = vsel %vm10252, %v10080, 0
        %v10366 = vsel %vm10252, %v10082, 0
        %v10368 = vsel %vm10252, %v10085, 0
        %v10370 = vsel %vm10252, %v10087, 0
        %v10372 = vsel %vm10252, %v10089, 0
        %v10374 = vsel %vm10252, %v10091, 0
        %v10376 = vsel %vm10252, %v10094, 0
        %v10378 = vsel %vm10252, %v10096, 0
        %v10380 = vsel %vm10252, %v10098, 0
        %v10382 = vsel %vm10252, %v10100, 0
        %v10384 = vsel %vm10252, %v10103, 0
        %v10386 = vsel %vm10252, %v10105, 0
        %v10388 = vsel %vm10252, %v10107, 0
        %v10390 = vsel %vm10252, %v10109, 0
        %v10392 = vsel %vm10252, %v10112, 0
        %v10394 = vsel %vm10252, %v10114, 0
        %v10396 = vsel %vm10252, %v10116, 0
        %v10398 = vsel %vm10252, %v10118, 0
        %v10400 = vsel %vm10252, %v10121, 0
        %v10402 = vsel %vm10252, %v10123, 0
        %v10404 = vsel %vm10252, %v10125, 0
        %v10406 = vsel %vm10252, %v10127, 0
        %v10408 = vsel %vm10252, %v10130, 0
        %v10410 = vsel %vm10252, %v10132, 0
        %v10412 = vsel %vm10252, %v10134, 0
        %v10414 = vsel %vm10252, %v10136, 0
        %v10416 = vsel %vm10252, %v10139, 0
        %v10418 = vsel %vm10252, %v10141, 0
        %v10420 = vsel %vm10252, %v10143, 0
        %v10422 = vsel %vm10252, %v10145, 0
        %v10424 = vsel %vm10252, %v10148, 0
        %v10426 = vsel %vm10252, %v10150, 0
        %v10428 = vsel %vm10252, %v10152, 0
        %v10430 = vsel %vm10252, %v10154, 0
        %v10432 = vsel %vm10252, %v10157, 0
        %v10434 = vsel %vm10252, %v10159, 0
        %v10436 = vsel %vm10252, %v10161, 0
        %v10438 = vsel %vm10252, %v10163, 0
        %v10440 = vsel %vm10252, %v10166, 0
        %v10442 = vsel %vm10252, %v10168, 0
        %v10444 = vsel %vm10252, %v10170, 0
        %v10446 = vsel %vm10252, %v10172, 0
        %v10448 = vsel %vm10252, %v10175, 0
        %v10450 = vsel %vm10252, %v10177, 0
        %v10452 = vsel %vm10252, %v10179, 0
        %v10454 = vsel %vm10252, %v10181, 0
        %v10456 = vsel %vm10252, %v10184, 0
        %v10458 = vsel %vm10252, %v10186, 0
        %v10460 = vsel %vm10252, %v10188, 0
        %v10462 = vsel %vm10252, %v10190, 0
        %v10464 = vsel %vm10252, %v10193, 0
        %v10466 = vsel %vm10252, %v10195, 0
        %v10468 = vsel %vm10252, %v10197, 0
        %v10470 = vsel %vm10252, %v10199, 0
        %v10472 = vsel %vm10252, %v10202, 0
        %v10474 = vsel %vm10252, %v10204, 0
        %v10476 = vsel %vm10252, %v10206, 0
        %v10478 = vsel %vm10252, %v10208, 0
        %v10480 = vsel %vm10252, %v10211, 0
        %v10482 = vsel %vm10252, %v10213, 0
        %v10484 = vsel %vm10252, %v10215, 0
        %v10486 = vsel %vm10252, %v10217, 0
        %v10488 = vsel %vm10252, %v10220, 0
        %v10490 = vsel %vm10252, %v10222, 0
        %v10492 = vsel %vm10252, %v10224, 0
        %v10494 = vsel %vm10252, %v10226, 0
        %v10496 = vsel %vm10252, %v10229, 0
        %v10498 = vsel %vm10252, %v10231, 0
        %v10500 = vsel %vm10252, %v10233, 0
        %v10502 = vsel %vm10252, %v10235, 0
        %v10504 = vsel %vm10252, %v10238, 0
        %v10506 = vsel %vm10252, %v10240, 0
        %v10508 = vsel %vm10252, %v10242, 0
        %v10510 = vsel %vm10252, %v10244, 0
        %10512 = vmatprep.subr.mxu0 0.0
        %10513 = vmatpush1.xpose.msra.mxu0 %v10256
        %10514 = vmatprep.subr.mxu0 0.0
        %10515 = vmatpush1.xpose.msra.mxu0 %v10258
        %10516 = vmatprep.subr.mxu0 0.0
        %10517 = vmatpush1.xpose.msra.mxu0 %v10260
        %10518 = vmatprep.subr.mxu0 0.0
        %10519 = vmatpush1.xpose.msra.mxu0 %v10262
        %10520 = vmatprep.subr.mxu0 0.0
        %10521 = vmatpush1.xpose.msra.mxu0 %v10264
        %10522 = vmatprep.subr.mxu0 0.0
        %10523 = vmatpush1.xpose.msra.mxu0 %v10266
        %10524 = vmatprep.subr.mxu0 0.0
        %10525 = vmatpush1.xpose.msra.mxu0 %v10268
        %10526 = vmatprep.subr.mxu0 0.0
        %10527 = vmatpush1.xpose.msra.mxu0 %v10270
        %10528 = vmatprep.subr.mxu0 0.0
        %10529 = vmatpush1.xpose.msra.mxu0 %v10272
        %10530 = vmatprep.subr.mxu0 0.0
        %10531 = vmatpush1.xpose.msra.mxu0 %v10274
        %10532 = vmatprep.subr.mxu0 0.0
        %10533 = vmatpush1.xpose.msra.mxu0 %v10276
        %10534 = vmatprep.subr.mxu0 0.0
        %10535 = vmatpush1.xpose.msra.mxu0 %v10278
        %10536 = vmatprep.subr.mxu0 0.0
        %10537 = vmatpush1.xpose.msra.mxu0 %v10280
        %10538 = vmatprep.subr.mxu0 0.0
        %10539 = vmatpush1.xpose.msra.mxu0 %v10282
        %10540 = vmatprep.subr.mxu0 0.0
        %10541 = vmatpush1.xpose.msra.mxu0 %v10284
        %10542 = vmatprep.subr.mxu0 0.0
        %10543 = vmatpush1.xpose.msra.mxu0 %v10286
        %10544 = vmatprep.subr.mxu0 0.0
        %10545 = vmatpush1.xpose.msra.mxu0 %v10288
        %10546 = vmatprep.subr.mxu0 0.0
        %10547 = vmatpush1.xpose.msra.mxu0 %v10290
        %10548 = vmatprep.subr.mxu0 0.0
        %10549 = vmatpush1.xpose.msra.mxu0 %v10292
        %10550 = vmatprep.subr.mxu0 0.0
        %10551 = vmatpush1.xpose.msra.mxu0 %v10294
        %10552 = vmatprep.subr.mxu0 0.0
        %10553 = vmatpush1.xpose.msra.mxu0 %v10296
        %10554 = vmatprep.subr.mxu0 0.0
        %10555 = vmatpush1.xpose.msra.mxu0 %v10298
        %10556 = vmatprep.subr.mxu0 0.0
        %10557 = vmatpush1.xpose.msra.mxu0 %v10300
        %10558 = vmatprep.subr.mxu0 0.0
        %10559 = vmatpush1.xpose.msra.mxu0 %v10302
        %10560 = vmatprep.subr.mxu0 0.0
        %10561 = vmatpush1.xpose.msra.mxu0 %v10304
        %10562 = vmatprep.subr.mxu0 0.0
        %10563 = vmatpush1.xpose.msra.mxu0 %v10306
        %10564 = vmatprep.subr.mxu0 0.0
        %10565 = vmatpush1.xpose.msra.mxu0 %v10308
        %10566 = vmatprep.subr.mxu0 0.0
        %10567 = vmatpush1.xpose.msra.mxu0 %v10310
        %10568 = vmatprep.subr.mxu0 0.0
        %10569 = vmatpush1.xpose.msra.mxu0 %v10312
        %10570 = vmatprep.subr.mxu0 0.0
        %10571 = vmatpush1.xpose.msra.mxu0 %v10314
        %10572 = vmatprep.subr.mxu0 0.0
        %10573 = vmatpush1.xpose.msra.mxu0 %v10316
        %10574 = vmatprep.subr.mxu0 0.0
        %10575 = vmatpush1.xpose.msra.mxu0 %v10318
        %10576 = vmatprep.mubr.f32.mxu0 0.0
        %10577 = vmatmul.mubr.f32.gmra.mrb[0].mxu0 %v10254
        %v10578 = vpop.f32.mrb[0].mxu0
        %v10579 = vadd.f32 %v10250, %v10578
        %v10580 = vpop.f32.mrb[0].mxu0
        %v10581 = vadd.f32 %v10250, %v10580
        %10582 = vdwg.mxu0
        %10583 = vmatprep.subr.mxu0 0.0
        %10584 = vmatpush1.xpose.msra.mxu0 %v10320
        %10585 = vmatprep.subr.mxu0 0.0
        %10586 = vmatpush1.xpose.msra.mxu0 %v10322
        %10587 = vmatprep.subr.mxu0 0.0
        %10588 = vmatpush1.xpose.msra.mxu0 %v10324
        %10589 = vmatprep.subr.mxu0 0.0
        %10590 = vmatpush1.xpose.msra.mxu0 %v10326
        %10591 = vmatprep.subr.mxu0 0.0
        %10592 = vmatpush1.xpose.msra.mxu0 %v10328
        %10593 = vmatprep.subr.mxu0 0.0
        %10594 = vmatpush1.xpose.msra.mxu0 %v10330
        %10595 = vmatprep.subr.mxu0 0.0
        %10596 = vmatpush1.xpose.msra.mxu0 %v10332
        %10597 = vmatprep.subr.mxu0 0.0
        %10598 = vmatpush1.xpose.msra.mxu0 %v10334
        %10599 = vmatprep.subr.mxu0 0.0
        %10600 = vmatpush1.xpose.msra.mxu0 %v10336
        %10601 = vmatprep.subr.mxu0 0.0
        %10602 = vmatpush1.xpose.msra.mxu0 %v10338
        %10603 = vmatprep.subr.mxu0 0.0
        %10604 = vmatpush1.xpose.msra.mxu0 %v10340
        %10605 = vmatprep.subr.mxu0 0.0
        %10606 = vmatpush1.xpose.msra.mxu0 %v10342
        %10607 = vmatprep.subr.mxu0 0.0
        %10608 = vmatpush1.xpose.msra.mxu0 %v10344
        %10609 = vmatprep.subr.mxu0 0.0
        %10610 = vmatpush1.xpose.msra.mxu0 %v10346
        %10611 = vmatprep.subr.mxu0 0.0
        %10612 = vmatpush1.xpose.msra.mxu0 %v10348
        %10613 = vmatprep.subr.mxu0 0.0
        %10614 = vmatpush1.xpose.msra.mxu0 %v10350
        %10615 = vmatprep.subr.mxu0 0.0
        %10616 = vmatpush1.xpose.msra.mxu0 %v10352
        %10617 = vmatprep.subr.mxu0 0.0
        %10618 = vmatpush1.xpose.msra.mxu0 %v10354
        %10619 = vmatprep.subr.mxu0 0.0
        %10620 = vmatpush1.xpose.msra.mxu0 %v10356
        %10621 = vmatprep.subr.mxu0 0.0
        %10622 = vmatpush1.xpose.msra.mxu0 %v10358
        %10623 = vmatprep.subr.mxu0 0.0
        %10624 = vmatpush1.xpose.msra.mxu0 %v10360
        %10625 = vmatprep.subr.mxu0 0.0
        %10626 = vmatpush1.xpose.msra.mxu0 %v10362
        %10627 = vmatprep.subr.mxu0 0.0
        %10628 = vmatpush1.xpose.msra.mxu0 %v10364
        %10629 = vmatprep.subr.mxu0 0.0
        %10630 = vmatpush1.xpose.msra.mxu0 %v10366
        %10631 = vmatprep.subr.mxu0 0.0
        %10632 = vmatpush1.xpose.msra.mxu0 %v10368
        %10633 = vmatprep.subr.mxu0 0.0
        %10634 = vmatpush1.xpose.msra.mxu0 %v10370
        %10635 = vmatprep.subr.mxu0 0.0
        %10636 = vmatpush1.xpose.msra.mxu0 %v10372
        %10637 = vmatprep.subr.mxu0 0.0
        %10638 = vmatpush1.xpose.msra.mxu0 %v10374
        %10639 = vmatprep.subr.mxu0 0.0
        %10640 = vmatpush1.xpose.msra.mxu0 %v10376
        %10641 = vmatprep.subr.mxu0 0.0
        %10642 = vmatpush1.xpose.msra.mxu0 %v10378
        %10643 = vmatprep.subr.mxu0 0.0
        %10644 = vmatpush1.xpose.msra.mxu0 %v10380
        %10645 = vmatprep.subr.mxu0 0.0
        %10646 = vmatpush1.xpose.msra.mxu0 %v10382
        %10647 = vmatprep.mubr.f32.mxu0 0.0
        %10648 = vmatmul.mubr.f32.gmra.mrb[0].mxu0 %v10254
        %v10649 = vpop.f32.mrb[0].mxu0
        %v10650 = vadd.f32 %v10250, %v10649
        %v10651 = vpop.f32.mrb[0].mxu0
        %v10652 = vadd.f32 %v10250, %v10651
        %10653 = vdwg.mxu0
        %10654 = vmatprep.subr.mxu0 0.0
        %10655 = vmatpush1.xpose.msra.mxu0 %v10384
        %10656 = vmatprep.subr.mxu0 0.0
        %10657 = vmatpush1.xpose.msra.mxu0 %v10386
        %10658 = vmatprep.subr.mxu0 0.0
        %10659 = vmatpush1.xpose.msra.mxu0 %v10388
        %10660 = vmatprep.subr.mxu0 0.0
        %10661 = vmatpush1.xpose.msra.mxu0 %v10390
        %10662 = vmatprep.subr.mxu0 0.0
        %10663 = vmatpush1.xpose.msra.mxu0 %v10392
        %10664 = vmatprep.subr.mxu0 0.0
        %10665 = vmatpush1.xpose.msra.mxu0 %v10394
        %10666 = vmatprep.subr.mxu0 0.0
        %10667 = vmatpush1.xpose.msra.mxu0 %v10396
        %10668 = vmatprep.subr.mxu0 0.0
        %10669 = vmatpush1.xpose.msra.mxu0 %v10398
        %10670 = vmatprep.subr.mxu0 0.0
        %10671 = vmatpush1.xpose.msra.mxu0 %v10400
        %10672 = vmatprep.subr.mxu0 0.0
        %10673 = vmatpush1.xpose.msra.mxu0 %v10402
        %10674 = vmatprep.subr.mxu0 0.0
        %10675 = vmatpush1.xpose.msra.mxu0 %v10404
        %10676 = vmatprep.subr.mxu0 0.0
        %10677 = vmatpush1.xpose.msra.mxu0 %v10406
        %10678 = vmatprep.subr.mxu0 0.0
        %10679 = vmatpush1.xpose.msra.mxu0 %v10408
        %10680 = vmatprep.subr.mxu0 0.0
        %10681 = vmatpush1.xpose.msra.mxu0 %v10410
        %10682 = vmatprep.subr.mxu0 0.0
        %10683 = vmatpush1.xpose.msra.mxu0 %v10412
        %10684 = vmatprep.subr.mxu0 0.0
        %10685 = vmatpush1.xpose.msra.mxu0 %v10414
        %10686 = vmatprep.subr.mxu0 0.0
        %10687 = vmatpush1.xpose.msra.mxu0 %v10416
        %10688 = vmatprep.subr.mxu0 0.0
        %10689 = vmatpush1.xpose.msra.mxu0 %v10418
        %10690 = vmatprep.subr.mxu0 0.0
        %10691 = vmatpush1.xpose.msra.mxu0 %v10420
        %10692 = vmatprep.subr.mxu0 0.0
        %10693 = vmatpush1.xpose.msra.mxu0 %v10422
        %10694 = vmatprep.subr.mxu0 0.0
        %10695 = vmatpush1.xpose.msra.mxu0 %v10424
        %10696 = vmatprep.subr.mxu0 0.0
        %10697 = vmatpush1.xpose.msra.mxu0 %v10426
        %10698 = vmatprep.subr.mxu0 0.0
        %10699 = vmatpush1.xpose.msra.mxu0 %v10428
        %10700 = vmatprep.subr.mxu0 0.0
        %10701 = vmatpush1.xpose.msra.mxu0 %v10430
        %10702 = vmatprep.subr.mxu0 0.0
        %10703 = vmatpush1.xpose.msra.mxu0 %v10432
        %10704 = vmatprep.subr.mxu0 0.0
        %10705 = vmatpush1.xpose.msra.mxu0 %v10434
        %10706 = vmatprep.subr.mxu0 0.0
        %10707 = vmatpush1.xpose.msra.mxu0 %v10436
        %10708 = vmatprep.subr.mxu0 0.0
        %10709 = vmatpush1.xpose.msra.mxu0 %v10438
        %10710 = vmatprep.subr.mxu0 0.0
        %10711 = vmatpush1.xpose.msra.mxu0 %v10440
        %10712 = vmatprep.subr.mxu0 0.0
        %10713 = vmatpush1.xpose.msra.mxu0 %v10442
        %10714 = vmatprep.subr.mxu0 0.0
        %10715 = vmatpush1.xpose.msra.mxu0 %v10444
        %10716 = vmatprep.subr.mxu0 0.0
        %10717 = vmatpush1.xpose.msra.mxu0 %v10446
        %10718 = vmatprep.mubr.f32.mxu0 0.0
        %10719 = vmatmul.mubr.f32.gmra.mrb[0].mxu0 %v10254
        %v10720 = vpop.f32.mrb[0].mxu0
        %v10721 = vadd.f32 %v10250, %v10720
        %v10722 = vpop.f32.mrb[0].mxu0
        %v10723 = vadd.f32 %v10250, %v10722
        %10724 = vdwg.mxu0
        %10725 = vmatprep.subr.mxu0 0.0
        %10726 = vmatpush1.xpose.msra.mxu0 %v10448
        %10727 = vmatprep.subr.mxu0 0.0
        %10728 = vmatpush1.xpose.msra.mxu0 %v10450
        %10729 = vmatprep.subr.mxu0 0.0
        %10730 = vmatpush1.xpose.msra.mxu0 %v10452
        %10731 = vmatprep.subr.mxu0 0.0
        %10732 = vmatpush1.xpose.msra.mxu0 %v10454
        %10733 = vmatprep.subr.mxu0 0.0
        %10734 = vmatpush1.xpose.msra.mxu0 %v10456
        %10735 = vmatprep.subr.mxu0 0.0
        %10736 = vmatpush1.xpose.msra.mxu0 %v10458
        %10737 = vmatprep.subr.mxu0 0.0
        %10738 = vmatpush1.xpose.msra.mxu0 %v10460
        %10739 = vmatprep.subr.mxu0 0.0
        %10740 = vmatpush1.xpose.msra.mxu0 %v10462
        %10741 = vmatprep.subr.mxu0 0.0
        %10742 = vmatpush1.xpose.msra.mxu0 %v10464
        %10743 = vmatprep.subr.mxu0 0.0
        %10744 = vmatpush1.xpose.msra.mxu0 %v10466
        %10745 = vmatprep.subr.mxu0 0.0
        %10746 = vmatpush1.xpose.msra.mxu0 %v10468
        %10747 = vmatprep.subr.mxu0 0.0
        %10748 = vmatpush1.xpose.msra.mxu0 %v10470
        %10749 = vmatprep.subr.mxu0 0.0
        %10750 = vmatpush1.xpose.msra.mxu0 %v10472
        %10751 = vmatprep.subr.mxu0 0.0
        %10752 = vmatpush1.xpose.msra.mxu0 %v10474
        %10753 = vmatprep.subr.mxu0 0.0
        %10754 = vmatpush1.xpose.msra.mxu0 %v10476
        %10755 = vmatprep.subr.mxu0 0.0
        %10756 = vmatpush1.xpose.msra.mxu0 %v10478
        %10757 = vmatprep.subr.mxu0 0.0
        %10758 = vmatpush1.xpose.msra.mxu0 %v10480
        %10759 = vmatprep.subr.mxu0 0.0
        %10760 = vmatpush1.xpose.msra.mxu0 %v10482
        %10761 = vmatprep.subr.mxu0 0.0
        %10762 = vmatpush1.xpose.msra.mxu0 %v10484
        %10763 = vmatprep.subr.mxu0 0.0
        %10764 = vmatpush1.xpose.msra.mxu0 %v10486
        %10765 = vmatprep.subr.mxu0 0.0
        %10766 = vmatpush1.xpose.msra.mxu0 %v10488
        %10767 = vmatprep.subr.mxu0 0.0
        %10768 = vmatpush1.xpose.msra.mxu0 %v10490
        %10769 = vmatprep.subr.mxu0 0.0
        %10770 = vmatpush1.xpose.msra.mxu0 %v10492
        %10771 = vmatprep.subr.mxu0 0.0
        %10772 = vmatpush1.xpose.msra.mxu0 %v10494
        %10773 = vmatprep.subr.mxu0 0.0
        %10774 = vmatpush1.xpose.msra.mxu0 %v10496
        %10775 = vmatprep.subr.mxu0 0.0
        %10776 = vmatpush1.xpose.msra.mxu0 %v10498
        %10777 = vmatprep.subr.mxu0 0.0
        %10778 = vmatpush1.xpose.msra.mxu0 %v10500
        %10779 = vmatprep.subr.mxu0 0.0
        %10780 = vmatpush1.xpose.msra.mxu0 %v10502
        %10781 = vmatprep.subr.mxu0 0.0
        %10782 = vmatpush1.xpose.msra.mxu0 %v10504
        %10783 = vmatprep.subr.mxu0 0.0
        %10784 = vmatpush1.xpose.msra.mxu0 %v10506
        %10785 = vmatprep.subr.mxu0 0.0
        %10786 = vmatpush1.xpose.msra.mxu0 %v10508
        %10787 = vmatprep.subr.mxu0 0.0
        %10788 = vmatpush1.xpose.msra.mxu0 %v10510
        %10789 = vmatprep.mubr.f32.mxu0 0.0
        %10790 = vmatmul.mubr.f32.gmra.mrb[0].mxu0 %v10254
        %v10791 = vpop.f32.mrb[0].mxu0
        %v10792 = vadd.f32 %v10250, %v10791
        %v10793 = vpop.f32.mrb[0].mxu0
        %v10794 = vadd.f32 %v10250, %v10793
        %10795 = vdwg.mxu0
        %10796 = vst [vmem:[%s177] sm:$0xff] %v10579
        %10797 = vst [vmem:[%s177 + $0x8] sm:$0xff] %v10581
        %10798 = vst [vmem:[%s177 + $0x10] sm:$0xff] %v10650
        %10799 = vst [vmem:[%s177 + $0x18] sm:$0xff] %v10652
        %10800 = vst [vmem:[%s177 + $0x20] sm:$0xff] %v10721
        %10801 = vst [vmem:[%s177 + $0x28] sm:$0xff] %v10723
        %10802 = vst [vmem:[%s177 + $0x30] sm:$0xff] %v10792
        %10803 = vst [vmem:[%s177 + $0x38] sm:$0xff] %v10794
        %s10804 = sand.u32 %s107, 1
        %s10805 = scalar_lea.sflag [#allocation3], %s10804
        %s10806 = sand.u32 %s107, 1
        %s10807 = smul.addr %s10806, 64
        %s10808 = scalar_lea.vmem [#allocation2], %s10807
        // Predicated region
        $region33: #{tpu_custom_call.1} parent=31 // pred_check
          %p10809 = pneg %p117
        $region34: #{tpu_custom_call.1} parent=31 // pred_check_branch
          %10811 = sbr.rel (%p10809) target = $region36
        $region35: #{tpu_custom_call.1} parent=31 // pred_region
          %s10812 = smul.u32 8, %s22
          %s10814 = ssub.s32 1024, 1024
          %10815 = vsyncadd %s10805, %s10814
          %s10816 = smul.addr %s21, 8
          %s10817 = sadd.s32 %s10812, %s10816
          %s10818 = smul.addr %s10817, 128
          %s10819 = scalar_lea.hbm %s3, %s10818
          %s10821 = sshll.u32 %s10808, 4
          %s10822 = int_to_ptr.vmem [resolvable:$true] %s10821
          %10824 = dma.vmem_to_hbm [thread:$0]  %s10822, 1024, %s10819, %s10805
        $region36: #{tpu_custom_call.1} parent=31 // pred_fallthru
          _
      $region32: #{tpu_custom_call.1} parent=5 // pred_fallthru
        _
      %p10825 = scmp.le.s32.totalorder 2, %s12
      // Predicated region
      $region37: #{tpu_custom_call.1} parent=5 // pred_check
        %p10826 = pneg %p10825
      $region38: #{tpu_custom_call.1} parent=5 // pred_check_branch
        %10828 = sbr.rel (%p10826) target = $region40
      $region39: #{tpu_custom_call.1} parent=5 // pred_region
        %s10829 = ssub.s32 %s12, 2
        // Predicated region
        $region41: #{tpu_custom_call.1} parent=39 // pred_check
          %p10830 = pneg %p123
        $region42: #{tpu_custom_call.1} parent=39 // pred_check_branch
          %10832 = sbr.rel (%p10830) target = $region44
        $region43: #{tpu_custom_call.1} parent=39 // pred_region
          %s10833 = sand.u32 %s108, 1
          %s10834 = scalar_lea.sflag [#allocation3], %s10833
          %s10835 = sand.u32 %s108, 1
          %s10836 = smul.addr %s10835, 64
          %s10837 = scalar_lea.vmem [#allocation2], %s10836
          %10838 = dma.done %s10834, 1024
        $region44: #{tpu_custom_call.1} parent=39 // pred_fallthru
          _
      $region40: #{tpu_custom_call.1} parent=5 // pred_fallthru
        _
    $region6: #{tpu_custom_call.1} parent=1 // loop_footer
      %s16 = sadd.s32 1, %s12
    $region7: #{tpu_custom_call.1} parent=1 // loop_footer_branch
      %11 = sbr.rel target = $region3
    $region8: #{tpu_custom_call.1} parent=1 // loop_exit
      _
    %10839 = vsyncpa [#allocation3], 1
    %s10840 = scalar_lea.sflag [#allocation3], 1
    %10841 = vsyncpa %s10840, 1

</llo_original>
